<compile_context>
chip_gen: v7x
topology: tpu7x:2x2x1
jax: 0.10.0
libtpu: 0.0.40
codegen_flags: <defaults>
</compile_context>

<pallas_src>
import functools

import jax
import jax.numpy as jnp
from jax import lax
from jax.experimental import pallas as pl
from jax.experimental.pallas import tpu as pltpu

SMEM = pltpu.MemorySpace.SMEM


def _pick_tile(hw, target=2048):
    """Largest divisor of hw that is a multiple of 128 and <= target, else full hw.

    Keeps blocks lane-dense while staying well inside the scoped-VMEM budget of all
    generations (v5e 16 MiB / v6e 32 MiB / v7x 64 MiB physical) with double buffering.
    """
    best = None
    d = 128
    lim = min(hw, target)
    while d <= lim:
        if hw % d == 0:
            best = d
        d += 128
    return best if best is not None else hw


# ---------------------------------------------------------------------------
# Kernel 1: composition + hole / valid L1 partial sums (tiled, fused)
# ---------------------------------------------------------------------------
def _masked_loss_kernel(mask_ref, inp_ref, out_ref, gt_ref, comp_ref, sums_ref):
    @pl.when(pl.program_id(0) == 0)
    def _init():
        sums_ref[0] = 0.0
        sums_ref[1] = 0.0

    m = mask_ref[...]                       # (N, 1, T) -> broadcast over C in-kernel
    o = out_ref[...]                        # (N, 3, T)
    g = gt_ref[...]
    om = 1.0 - m
    comp_ref[...] = m * inp_ref[...] + om * o
    sums_ref[0] += jnp.sum(jnp.abs(om * o - om * g))    # hole-loss numerator
    sums_ref[1] += jnp.sum(jnp.abs(m * o - m * g))      # valid-loss numerator


def masked_losses(mask, inp, out, gt):
    """Returns (output_comp as (N,3,H*W), holeLoss, validAreaLoss)."""
    n, c, h, w = inp.shape
    hw = h * w
    t = _pick_tile(hw)
    r3 = lambda a: a.reshape(n, c, hw)
    img_spec = pl.BlockSpec((n, c, t), lambda i: (0, 0, i))
    comp, sums = pl.pallas_call(
        _masked_loss_kernel,
        grid=(hw // t,),
        out_shape=(jax.ShapeDtypeStruct((n, c, hw), jnp.float32),
                   jax.ShapeDtypeStruct((2,), jnp.float32)),
        in_specs=[pl.BlockSpec((n, 1, t), lambda i: (0, 0, i)),
                  img_spec, img_spec, img_spec],
        out_specs=(img_spec, pl.BlockSpec(memory_space=SMEM)),
        compiler_params=pltpu.CompilerParams(dimension_semantics=("arbitrary",)),
    )(mask.reshape(n, 1, hw), r3(inp), r3(out), r3(gt))
    nelem = float(n * c * hw)
    hole_loss = 6.0 * sums[0] / nelem       # 6 * L1((1-m)*out, (1-m)*gt), mean reduction
    valid_loss = sums[1] / nelem            # L1(m*out, m*gt), mean reduction
    return comp, hole_loss, valid_loss


# ---------------------------------------------------------------------------
# Kernel 2: channel-major 1x1-conv (+ activation) for the three roles at once
# ---------------------------------------------------------------------------
def _conv3_kernel(x0_ref, x1_ref, x2_ref, w_ref, b_ref, y0_ref, y1_ref, y2_ref, *, act):
    wgt = w_ref[...]                        # (Cout, Cin), resident across the grid
    b = b_ref[...]                          # (Cout, 1)
    for x_ref, y_ref in ((x0_ref, y0_ref), (x1_ref, y1_ref), (x2_ref, y2_ref)):
        y = jnp.dot(wgt, x_ref[0], preferred_element_type=jnp.float32) + b
        if act == "relu":
            y = jnp.maximum(y, 0.0)
        elif act == "lrelu":
            y = jnp.where(y > 0.0, y, 0.2 * y)
        y_ref[0] = y


def conv1x1_relu_3(xs, w, b, act="relu"):
    """xs: 3 arrays (output / comp / gt role), each (N, Cin, HW) -> 3 x (N, Cout, HW)."""
    n, cin, hw = xs[0].shape
    cout = w.shape[0]
    t = _pick_tile(hw)
    x_spec = pl.BlockSpec((1, cin, t), lambda i, j: (i, 0, j))
    y_spec = pl.BlockSpec((1, cout, t), lambda i, j: (i, 0, j))
    y_shape = jax.ShapeDtypeStruct((n, cout, hw), jnp.float32)
    return pl.pallas_call(
        functools.partial(_conv3_kernel, act=act),
        grid=(n, hw // t),
        out_shape=(y_shape, y_shape, y_shape),
        in_specs=[x_spec, x_spec, x_spec,
                  pl.BlockSpec((cout, cin), lambda i, j: (0, 0)),
                  pl.BlockSpec((cout, 1), lambda i, j: (0, 0))],
        out_specs=(y_spec, y_spec, y_spec),
        compiler_params=pltpu.CompilerParams(
            dimension_semantics=("parallel", "parallel")),
    )(xs[0], xs[1], xs[2], w, b)


# ---------------------------------------------------------------------------
# Kernel 3: per-level feature statistics: 3 gram matrices + 2 perceptual L1 sums
# ---------------------------------------------------------------------------
def _feature_stats_kernel(fo_ref, fc_ref, fg_ref, gram_ref, sums_ref, *, inv_chw):
    i = pl.program_id(0)
    j = pl.program_id(1)

    @pl.when(jnp.logical_and(i == 0, j == 0))
    def _init_sums():
        sums_ref[0] = 0.0
        sums_ref[1] = 0.0

    @pl.when(j == 0)
    def _init_gram():
        gram_ref[...] = jnp.zeros_like(gram_ref)

    fo = fo_ref[0]                          # (C, T)
    fc = fc_ref[0]
    fg = fg_ref[0]
    dn = (((1,), (1,)), ((), ()))           # contract over HW, no transpose materialized
    gram_ref[0, 0] += lax.dot_general(fo, fo, dn, preferred_element_type=jnp.float32)
    gram_ref[1, 0] += lax.dot_general(fc, fc, dn, preferred_element_type=jnp.float32)
    gram_ref[2, 0] += lax.dot_general(fg, fg, dn, preferred_element_type=jnp.float32)
    sums_ref[0] += jnp.sum(jnp.abs(fo - fg))
    sums_ref[1] += jnp.sum(jnp.abs(fc - fg))

    @pl.when(j == pl.num_programs(1) - 1)
    def _finalize():
        gram_ref[...] = gram_ref[...] * inv_chw     # gram / (ch * h * w)


def feature_stats(fo, fc, fg):
    """Inputs: 3 feature maps (N, C, HW). Returns (grams (3,N,C,C), l1sums (2,))."""
    n, c, hw = fo.shape
    t = _pick_tile(hw)
    f_spec = pl.BlockSpec((1, c, t), lambda i, j: (i, 0, j))
    grams, sums = pl.pallas_call(
        functools.partial(_feature_stats_kernel, inv_chw=1.0 / float(c * hw)),
        grid=(n, hw // t),
        out_shape=(jax.ShapeDtypeStruct((3, n, c, c), jnp.float32),
                   jax.ShapeDtypeStruct((2,), jnp.float32)),
        in_specs=[f_spec, f_spec, f_spec],
        out_specs=(pl.BlockSpec((3, 1, c, c), lambda i, j: (0, i, 0, 0)),
                   pl.BlockSpec(memory_space=SMEM)),
        compiler_params=pltpu.CompilerParams(
            dimension_semantics=("arbitrary", "arbitrary")),
    )(fo, fc, fg)
    return grams, sums


# ---------------------------------------------------------------------------
# Kernel 4: fully fused synthetic DiscriminatorDoubleColumn(3) -> mean score
# ---------------------------------------------------------------------------
def _disc_kernel(img_ref, mask_ref, w1m_ref, w1u_ref, b1_ref,
                 w2_ref, b2_ref, w3_ref, b3_ref, sum_ref):
    @pl.when(jnp.logical_and(pl.program_id(0) == 0, pl.program_id(1) == 0))
    def _init():
        sum_ref[0] = 0.0

    x = img_ref[0]                          # (3, T)
    m = mask_ref[0]                         # (1, T)
    # two-column input (masked / unmasked region) built in-kernel, no HBM concat
    h = (jnp.dot(w1m_ref[...], x * m, preferred_element_type=jnp.float32)
         + jnp.dot(w1u_ref[...], x * (1.0 - m), preferred_element_type=jnp.float32)
         + b1_ref[...])
    h = jnp.where(h > 0.0, h, 0.2 * h)
    h = jnp.dot(w2_ref[...], h, preferred_element_type=jnp.float32) + b2_ref[...]
    h = jnp.where(h > 0.0, h, 0.2 * h)
    y = jnp.sum(w3_ref[...] * h, axis=0, keepdims=True) + b3_ref[...]   # (1, T)
    sum_ref[0] += jnp.sum(y)                # Cout=1 map never written to HBM


def discriminator_mean(img, mask, params):
    w1m, w1u, b1, w2, b2, w3, b3 = params
    n, c, h, w = img.shape
    hw = h * w
    t = _pick_tile(hw)

    def full(shape):
        return pl.BlockSpec(shape, lambda i, j, _s=len(shape): (0,) * _s)

    dsum = pl.pallas_call(
        _disc_kernel,
        grid=(n, hw // t),
        out_shape=jax.ShapeDtypeStruct((1,), jnp.float32),
        in_specs=[pl.BlockSpec((1, c, t), lambda i, j: (i, 0, j)),
                  pl.BlockSpec((1, 1, t), lambda i, j: (i, 0, j)),
                  full(w1m.shape), full(w1u.shape), full(b1.shape),
                  full(w2.shape), full(b2.shape), full(w3.shape), full(b3.shape)],
        out_specs=pl.BlockSpec(memory_space=SMEM),
        compiler_params=pltpu.CompilerParams(
            dimension_semantics=("arbitrary", "arbitrary")),
    )(img.reshape(n, c, hw), mask.reshape(n, 1, hw),
      w1m, w1u, b1, w2, b2, w3, b3)
    return dsum[0] / float(n * hw)          # .mean().sum() of the per-pixel score map


# ---------------------------------------------------------------------------
# Synthetic parameter initialization (extractor + discriminator)
# ---------------------------------------------------------------------------
def init_params():
    key = jax.random.PRNGKey(42)
    ks = jax.random.split(key, 12)

    def wb(kw, kb, cin, cout):
        w = jax.random.normal(kw, (cout, cin), jnp.float32) / jnp.sqrt(float(cin))
        b = jax.random.normal(kb, (cout, 1), jnp.float32) * 0.01
        return w, b

    ext_params = [wb(ks[0], ks[1], 3, 8),
                  wb(ks[2], ks[3], 8, 16),
                  wb(ks[4], ks[5], 16, 32)]
    w1, b1 = wb(ks[6], ks[7], 6, 16)
    w2, b2 = wb(ks[8], ks[9], 16, 16)
    w3, b3 = wb(ks[10], ks[11], 16, 1)
    disc_params = (w1[:, :3], w1[:, 3:], b1, w2, b2,
                   w3.reshape(16, 1), b3.reshape(1, 1))
    return ext_params, disc_params


# ---------------------------------------------------------------------------
# Extractor (3 levels of conv1x1 -> ReLU -> 2x2 avg-pool) + perceptual/style losses
# ---------------------------------------------------------------------------
def _avg_pool2_flat(f, h, w):
    """(N, C, h*w) -> (N, C, (h//2)*(w//2)) 2x2 average pool (plain XLA)."""
    n, c, _ = f.shape
    # TODO(synk): fuse this 2x2 avg-pool into the conv kernel epilogue to save one HBM
    # round trip of the pre-pool feature map per level (needs lane-splitting layout work).
    p = f.reshape(n, c, h // 2, 2, w // 2, 2).mean(axis=(3, 5))
    return p.reshape(n, c, (h // 2) * (w // 2))


def extractor_losses(out_r, comp_r, gt_r, h, w, ext_params):
    """Runs the shared synthetic extractor over (output, output_comp, gt) and returns
    (prcLoss, styleLoss) with the per-level L1 and gram reductions fused in-kernel."""
    n = out_r.shape[0]
    xs = (out_r, comp_r, gt_r)
    cur_h, cur_w = h, w
    prc = jnp.float32(0.0)
    style = jnp.float32(0.0)
    for wgt, bias in ext_params:
        ys = conv1x1_relu_3(xs, wgt, bias, act="relu")
        cout = wgt.shape[0]
        feats = tuple(_avg_pool2_flat(y, cur_h, cur_w) for y in ys)
        cur_h //= 2
        cur_w //= 2
        hwp = cur_h * cur_w
        grams, sums = feature_stats(*feats)
        cnt = float(n * cout * hwp)
        prc = prc + 0.005 * sums[0] / cnt + 0.005 * sums[1] / cnt
        g_out, g_comp, g_gt = grams[0], grams[1], grams[2]
        # gram matrices are tiny (<=32x32); their L1 means stay in plain XLA
        style = (style
                 + 120.0 * jnp.mean(jnp.abs(g_out - g_gt))
                 + 120.0 * jnp.mean(jnp.abs(g_comp - g_gt)))
        xs = feats
    return prc, style


# ---------------------------------------------------------------------------
# InpaintingLossWithGAN.forward (generator loss path)
# ---------------------------------------------------------------------------
@jax.jit
def inpainting_loss_with_gan(inp, mask, output, gt, ext_params, disc_params):
    n, c, h, w = output.shape

    # D_fake = discriminator(output, mask).mean().sum()
    d_fake = discriminator_mean(output, mask, disc_params)
    # TODO(synk): D_real, calc_gradient_penalty (autograd.grad), D_loss.backward(),
    # the Adam discriminator update and SummaryWriter logging are discriminator-training
    # side effects that do not contribute to the returned GLoss; not implemented.

    comp, hole_loss, valid_loss = masked_losses(mask, inp, output, gt)

    # output.shape[1] == 3 branch of the reference code
    prc_loss, style_loss = extractor_losses(
        output.reshape(n, c, h * w), comp, gt.reshape(n, c, h * w), h, w, ext_params)

    g_loss = hole_loss + valid_loss + prc_loss + style_loss + 0.1 * d_fake
    return g_loss                            # scalar (== GLoss.sum())


if __name__ == "__main__":
    key = jax.random.PRNGKey(0)
    k1, k2, k3, k4 = jax.random.split(key, 4)
    N, C, H, W = 2, 3, 16, 16
    inp = jax.random.normal(k1, (N, C, H, W), jnp.float32)
    gt = jax.random.normal(k2, (N, C, H, W), jnp.float32)
    output = jax.random.normal(k3, (N, C, H, W), jnp.float32)
    mask = (jax.random.uniform(k4, (N, 1, H, W)) > 0.5).astype(jnp.float32)

    ext_params, disc_params = init_params()
    loss = inpainting_loss_with_gan(inp, mask, output, gt, ext_params, disc_params)
    jax.block_until_ready(loss)
    print("KERNEL_OK")
</pallas_src>

<mosaic_0001>
module attributes {stable_mosaic.version = 11 : i64} {
  func.func @_masked_loss_kernel(%arg0: i32, %arg1: memref<2x1x256xf32, #tpu.memory_space<vmem>>, %arg2: memref<2x3x256xf32, #tpu.memory_space<vmem>>, %arg3: memref<2x3x256xf32, #tpu.memory_space<vmem>>, %arg4: memref<2x3x256xf32, #tpu.memory_space<vmem>>, %arg5: memref<2x3x256xf32, #tpu.memory_space<vmem>>, %arg6: memref<2xf32, #tpu.memory_space<smem>>) attributes {dimension_semantics = [#tpu.dimension_semantics<arbitrary>], iteration_bounds = array<i64: 1>, scalar_prefetch = 0 : i64, scratch_operands = 0 : i64, tpu.core_type = #tpu.core_type<tc>, window_params = [{transform_indices = @transform_0, window_bounds = array<i64: 2, 1, 256>}, {transform_indices = @transform_1, window_bounds = array<i64: 2, 3, 256>}, {transform_indices = @transform_2, window_bounds = array<i64: 2, 3, 256>}, {transform_indices = @transform_3, window_bounds = array<i64: 2, 3, 256>}, {transform_indices = @transform_4, window_bounds = array<i64: 2, 3, 256>}, {transform_indices = @transform_5, window_bounds = array<i64: 2>}]} {
    %c0_i32 = arith.constant 0 : i32
    %0 = arith.cmpi eq, %arg0, %c0_i32 : i32
    %1 = arith.extui %0 : i1 to i32
    %c0_i32_0 = arith.constant 0 : i32
    %2 = arith.cmpi ne, %1, %c0_i32_0 : i32
    scf.if %2 {
      %cst_20 = arith.constant 0.000000e+00 : f32
      %c0_21 = arith.constant 0 : index
      %41 = memref.load %arg6[%c0_21] : memref<2xf32, #tpu.memory_space<smem>>
      memref.store %cst_20, %arg6[%c0_21] : memref<2xf32, #tpu.memory_space<smem>>
      %cst_22 = arith.constant 0.000000e+00 : f32
      %c1_23 = arith.constant 1 : index
      %42 = memref.load %arg6[%c1_23] : memref<2xf32, #tpu.memory_space<smem>>
      memref.store %cst_22, %arg6[%c1_23] : memref<2xf32, #tpu.memory_space<smem>>
    } else {
    }
    %c0 = arith.constant 0 : index
    %c0_1 = arith.constant 0 : index
    %c0_2 = arith.constant 0 : index
    %3 = vector.load %arg1[%c0, %c0_1, %c0_2] : memref<2x1x256xf32, #tpu.memory_space<vmem>>, vector<2x1x256xf32>
    %c0_3 = arith.constant 0 : index
    %c0_4 = arith.constant 0 : index
    %c0_5 = arith.constant 0 : index
    %4 = vector.load %arg3[%c0_3, %c0_4, %c0_5] : memref<2x3x256xf32, #tpu.memory_space<vmem>>, vector<2x3x256xf32>
    %c0_6 = arith.constant 0 : index
    %c0_7 = arith.constant 0 : index
    %c0_8 = arith.constant 0 : index
    %5 = vector.load %arg4[%c0_6, %c0_7, %c0_8] : memref<2x3x256xf32, #tpu.memory_space<vmem>>, vector<2x3x256xf32>
    %cst = arith.constant 1.000000e+00 : f32
    %6 = vector.broadcast %cst : f32 to vector<2x1x256xf32>
    %7 = arith.subf %6, %3 : vector<2x1x256xf32>
    %c0_9 = arith.constant 0 : index
    %c0_10 = arith.constant 0 : index
    %c0_11 = arith.constant 0 : index
    %8 = vector.load %arg2[%c0_9, %c0_10, %c0_11] : memref<2x3x256xf32, #tpu.memory_space<vmem>>, vector<2x3x256xf32>
    %9 = vector.broadcast %3 : vector<2x1x256xf32> to vector<2x3x256xf32>
    %10 = arith.mulf %9, %8 : vector<2x3x256xf32>
    %11 = vector.broadcast %7 : vector<2x1x256xf32> to vector<2x3x256xf32>
    %12 = arith.mulf %11, %4 : vector<2x3x256xf32>
    %13 = arith.addf %10, %12 : vector<2x3x256xf32>
    %c0_12 = arith.constant 0 : index
    %c0_13 = arith.constant 0 : index
    %c0_14 = arith.constant 0 : index
    %14 = vector.load %arg5[%c0_12, %c0_13, %c0_14] : memref<2x3x256xf32, #tpu.memory_space<vmem>>, vector<2x3x256xf32>
    tpu.vector_store %arg5[%c0_12, %c0_13, %c0_14], %13 {strides = array<i32>} : memref<2x3x256xf32, #tpu.memory_space<vmem>>, vector<2x3x256xf32>,
    %c0_15 = arith.constant 0 : index
    %15 = memref.load %arg6[%c0_15] : memref<2xf32, #tpu.memory_space<smem>>
    %16 = vector.broadcast %7 : vector<2x1x256xf32> to vector<2x3x256xf32>
    %17 = arith.mulf %16, %4 : vector<2x3x256xf32>
    %18 = vector.broadcast %7 : vector<2x1x256xf32> to vector<2x3x256xf32>
    %19 = arith.mulf %18, %5 : vector<2x3x256xf32>
    %20 = arith.subf %17, %19 : vector<2x3x256xf32>
    %21 = math.absf %20 : vector<2x3x256xf32>
    %22 = vector.shape_cast %21 : vector<2x3x256xf32> to vector<1x2x3x256xf32>
    %cst_16 = arith.constant dense<0.000000e+00> : vector<1xf32>
    %23 = vector.multi_reduction <add>, %22, %cst_16 [1, 2, 3] : vector<1x2x3x256xf32> to vector<1xf32>
    %24 = vector.shape_cast %23 : vector<1xf32> to vector<1x1x1x1xf32>
    %25 = vector.extract %24[0, 0, 0, 0] : f32 from vector<1x1x1x1xf32>
    %26 = arith.addf %15, %25 : f32
    %c0_17 = arith.constant 0 : index
    %27 = memref.load %arg6[%c0_17] : memref<2xf32, #tpu.memory_space<smem>>
    memref.store %26, %arg6[%c0_17] : memref<2xf32, #tpu.memory_space<smem>>
    %c1 = arith.constant 1 : index
    %28 = memref.load %arg6[%c1] : memref<2xf32, #tpu.memory_space<smem>>
    %29 = vector.broadcast %3 : vector<2x1x256xf32> to vector<2x3x256xf32>
    %30 = arith.mulf %29, %4 : vector<2x3x256xf32>
    %31 = vector.broadcast %3 : vector<2x1x256xf32> to vector<2x3x256xf32>
    %32 = arith.mulf %31, %5 : vector<2x3x256xf32>
    %33 = arith.subf %30, %32 : vector<2x3x256xf32>
    %34 = math.absf %33 : vector<2x3x256xf32>
    %35 = vector.shape_cast %34 : vector<2x3x256xf32> to vector<1x2x3x256xf32>
    %cst_18 = arith.constant dense<0.000000e+00> : vector<1xf32>
    %36 = vector.multi_reduction <add>, %35, %cst_18 [1, 2, 3] : vector<1x2x3x256xf32> to vector<1xf32>
    %37 = vector.shape_cast %36 : vector<1xf32> to vector<1x1x1x1xf32>
    %38 = vector.extract %37[0, 0, 0, 0] : f32 from vector<1x1x1x1xf32>
    %39 = arith.addf %28, %38 : f32
    %c1_19 = arith.constant 1 : index
    %40 = memref.load %arg6[%c1_19] : memref<2xf32, #tpu.memory_space<smem>>
    memref.store %39, %arg6[%c1_19] : memref<2xf32, #tpu.memory_space<smem>>
    return
  }
  func.func @transform_0(%arg0: i32) -> (i32, i32, i32) {
    %c0_i32 = arith.constant 0 : i32
    %c0_i32_0 = arith.constant 0 : i32
    %c0_i32_1 = arith.constant 0 : i32
    return %c0_i32, %c0_i32_0, %arg0 : i32, i32, i32
  }
  func.func @transform_1(%arg0: i32) -> (i32, i32, i32) {
    %c0_i32 = arith.constant 0 : i32
    %c0_i32_0 = arith.constant 0 : i32
    %c0_i32_1 = arith.constant 0 : i32
    return %c0_i32, %c0_i32_0, %arg0 : i32, i32, i32
  }
  func.func @transform_2(%arg0: i32) -> (i32, i32, i32) {
    %c0_i32 = arith.constant 0 : i32
    %c0_i32_0 = arith.constant 0 : i32
    %c0_i32_1 = arith.constant 0 : i32
    return %c0_i32, %c0_i32_0, %arg0 : i32, i32, i32
  }
  func.func @transform_3(%arg0: i32) -> (i32, i32, i32) {
    %c0_i32 = arith.constant 0 : i32
    %c0_i32_0 = arith.constant 0 : i32
    %c0_i32_1 = arith.constant 0 : i32
    return %c0_i32, %c0_i32_0, %arg0 : i32, i32, i32
  }
  func.func @transform_4(%arg0: i32) -> (i32, i32, i32) {
    %c0_i32 = arith.constant 0 : i32
    %c0_i32_0 = arith.constant 0 : i32
    %c0_i32_1 = arith.constant 0 : i32
    return %c0_i32, %c0_i32_0, %arg0 : i32, i32, i32
  }
  func.func @transform_5(%arg0: i32) -> i32 {
    %c0_i32 = arith.constant 0 : i32
    %c0_i32_0 = arith.constant 0 : i32
    return %c0_i32 : i32
  }
}

module attributes {stable_mosaic.version = 11 : i64} {
  func.func @_conv3_kernel(%arg0: i32, %arg1: i32, %arg2: memref<1x3x256xf32, #tpu.memory_space<vmem>>, %arg3: memref<1x3x256xf32, #tpu.memory_space<vmem>>, %arg4: memref<1x3x256xf32, #tpu.memory_space<vmem>>, %arg5: memref<8x3xf32, #tpu.memory_space<vmem>>, %arg6: memref<8x1xf32, #tpu.memory_space<vmem>>, %arg7: memref<1x8x256xf32, #tpu.memory_space<vmem>>, %arg8: memref<1x8x256xf32, #tpu.memory_space<vmem>>, %arg9: memref<1x8x256xf32, #tpu.memory_space<vmem>>) attributes {dimension_semantics = [#tpu.dimension_semantics<parallel>, #tpu.dimension_semantics<parallel>], iteration_bounds = array<i64: 2, 1>, scalar_prefetch = 0 : i64, scratch_operands = 0 : i64, tpu.core_type = #tpu.core_type<tc>, window_params = [{transform_indices = @transform_0, window_bounds = array<i64: 1, 3, 256>}, {transform_indices = @transform_1, window_bounds = array<i64: 1, 3, 256>}, {transform_indices = @transform_2, window_bounds = array<i64: 1, 3, 256>}, {pipeline_mode = #tpu.pipeline_mode<synchronous>, transform_indices = @transform_3, window_bounds = array<i64: 8, 3>}, {pipeline_mode = #tpu.pipeline_mode<synchronous>, transform_indices = @transform_4, window_bounds = array<i64: 8, 1>}, {transform_indices = @transform_5, window_bounds = array<i64: 1, 8, 256>}, {transform_indices = @transform_6, window_bounds = array<i64: 1, 8, 256>}, {transform_indices = @transform_7, window_bounds = array<i64: 1, 8, 256>}]} {
    %c0 = arith.constant 0 : index
    %c0_0 = arith.constant 0 : index
    %0 = vector.load %arg5[%c0, %c0_0] : memref<8x3xf32, #tpu.memory_space<vmem>>, vector<8x3xf32>
    %c0_1 = arith.constant 0 : index
    %c0_2 = arith.constant 0 : index
    %1 = vector.load %arg6[%c0_1, %c0_2] : memref<8x1xf32, #tpu.memory_space<vmem>>, vector<8x1xf32>
    %c0_3 = arith.constant 0 : index
    %c0_4 = arith.constant 0 : index
    %c0_5 = arith.constant 0 : index
    %2 = vector.load %arg2[%c0_3, %c0_4, %c0_5] : memref<1x3x256xf32, #tpu.memory_space<vmem>>, vector<1x3x256xf32>
    %3 = vector.shape_cast %2 : vector<1x3x256xf32> to vector<3x256xf32>
    %cst = arith.constant dense<0.000000e+00> : vector<8x256xf32>
    %4 = tpu.matmul %0, %3, %cst {dimension_numbers = #tpu.dot_dimension_numbers<[1], [0], [0], [1], [0, 0, 1, 1], [], []>} : vector<8x3xf32>, vector<3x256xf32>, vector<8x256xf32> -> vector<8x256xf32>
    %5 = vector.broadcast %1 : vector<8x1xf32> to vector<8x256xf32>
    %6 = arith.addf %4, %5 : vector<8x256xf32>
    %cst_6 = arith.constant 0.000000e+00 : f32
    %7 = vector.broadcast %cst_6 : f32 to vector<8x256xf32>
    %8 = arith.maximumf %6, %7 : vector<8x256xf32>
    %c0_7 = arith.constant 0 : index
    %c0_8 = arith.constant 0 : index
    %c0_9 = arith.constant 0 : index
    %9 = vector.load %arg7[%c0_7, %c0_8, %c0_9] : memref<1x8x256xf32, #tpu.memory_space<vmem>>, vector<1x8x256xf32>
    %10 = vector.shape_cast %9 : vector<1x8x256xf32> to vector<8x256xf32>
    %11 = vector.shape_cast %8 : vector<8x256xf32> to vector<1x8x256xf32>
    tpu.vector_store %arg7[%c0_7, %c0_8, %c0_9], %11 {strides = array<i32>} : memref<1x8x256xf32, #tpu.memory_space<vmem>>, vector<1x8x256xf32>,
    %c0_10 = arith.constant 0 : index
    %c0_11 = arith.constant 0 : index
    %c0_12 = arith.constant 0 : index
    %12 = vector.load %arg3[%c0_10, %c0_11, %c0_12] : memref<1x3x256xf32, #tpu.memory_space<vmem>>, vector<1x3x256xf32>
    %13 = vector.shape_cast %12 : vector<1x3x256xf32> to vector<3x256xf32>
    %cst_13 = arith.constant dense<0.000000e+00> : vector<8x256xf32>
    %14 = tpu.matmul %0, %13, %cst_13 {dimension_numbers = #tpu.dot_dimension_numbers<[1], [0], [0], [1], [0, 0, 1, 1], [], []>} : vector<8x3xf32>, vector<3x256xf32>, vector<8x256xf32> -> vector<8x256xf32>
    %15 = vector.broadcast %1 : vector<8x1xf32> to vector<8x256xf32>
    %16 = arith.addf %14, %15 : vector<8x256xf32>
    %cst_14 = arith.constant 0.000000e+00 : f32
    %17 = vector.broadcast %cst_14 : f32 to vector<8x256xf32>
    %18 = arith.maximumf %16, %17 : vector<8x256xf32>
    %c0_15 = arith.constant 0 : index
    %c0_16 = arith.constant 0 : index
    %c0_17 = arith.constant 0 : index
    %19 = vector.load %arg8[%c0_15, %c0_16, %c0_17] : memref<1x8x256xf32, #tpu.memory_space<vmem>>, vector<1x8x256xf32>
    %20 = vector.shape_cast %19 : vector<1x8x256xf32> to vector<8x256xf32>
    %21 = vector.shape_cast %18 : vector<8x256xf32> to vector<1x8x256xf32>
    tpu.vector_store %arg8[%c0_15, %c0_16, %c0_17], %21 {strides = array<i32>} : memref<1x8x256xf32, #tpu.memory_space<vmem>>, vector<1x8x256xf32>,
    %c0_18 = arith.constant 0 : index
    %c0_19 = arith.constant 0 : index
    %c0_20 = arith.constant 0 : index
    %22 = vector.load %arg4[%c0_18, %c0_19, %c0_20] : memref<1x3x256xf32, #tpu.memory_space<vmem>>, vector<1x3x256xf32>
    %23 = vector.shape_cast %22 : vector<1x3x256xf32> to vector<3x256xf32>
    %cst_21 = arith.constant dense<0.000000e+00> : vector<8x256xf32>
    %24 = tpu.matmul %0, %23, %cst_21 {dimension_numbers = #tpu.dot_dimension_numbers<[1], [0], [0], [1], [0, 0, 1, 1], [], []>} : vector<8x3xf32>, vector<3x256xf32>, vector<8x256xf32> -> vector<8x256xf32>
    %25 = vector.broadcast %1 : vector<8x1xf32> to vector<8x256xf32>
    %26 = arith.addf %24, %25 : vector<8x256xf32>
    %cst_22 = arith.constant 0.000000e+00 : f32
    %27 = vector.broadcast %cst_22 : f32 to vector<8x256xf32>
    %28 = arith.maximumf %26, %27 : vector<8x256xf32>
    %c0_23 = arith.constant 0 : index
    %c0_24 = arith.constant 0 : index
    %c0_25 = arith.constant 0 : index
    %29 = vector.load %arg9[%c0_23, %c0_24, %c0_25] : memref<1x8x256xf32, #tpu.memory_space<vmem>>, vector<1x8x256xf32>
    %30 = vector.shape_cast %29 : vector<1x8x256xf32> to vector<8x256xf32>
    %31 = vector.shape_cast %28 : vector<8x256xf32> to vector<1x8x256xf32>
    tpu.vector_store %arg9[%c0_23, %c0_24, %c0_25], %31 {strides = array<i32>} : memref<1x8x256xf32, #tpu.memory_space<vmem>>, vector<1x8x256xf32>,
    return
  }
  func.func @transform_0(%arg0: i32, %arg1: i32) -> (i32, i32, i32) {
    %c0_i32 = arith.constant 0 : i32
    %c0_i32_0 = arith.constant 0 : i32
    return %arg0, %c0_i32, %arg1 : i32, i32, i32
  }
  func.func @transform_1(%arg0: i32, %arg1: i32) -> (i32, i32, i32) {
    %c0_i32 = arith.constant 0 : i32
    %c0_i32_0 = arith.constant 0 : i32
    return %arg0, %c0_i32, %arg1 : i32, i32, i32
  }
  func.func @transform_2(%arg0: i32, %arg1: i32) -> (i32, i32, i32) {
    %c0_i32 = arith.constant 0 : i32
    %c0_i32_0 = arith.constant 0 : i32
    return %arg0, %c0_i32, %arg1 : i32, i32, i32
  }
  func.func @transform_3(%arg0: i32, %arg1: i32) -> (i32, i32) {
    %c0_i32 = arith.constant 0 : i32
    %c0_i32_0 = arith.constant 0 : i32
    %c0_i32_1 = arith.constant 0 : i32
    return %c0_i32, %c0_i32_0 : i32, i32
  }
  func.func @transform_4(%arg0: i32, %arg1: i32) -> (i32, i32) {
    %c0_i32 = arith.constant 0 : i32
    %c0_i32_0 = arith.constant 0 : i32
    %c0_i32_1 = arith.constant 0 : i32
    return %c0_i32, %c0_i32_0 : i32, i32
  }
  func.func @transform_5(%arg0: i32, %arg1: i32) -> (i32, i32, i32) {
    %c0_i32 = arith.constant 0 : i32
    %c0_i32_0 = arith.constant 0 : i32
    return %arg0, %c0_i32, %arg1 : i32, i32, i32
  }
  func.func @transform_6(%arg0: i32, %arg1: i32) -> (i32, i32, i32) {
    %c0_i32 = arith.constant 0 : i32
    %c0_i32_0 = arith.constant 0 : i32
    return %arg0, %c0_i32, %arg1 : i32, i32, i32
  }
  func.func @transform_7(%arg0: i32, %arg1: i32) -> (i32, i32, i32) {
    %c0_i32 = arith.constant 0 : i32
    %c0_i32_0 = arith.constant 0 : i32
    return %arg0, %c0_i32, %arg1 : i32, i32, i32
  }
}

module attributes {stable_mosaic.version = 11 : i64} {
  func.func @_feature_stats_kernel(%arg0: i32, %arg1: i32, %arg2: memref<1x8x64xf32, #tpu.memory_space<vmem>>, %arg3: memref<1x8x64xf32, #tpu.memory_space<vmem>>, %arg4: memref<1x8x64xf32, #tpu.memory_space<vmem>>, %arg5: memref<3x1x8x8xf32, #tpu.memory_space<vmem>>, %arg6: memref<2xf32, #tpu.memory_space<smem>>) attributes {dimension_semantics = [#tpu.dimension_semantics<arbitrary>, #tpu.dimension_semantics<arbitrary>], iteration_bounds = array<i64: 2, 1>, scalar_prefetch = 0 : i64, scratch_operands = 0 : i64, tpu.core_type = #tpu.core_type<tc>, window_params = [{transform_indices = @transform_0, window_bounds = array<i64: 1, 8, 64>}, {transform_indices = @transform_1, window_bounds = array<i64: 1, 8, 64>}, {transform_indices = @transform_2, window_bounds = array<i64: 1, 8, 64>}, {transform_indices = @transform_3, window_bounds = array<i64: 3, 1, 8, 8>}, {transform_indices = @transform_4, window_bounds = array<i64: 2>}]} {
    %c0_i32 = arith.constant 0 : i32
    %0 = arith.cmpi eq, %arg0, %c0_i32 : i32
    %c0_i32_0 = arith.constant 0 : i32
    %1 = arith.cmpi eq, %arg1, %c0_i32_0 : i32
    %2 = arith.andi %0, %1 : i1
    %3 = arith.extui %2 : i1 to i32
    %c0_i32_1 = arith.constant 0 : i32
    %4 = arith.cmpi ne, %3, %c0_i32_1 : i32
    scf.if %4 {
      %cst_44 = arith.constant 0.000000e+00 : f32
      %c0_45 = arith.constant 0 : index
      %56 = memref.load %arg6[%c0_45] : memref<2xf32, #tpu.memory_space<smem>>
      memref.store %cst_44, %arg6[%c0_45] : memref<2xf32, #tpu.memory_space<smem>>
      %cst_46 = arith.constant 0.000000e+00 : f32
      %c1_47 = arith.constant 1 : index
      %57 = memref.load %arg6[%c1_47] : memref<2xf32, #tpu.memory_space<smem>>
      memref.store %cst_46, %arg6[%c1_47] : memref<2xf32, #tpu.memory_space<smem>>
    } else {
    }
    %c0_i32_2 = arith.constant 0 : i32
    %5 = arith.cmpi eq, %arg1, %c0_i32_2 : i32
    %6 = arith.extui %5 : i1 to i32
    %c0_i32_3 = arith.constant 0 : i32
    %7 = arith.cmpi ne, %6, %c0_i32_3 : i32
    scf.if %7 {
      %cst_44 = arith.constant 0.000000e+00 : f32
      %56 = vector.broadcast %cst_44 : f32 to vector<3x1x8x8xf32>
      %c0_45 = arith.constant 0 : index
      %c0_46 = arith.constant 0 : index
      %c0_47 = arith.constant 0 : index
      %c0_48 = arith.constant 0 : index
      %57 = vector.load %arg5[%c0_45, %c0_46, %c0_47, %c0_48] : memref<3x1x8x8xf32, #tpu.memory_space<vmem>>, vector<3x1x8x8xf32>
      tpu.vector_store %arg5[%c0_45, %c0_46, %c0_47, %c0_48], %56 {strides = array<i32>} : memref<3x1x8x8xf32, #tpu.memory_space<vmem>>, vector<3x1x8x8xf32>,
    } else {
    }
    %c0 = arith.constant 0 : index
    %c0_4 = arith.constant 0 : index
    %c0_5 = arith.constant 0 : index
    %8 = vector.load %arg2[%c0, %c0_4, %c0_5] : memref<1x8x64xf32, #tpu.memory_space<vmem>>, vector<1x8x64xf32>
    %9 = vector.shape_cast %8 : vector<1x8x64xf32> to vector<8x64xf32>
    %c0_6 = arith.constant 0 : index
    %c0_7 = arith.constant 0 : index
    %c0_8 = arith.constant 0 : index
    %10 = vector.load %arg3[%c0_6, %c0_7, %c0_8] : memref<1x8x64xf32, #tpu.memory_space<vmem>>, vector<1x8x64xf32>
    %11 = vector.shape_cast %10 : vector<1x8x64xf32> to vector<8x64xf32>
    %c0_9 = arith.constant 0 : index
    %c0_10 = arith.constant 0 : index
    %c0_11 = arith.constant 0 : index
    %12 = vector.load %arg4[%c0_9, %c0_10, %c0_11] : memref<1x8x64xf32, #tpu.memory_space<vmem>>, vector<1x8x64xf32>
    %13 = vector.shape_cast %12 : vector<1x8x64xf32> to vector<8x64xf32>
    %c0_12 = arith.constant 0 : index
    %c0_13 = arith.constant 0 : index
    %c0_14 = arith.constant 0 : index
    %c0_15 = arith.constant 0 : index
    %14 = vector.load %arg5[%c0_12, %c0_13, %c0_14, %c0_15] : memref<3x1x8x8xf32, #tpu.memory_space<vmem>>, vector<1x1x8x8xf32>
    %15 = vector.shape_cast %14 : vector<1x1x8x8xf32> to vector<8x8xf32>
    %cst = arith.constant dense<0.000000e+00> : vector<8x8xf32>
    %16 = tpu.matmul %9, %9, %cst {dimension_numbers = #tpu.dot_dimension_numbers<[1], [1], [0], [0], [0, 0, 1, 0], [], []>} : vector<8x64xf32>, vector<8x64xf32>, vector<8x8xf32> -> vector<8x8xf32>
    %17 = arith.addf %15, %16 : vector<8x8xf32>
    %c0_16 = arith.constant 0 : index
    %c0_17 = arith.constant 0 : index
    %c0_18 = arith.constant 0 : index
    %c0_19 = arith.constant 0 : index
    %18 = vector.load %arg5[%c0_16, %c0_17, %c0_18, %c0_19] : memref<3x1x8x8xf32, #tpu.memory_space<vmem>>, vector<1x1x8x8xf32>
    %19 = vector.shape_cast %18 : vector<1x1x8x8xf32> to vector<8x8xf32>
    %20 = vector.shape_cast %17 : vector<8x8xf32> to vector<1x1x8x8xf32>
    tpu.vector_store %arg5[%c0_16, %c0_17, %c0_18, %c0_19], %20 {strides = array<i32>} : memref<3x1x8x8xf32, #tpu.memory_space<vmem>>, vector<1x1x8x8xf32>,
    %c1 = arith.constant 1 : index
    %c0_20 = arith.constant 0 : index
    %c0_21 = arith.constant 0 : index
    %c0_22 = arith.constant 0 : index
    %21 = vector.load %arg5[%c1, %c0_20, %c0_21, %c0_22] : memref<3x1x8x8xf32, #tpu.memory_space<vmem>>, vector<1x1x8x8xf32>
    %22 = vector.shape_cast %21 : vector<1x1x8x8xf32> to vector<8x8xf32>
    %cst_23 = arith.constant dense<0.000000e+00> : vector<8x8xf32>
    %23 = tpu.matmul %11, %11, %cst_23 {dimension_numbers = #tpu.dot_dimension_numbers<[1], [1], [0], [0], [0, 0, 1, 0], [], []>} : vector<8x64xf32>, vector<8x64xf32>, vector<8x8xf32> -> vector<8x8xf32>
    %24 = arith.addf %22, %23 : vector<8x8xf32>
    %c1_24 = arith.constant 1 : index
    %c0_25 = arith.constant 0 : index
    %c0_26 = arith.constant 0 : index
    %c0_27 = arith.constant 0 : index
    %25 = vector.load %arg5[%c1_24, %c0_25, %c0_26, %c0_27] : memref<3x1x8x8xf32, #tpu.memory_space<vmem>>, vector<1x1x8x8xf32>
    %26 = vector.shape_cast %25 : vector<1x1x8x8xf32> to vector<8x8xf32>
    %27 = vector.shape_cast %24 : vector<8x8xf32> to vector<1x1x8x8xf32>
    tpu.vector_store %arg5[%c1_24, %c0_25, %c0_26, %c0_27], %27 {strides = array<i32>} : memref<3x1x8x8xf32, #tpu.memory_space<vmem>>, vector<1x1x8x8xf32>,
    %c2 = arith.constant 2 : index
    %c0_28 = arith.constant 0 : index
    %c0_29 = arith.constant 0 : index
    %c0_30 = arith.constant 0 : index
    %28 = vector.load %arg5[%c2, %c0_28, %c0_29, %c0_30] : memref<3x1x8x8xf32, #tpu.memory_space<vmem>>, vector<1x1x8x8xf32>
    %29 = vector.shape_cast %28 : vector<1x1x8x8xf32> to vector<8x8xf32>
    %cst_31 = arith.constant dense<0.000000e+00> : vector<8x8xf32>
    %30 = tpu.matmul %13, %13, %cst_31 {dimension_numbers = #tpu.dot_dimension_numbers<[1], [1], [0], [0], [0, 0, 1, 0], [], []>} : vector<8x64xf32>, vector<8x64xf32>, vector<8x8xf32> -> vector<8x8xf32>
    %31 = arith.addf %29, %30 : vector<8x8xf32>
    %c2_32 = arith.constant 2 : index
    %c0_33 = arith.constant 0 : index
    %c0_34 = arith.constant 0 : index
    %c0_35 = arith.constant 0 : index
    %32 = vector.load %arg5[%c2_32, %c0_33, %c0_34, %c0_35] : memref<3x1x8x8xf32, #tpu.memory_space<vmem>>, vector<1x1x8x8xf32>
    %33 = vector.shape_cast %32 : vector<1x1x8x8xf32> to vector<8x8xf32>
    %34 = vector.shape_cast %31 : vector<8x8xf32> to vector<1x1x8x8xf32>
    tpu.vector_store %arg5[%c2_32, %c0_33, %c0_34, %c0_35], %34 {strides = array<i32>} : memref<3x1x8x8xf32, #tpu.memory_space<vmem>>, vector<1x1x8x8xf32>,
    %c0_36 = arith.constant 0 : index
    %35 = memref.load %arg6[%c0_36] : memref<2xf32, #tpu.memory_space<smem>>
    %36 = arith.subf %9, %13 : vector<8x64xf32>
    %37 = math.absf %36 : vector<8x64xf32>
    %38 = vector.shape_cast %37 : vector<8x64xf32> to vector<1x8x64xf32>
    %cst_37 = arith.constant dense<0.000000e+00> : vector<1xf32>
    %39 = vector.multi_reduction <add>, %38, %cst_37 [1, 2] : vector<1x8x64xf32> to vector<1xf32>
    %40 = vector.shape_cast %39 : vector<1xf32> to vector<1x1x1xf32>
    %41 = vector.extract %40[0, 0, 0] : f32 from vector<1x1x1xf32>
    %42 = arith.addf %35, %41 : f32
    %c0_38 = arith.constant 0 : index
    %43 = memref.load %arg6[%c0_38] : memref<2xf32, #tpu.memory_space<smem>>
    memref.store %42, %arg6[%c0_38] : memref<2xf32, #tpu.memory_space<smem>>
    %c1_39 = arith.constant 1 : index
    %44 = memref.load %arg6[%c1_39] : memref<2xf32, #tpu.memory_space<smem>>
    %45 = arith.subf %11, %13 : vector<8x64xf32>
    %46 = math.absf %45 : vector<8x64xf32>
    %47 = vector.shape_cast %46 : vector<8x64xf32> to vector<1x8x64xf32>
    %cst_40 = arith.constant dense<0.000000e+00> : vector<1xf32>
    %48 = vector.multi_reduction <add>, %47, %cst_40 [1, 2] : vector<1x8x64xf32> to vector<1xf32>
    %49 = vector.shape_cast %48 : vector<1xf32> to vector<1x1x1xf32>
    %50 = vector.extract %49[0, 0, 0] : f32 from vector<1x1x1xf32>
    %51 = arith.addf %44, %50 : f32
    %c1_41 = arith.constant 1 : index
    %52 = memref.load %arg6[%c1_41] : memref<2xf32, #tpu.memory_space<smem>>
    memref.store %51, %arg6[%c1_41] : memref<2xf32, #tpu.memory_space<smem>>
    %c0_i32_42 = arith.constant 0 : i32
    %53 = arith.cmpi eq, %arg1, %c0_i32_42 : i32
    %54 = arith.extui %53 : i1 to i32
    %c0_i32_43 = arith.constant 0 : i32
    %55 = arith.cmpi ne, %54, %c0_i32_43 : i32
    scf.if %55 {
      %c0_44 = arith.constant 0 : index
      %c0_45 = arith.constant 0 : index
      %c0_46 = arith.constant 0 : index
      %c0_47 = arith.constant 0 : index
      %56 = vector.load %arg5[%c0_44, %c0_45, %c0_46, %c0_47] : memref<3x1x8x8xf32, #tpu.memory_space<vmem>>, vector<3x1x8x8xf32>
      %cst_48 = arith.constant 0.001953125 : f32
      %57 = vector.broadcast %cst_48 : f32 to vector<3x1x8x8xf32>
      %58 = arith.mulf %56, %57 : vector<3x1x8x8xf32>
      %c0_49 = arith.constant 0 : index
      %c0_50 = arith.constant 0 : index
      %c0_51 = arith.constant 0 : index
      %c0_52 = arith.constant 0 : index
      %59 = vector.load %arg5[%c0_49, %c0_50, %c0_51, %c0_52] : memref<3x1x8x8xf32, #tpu.memory_space<vmem>>, vector<3x1x8x8xf32>
      tpu.vector_store %arg5[%c0_49, %c0_50, %c0_51, %c0_52], %58 {strides = array<i32>} : memref<3x1x8x8xf32, #tpu.memory_space<vmem>>, vector<3x1x8x8xf32>,
    } else {
    }
    return
  }
  func.func @transform_0(%arg0: i32, %arg1: i32) -> (i32, i32, i32) {
    %c0_i32 = arith.constant 0 : i32
    %c0_i32_0 = arith.constant 0 : i32
    return %arg0, %c0_i32, %arg1 : i32, i32, i32
  }
  func.func @transform_1(%arg0: i32, %arg1: i32) -> (i32, i32, i32) {
    %c0_i32 = arith.constant 0 : i32
    %c0_i32_0 = arith.constant 0 : i32
    return %arg0, %c0_i32, %arg1 : i32, i32, i32
  }
  func.func @transform_2(%arg0: i32, %arg1: i32) -> (i32, i32, i32) {
    %c0_i32 = arith.constant 0 : i32
    %c0_i32_0 = arith.constant 0 : i32
    return %arg0, %c0_i32, %arg1 : i32, i32, i32
  }
  func.func @transform_3(%arg0: i32, %arg1: i32) -> (i32, i32, i32, i32) {
    %c0_i32 = arith.constant 0 : i32
    %c0_i32_0 = arith.constant 0 : i32
    %c0_i32_1 = arith.constant 0 : i32
    %c0_i32_2 = arith.constant 0 : i32
    return %c0_i32, %arg0, %c0_i32_0, %c0_i32_1 : i32, i32, i32, i32
  }
  func.func @transform_4(%arg0: i32, %arg1: i32) -> i32 {
    %c0_i32 = arith.constant 0 : i32
    %c0_i32_0 = arith.constant 0 : i32
    return %c0_i32 : i32
  }
}

module attributes {stable_mosaic.version = 11 : i64} {
  func.func @_conv3_kernel(%arg0: i32, %arg1: i32, %arg2: memref<1x8x64xf32, #tpu.memory_space<vmem>>, %arg3: memref<1x8x64xf32, #tpu.memory_space<vmem>>, %arg4: memref<1x8x64xf32, #tpu.memory_space<vmem>>, %arg5: memref<16x8xf32, #tpu.memory_space<vmem>>, %arg6: memref<16x1xf32, #tpu.memory_space<vmem>>, %arg7: memref<1x16x64xf32, #tpu.memory_space<vmem>>, %arg8: memref<1x16x64xf32, #tpu.memory_space<vmem>>, %arg9: memref<1x16x64xf32, #tpu.memory_space<vmem>>) attributes {dimension_semantics = [#tpu.dimension_semantics<parallel>, #tpu.dimension_semantics<parallel>], iteration_bounds = array<i64: 2, 1>, scalar_prefetch = 0 : i64, scratch_operands = 0 : i64, tpu.core_type = #tpu.core_type<tc>, window_params = [{transform_indices = @transform_0, window_bounds = array<i64: 1, 8, 64>}, {transform_indices = @transform_1, window_bounds = array<i64: 1, 8, 64>}, {transform_indices = @transform_2, window_bounds = array<i64: 1, 8, 64>}, {pipeline_mode = #tpu.pipeline_mode<synchronous>, transform_indices = @transform_3, window_bounds = array<i64: 16, 8>}, {pipeline_mode = #tpu.pipeline_mode<synchronous>, transform_indices = @transform_4, window_bounds = array<i64: 16, 1>}, {transform_indices = @transform_5, window_bounds = array<i64: 1, 16, 64>}, {transform_indices = @transform_6, window_bounds = array<i64: 1, 16, 64>}, {transform_indices = @transform_7, window_bounds = array<i64: 1, 16, 64>}]} {
    %c0 = arith.constant 0 : index
    %c0_0 = arith.constant 0 : index
    %0 = vector.load %arg5[%c0, %c0_0] : memref<16x8xf32, #tpu.memory_space<vmem>>, vector<16x8xf32>
    %c0_1 = arith.constant 0 : index
    %c0_2 = arith.constant 0 : index
    %1 = vector.load %arg6[%c0_1, %c0_2] : memref<16x1xf32, #tpu.memory_space<vmem>>, vector<16x1xf32>
    %c0_3 = arith.constant 0 : index
    %c0_4 = arith.constant 0 : index
    %c0_5 = arith.constant 0 : index
    %2 = vector.load %arg2[%c0_3, %c0_4, %c0_5] : memref<1x8x64xf32, #tpu.memory_space<vmem>>, vector<1x8x64xf32>
    %3 = vector.shape_cast %2 : vector<1x8x64xf32> to vector<8x64xf32>
    %cst = arith.constant dense<0.000000e+00> : vector<16x64xf32>
    %4 = tpu.matmul %0, %3, %cst {dimension_numbers = #tpu.dot_dimension_numbers<[1], [0], [0], [1], [0, 0, 1, 1], [], []>} : vector<16x8xf32>, vector<8x64xf32>, vector<16x64xf32> -> vector<16x64xf32>
    %5 = vector.broadcast %1 : vector<16x1xf32> to vector<16x64xf32>
    %6 = arith.addf %4, %5 : vector<16x64xf32>
    %cst_6 = arith.constant 0.000000e+00 : f32
    %7 = vector.broadcast %cst_6 : f32 to vector<16x64xf32>
    %8 = arith.maximumf %6, %7 : vector<16x64xf32>
    %c0_7 = arith.constant 0 : index
    %c0_8 = arith.constant 0 : index
    %c0_9 = arith.constant 0 : index
    %9 = vector.load %arg7[%c0_7, %c0_8, %c0_9] : memref<1x16x64xf32, #tpu.memory_space<vmem>>, vector<1x16x64xf32>
    %10 = vector.shape_cast %9 : vector<1x16x64xf32> to vector<16x64xf32>
    %11 = vector.shape_cast %8 : vector<16x64xf32> to vector<1x16x64xf32>
    tpu.vector_store %arg7[%c0_7, %c0_8, %c0_9], %11 {strides = array<i32>} : memref<1x16x64xf32, #tpu.memory_space<vmem>>, vector<1x16x64xf32>,
    %c0_10 = arith.constant 0 : index
    %c0_11 = arith.constant 0 : index
    %c0_12 = arith.constant 0 : index
    %12 = vector.load %arg3[%c0_10, %c0_11, %c0_12] : memref<1x8x64xf32, #tpu.memory_space<vmem>>, vector<1x8x64xf32>
    %13 = vector.shape_cast %12 : vector<1x8x64xf32> to vector<8x64xf32>
    %cst_13 = arith.constant dense<0.000000e+00> : vector<16x64xf32>
    %14 = tpu.matmul %0, %13, %cst_13 {dimension_numbers = #tpu.dot_dimension_numbers<[1], [0], [0], [1], [0, 0, 1, 1], [], []>} : vector<16x8xf32>, vector<8x64xf32>, vector<16x64xf32> -> vector<16x64xf32>
    %15 = vector.broadcast %1 : vector<16x1xf32> to vector<16x64xf32>
    %16 = arith.addf %14, %15 : vector<16x64xf32>
    %cst_14 = arith.constant 0.000000e+00 : f32
    %17 = vector.broadcast %cst_14 : f32 to vector<16x64xf32>
    %18 = arith.maximumf %16, %17 : vector<16x64xf32>
    %c0_15 = arith.constant 0 : index
    %c0_16 = arith.constant 0 : index
    %c0_17 = arith.constant 0 : index
    %19 = vector.load %arg8[%c0_15, %c0_16, %c0_17] : memref<1x16x64xf32, #tpu.memory_space<vmem>>, vector<1x16x64xf32>
    %20 = vector.shape_cast %19 : vector<1x16x64xf32> to vector<16x64xf32>
    %21 = vector.shape_cast %18 : vector<16x64xf32> to vector<1x16x64xf32>
    tpu.vector_store %arg8[%c0_15, %c0_16, %c0_17], %21 {strides = array<i32>} : memref<1x16x64xf32, #tpu.memory_space<vmem>>, vector<1x16x64xf32>,
    %c0_18 = arith.constant 0 : index
    %c0_19 = arith.constant 0 : index
    %c0_20 = arith.constant 0 : index
    %22 = vector.load %arg4[%c0_18, %c0_19, %c0_20] : memref<1x8x64xf32, #tpu.memory_space<vmem>>, vector<1x8x64xf32>
    %23 = vector.shape_cast %22 : vector<1x8x64xf32> to vector<8x64xf32>
    %cst_21 = arith.constant dense<0.000000e+00> : vector<16x64xf32>
    %24 = tpu.matmul %0, %23, %cst_21 {dimension_numbers = #tpu.dot_dimension_numbers<[1], [0], [0], [1], [0, 0, 1, 1], [], []>} : vector<16x8xf32>, vector<8x64xf32>, vector<16x64xf32> -> vector<16x64xf32>
    %25 = vector.broadcast %1 : vector<16x1xf32> to vector<16x64xf32>
    %26 = arith.addf %24, %25 : vector<16x64xf32>
    %cst_22 = arith.constant 0.000000e+00 : f32
    %27 = vector.broadcast %cst_22 : f32 to vector<16x64xf32>
    %28 = arith.maximumf %26, %27 : vector<16x64xf32>
    %c0_23 = arith.constant 0 : index
    %c0_24 = arith.constant 0 : index
    %c0_25 = arith.constant 0 : index
    %29 = vector.load %arg9[%c0_23, %c0_24, %c0_25] : memref<1x16x64xf32, #tpu.memory_space<vmem>>, vector<1x16x64xf32>
    %30 = vector.shape_cast %29 : vector<1x16x64xf32> to vector<16x64xf32>
    %31 = vector.shape_cast %28 : vector<16x64xf32> to vector<1x16x64xf32>
    tpu.vector_store %arg9[%c0_23, %c0_24, %c0_25], %31 {strides = array<i32>} : memref<1x16x64xf32, #tpu.memory_space<vmem>>, vector<1x16x64xf32>,
    return
  }
  func.func @transform_0(%arg0: i32, %arg1: i32) -> (i32, i32, i32) {
    %c0_i32 = arith.constant 0 : i32
    %c0_i32_0 = arith.constant 0 : i32
    return %arg0, %c0_i32, %arg1 : i32, i32, i32
  }
  func.func @transform_1(%arg0: i32, %arg1: i32) -> (i32, i32, i32) {
    %c0_i32 = arith.constant 0 : i32
    %c0_i32_0 = arith.constant 0 : i32
    return %arg0, %c0_i32, %arg1 : i32, i32, i32
  }
  func.func @transform_2(%arg0: i32, %arg1: i32) -> (i32, i32, i32) {
    %c0_i32 = arith.constant 0 : i32
    %c0_i32_0 = arith.constant 0 : i32
    return %arg0, %c0_i32, %arg1 : i32, i32, i32
  }
  func.func @transform_3(%arg0: i32, %arg1: i32) -> (i32, i32) {
    %c0_i32 = arith.constant 0 : i32
    %c0_i32_0 = arith.constant 0 : i32
    %c0_i32_1 = arith.constant 0 : i32
    return %c0_i32, %c0_i32_0 : i32, i32
  }
  func.func @transform_4(%arg0: i32, %arg1: i32) -> (i32, i32) {
    %c0_i32 = arith.constant 0 : i32
    %c0_i32_0 = arith.constant 0 : i32
    %c0_i32_1 = arith.constant 0 : i32
    return %c0_i32, %c0_i32_0 : i32, i32
  }
  func.func @transform_5(%arg0: i32, %arg1: i32) -> (i32, i32, i32) {
    %c0_i32 = arith.constant 0 : i32
    %c0_i32_0 = arith.constant 0 : i32
    return %arg0, %c0_i32, %arg1 : i32, i32, i32
  }
  func.func @transform_6(%arg0: i32, %arg1: i32) -> (i32, i32, i32) {
    %c0_i32 = arith.constant 0 : i32
    %c0_i32_0 = arith.constant 0 : i32
    return %arg0, %c0_i32, %arg1 : i32, i32, i32
  }
  func.func @transform_7(%arg0: i32, %arg1: i32) -> (i32, i32, i32) {
    %c0_i32 = arith.constant 0 : i32
    %c0_i32_0 = arith.constant 0 : i32
    return %arg0, %c0_i32, %arg1 : i32, i32, i32
  }
}

module attributes {stable_mosaic.version = 11 : i64} {
  func.func @_conv3_kernel(%arg0: i32, %arg1: i32, %arg2: memref<1x16x16xf32, #tpu.memory_space<vmem>>, %arg3: memref<1x16x16xf32, #tpu.memory_space<vmem>>, %arg4: memref<1x16x16xf32, #tpu.memory_space<vmem>>, %arg5: memref<32x16xf32, #tpu.memory_space<vmem>>, %arg6: memref<32x1xf32, #tpu.memory_space<vmem>>, %arg7: memref<1x32x16xf32, #tpu.memory_space<vmem>>, %arg8: memref<1x32x16xf32, #tpu.memory_space<vmem>>, %arg9: memref<1x32x16xf32, #tpu.memory_space<vmem>>) attributes {dimension_semantics = [#tpu.dimension_semantics<parallel>, #tpu.dimension_semantics<parallel>], iteration_bounds = array<i64: 2, 1>, scalar_prefetch = 0 : i64, scratch_operands = 0 : i64, tpu.core_type = #tpu.core_type<tc>, window_params = [{transform_indices = @transform_0, window_bounds = array<i64: 1, 16, 16>}, {transform_indices = @transform_1, window_bounds = array<i64: 1, 16, 16>}, {transform_indices = @transform_2, window_bounds = array<i64: 1, 16, 16>}, {pipeline_mode = #tpu.pipeline_mode<synchronous>, transform_indices = @transform_3, window_bounds = array<i64: 32, 16>}, {pipeline_mode = #tpu.pipeline_mode<synchronous>, transform_indices = @transform_4, window_bounds = array<i64: 32, 1>}, {transform_indices = @transform_5, window_bounds = array<i64: 1, 32, 16>}, {transform_indices = @transform_6, window_bounds = array<i64: 1, 32, 16>}, {transform_indices = @transform_7, window_bounds = array<i64: 1, 32, 16>}]} {
    %c0 = arith.constant 0 : index
    %c0_0 = arith.constant 0 : index
    %0 = vector.load %arg5[%c0, %c0_0] : memref<32x16xf32, #tpu.memory_space<vmem>>, vector<32x16xf32>
    %c0_1 = arith.constant 0 : index
    %c0_2 = arith.constant 0 : index
    %1 = vector.load %arg6[%c0_1, %c0_2] : memref<32x1xf32, #tpu.memory_space<vmem>>, vector<32x1xf32>
    %c0_3 = arith.constant 0 : index
    %c0_4 = arith.constant 0 : index
    %c0_5 = arith.constant 0 : index
    %2 = vector.load %arg2[%c0_3, %c0_4, %c0_5] : memref<1x16x16xf32, #tpu.memory_space<vmem>>, vector<1x16x16xf32>
    %3 = vector.shape_cast %2 : vector<1x16x16xf32> to vector<16x16xf32>
    %cst = arith.constant dense<0.000000e+00> : vector<32x16xf32>
    %4 = tpu.matmul %0, %3, %cst {dimension_numbers = #tpu.dot_dimension_numbers<[1], [0], [0], [1], [0, 0, 1, 1], [], []>} : vector<32x16xf32>, vector<16x16xf32>, vector<32x16xf32> -> vector<32x16xf32>
    %5 = vector.broadcast %1 : vector<32x1xf32> to vector<32x16xf32>
    %6 = arith.addf %4, %5 : vector<32x16xf32>
    %cst_6 = arith.constant 0.000000e+00 : f32
    %7 = vector.broadcast %cst_6 : f32 to vector<32x16xf32>
    %8 = arith.maximumf %6, %7 : vector<32x16xf32>
    %c0_7 = arith.constant 0 : index
    %c0_8 = arith.constant 0 : index
    %c0_9 = arith.constant 0 : index
    %9 = vector.load %arg7[%c0_7, %c0_8, %c0_9] : memref<1x32x16xf32, #tpu.memory_space<vmem>>, vector<1x32x16xf32>
    %10 = vector.shape_cast %9 : vector<1x32x16xf32> to vector<32x16xf32>
    %11 = vector.shape_cast %8 : vector<32x16xf32> to vector<1x32x16xf32>
    tpu.vector_store %arg7[%c0_7, %c0_8, %c0_9], %11 {strides = array<i32>} : memref<1x32x16xf32, #tpu.memory_space<vmem>>, vector<1x32x16xf32>,
    %c0_10 = arith.constant 0 : index
    %c0_11 = arith.constant 0 : index
    %c0_12 = arith.constant 0 : index
    %12 = vector.load %arg3[%c0_10, %c0_11, %c0_12] : memref<1x16x16xf32, #tpu.memory_space<vmem>>, vector<1x16x16xf32>
    %13 = vector.shape_cast %12 : vector<1x16x16xf32> to vector<16x16xf32>
    %cst_13 = arith.constant dense<0.000000e+00> : vector<32x16xf32>
    %14 = tpu.matmul %0, %13, %cst_13 {dimension_numbers = #tpu.dot_dimension_numbers<[1], [0], [0], [1], [0, 0, 1, 1], [], []>} : vector<32x16xf32>, vector<16x16xf32>, vector<32x16xf32> -> vector<32x16xf32>
    %15 = vector.broadcast %1 : vector<32x1xf32> to vector<32x16xf32>
    %16 = arith.addf %14, %15 : vector<32x16xf32>
    %cst_14 = arith.constant 0.000000e+00 : f32
    %17 = vector.broadcast %cst_14 : f32 to vector<32x16xf32>
    %18 = arith.maximumf %16, %17 : vector<32x16xf32>
    %c0_15 = arith.constant 0 : index
    %c0_16 = arith.constant 0 : index
    %c0_17 = arith.constant 0 : index
    %19 = vector.load %arg8[%c0_15, %c0_16, %c0_17] : memref<1x32x16xf32, #tpu.memory_space<vmem>>, vector<1x32x16xf32>
    %20 = vector.shape_cast %19 : vector<1x32x16xf32> to vector<32x16xf32>
    %21 = vector.shape_cast %18 : vector<32x16xf32> to vector<1x32x16xf32>
    tpu.vector_store %arg8[%c0_15, %c0_16, %c0_17], %21 {strides = array<i32>} : memref<1x32x16xf32, #tpu.memory_space<vmem>>, vector<1x32x16xf32>,
    %c0_18 = arith.constant 0 : index
    %c0_19 = arith.constant 0 : index
    %c0_20 = arith.constant 0 : index
    %22 = vector.load %arg4[%c0_18, %c0_19, %c0_20] : memref<1x16x16xf32, #tpu.memory_space<vmem>>, vector<1x16x16xf32>
    %23 = vector.shape_cast %22 : vector<1x16x16xf32> to vector<16x16xf32>
    %cst_21 = arith.constant dense<0.000000e+00> : vector<32x16xf32>
    %24 = tpu.matmul %0, %23, %cst_21 {dimension_numbers = #tpu.dot_dimension_numbers<[1], [0], [0], [1], [0, 0, 1, 1], [], []>} : vector<32x16xf32>, vector<16x16xf32>, vector<32x16xf32> -> vector<32x16xf32>
    %25 = vector.broadcast %1 : vector<32x1xf32> to vector<32x16xf32>
    %26 = arith.addf %24, %25 : vector<32x16xf32>
    %cst_22 = arith.constant 0.000000e+00 : f32
    %27 = vector.broadcast %cst_22 : f32 to vector<32x16xf32>
    %28 = arith.maximumf %26, %27 : vector<32x16xf32>
    %c0_23 = arith.constant 0 : index
    %c0_24 = arith.constant 0 : index
    %c0_25 = arith.constant 0 : index
    %29 = vector.load %arg9[%c0_23, %c0_24, %c0_25] : memref<1x32x16xf32, #tpu.memory_space<vmem>>, vector<1x32x16xf32>
    %30 = vector.shape_cast %29 : vector<1x32x16xf32> to vector<32x16xf32>
    %31 = vector.shape_cast %28 : vector<32x16xf32> to vector<1x32x16xf32>
    tpu.vector_store %arg9[%c0_23, %c0_24, %c0_25], %31 {strides = array<i32>} : memref<1x32x16xf32, #tpu.memory_space<vmem>>, vector<1x32x16xf32>,
    return
  }
  func.func @transform_0(%arg0: i32, %arg1: i32) -> (i32, i32, i32) {
    %c0_i32 = arith.constant 0 : i32
    %c0_i32_0 = arith.constant 0 : i32
    return %arg0, %c0_i32, %arg1 : i32, i32, i32
  }
  func.func @transform_1(%arg0: i32, %arg1: i32) -> (i32, i32, i32) {
    %c0_i32 = arith.constant 0 : i32
    %c0_i32_0 = arith.constant 0 : i32
    return %arg0, %c0_i32, %arg1 : i32, i32, i32
  }
  func.func @transform_2(%arg0: i32, %arg1: i32) -> (i32, i32, i32) {
    %c0_i32 = arith.constant 0 : i32
    %c0_i32_0 = arith.constant 0 : i32
    return %arg0, %c0_i32, %arg1 : i32, i32, i32
  }
  func.func @transform_3(%arg0: i32, %arg1: i32) -> (i32, i32) {
    %c0_i32 = arith.constant 0 : i32
    %c0_i32_0 = arith.constant 0 : i32
    %c0_i32_1 = arith.constant 0 : i32
    return %c0_i32, %c0_i32_0 : i32, i32
  }
  func.func @transform_4(%arg0: i32, %arg1: i32) -> (i32, i32) {
    %c0_i32 = arith.constant 0 : i32
    %c0_i32_0 = arith.constant 0 : i32
    %c0_i32_1 = arith.constant 0 : i32
    return %c0_i32, %c0_i32_0 : i32, i32
  }
  func.func @transform_5(%arg0: i32, %arg1: i32) -> (i32, i32, i32) {
    %c0_i32 = arith.constant 0 : i32
    %c0_i32_0 = arith.constant 0 : i32
    return %arg0, %c0_i32, %arg1 : i32, i32, i32
  }
  func.func @transform_6(%arg0: i32, %arg1: i32) -> (i32, i32, i32) {
    %c0_i32 = arith.constant 0 : i32
    %c0_i32_0 = arith.constant 0 : i32
    return %arg0, %c0_i32, %arg1 : i32, i32, i32
  }
  func.func @transform_7(%arg0: i32, %arg1: i32) -> (i32, i32, i32) {
    %c0_i32 = arith.constant 0 : i32
    %c0_i32_0 = arith.constant 0 : i32
    return %arg0, %c0_i32, %arg1 : i32, i32, i32
  }
}

module attributes {stable_mosaic.version = 11 : i64} {
  func.func @_feature_stats_kernel(%arg0: i32, %arg1: i32, %arg2: memref<1x16x16xf32, #tpu.memory_space<vmem>>, %arg3: memref<1x16x16xf32, #tpu.memory_space<vmem>>, %arg4: memref<1x16x16xf32, #tpu.memory_space<vmem>>, %arg5: memref<3x1x16x16xf32, #tpu.memory_space<vmem>>, %arg6: memref<2xf32, #tpu.memory_space<smem>>) attributes {dimension_semantics = [#tpu.dimension_semantics<arbitrary>, #tpu.dimension_semantics<arbitrary>], iteration_bounds = array<i64: 2, 1>, scalar_prefetch = 0 : i64, scratch_operands = 0 : i64, tpu.core_type = #tpu.core_type<tc>, window_params = [{transform_indices = @transform_0, window_bounds = array<i64: 1, 16, 16>}, {transform_indices = @transform_1, window_bounds = array<i64: 1, 16, 16>}, {transform_indices = @transform_2, window_bounds = array<i64: 1, 16, 16>}, {transform_indices = @transform_3, window_bounds = array<i64: 3, 1, 16, 16>}, {transform_indices = @transform_4, window_bounds = array<i64: 2>}]} {
    %c0_i32 = arith.constant 0 : i32
    %0 = arith.cmpi eq, %arg0, %c0_i32 : i32
    %c0_i32_0 = arith.constant 0 : i32
    %1 = arith.cmpi eq, %arg1, %c0_i32_0 : i32
    %2 = arith.andi %0, %1 : i1
    %3 = arith.extui %2 : i1 to i32
    %c0_i32_1 = arith.constant 0 : i32
    %4 = arith.cmpi ne, %3, %c0_i32_1 : i32
    scf.if %4 {
      %cst_44 = arith.constant 0.000000e+00 : f32
      %c0_45 = arith.constant 0 : index
      %56 = memref.load %arg6[%c0_45] : memref<2xf32, #tpu.memory_space<smem>>
      memref.store %cst_44, %arg6[%c0_45] : memref<2xf32, #tpu.memory_space<smem>>
      %cst_46 = arith.constant 0.000000e+00 : f32
      %c1_47 = arith.constant 1 : index
      %57 = memref.load %arg6[%c1_47] : memref<2xf32, #tpu.memory_space<smem>>
      memref.store %cst_46, %arg6[%c1_47] : memref<2xf32, #tpu.memory_space<smem>>
    } else {
    }
    %c0_i32_2 = arith.constant 0 : i32
    %5 = arith.cmpi eq, %arg1, %c0_i32_2 : i32
    %6 = arith.extui %5 : i1 to i32
    %c0_i32_3 = arith.constant 0 : i32
    %7 = arith.cmpi ne, %6, %c0_i32_3 : i32
    scf.if %7 {
      %cst_44 = arith.constant 0.000000e+00 : f32
      %56 = vector.broadcast %cst_44 : f32 to vector<3x1x16x16xf32>
      %c0_45 = arith.constant 0 : index
      %c0_46 = arith.constant 0 : index
      %c0_47 = arith.constant 0 : index
      %c0_48 = arith.constant 0 : index
      %57 = vector.load %arg5[%c0_45, %c0_46, %c0_47, %c0_48] : memref<3x1x16x16xf32, #tpu.memory_space<vmem>>, vector<3x1x16x16xf32>
      tpu.vector_store %arg5[%c0_45, %c0_46, %c0_47, %c0_48], %56 {strides = array<i32>} : memref<3x1x16x16xf32, #tpu.memory_space<vmem>>, vector<3x1x16x16xf32>,
    } else {
    }
    %c0 = arith.constant 0 : index
    %c0_4 = arith.constant 0 : index
    %c0_5 = arith.constant 0 : index
    %8 = vector.load %arg2[%c0, %c0_4, %c0_5] : memref<1x16x16xf32, #tpu.memory_space<vmem>>, vector<1x16x16xf32>
    %9 = vector.shape_cast %8 : vector<1x16x16xf32> to vector<16x16xf32>
    %c0_6 = arith.constant 0 : index
    %c0_7 = arith.constant 0 : index
    %c0_8 = arith.constant 0 : index
    %10 = vector.load %arg3[%c0_6, %c0_7, %c0_8] : memref<1x16x16xf32, #tpu.memory_space<vmem>>, vector<1x16x16xf32>
    %11 = vector.shape_cast %10 : vector<1x16x16xf32> to vector<16x16xf32>
    %c0_9 = arith.constant 0 : index
    %c0_10 = arith.constant 0 : index
    %c0_11 = arith.constant 0 : index
    %12 = vector.load %arg4[%c0_9, %c0_10, %c0_11] : memref<1x16x16xf32, #tpu.memory_space<vmem>>, vector<1x16x16xf32>
    %13 = vector.shape_cast %12 : vector<1x16x16xf32> to vector<16x16xf32>
    %c0_12 = arith.constant 0 : index
    %c0_13 = arith.constant 0 : index
    %c0_14 = arith.constant 0 : index
    %c0_15 = arith.constant 0 : index
    %14 = vector.load %arg5[%c0_12, %c0_13, %c0_14, %c0_15] : memref<3x1x16x16xf32, #tpu.memory_space<vmem>>, vector<1x1x16x16xf32>
    %15 = vector.shape_cast %14 : vector<1x1x16x16xf32> to vector<16x16xf32>
    %cst = arith.constant dense<0.000000e+00> : vector<16x16xf32>
    %16 = tpu.matmul %9, %9, %cst {dimension_numbers = #tpu.dot_dimension_numbers<[1], [1], [0], [0], [0, 0, 1, 0], [], []>} : vector<16x16xf32>, vector<16x16xf32>, vector<16x16xf32> -> vector<16x16xf32>
    %17 = arith.addf %15, %16 : vector<16x16xf32>
    %c0_16 = arith.constant 0 : index
    %c0_17 = arith.constant 0 : index
    %c0_18 = arith.constant 0 : index
    %c0_19 = arith.constant 0 : index
    %18 = vector.load %arg5[%c0_16, %c0_17, %c0_18, %c0_19] : memref<3x1x16x16xf32, #tpu.memory_space<vmem>>, vector<1x1x16x16xf32>
    %19 = vector.shape_cast %18 : vector<1x1x16x16xf32> to vector<16x16xf32>
    %20 = vector.shape_cast %17 : vector<16x16xf32> to vector<1x1x16x16xf32>
    tpu.vector_store %arg5[%c0_16, %c0_17, %c0_18, %c0_19], %20 {strides = array<i32>} : memref<3x1x16x16xf32, #tpu.memory_space<vmem>>, vector<1x1x16x16xf32>,
    %c1 = arith.constant 1 : index
    %c0_20 = arith.constant 0 : index
    %c0_21 = arith.constant 0 : index
    %c0_22 = arith.constant 0 : index
    %21 = vector.load %arg5[%c1, %c0_20, %c0_21, %c0_22] : memref<3x1x16x16xf32, #tpu.memory_space<vmem>>, vector<1x1x16x16xf32>
    %22 = vector.shape_cast %21 : vector<1x1x16x16xf32> to vector<16x16xf32>
    %cst_23 = arith.constant dense<0.000000e+00> : vector<16x16xf32>
    %23 = tpu.matmul %11, %11, %cst_23 {dimension_numbers = #tpu.dot_dimension_numbers<[1], [1], [0], [0], [0, 0, 1, 0], [], []>} : vector<16x16xf32>, vector<16x16xf32>, vector<16x16xf32> -> vector<16x16xf32>
    %24 = arith.addf %22, %23 : vector<16x16xf32>
    %c1_24 = arith.constant 1 : index
    %c0_25 = arith.constant 0 : index
    %c0_26 = arith.constant 0 : index
    %c0_27 = arith.constant 0 : index
    %25 = vector.load %arg5[%c1_24, %c0_25, %c0_26, %c0_27] : memref<3x1x16x16xf32, #tpu.memory_space<vmem>>, vector<1x1x16x16xf32>
    %26 = vector.shape_cast %25 : vector<1x1x16x16xf32> to vector<16x16xf32>
    %27 = vector.shape_cast %24 : vector<16x16xf32> to vector<1x1x16x16xf32>
    tpu.vector_store %arg5[%c1_24, %c0_25, %c0_26, %c0_27], %27 {strides = array<i32>} : memref<3x1x16x16xf32, #tpu.memory_space<vmem>>, vector<1x1x16x16xf32>,
    %c2 = arith.constant 2 : index
    %c0_28 = arith.constant 0 : index
    %c0_29 = arith.constant 0 : index
    %c0_30 = arith.constant 0 : index
    %28 = vector.load %arg5[%c2, %c0_28, %c0_29, %c0_30] : memref<3x1x16x16xf32, #tpu.memory_space<vmem>>, vector<1x1x16x16xf32>
    %29 = vector.shape_cast %28 : vector<1x1x16x16xf32> to vector<16x16xf32>
    %cst_31 = arith.constant dense<0.000000e+00> : vector<16x16xf32>
    %30 = tpu.matmul %13, %13, %cst_31 {dimension_numbers = #tpu.dot_dimension_numbers<[1], [1], [0], [0], [0, 0, 1, 0], [], []>} : vector<16x16xf32>, vector<16x16xf32>, vector<16x16xf32> -> vector<16x16xf32>
    %31 = arith.addf %29, %30 : vector<16x16xf32>
    %c2_32 = arith.constant 2 : index
    %c0_33 = arith.constant 0 : index
    %c0_34 = arith.constant 0 : index
    %c0_35 = arith.constant 0 : index
    %32 = vector.load %arg5[%c2_32, %c0_33, %c0_34, %c0_35] : memref<3x1x16x16xf32, #tpu.memory_space<vmem>>, vector<1x1x16x16xf32>
    %33 = vector.shape_cast %32 : vector<1x1x16x16xf32> to vector<16x16xf32>
    %34 = vector.shape_cast %31 : vector<16x16xf32> to vector<1x1x16x16xf32>
    tpu.vector_store %arg5[%c2_32, %c0_33, %c0_34, %c0_35], %34 {strides = array<i32>} : memref<3x1x16x16xf32, #tpu.memory_space<vmem>>, vector<1x1x16x16xf32>,
    %c0_36 = arith.constant 0 : index
    %35 = memref.load %arg6[%c0_36] : memref<2xf32, #tpu.memory_space<smem>>
    %36 = arith.subf %9, %13 : vector<16x16xf32>
    %37 = math.absf %36 : vector<16x16xf32>
    %38 = vector.shape_cast %37 : vector<16x16xf32> to vector<1x16x16xf32>
    %cst_37 = arith.constant dense<0.000000e+00> : vector<1xf32>
    %39 = vector.multi_reduction <add>, %38, %cst_37 [1, 2] : vector<1x16x16xf32> to vector<1xf32>
    %40 = vector.shape_cast %39 : vector<1xf32> to vector<1x1x1xf32>
    %41 = vector.extract %40[0, 0, 0] : f32 from vector<1x1x1xf32>
    %42 = arith.addf %35, %41 : f32
    %c0_38 = arith.constant 0 : index
    %43 = memref.load %arg6[%c0_38] : memref<2xf32, #tpu.memory_space<smem>>
    memref.store %42, %arg6[%c0_38] : memref<2xf32, #tpu.memory_space<smem>>
    %c1_39 = arith.constant 1 : index
    %44 = memref.load %arg6[%c1_39] : memref<2xf32, #tpu.memory_space<smem>>
    %45 = arith.subf %11, %13 : vector<16x16xf32>
    %46 = math.absf %45 : vector<16x16xf32>
    %47 = vector.shape_cast %46 : vector<16x16xf32> to vector<1x16x16xf32>
    %cst_40 = arith.constant dense<0.000000e+00> : vector<1xf32>
    %48 = vector.multi_reduction <add>, %47, %cst_40 [1, 2] : vector<1x16x16xf32> to vector<1xf32>
    %49 = vector.shape_cast %48 : vector<1xf32> to vector<1x1x1xf32>
    %50 = vector.extract %49[0, 0, 0] : f32 from vector<1x1x1xf32>
    %51 = arith.addf %44, %50 : f32
    %c1_41 = arith.constant 1 : index
    %52 = memref.load %arg6[%c1_41] : memref<2xf32, #tpu.memory_space<smem>>
    memref.store %51, %arg6[%c1_41] : memref<2xf32, #tpu.memory_space<smem>>
    %c0_i32_42 = arith.constant 0 : i32
    %53 = arith.cmpi eq, %arg1, %c0_i32_42 : i32
    %54 = arith.extui %53 : i1 to i32
    %c0_i32_43 = arith.constant 0 : i32
    %55 = arith.cmpi ne, %54, %c0_i32_43 : i32
    scf.if %55 {
      %c0_44 = arith.constant 0 : index
      %c0_45 = arith.constant 0 : index
      %c0_46 = arith.constant 0 : index
      %c0_47 = arith.constant 0 : index
      %56 = vector.load %arg5[%c0_44, %c0_45, %c0_46, %c0_47] : memref<3x1x16x16xf32, #tpu.memory_space<vmem>>, vector<3x1x16x16xf32>
      %cst_48 = arith.constant 3.906250e-03 : f32
      %57 = vector.broadcast %cst_48 : f32 to vector<3x1x16x16xf32>
      %58 = arith.mulf %56, %57 : vector<3x1x16x16xf32>
      %c0_49 = arith.constant 0 : index
      %c0_50 = arith.constant 0 : index
      %c0_51 = arith.constant 0 : index
      %c0_52 = arith.constant 0 : index
      %59 = vector.load %arg5[%c0_49, %c0_50, %c0_51, %c0_52] : memref<3x1x16x16xf32, #tpu.memory_space<vmem>>, vector<3x1x16x16xf32>
      tpu.vector_store %arg5[%c0_49, %c0_50, %c0_51, %c0_52], %58 {strides = array<i32>} : memref<3x1x16x16xf32, #tpu.memory_space<vmem>>, vector<3x1x16x16xf32>,
    } else {
    }
    return
  }
  func.func @transform_0(%arg0: i32, %arg1: i32) -> (i32, i32, i32) {
    %c0_i32 = arith.constant 0 : i32
    %c0_i32_0 = arith.constant 0 : i32
    return %arg0, %c0_i32, %arg1 : i32, i32, i32
  }
  func.func @transform_1(%arg0: i32, %arg1: i32) -> (i32, i32, i32) {
    %c0_i32 = arith.constant 0 : i32
    %c0_i32_0 = arith.constant 0 : i32
    return %arg0, %c0_i32, %arg1 : i32, i32, i32
  }
  func.func @transform_2(%arg0: i32, %arg1: i32) -> (i32, i32, i32) {
    %c0_i32 = arith.constant 0 : i32
    %c0_i32_0 = arith.constant 0 : i32
    return %arg0, %c0_i32, %arg1 : i32, i32, i32
  }
  func.func @transform_3(%arg0: i32, %arg1: i32) -> (i32, i32, i32, i32) {
    %c0_i32 = arith.constant 0 : i32
    %c0_i32_0 = arith.constant 0 : i32
    %c0_i32_1 = arith.constant 0 : i32
    %c0_i32_2 = arith.constant 0 : i32
    return %c0_i32, %arg0, %c0_i32_0, %c0_i32_1 : i32, i32, i32, i32
  }
  func.func @transform_4(%arg0: i32, %arg1: i32) -> i32 {
    %c0_i32 = arith.constant 0 : i32
    %c0_i32_0 = arith.constant 0 : i32
    return %c0_i32 : i32
  }
}

module attributes {stable_mosaic.version = 11 : i64} {
  func.func @_feature_stats_kernel(%arg0: i32, %arg1: i32, %arg2: memref<1x32x4xf32, #tpu.memory_space<vmem>>, %arg3: memref<1x32x4xf32, #tpu.memory_space<vmem>>, %arg4: memref<1x32x4xf32, #tpu.memory_space<vmem>>, %arg5: memref<3x1x32x32xf32, #tpu.memory_space<vmem>>, %arg6: memref<2xf32, #tpu.memory_space<smem>>) attributes {dimension_semantics = [#tpu.dimension_semantics<arbitrary>, #tpu.dimension_semantics<arbitrary>], iteration_bounds = array<i64: 2, 1>, scalar_prefetch = 0 : i64, scratch_operands = 0 : i64, tpu.core_type = #tpu.core_type<tc>, window_params = [{transform_indices = @transform_0, window_bounds = array<i64: 1, 32, 4>}, {transform_indices = @transform_1, window_bounds = array<i64: 1, 32, 4>}, {transform_indices = @transform_2, window_bounds = array<i64: 1, 32, 4>}, {transform_indices = @transform_3, window_bounds = array<i64: 3, 1, 32, 32>}, {transform_indices = @transform_4, window_bounds = array<i64: 2>}]} {
    %c0_i32 = arith.constant 0 : i32
    %0 = arith.cmpi eq, %arg0, %c0_i32 : i32
    %c0_i32_0 = arith.constant 0 : i32
    %1 = arith.cmpi eq, %arg1, %c0_i32_0 : i32
    %2 = arith.andi %0, %1 : i1
    %3 = arith.extui %2 : i1 to i32
    %c0_i32_1 = arith.constant 0 : i32
    %4 = arith.cmpi ne, %3, %c0_i32_1 : i32
    scf.if %4 {
      %cst_44 = arith.constant 0.000000e+00 : f32
      %c0_45 = arith.constant 0 : index
      %56 = memref.load %arg6[%c0_45] : memref<2xf32, #tpu.memory_space<smem>>
      memref.store %cst_44, %arg6[%c0_45] : memref<2xf32, #tpu.memory_space<smem>>
      %cst_46 = arith.constant 0.000000e+00 : f32
      %c1_47 = arith.constant 1 : index
      %57 = memref.load %arg6[%c1_47] : memref<2xf32, #tpu.memory_space<smem>>
      memref.store %cst_46, %arg6[%c1_47] : memref<2xf32, #tpu.memory_space<smem>>
    } else {
    }
    %c0_i32_2 = arith.constant 0 : i32
    %5 = arith.cmpi eq, %arg1, %c0_i32_2 : i32
    %6 = arith.extui %5 : i1 to i32
    %c0_i32_3 = arith.constant 0 : i32
    %7 = arith.cmpi ne, %6, %c0_i32_3 : i32
    scf.if %7 {
      %cst_44 = arith.constant 0.000000e+00 : f32
      %56 = vector.broadcast %cst_44 : f32 to vector<3x1x32x32xf32>
      %c0_45 = arith.constant 0 : index
      %c0_46 = arith.constant 0 : index
      %c0_47 = arith.constant 0 : index
      %c0_48 = arith.constant 0 : index
      %57 = vector.load %arg5[%c0_45, %c0_46, %c0_47, %c0_48] : memref<3x1x32x32xf32, #tpu.memory_space<vmem>>, vector<3x1x32x32xf32>
      tpu.vector_store %arg5[%c0_45, %c0_46, %c0_47, %c0_48], %56 {strides = array<i32>} : memref<3x1x32x32xf32, #tpu.memory_space<vmem>>, vector<3x1x32x32xf32>,
    } else {
    }
    %c0 = arith.constant 0 : index
    %c0_4 = arith.constant 0 : index
    %c0_5 = arith.constant 0 : index
    %8 = vector.load %arg2[%c0, %c0_4, %c0_5] : memref<1x32x4xf32, #tpu.memory_space<vmem>>, vector<1x32x4xf32>
    %9 = vector.shape_cast %8 : vector<1x32x4xf32> to vector<32x4xf32>
    %c0_6 = arith.constant 0 : index
    %c0_7 = arith.constant 0 : index
    %c0_8 = arith.constant 0 : index
    %10 = vector.load %arg3[%c0_6, %c0_7, %c0_8] : memref<1x32x4xf32, #tpu.memory_space<vmem>>, vector<1x32x4xf32>
    %11 = vector.shape_cast %10 : vector<1x32x4xf32> to vector<32x4xf32>
    %c0_9 = arith.constant 0 : index
    %c0_10 = arith.constant 0 : index
    %c0_11 = arith.constant 0 : index
    %12 = vector.load %arg4[%c0_9, %c0_10, %c0_11] : memref<1x32x4xf32, #tpu.memory_space<vmem>>, vector<1x32x4xf32>
    %13 = vector.shape_cast %12 : vector<1x32x4xf32> to vector<32x4xf32>
    %c0_12 = arith.constant 0 : index
    %c0_13 = arith.constant 0 : index
    %c0_14 = arith.constant 0 : index
    %c0_15 = arith.constant 0 : index
    %14 = vector.load %arg5[%c0_12, %c0_13, %c0_14, %c0_15] : memref<3x1x32x32xf32, #tpu.memory_space<vmem>>, vector<1x1x32x32xf32>
    %15 = vector.shape_cast %14 : vector<1x1x32x32xf32> to vector<32x32xf32>
    %cst = arith.constant dense<0.000000e+00> : vector<32x32xf32>
    %16 = tpu.matmul %9, %9, %cst {dimension_numbers = #tpu.dot_dimension_numbers<[1], [1], [0], [0], [0, 0, 1, 0], [], []>} : vector<32x4xf32>, vector<32x4xf32>, vector<32x32xf32> -> vector<32x32xf32>
    %17 = arith.addf %15, %16 : vector<32x32xf32>
    %c0_16 = arith.constant 0 : index
    %c0_17 = arith.constant 0 : index
    %c0_18 = arith.constant 0 : index
    %c0_19 = arith.constant 0 : index
    %18 = vector.load %arg5[%c0_16, %c0_17, %c0_18, %c0_19] : memref<3x1x32x32xf32, #tpu.memory_space<vmem>>, vector<1x1x32x32xf32>
    %19 = vector.shape_cast %18 : vector<1x1x32x32xf32> to vector<32x32xf32>
    %20 = vector.shape_cast %17 : vector<32x32xf32> to vector<1x1x32x32xf32>
    tpu.vector_store %arg5[%c0_16, %c0_17, %c0_18, %c0_19], %20 {strides = array<i32>} : memref<3x1x32x32xf32, #tpu.memory_space<vmem>>, vector<1x1x32x32xf32>,
    %c1 = arith.constant 1 : index
    %c0_20 = arith.constant 0 : index
    %c0_21 = arith.constant 0 : index
    %c0_22 = arith.constant 0 : index
    %21 = vector.load %arg5[%c1, %c0_20, %c0_21, %c0_22] : memref<3x1x32x32xf32, #tpu.memory_space<vmem>>, vector<1x1x32x32xf32>
    %22 = vector.shape_cast %21 : vector<1x1x32x32xf32> to vector<32x32xf32>
    %cst_23 = arith.constant dense<0.000000e+00> : vector<32x32xf32>
    %23 = tpu.matmul %11, %11, %cst_23 {dimension_numbers = #tpu.dot_dimension_numbers<[1], [1], [0], [0], [0, 0, 1, 0], [], []>} : vector<32x4xf32>, vector<32x4xf32>, vector<32x32xf32> -> vector<32x32xf32>
    %24 = arith.addf %22, %23 : vector<32x32xf32>
    %c1_24 = arith.constant 1 : index
    %c0_25 = arith.constant 0 : index
    %c0_26 = arith.constant 0 : index
    %c0_27 = arith.constant 0 : index
    %25 = vector.load %arg5[%c1_24, %c0_25, %c0_26, %c0_27] : memref<3x1x32x32xf32, #tpu.memory_space<vmem>>, vector<1x1x32x32xf32>
    %26 = vector.shape_cast %25 : vector<1x1x32x32xf32> to vector<32x32xf32>
    %27 = vector.shape_cast %24 : vector<32x32xf32> to vector<1x1x32x32xf32>
    tpu.vector_store %arg5[%c1_24, %c0_25, %c0_26, %c0_27], %27 {strides = array<i32>} : memref<3x1x32x32xf32, #tpu.memory_space<vmem>>, vector<1x1x32x32xf32>,
    %c2 = arith.constant 2 : index
    %c0_28 = arith.constant 0 : index
    %c0_29 = arith.constant 0 : index
    %c0_30 = arith.constant 0 : index
    %28 = vector.load %arg5[%c2, %c0_28, %c0_29, %c0_30] : memref<3x1x32x32xf32, #tpu.memory_space<vmem>>, vector<1x1x32x32xf32>
    %29 = vector.shape_cast %28 : vector<1x1x32x32xf32> to vector<32x32xf32>
    %cst_31 = arith.constant dense<0.000000e+00> : vector<32x32xf32>
    %30 = tpu.matmul %13, %13, %cst_31 {dimension_numbers = #tpu.dot_dimension_numbers<[1], [1], [0], [0], [0, 0, 1, 0], [], []>} : vector<32x4xf32>, vector<32x4xf32>, vector<32x32xf32> -> vector<32x32xf32>
    %31 = arith.addf %29, %30 : vector<32x32xf32>
    %c2_32 = arith.constant 2 : index
    %c0_33 = arith.constant 0 : index
    %c0_34 = arith.constant 0 : index
    %c0_35 = arith.constant 0 : index
    %32 = vector.load %arg5[%c2_32, %c0_33, %c0_34, %c0_35] : memref<3x1x32x32xf32, #tpu.memory_space<vmem>>, vector<1x1x32x32xf32>
    %33 = vector.shape_cast %32 : vector<1x1x32x32xf32> to vector<32x32xf32>
    %34 = vector.shape_cast %31 : vector<32x32xf32> to vector<1x1x32x32xf32>
    tpu.vector_store %arg5[%c2_32, %c0_33, %c0_34, %c0_35], %34 {strides = array<i32>} : memref<3x1x32x32xf32, #tpu.memory_space<vmem>>, vector<1x1x32x32xf32>,
    %c0_36 = arith.constant 0 : index
    %35 = memref.load %arg6[%c0_36] : memref<2xf32, #tpu.memory_space<smem>>
    %36 = arith.subf %9, %13 : vector<32x4xf32>
    %37 = math.absf %36 : vector<32x4xf32>
    %38 = vector.shape_cast %37 : vector<32x4xf32> to vector<1x32x4xf32>
    %cst_37 = arith.constant dense<0.000000e+00> : vector<1xf32>
    %39 = vector.multi_reduction <add>, %38, %cst_37 [1, 2] : vector<1x32x4xf32> to vector<1xf32>
    %40 = vector.shape_cast %39 : vector<1xf32> to vector<1x1x1xf32>
    %41 = vector.extract %40[0, 0, 0] : f32 from vector<1x1x1xf32>
    %42 = arith.addf %35, %41 : f32
    %c0_38 = arith.constant 0 : index
    %43 = memref.load %arg6[%c0_38] : memref<2xf32, #tpu.memory_space<smem>>
    memref.store %42, %arg6[%c0_38] : memref<2xf32, #tpu.memory_space<smem>>
    %c1_39 = arith.constant 1 : index
    %44 = memref.load %arg6[%c1_39] : memref<2xf32, #tpu.memory_space<smem>>
    %45 = arith.subf %11, %13 : vector<32x4xf32>
    %46 = math.absf %45 : vector<32x4xf32>
    %47 = vector.shape_cast %46 : vector<32x4xf32> to vector<1x32x4xf32>
    %cst_40 = arith.constant dense<0.000000e+00> : vector<1xf32>
    %48 = vector.multi_reduction <add>, %47, %cst_40 [1, 2] : vector<1x32x4xf32> to vector<1xf32>
    %49 = vector.shape_cast %48 : vector<1xf32> to vector<1x1x1xf32>
    %50 = vector.extract %49[0, 0, 0] : f32 from vector<1x1x1xf32>
    %51 = arith.addf %44, %50 : f32
    %c1_41 = arith.constant 1 : index
    %52 = memref.load %arg6[%c1_41] : memref<2xf32, #tpu.memory_space<smem>>
    memref.store %51, %arg6[%c1_41] : memref<2xf32, #tpu.memory_space<smem>>
    %c0_i32_42 = arith.constant 0 : i32
    %53 = arith.cmpi eq, %arg1, %c0_i32_42 : i32
    %54 = arith.extui %53 : i1 to i32
    %c0_i32_43 = arith.constant 0 : i32
    %55 = arith.cmpi ne, %54, %c0_i32_43 : i32
    scf.if %55 {
      %c0_44 = arith.constant 0 : index
      %c0_45 = arith.constant 0 : index
      %c0_46 = arith.constant 0 : index
      %c0_47 = arith.constant 0 : index
      %56 = vector.load %arg5[%c0_44, %c0_45, %c0_46, %c0_47] : memref<3x1x32x32xf32, #tpu.memory_space<vmem>>, vector<3x1x32x32xf32>
      %cst_48 = arith.constant 7.812500e-03 : f32
      %57 = vector.broadcast %cst_48 : f32 to vector<3x1x32x32xf32>
      %58 = arith.mulf %56, %57 : vector<3x1x32x32xf32>
      %c0_49 = arith.constant 0 : index
      %c0_50 = arith.constant 0 : index
      %c0_51 = arith.constant 0 : index
      %c0_52 = arith.constant 0 : index
      %59 = vector.load %arg5[%c0_49, %c0_50, %c0_51, %c0_52] : memref<3x1x32x32xf32, #tpu.memory_space<vmem>>, vector<3x1x32x32xf32>
      tpu.vector_store %arg5[%c0_49, %c0_50, %c0_51, %c0_52], %58 {strides = array<i32>} : memref<3x1x32x32xf32, #tpu.memory_space<vmem>>, vector<3x1x32x32xf32>,
    } else {
    }
    return
  }
  func.func @transform_0(%arg0: i32, %arg1: i32) -> (i32, i32, i32) {
    %c0_i32 = arith.constant 0 : i32
    %c0_i32_0 = arith.constant 0 : i32
    return %arg0, %c0_i32, %arg1 : i32, i32, i32
  }
  func.func @transform_1(%arg0: i32, %arg1: i32) -> (i32, i32, i32) {
    %c0_i32 = arith.constant 0 : i32
    %c0_i32_0 = arith.constant 0 : i32
    return %arg0, %c0_i32, %arg1 : i32, i32, i32
  }
  func.func @transform_2(%arg0: i32, %arg1: i32) -> (i32, i32, i32) {
    %c0_i32 = arith.constant 0 : i32
    %c0_i32_0 = arith.constant 0 : i32
    return %arg0, %c0_i32, %arg1 : i32, i32, i32
  }
  func.func @transform_3(%arg0: i32, %arg1: i32) -> (i32, i32, i32, i32) {
    %c0_i32 = arith.constant 0 : i32
    %c0_i32_0 = arith.constant 0 : i32
    %c0_i32_1 = arith.constant 0 : i32
    %c0_i32_2 = arith.constant 0 : i32
    return %c0_i32, %arg0, %c0_i32_0, %c0_i32_1 : i32, i32, i32, i32
  }
  func.func @transform_4(%arg0: i32, %arg1: i32) -> i32 {
    %c0_i32 = arith.constant 0 : i32
    %c0_i32_0 = arith.constant 0 : i32
    return %c0_i32 : i32
  }
}

module attributes {stable_mosaic.version = 11 : i64} {
  func.func @_disc_kernel(%arg0: i32, %arg1: i32, %arg2: memref<1x3x256xf32, #tpu.memory_space<vmem>>, %arg3: memref<1x1x256xf32, #tpu.memory_space<vmem>>, %arg4: memref<16x3xf32, #tpu.memory_space<vmem>>, %arg5: memref<16x3xf32, #tpu.memory_space<vmem>>, %arg6: memref<16x1xf32, #tpu.memory_space<vmem>>, %arg7: memref<16x16xf32, #tpu.memory_space<vmem>>, %arg8: memref<16x1xf32, #tpu.memory_space<vmem>>, %arg9: memref<16x1xf32, #tpu.memory_space<vmem>>, %arg10: memref<1x1xf32, #tpu.memory_space<vmem>>, %arg11: memref<1xf32, #tpu.memory_space<smem>>) attributes {dimension_semantics = [#tpu.dimension_semantics<arbitrary>, #tpu.dimension_semantics<arbitrary>], iteration_bounds = array<i64: 2, 1>, scalar_prefetch = 0 : i64, scratch_operands = 0 : i64, tpu.core_type = #tpu.core_type<tc>, window_params = [{transform_indices = @transform_0, window_bounds = array<i64: 1, 3, 256>}, {transform_indices = @transform_1, window_bounds = array<i64: 1, 1, 256>}, {pipeline_mode = #tpu.pipeline_mode<synchronous>, transform_indices = @transform_2, window_bounds = array<i64: 16, 3>}, {pipeline_mode = #tpu.pipeline_mode<synchronous>, transform_indices = @transform_3, window_bounds = array<i64: 16, 3>}, {pipeline_mode = #tpu.pipeline_mode<synchronous>, transform_indices = @transform_4, window_bounds = array<i64: 16, 1>}, {pipeline_mode = #tpu.pipeline_mode<synchronous>, transform_indices = @transform_5, window_bounds = array<i64: 16, 16>}, {pipeline_mode = #tpu.pipeline_mode<synchronous>, transform_indices = @transform_6, window_bounds = array<i64: 16, 1>}, {pipeline_mode = #tpu.pipeline_mode<synchronous>, transform_indices = @transform_7, window_bounds = array<i64: 16, 1>}, {pipeline_mode = #tpu.pipeline_mode<synchronous>, transform_indices = @transform_8, window_bounds = array<i64: 1, 1>}, {transform_indices = @transform_9, window_bounds = array<i64: 1>}]} {
    %c0_i32 = arith.constant 0 : i32
    %0 = arith.cmpi eq, %arg0, %c0_i32 : i32
    %c0_i32_0 = arith.constant 0 : i32
    %1 = arith.cmpi eq, %arg1, %c0_i32_0 : i32
    %2 = arith.andi %0, %1 : i1
    %3 = arith.extui %2 : i1 to i32
    %c0_i32_1 = arith.constant 0 : i32
    %4 = arith.cmpi ne, %3, %c0_i32_1 : i32
    scf.if %4 {
      %cst_32 = arith.constant 0.000000e+00 : f32
      %c0_33 = arith.constant 0 : index
      %53 = memref.load %arg11[%c0_33] : memref<1xf32, #tpu.memory_space<smem>>
      memref.store %cst_32, %arg11[%c0_33] : memref<1xf32, #tpu.memory_space<smem>>
    } else {
    }
    %c0 = arith.constant 0 : index
    %c0_2 = arith.constant 0 : index
    %c0_3 = arith.constant 0 : index
    %5 = vector.load %arg2[%c0, %c0_2, %c0_3] : memref<1x3x256xf32, #tpu.memory_space<vmem>>, vector<1x3x256xf32>
    %6 = vector.shape_cast %5 : vector<1x3x256xf32> to vector<3x256xf32>
    %c0_4 = arith.constant 0 : index
    %c0_5 = arith.constant 0 : index
    %c0_6 = arith.constant 0 : index
    %7 = vector.load %arg3[%c0_4, %c0_5, %c0_6] : memref<1x1x256xf32, #tpu.memory_space<vmem>>, vector<1x1x256xf32>
    %8 = vector.shape_cast %7 : vector<1x1x256xf32> to vector<1x256xf32>
    %c0_7 = arith.constant 0 : index
    %c0_8 = arith.constant 0 : index
    %9 = vector.load %arg4[%c0_7, %c0_8] : memref<16x3xf32, #tpu.memory_space<vmem>>, vector<16x3xf32>
    %10 = vector.broadcast %8 : vector<1x256xf32> to vector<3x256xf32>
    %11 = arith.mulf %6, %10 : vector<3x256xf32>
    %cst = arith.constant dense<0.000000e+00> : vector<16x256xf32>
    %12 = tpu.matmul %9, %11, %cst {dimension_numbers = #tpu.dot_dimension_numbers<[1], [0], [0], [1], [0, 0, 1, 1], [], []>} : vector<16x3xf32>, vector<3x256xf32>, vector<16x256xf32> -> vector<16x256xf32>
    %c0_9 = arith.constant 0 : index
    %c0_10 = arith.constant 0 : index
    %13 = vector.load %arg5[%c0_9, %c0_10] : memref<16x3xf32, #tpu.memory_space<vmem>>, vector<16x3xf32>
    %cst_11 = arith.constant 1.000000e+00 : f32
    %14 = vector.broadcast %cst_11 : f32 to vector<1x256xf32>
    %15 = arith.subf %14, %8 : vector<1x256xf32>
    %16 = vector.broadcast %15 : vector<1x256xf32> to vector<3x256xf32>
    %17 = arith.mulf %6, %16 : vector<3x256xf32>
    %cst_12 = arith.constant dense<0.000000e+00> : vector<16x256xf32>
    %18 = tpu.matmul %13, %17, %cst_12 {dimension_numbers = #tpu.dot_dimension_numbers<[1], [0], [0], [1], [0, 0, 1, 1], [], []>} : vector<16x3xf32>, vector<3x256xf32>, vector<16x256xf32> -> vector<16x256xf32>
    %19 = arith.addf %12, %18 : vector<16x256xf32>
    %c0_13 = arith.constant 0 : index
    %c0_14 = arith.constant 0 : index
    %20 = vector.load %arg6[%c0_13, %c0_14] : memref<16x1xf32, #tpu.memory_space<vmem>>, vector<16x1xf32>
    %21 = vector.broadcast %20 : vector<16x1xf32> to vector<16x256xf32>
    %22 = arith.addf %19, %21 : vector<16x256xf32>
    %cst_15 = arith.constant 0.000000e+00 : f32
    %23 = vector.broadcast %cst_15 : f32 to vector<16x256xf32>
    %24 = arith.cmpf ogt, %22, %23 : vector<16x256xf32>
    %cst_16 = arith.constant 2.000000e-01 : f32
    %25 = vector.broadcast %cst_16 : f32 to vector<16x256xf32>
    %26 = arith.mulf %25, %22 : vector<16x256xf32>
    %27 = arith.select %24, %22, %26 : vector<16x256xi1>, vector<16x256xf32>
    %c0_17 = arith.constant 0 : index
    %c0_18 = arith.constant 0 : index
    %28 = vector.load %arg7[%c0_17, %c0_18] : memref<16x16xf32, #tpu.memory_space<vmem>>, vector<16x16xf32>
    %cst_19 = arith.constant dense<0.000000e+00> : vector<16x256xf32>
    %29 = tpu.matmul %28, %27, %cst_19 {dimension_numbers = #tpu.dot_dimension_numbers<[1], [0], [0], [1], [0, 0, 1, 1], [], []>} : vector<16x16xf32>, vector<16x256xf32>, vector<16x256xf32> -> vector<16x256xf32>
    %c0_20 = arith.constant 0 : index
    %c0_21 = arith.constant 0 : index
    %30 = vector.load %arg8[%c0_20, %c0_21] : memref<16x1xf32, #tpu.memory_space<vmem>>, vector<16x1xf32>
    %31 = vector.broadcast %30 : vector<16x1xf32> to vector<16x256xf32>
    %32 = arith.addf %29, %31 : vector<16x256xf32>
    %cst_22 = arith.constant 0.000000e+00 : f32
    %33 = vector.broadcast %cst_22 : f32 to vector<16x256xf32>
    %34 = arith.cmpf ogt, %32, %33 : vector<16x256xf32>
    %cst_23 = arith.constant 2.000000e-01 : f32
    %35 = vector.broadcast %cst_23 : f32 to vector<16x256xf32>
    %36 = arith.mulf %35, %32 : vector<16x256xf32>
    %37 = arith.select %34, %32, %36 : vector<16x256xi1>, vector<16x256xf32>
    %c0_24 = arith.constant 0 : index
    %c0_25 = arith.constant 0 : index
    %38 = vector.load %arg9[%c0_24, %c0_25] : memref<16x1xf32, #tpu.memory_space<vmem>>, vector<16x1xf32>
    %39 = vector.broadcast %38 : vector<16x1xf32> to vector<16x256xf32>
    %40 = arith.mulf %39, %37 : vector<16x256xf32>
    %cst_26 = arith.constant dense<0.000000e+00> : vector<256xf32>
    %41 = vector.multi_reduction <add>, %40, %cst_26 [0] : vector<16x256xf32> to vector<256xf32>
    %42 = vector.shape_cast %41 : vector<256xf32> to vector<1x256xf32>
    %c0_27 = arith.constant 0 : index
    %c0_28 = arith.constant 0 : index
    %43 = vector.load %arg10[%c0_27, %c0_28] : memref<1x1xf32, #tpu.memory_space<vmem>>, vector<1x1xf32>
    %44 = vector.broadcast %43 : vector<1x1xf32> to vector<1x256xf32>
    %45 = arith.addf %42, %44 : vector<1x256xf32>
    %c0_29 = arith.constant 0 : index
    %46 = memref.load %arg11[%c0_29] : memref<1xf32, #tpu.memory_space<smem>>
    %47 = vector.shape_cast %45 : vector<1x256xf32> to vector<1x1x256xf32>
    %cst_30 = arith.constant dense<0.000000e+00> : vector<1xf32>
    %48 = vector.multi_reduction <add>, %47, %cst_30 [1, 2] : vector<1x1x256xf32> to vector<1xf32>
    %49 = vector.shape_cast %48 : vector<1xf32> to vector<1x1x1xf32>
    %50 = vector.extract %49[0, 0, 0] : f32 from vector<1x1x1xf32>
    %51 = arith.addf %46, %50 : f32
    %c0_31 = arith.constant 0 : index
    %52 = memref.load %arg11[%c0_31] : memref<1xf32, #tpu.memory_space<smem>>
    memref.store %51, %arg11[%c0_31] : memref<1xf32, #tpu.memory_space<smem>>
    return
  }
  func.func @transform_0(%arg0: i32, %arg1: i32) -> (i32, i32, i32) {
    %c0_i32 = arith.constant 0 : i32
    %c0_i32_0 = arith.constant 0 : i32
    return %arg0, %c0_i32, %arg1 : i32, i32, i32
  }
  func.func @transform_1(%arg0: i32, %arg1: i32) -> (i32, i32, i32) {
    %c0_i32 = arith.constant 0 : i32
    %c0_i32_0 = arith.constant 0 : i32
    return %arg0, %c0_i32, %arg1 : i32, i32, i32
  }
  func.func @transform_2(%arg0: i32, %arg1: i32) -> (i32, i32) {
    %c0_i32 = arith.constant 0 : i32
    %c0_i32_0 = arith.constant 0 : i32
    %c0_i32_1 = arith.constant 0 : i32
    return %c0_i32, %c0_i32_0 : i32, i32
  }
  func.func @transform_3(%arg0: i32, %arg1: i32) -> (i32, i32) {
    %c0_i32 = arith.constant 0 : i32
    %c0_i32_0 = arith.constant 0 : i32
    %c0_i32_1 = arith.constant 0 : i32
    return %c0_i32, %c0_i32_0 : i32, i32
  }
  func.func @transform_4(%arg0: i32, %arg1: i32) -> (i32, i32) {
    %c0_i32 = arith.constant 0 : i32
    %c0_i32_0 = arith.constant 0 : i32
    %c0_i32_1 = arith.constant 0 : i32
    return %c0_i32, %c0_i32_0 : i32, i32
  }
  func.func @transform_5(%arg0: i32, %arg1: i32) -> (i32, i32) {
    %c0_i32 = arith.constant 0 : i32
    %c0_i32_0 = arith.constant 0 : i32
    %c0_i32_1 = arith.constant 0 : i32
    return %c0_i32, %c0_i32_0 : i32, i32
  }
  func.func @transform_6(%arg0: i32, %arg1: i32) -> (i32, i32) {
    %c0_i32 = arith.constant 0 : i32
    %c0_i32_0 = arith.constant 0 : i32
    %c0_i32_1 = arith.constant 0 : i32
    return %c0_i32, %c0_i32_0 : i32, i32
  }
  func.func @transform_7(%arg0: i32, %arg1: i32) -> (i32, i32) {
    %c0_i32 = arith.constant 0 : i32
    %c0_i32_0 = arith.constant 0 : i32
    %c0_i32_1 = arith.constant 0 : i32
    return %c0_i32, %c0_i32_0 : i32, i32
  }
  func.func @transform_8(%arg0: i32, %arg1: i32) -> (i32, i32) {
    %c0_i32 = arith.constant 0 : i32
    %c0_i32_0 = arith.constant 0 : i32
    %c0_i32_1 = arith.constant 0 : i32
    return %c0_i32, %c0_i32_0 : i32, i32
  }
  func.func @transform_9(%arg0: i32, %arg1: i32) -> i32 {
    %c0_i32 = arith.constant 0 : i32
    %c0_i32_0 = arith.constant 0 : i32
    return %c0_i32 : i32
  }
}

</mosaic_0001>

<llo_original>
// kernel: inpainting_loss_with_gan.9
$region0: #{inpainting_loss_with_gan.9}
  #allocation0 [shape = 'u32[]', space=smem, size = 0x4, offset = 0x4, fixed_abs, tag = 'smem constant byte address 0x4 - core index']
  #allocation1 [shape = 'u32[144,128]{1,0:T(1,128)}', space=vmem, size = 0x12000, scoped, tag = 'internal scratch']
  %s0 = inlined_call_operand.vmem [shape: f32[2,1,256], index: 0, kind: input, shape index: {}]
  %s1 = inlined_call_operand.vmem [shape: f32[2,3,256], index: 1, kind: input, shape index: {}]
  %s2 = inlined_call_operand.vmem [shape: f32[2,3,256], index: 2, kind: input, shape index: {}]
  %s3 = inlined_call_operand.vmem [shape: f32[2,3,256], index: 3, kind: input, shape index: {}]
  %s4 = inlined_call_operand.vmem [shape: f32[2,3,256], index: 4, kind: output, shape index: {0}]
  %s5 = inlined_call_operand.vmem [shape: f32[2], index: 5, kind: output, shape index: {1}]
  %6 = xla_tuple %s4, %s5
  %s7 = sld [smem:[#allocation0]]
  $region38: #{inpainting_loss_with_gan.9} parent=0
    _
  %s9 = ssub.s32 1, %s7
  %s10 = scalar_select 0, %s9, %s7
  $region1: #{inpainting_loss_with_gan.9} parent=0
    #allocation2 [shape = 'u8[512]{0}', space=smem, size = 0x200, scoped, tag = 'output window, operand 1, single buffered']
    #allocation3 [shape = 's32[1]{0}', space=sflag, size = 0x4, scoped, tag = 'scoped memory for inpainting_loss_with_gan.9']
    %11 = vsyncpa [#allocation3], 0
    // Predicated region
    $region2: #{inpainting_loss_with_gan.9} parent=1 // pred_check
      _
    $region3: #{inpainting_loss_with_gan.9} parent=1 // pred_check_branch
      %13 = sbr.rel (0) target = $region5
    $region4: #{inpainting_loss_with_gan.9} parent=1 // pred_region
      _
    $region5: #{inpainting_loss_with_gan.9} parent=1 // pred_fallthru
      _
    // Predicated region
    $region6: #{inpainting_loss_with_gan.9} parent=1 // pred_check
      _
    $region7: #{inpainting_loss_with_gan.9} parent=1 // pred_check_branch
      %15 = sbr.rel (0) target = $region9
    $region8: #{inpainting_loss_with_gan.9} parent=1 // pred_region
      _
    $region9: #{inpainting_loss_with_gan.9} parent=1 // pred_fallthru
      _
    // Predicated region
    $region10: #{inpainting_loss_with_gan.9} parent=1 // pred_check
      _
    $region11: #{inpainting_loss_with_gan.9} parent=1 // pred_check_branch
      %17 = sbr.rel (0) target = $region13
    $region12: #{inpainting_loss_with_gan.9} parent=1 // pred_region
      _
    $region13: #{inpainting_loss_with_gan.9} parent=1 // pred_fallthru
      _
    // Predicated region
    $region14: #{inpainting_loss_with_gan.9} parent=1 // pred_check
      _
    $region15: #{inpainting_loss_with_gan.9} parent=1 // pred_check_branch
      %19 = sbr.rel (0) target = $region17
    $region16: #{inpainting_loss_with_gan.9} parent=1 // pred_region
      _
    $region17: #{inpainting_loss_with_gan.9} parent=1 // pred_fallthru
      _
    %p20 = scmp.eq.s32.totalorder 0, 0
    // Predicated region
    $region18: #{inpainting_loss_with_gan.9} parent=1 // pred_check
      %p21 = pneg %p20
    $region19: #{inpainting_loss_with_gan.9} parent=1 // pred_check_branch
      %23 = sbr.rel (%p21) target = $region21
    $region20: #{inpainting_loss_with_gan.9} parent=1 // pred_region
      %s24 = scalar_lea.smem [#allocation2], 0
      %25 = sst [smem:[%s24]] 0.0
      %s26 = scalar_lea.smem [#allocation2], 1
      %27 = sst [smem:[%s26]] 0.0
    $region21: #{inpainting_loss_with_gan.9} parent=1 // pred_fallthru
      _
    %v28 = vld [vmem:[%s0] sm:$0x3]
    %v29 = vld [vmem:[%s0 + $0x2] sm:$0x3]
    %v30 = vld [vmem:[%s2] sm:$0x77]
    %v31 = vld [vmem:[%s2 + $0x8] sm:$0x77]
    %v32 = vld [vmem:[%s3] sm:$0x77]
    %v33 = vld [vmem:[%s3 + $0x8] sm:$0x77]
    %v34 = vsub.f32 1.0, %v28
    %v35 = vsub.f32 1.0, %v29
    %v36 = vld [vmem:[%s1] sm:$0x77]
    %v37 = vld [vmem:[%s1 + $0x8] sm:$0x77]
    %v40 = vlaneseq
    %v41 = vshrl.u32 %v40, 7
    %v42 = vsub.s32 0, %v41
    %v43 = vrot.slane %v28, %v42
    %v44 = vlaneseq
    %v45 = vshrl.u32 %v44, 7
    %v46 = vsub.s32 1, %v45
    %v47 = vrot.slane %v28, %v46
    %v48 = vlaneseq
    %v49 = vshrl.u32 %v48, 7
    %v50 = vsub.s32 0, %v49
    %v51 = vrot.slane %v29, %v50
    %v52 = vlaneseq
    %v53 = vshrl.u32 %v52, 7
    %v54 = vsub.s32 1, %v53
    %v55 = vrot.slane %v29, %v54
    %v62 = vcombine.high %v36, %v36
    %v63 = vcombine.high %v37, %v37
    %v66 = vmul.f32 %v43, %v36
    %v67 = vmul.f32 %v47, %v62
    %v68 = vmul.f32 %v51, %v37
    %v69 = vmul.f32 %v55, %v63
    %v72 = vlaneseq
    %v73 = vshrl.u32 %v72, 7
    %v74 = vsub.s32 0, %v73
    %v75 = vrot.slane %v34, %v74
    %v76 = vlaneseq
    %v77 = vshrl.u32 %v76, 7
    %v78 = vsub.s32 1, %v77
    %v79 = vrot.slane %v34, %v78
    %v80 = vlaneseq
    %v81 = vshrl.u32 %v80, 7
    %v82 = vsub.s32 0, %v81
    %v83 = vrot.slane %v35, %v82
    %v84 = vlaneseq
    %v85 = vshrl.u32 %v84, 7
    %v86 = vsub.s32 1, %v85
    %v87 = vrot.slane %v35, %v86
    %v94 = vcombine.high %v30, %v30
    %v95 = vcombine.high %v31, %v31
    %v98 = vmul.f32 %v75, %v30
    %v99 = vmul.f32 %v79, %v94
    %v100 = vmul.f32 %v83, %v31
    %v101 = vmul.f32 %v87, %v95
    %v102 = vadd.f32 %v66, %v98
    %v103 = vadd.f32 %v67, %v99
    %v104 = vadd.f32 %v68, %v100
    %v105 = vadd.f32 %v69, %v101
    %v110 = vcombine.low %v102, %v103
    %v111 = vcombine.low %v104, %v105
    %114 = vst [vmem:[%s4] sm:$0x77] %v110
    %115 = vst [vmem:[%s4 + $0x8] sm:$0x77] %v111
    %s116 = sld [smem:[#allocation2]]
    %v119 = vcombine.high %v32, %v32
    %v120 = vcombine.high %v33, %v33
    %v123 = vmul.f32 %v75, %v32
    %v124 = vmul.f32 %v79, %v119
    %v125 = vmul.f32 %v83, %v33
    %v126 = vmul.f32 %v87, %v120
    %v127 = vsub.f32 %v98, %v123
    %v128 = vsub.f32 %v99, %v124
    %v129 = vsub.f32 %v100, %v125
    %v130 = vsub.f32 %v101, %v126
    %v131 = vand.u32 2147483647, %v127
    %v132 = vand.u32 2147483647, %v128
    %v133 = vand.u32 2147483647, %v129
    %v134 = vand.u32 2147483647, %v130
    %vm135 = vcmask 1042432
    %v136 = vsel %vm135, %v131, 0.0
    %v137 = vsel %vm135, %v132, 0.0
    %v138 = vadd.f32 %v136, %v137
    %v139 = vsel %vm135, %v133, 0.0
    %v140 = vadd.f32 %v138, %v139
    %v141 = vsel %vm135, %v134, 0.0
    %v142 = vadd.f32 %v140, %v141
    %143 = vadd.xlane.f32.xlu0 %v142
    %v144 = vpop.xlane.xlu0 %143
    %v145 = vrot.slane %v144, 4
    %v146 = vadd.f32 %v144, %v145
    %v147 = vrot.slane %v146, 2
    %v148 = vadd.f32 %v146, %v147
    %v149 = vrot.slane %v148, 1
    %v150 = vadd.f32 %v148, %v149
    %s151 = vtos %v150
    %s152 = sadd.f32 %s116, %s151
    %s153 = scalar_lea.smem [#allocation2], 0
    %154 = sst [smem:[%s153]] %s152
    %s155 = sld [smem:[#allocation2 + $0x1]]
    %v156 = vmul.f32 %v43, %v30
    %v157 = vmul.f32 %v47, %v94
    %v158 = vmul.f32 %v51, %v31
    %v159 = vmul.f32 %v55, %v95
    %v160 = vmul.f32 %v43, %v32
    %v161 = vmul.f32 %v47, %v119
    %v162 = vmul.f32 %v51, %v33
    %v163 = vmul.f32 %v55, %v120
    %v164 = vsub.f32 %v156, %v160
    %v165 = vsub.f32 %v157, %v161
    %v166 = vsub.f32 %v158, %v162
    %v167 = vsub.f32 %v159, %v163
    %v168 = vand.u32 2147483647, %v164
    %v169 = vand.u32 2147483647, %v165
    %v170 = vand.u32 2147483647, %v166
    %v171 = vand.u32 2147483647, %v167
    %v172 = vsel %vm135, %v168, 0.0
    %v173 = vsel %vm135, %v169, 0.0
    %v174 = vadd.f32 %v172, %v173
    %v175 = vsel %vm135, %v170, 0.0
    %v176 = vadd.f32 %v174, %v175
    %v177 = vsel %vm135, %v171, 0.0
    %v178 = vadd.f32 %v176, %v177
    %179 = vadd.xlane.f32.xlu0 %v178
    %v180 = vpop.xlane.xlu0 %179
    %v181 = vrot.slane %v180, 4
    %v182 = vadd.f32 %v180, %v181
    %v183 = vrot.slane %v182, 2
    %v184 = vadd.f32 %v182, %v183
    %v185 = vrot.slane %v184, 1
    %v186 = vadd.f32 %v184, %v185
    %s187 = vtos %v186
    %s188 = sadd.f32 %s155, %s187
    %s189 = scalar_lea.smem [#allocation2], 1
    %190 = sst [smem:[%s189]] %s188
    // Predicated region
    $region22: #{inpainting_loss_with_gan.9} parent=1 // pred_check
      _
    $region23: #{inpainting_loss_with_gan.9} parent=1 // pred_check_branch
      %192 = sbr.rel (0) target = $region25
    $region24: #{inpainting_loss_with_gan.9} parent=1 // pred_region
      _
    $region25: #{inpainting_loss_with_gan.9} parent=1 // pred_fallthru
      _
    // Predicated region
    $region26: #{inpainting_loss_with_gan.9} parent=1 // pred_check
      _
    $region27: #{inpainting_loss_with_gan.9} parent=1 // pred_check_branch
      %194 = sbr.rel (0) target = $region29
    $region28: #{inpainting_loss_with_gan.9} parent=1 // pred_region
      %s196 = ssub.s32 16, 16
      %197 = vsyncadd [#allocation3], %s196
      %s199 = sshll.u32 %s5, 4
      %s200 = int_to_ptr.vmem [resolvable:$true] %s199
      %202 = dma.smem_to_vmem [#allocation2], 16, %s200, [#allocation3]
    $region29: #{inpainting_loss_with_gan.9} parent=1 // pred_fallthru
      _
    // Predicated region
    $region30: #{inpainting_loss_with_gan.9} parent=1 // pred_check
      _
    $region31: #{inpainting_loss_with_gan.9} parent=1 // pred_check_branch
      %204 = sbr.rel (0) target = $region33
    $region32: #{inpainting_loss_with_gan.9} parent=1 // pred_region
      _
    $region33: #{inpainting_loss_with_gan.9} parent=1 // pred_fallthru
      _
    // Predicated region
    $region34: #{inpainting_loss_with_gan.9} parent=1 // pred_check
      _
    $region35: #{inpainting_loss_with_gan.9} parent=1 // pred_check_branch
      %206 = sbr.rel (0) target = $region37
    $region36: #{inpainting_loss_with_gan.9} parent=1 // pred_region
      %207 = dma.done [#allocation3], 16
    $region37: #{inpainting_loss_with_gan.9} parent=1 // pred_fallthru
      _
    %208 = sfence
    %209 = vsyncpa [#allocation3], 1

// kernel: inpainting_loss_with_gan.10
$region0: #{inpainting_loss_with_gan.10}
  #allocation0 [shape = 'u32[]', space=smem, size = 0x4, offset = 0x4, fixed_abs, tag = 'smem constant byte address 0x4 - core index']
  #allocation1 [shape = 'u32[144,128]{1,0:T(1,128)}', space=vmem, size = 0x12000, scoped, tag = 'internal scratch']
  %s0 = inlined_call_operand.vmem [shape: f32[2,3,256], index: 0, kind: input, shape index: {}]
  %s1 = inlined_call_operand.vmem [shape: f32[2,3,256], index: 1, kind: input, shape index: {}]
  %s2 = inlined_call_operand.vmem [shape: f32[2,3,256], index: 2, kind: input, shape index: {}]
  %s3 = inlined_call_operand.vmem [shape: f32[8,3], index: 3, kind: input, shape index: {}]
  %s4 = inlined_call_operand.vmem [shape: f32[8,1], index: 4, kind: input, shape index: {}]
  %s5 = inlined_call_operand.vmem [shape: f32[2,8,256], index: 5, kind: output, shape index: {0}]
  %s6 = inlined_call_operand.vmem [shape: f32[2,8,256], index: 6, kind: output, shape index: {1}]
  %s7 = inlined_call_operand.vmem [shape: f32[2,8,256], index: 7, kind: output, shape index: {2}]
  %8 = xla_tuple %s5, %s6, %s7
  %s9 = sld [smem:[#allocation0]]
  $region69: #{inpainting_loss_with_gan.10} parent=0
    _
  %s11 = ssub.s32 1, %s9
  %s12 = scalar_select 0, %s11, %s9
  loop: start=0, step=1, limit=4
  $region2: #{inpainting_loss_with_gan.10} parent=0 // loop_pre_header
    _
  $region3: #{inpainting_loss_with_gan.10} parent=0 // loop_header
    %s14 = sphi 0, %s18
    %p15 = scmp.ge.s32.totalorder %s14, 4
    %s21 = sphi 0, %s33
    %s22 = sphi 0, %s29
    %s23 = sphi 0, %s21
    %s24 = sphi 0, %s22
    %s25 = sphi 0, %s23
    %s26 = sphi 0, %s24
    %s38 = sphi 0, %s40
    %s41 = sphi 0, %s38
    %s42 = sphi 0, %s41
    %s58 = sphi 0, %s42
    %s66 = sphi 0, %s68
    %s69 = sphi 0, %s66
    %s70 = sphi 0, %s69
    %s86 = sphi 0, %s70
    %s94 = sphi 0, %s96
    %s97 = sphi 0, %s94
    %s98 = sphi 0, %s97
    %s114 = sphi 0, %s98
    %s118 = sphi 0, %s118
    %s120 = sphi 0, %s118
    %s121 = sphi 0, %s120
    %s135 = sphi 0, %s121
    %s139 = sphi 0, %s139
    %s141 = sphi 0, %s139
    %s142 = sphi 0, %s141
    %s156 = sphi 0, %s142
    %s164 = sphi 0, %s166
    %s167 = sphi 0, %s164
    %s168 = sphi 0, %s167
    %s184 = sphi 0, %s168
    %s192 = sphi 0, %s194
    %s195 = sphi 0, %s192
    %s196 = sphi 0, %s195
    %s212 = sphi 0, %s196
    %s220 = sphi 0, %s222
    %s223 = sphi 0, %s220
    %s224 = sphi 0, %s223
    %s240 = sphi 0, %s224
  $region4: #{inpainting_loss_with_gan.10} parent=0 // loop_header_branch
    %17 = sbr.rel (%p15) target = $region8
  $region5: #{inpainting_loss_with_gan.10} parent=0 // loop_body
    %s19 = ssub.s32 %s14, 1
    %s20 = ssub.s32 %s14, 2
    %s27 = sadd.s32 1, %s22
    %p28 = scmp.ge.s32.totalorder %s27, 1
    %s29 = scalar_select %p28, 0, %s27
    %s30 = sadd.s32 1, %s21
    %s31 = scalar_select %p28, %s30, %s21
    %p32 = scmp.ge.s32.totalorder %s31, 2
    %s33 = scalar_select %p32, 0, %s31
    %s34 = ssub.s32 %s21, %s33
    %s35 = ssub.s32 %s22, %s29
    %s36 = sor.u32 %s34, %s35
    %p37 = scmp.eq.s32.totalorder %s36, 0
    %s39 = sadd.s32 %s38, 1
    %s40 = scalar_select %p37, %s38, %s39
    %p43 = pneg %p37
    %p44 = scmp.eq.s32.totalorder %s14, 1
    %p45 = por %p43, %p44
    %p46 = scmp.ne.s32.totalorder %s38, %s41
    %p47 = scmp.eq.s32.totalorder %s14, 0
    %p48 = por %p46, %p47
    %p49 = scmp.ne.s32.totalorder %s38, %s41
    %p50 = scmp.eq.s32.totalorder %s19, 1
    %p51 = por %p49, %p50
    %p52 = scmp.ne.s32.totalorder %s41, %s42
    %p53 = scmp.eq.s32.totalorder %s19, 0
    %p54 = por %p52, %p53
    %p55 = scmp.ne.s32.totalorder %s41, %s42
    %p56 = scmp.eq.s32.totalorder %s20, 1
    %p57 = por %p55, %p56
    %p59 = scmp.ne.s32.totalorder %s42, %s58
    %p60 = scmp.eq.s32.totalorder %s20, 0
    %p61 = por %p59, %p60
    %s62 = ssub.s32 %s21, %s33
    %s63 = ssub.s32 %s22, %s29
    %s64 = sor.u32 %s62, %s63
    %p65 = scmp.eq.s32.totalorder %s64, 0
    %s67 = sadd.s32 %s66, 1
    %s68 = scalar_select %p65, %s66, %s67
    %p71 = pneg %p65
    %p72 = scmp.eq.s32.totalorder %s14, 1
    %p73 = por %p71, %p72
    %p74 = scmp.ne.s32.totalorder %s66, %s69
    %p75 = scmp.eq.s32.totalorder %s14, 0
    %p76 = por %p74, %p75
    %p77 = scmp.ne.s32.totalorder %s66, %s69
    %p78 = scmp.eq.s32.totalorder %s19, 1
    %p79 = por %p77, %p78
    %p80 = scmp.ne.s32.totalorder %s69, %s70
    %p81 = scmp.eq.s32.totalorder %s19, 0
    %p82 = por %p80, %p81
    %p83 = scmp.ne.s32.totalorder %s69, %s70
    %p84 = scmp.eq.s32.totalorder %s20, 1
    %p85 = por %p83, %p84
    %p87 = scmp.ne.s32.totalorder %s70, %s86
    %p88 = scmp.eq.s32.totalorder %s20, 0
    %p89 = por %p87, %p88
    %s90 = ssub.s32 %s21, %s33
    %s91 = ssub.s32 %s22, %s29
    %s92 = sor.u32 %s90, %s91
    %p93 = scmp.eq.s32.totalorder %s92, 0
    %s95 = sadd.s32 %s94, 1
    %s96 = scalar_select %p93, %s94, %s95
    %p99 = pneg %p93
    %p100 = scmp.eq.s32.totalorder %s14, 1
    %p101 = por %p99, %p100
    %p102 = scmp.ne.s32.totalorder %s94, %s97
    %p103 = scmp.eq.s32.totalorder %s14, 0
    %p104 = por %p102, %p103
    %p105 = scmp.ne.s32.totalorder %s94, %s97
    %p106 = scmp.eq.s32.totalorder %s19, 1
    %p107 = por %p105, %p106
    %p108 = scmp.ne.s32.totalorder %s97, %s98
    %p109 = scmp.eq.s32.totalorder %s19, 0
    %p110 = por %p108, %p109
    %p111 = scmp.ne.s32.totalorder %s97, %s98
    %p112 = scmp.eq.s32.totalorder %s20, 1
    %p113 = por %p111, %p112
    %p115 = scmp.ne.s32.totalorder %s98, %s114
    %p116 = scmp.eq.s32.totalorder %s20, 0
    %p117 = por %p115, %p116
    %s119 = sadd.s32 %s118, 1
    %p122 = scmp.eq.s32.totalorder %s14, 1
    %p123 = scmp.ne.s32.totalorder %s118, %s120
    %p124 = scmp.eq.s32.totalorder %s14, 0
    %p125 = por %p123, %p124
    %p126 = scmp.ne.s32.totalorder %s118, %s120
    %p127 = scmp.eq.s32.totalorder %s19, 1
    %p128 = por %p126, %p127
    %p129 = scmp.ne.s32.totalorder %s120, %s121
    %p130 = scmp.eq.s32.totalorder %s19, 0
    %p131 = por %p129, %p130
    %p132 = scmp.ne.s32.totalorder %s120, %s121
    %p133 = scmp.eq.s32.totalorder %s20, 1
    %p134 = por %p132, %p133
    %p136 = scmp.ne.s32.totalorder %s121, %s135
    %p137 = scmp.eq.s32.totalorder %s20, 0
    %p138 = por %p136, %p137
    %s140 = sadd.s32 %s139, 1
    %p143 = scmp.eq.s32.totalorder %s14, 1
    %p144 = scmp.ne.s32.totalorder %s139, %s141
    %p145 = scmp.eq.s32.totalorder %s14, 0
    %p146 = por %p144, %p145
    %p147 = scmp.ne.s32.totalorder %s139, %s141
    %p148 = scmp.eq.s32.totalorder %s19, 1
    %p149 = por %p147, %p148
    %p150 = scmp.ne.s32.totalorder %s141, %s142
    %p151 = scmp.eq.s32.totalorder %s19, 0
    %p152 = por %p150, %p151
    %p153 = scmp.ne.s32.totalorder %s141, %s142
    %p154 = scmp.eq.s32.totalorder %s20, 1
    %p155 = por %p153, %p154
    %p157 = scmp.ne.s32.totalorder %s142, %s156
    %p158 = scmp.eq.s32.totalorder %s20, 0
    %p159 = por %p157, %p158
    %s160 = ssub.s32 %s21, %s33
    %s161 = ssub.s32 %s22, %s29
    %s162 = sor.u32 %s160, %s161
    %p163 = scmp.eq.s32.totalorder %s162, 0
    %s165 = sadd.s32 %s164, 1
    %s166 = scalar_select %p163, %s164, %s165
    %p169 = pneg %p163
    %p170 = scmp.eq.s32.totalorder %s14, 1
    %p171 = por %p169, %p170
    %p172 = scmp.ne.s32.totalorder %s164, %s167
    %p173 = scmp.eq.s32.totalorder %s14, 0
    %p174 = por %p172, %p173
    %p175 = scmp.ne.s32.totalorder %s164, %s167
    %p176 = scmp.eq.s32.totalorder %s19, 1
    %p177 = por %p175, %p176
    %p178 = scmp.ne.s32.totalorder %s167, %s168
    %p179 = scmp.eq.s32.totalorder %s19, 0
    %p180 = por %p178, %p179
    %p181 = scmp.ne.s32.totalorder %s167, %s168
    %p182 = scmp.eq.s32.totalorder %s20, 1
    %p183 = por %p181, %p182
    %p185 = scmp.ne.s32.totalorder %s168, %s184
    %p186 = scmp.eq.s32.totalorder %s20, 0
    %p187 = por %p185, %p186
    %s188 = ssub.s32 %s21, %s33
    %s189 = ssub.s32 %s22, %s29
    %s190 = sor.u32 %s188, %s189
    %p191 = scmp.eq.s32.totalorder %s190, 0
    %s193 = sadd.s32 %s192, 1
    %s194 = scalar_select %p191, %s192, %s193
    %p197 = pneg %p191
    %p198 = scmp.eq.s32.totalorder %s14, 1
    %p199 = por %p197, %p198
    %p200 = scmp.ne.s32.totalorder %s192, %s195
    %p201 = scmp.eq.s32.totalorder %s14, 0
    %p202 = por %p200, %p201
    %p203 = scmp.ne.s32.totalorder %s192, %s195
    %p204 = scmp.eq.s32.totalorder %s19, 1
    %p205 = por %p203, %p204
    %p206 = scmp.ne.s32.totalorder %s195, %s196
    %p207 = scmp.eq.s32.totalorder %s19, 0
    %p208 = por %p206, %p207
    %p209 = scmp.ne.s32.totalorder %s195, %s196
    %p210 = scmp.eq.s32.totalorder %s20, 1
    %p211 = por %p209, %p210
    %p213 = scmp.ne.s32.totalorder %s196, %s212
    %p214 = scmp.eq.s32.totalorder %s20, 0
    %p215 = por %p213, %p214
    %s216 = ssub.s32 %s21, %s33
    %s217 = ssub.s32 %s22, %s29
    %s218 = sor.u32 %s216, %s217
    %p219 = scmp.eq.s32.totalorder %s218, 0
    %s221 = sadd.s32 %s220, 1
    %s222 = scalar_select %p219, %s220, %s221
    %p225 = pneg %p219
    %p226 = scmp.eq.s32.totalorder %s14, 1
    %p227 = por %p225, %p226
    %p228 = scmp.ne.s32.totalorder %s220, %s223
    %p229 = scmp.eq.s32.totalorder %s14, 0
    %p230 = por %p228, %p229
    %p231 = scmp.ne.s32.totalorder %s220, %s223
    %p232 = scmp.eq.s32.totalorder %s19, 1
    %p233 = por %p231, %p232
    %p234 = scmp.ne.s32.totalorder %s223, %s224
    %p235 = scmp.eq.s32.totalorder %s19, 0
    %p236 = por %p234, %p235
    %p237 = scmp.ne.s32.totalorder %s223, %s224
    %p238 = scmp.eq.s32.totalorder %s20, 1
    %p239 = por %p237, %p238
    %p241 = scmp.ne.s32.totalorder %s224, %s240
    %p242 = scmp.eq.s32.totalorder %s20, 0
    %p243 = por %p241, %p242
    %p244 = scmp.le.s32.totalorder 1, %s14
    %p245 = scmp.lt.s32.totalorder %s14, 3
    %p246 = pnand %p244, %p245
    %p247 = pneg %p246
    // Predicated region
    $region9: #{inpainting_loss_with_gan.10} parent=5 // pred_check
      _
    $region10: #{inpainting_loss_with_gan.10} parent=5 // pred_check_branch
      %249 = sbr.rel (%p246) target = $region12
    $region11: #{inpainting_loss_with_gan.10} parent=5 // pred_region
      %s250 = ssub.s32 %s14, 1
      // Predicated region
      $region13: #{inpainting_loss_with_gan.10} parent=11 // pred_check
        %p251 = pneg %p131
      $region14: #{inpainting_loss_with_gan.10} parent=11 // pred_check_branch
        %253 = sbr.rel (%p251) target = $region16
      $region15: #{inpainting_loss_with_gan.10} parent=11 // pred_region
        _
      $region16: #{inpainting_loss_with_gan.10} parent=11 // pred_fallthru
        _
      // Predicated region
      $region17: #{inpainting_loss_with_gan.10} parent=11 // pred_check
        %p254 = pneg %p152
      $region18: #{inpainting_loss_with_gan.10} parent=11 // pred_check_branch
        %256 = sbr.rel (%p254) target = $region20
      $region19: #{inpainting_loss_with_gan.10} parent=11 // pred_region
        _
      $region20: #{inpainting_loss_with_gan.10} parent=11 // pred_fallthru
        _
    $region12: #{inpainting_loss_with_gan.10} parent=5 // pred_fallthru
      _
    %p257 = scmp.lt.s32.totalorder %s14, 2
    // Predicated region
    $region21: #{inpainting_loss_with_gan.10} parent=5 // pred_check
      %p258 = pneg %p257
    $region22: #{inpainting_loss_with_gan.10} parent=5 // pred_check_branch
      %260 = sbr.rel (%p258) target = $region24
    $region23: #{inpainting_loss_with_gan.10} parent=5 // pred_region
      // Predicated region
      $region25: #{inpainting_loss_with_gan.10} parent=23 // pred_check
        %p261 = pneg %p48
      $region26: #{inpainting_loss_with_gan.10} parent=23 // pred_check_branch
        %263 = sbr.rel (%p261) target = $region28
      $region27: #{inpainting_loss_with_gan.10} parent=23 // pred_region
        %s264 = smul.u32 2, %s22
        %p265 = scmp.lt.s32.totalorder %s21, 1
        %s266 = scalar_select %p265, %s21, 1
        %p267 = scmp.lt.s32.totalorder %s264, 1
        %s268 = scalar_select %p267, %s264, 1
        %s269 = smul.addr %s266, 2
        %s270 = sadd.s32 %s268, %s269
        %s271 = smul.addr %s270, 4
        %s272 = scalar_lea.vmem %s0, %s271
        %s273 = smul.u32 2, %s22
      $region28: #{inpainting_loss_with_gan.10} parent=23 // pred_fallthru
        _
      // Predicated region
      $region29: #{inpainting_loss_with_gan.10} parent=23 // pred_check
        %p274 = pneg %p76
      $region30: #{inpainting_loss_with_gan.10} parent=23 // pred_check_branch
        %276 = sbr.rel (%p274) target = $region32
      $region31: #{inpainting_loss_with_gan.10} parent=23 // pred_region
        %s277 = smul.u32 2, %s22
        %p278 = scmp.lt.s32.totalorder %s21, 1
        %s279 = scalar_select %p278, %s21, 1
        %p280 = scmp.lt.s32.totalorder %s277, 1
        %s281 = scalar_select %p280, %s277, 1
        %s282 = smul.addr %s279, 2
        %s283 = sadd.s32 %s281, %s282
        %s284 = smul.addr %s283, 4
        %s285 = scalar_lea.vmem %s1, %s284
        %s286 = smul.u32 2, %s22
      $region32: #{inpainting_loss_with_gan.10} parent=23 // pred_fallthru
        _
      // Predicated region
      $region33: #{inpainting_loss_with_gan.10} parent=23 // pred_check
        %p287 = pneg %p104
      $region34: #{inpainting_loss_with_gan.10} parent=23 // pred_check_branch
        %289 = sbr.rel (%p287) target = $region36
      $region35: #{inpainting_loss_with_gan.10} parent=23 // pred_region
        %s290 = smul.u32 2, %s22
        %p291 = scmp.lt.s32.totalorder %s21, 1
        %s292 = scalar_select %p291, %s21, 1
        %p293 = scmp.lt.s32.totalorder %s290, 1
        %s294 = scalar_select %p293, %s290, 1
        %s295 = smul.addr %s292, 2
        %s296 = sadd.s32 %s294, %s295
        %s297 = smul.addr %s296, 4
        %s298 = scalar_lea.vmem %s2, %s297
        %s299 = smul.u32 2, %s22
      $region36: #{inpainting_loss_with_gan.10} parent=23 // pred_fallthru
        _
    $region24: #{inpainting_loss_with_gan.10} parent=5 // pred_fallthru
      _
    %p300 = scmp.le.s32.totalorder 1, %s14
    %p301 = scmp.lt.s32.totalorder %s14, 3
    %p302 = pnand %p300, %p301
    %p303 = pneg %p302
    // Predicated region
    $region37: #{inpainting_loss_with_gan.10} parent=5 // pred_check
      _
    $region38: #{inpainting_loss_with_gan.10} parent=5 // pred_check_branch
      %305 = sbr.rel (%p302) target = $region40
    $region39: #{inpainting_loss_with_gan.10} parent=5 // pred_region
      %s306 = ssub.s32 %s14, 1
      %s307 = smul.u32 2, %s24
      %p308 = scmp.lt.s32.totalorder %s23, 1
      %s309 = scalar_select %p308, %s23, 1
      %p310 = scmp.lt.s32.totalorder %s307, 1
      %s311 = scalar_select %p310, %s307, 1
      %s312 = smul.addr %s309, 2
      %s313 = sadd.s32 %s311, %s312
      %s314 = smul.addr %s313, 4
      %s315 = scalar_lea.vmem %s0, %s314
      %p316 = pneg %p54
      %p317 = pneg %p51
      %s318 = smul.u32 2, %s24
      %p319 = scmp.lt.s32.totalorder %s23, 1
      %s320 = scalar_select %p319, %s23, 1
      %p321 = scmp.lt.s32.totalorder %s318, 1
      %s322 = scalar_select %p321, %s318, 1
      %s323 = smul.addr %s320, 2
      %s324 = sadd.s32 %s322, %s323
      %s325 = smul.addr %s324, 4
      %s326 = scalar_lea.vmem %s1, %s325
      %p327 = pneg %p82
      %p328 = pneg %p79
      %s329 = smul.u32 2, %s24
      %p330 = scmp.lt.s32.totalorder %s23, 1
      %s331 = scalar_select %p330, %s23, 1
      %p332 = scmp.lt.s32.totalorder %s329, 1
      %s333 = scalar_select %p332, %s329, 1
      %s334 = smul.addr %s331, 2
      %s335 = sadd.s32 %s333, %s334
      %s336 = smul.addr %s335, 4
      %s337 = scalar_lea.vmem %s2, %s336
      %p338 = pneg %p110
      %p339 = pneg %p107
      %p340 = pneg %p131
      %p341 = pneg %p128
      %p342 = pneg %p152
      %p343 = pneg %p149
      %p344 = pneg %p180
      %p345 = pneg %p177
      %s346 = smul.u32 2, %s24
      %p347 = scmp.lt.s32.totalorder %s23, 1
      %s348 = scalar_select %p347, %s23, 1
      %p349 = scmp.lt.s32.totalorder %s346, 1
      %s350 = scalar_select %p349, %s346, 1
      %s351 = smul.addr %s348, 2
      %s352 = sadd.s32 %s350, %s351
      %s353 = smul.addr %s352, 8
      %s354 = scalar_lea.vmem %s5, %s353
      %p355 = pneg %p208
      %p356 = pneg %p205
      %s357 = smul.u32 2, %s24
      %p358 = scmp.lt.s32.totalorder %s23, 1
      %s359 = scalar_select %p358, %s23, 1
      %p360 = scmp.lt.s32.totalorder %s357, 1
      %s361 = scalar_select %p360, %s357, 1
      %s362 = smul.addr %s359, 2
      %s363 = sadd.s32 %s361, %s362
      %s364 = smul.addr %s363, 8
      %s365 = scalar_lea.vmem %s6, %s364
      %p366 = pneg %p236
      %p367 = pneg %p233
      %s368 = smul.u32 2, %s24
      %p369 = scmp.lt.s32.totalorder %s23, 1
      %s370 = scalar_select %p369, %s23, 1
      %p371 = scmp.lt.s32.totalorder %s368, 1
      %s372 = scalar_select %p371, %s368, 1
      %s373 = smul.addr %s370, 2
      %s374 = sadd.s32 %s372, %s373
      %s375 = smul.addr %s374, 8
      %s376 = scalar_lea.vmem %s7, %s375
      %s377 = smul.u32 2, %s24
      %p378 = scmp.lt.s32.totalorder %s23, 1
      %s379 = scalar_select %p378, %s23, 1
      %p380 = scmp.lt.s32.totalorder %s377, 1
      %s381 = scalar_select %p380, %s377, 1
      %s382 = smul.addr %s379, 2
      %s383 = sadd.s32 %s381, %s382
      %s384 = smul.addr %s383, 4
      %s385 = scalar_lea.vmem %s0, %s384
      %s386 = smul.u32 2, %s24
      %s387 = smul.u32 2, %s24
      %p388 = scmp.lt.s32.totalorder %s23, 1
      %s389 = scalar_select %p388, %s23, 1
      %p390 = scmp.lt.s32.totalorder %s387, 1
      %s391 = scalar_select %p390, %s387, 1
      %s392 = smul.addr %s389, 2
      %s393 = sadd.s32 %s391, %s392
      %s394 = smul.addr %s393, 4
      %s395 = scalar_lea.vmem %s1, %s394
      %s396 = smul.u32 2, %s24
      %s397 = smul.u32 2, %s24
      %p398 = scmp.lt.s32.totalorder %s23, 1
      %s399 = scalar_select %p398, %s23, 1
      %p400 = scmp.lt.s32.totalorder %s397, 1
      %s401 = scalar_select %p400, %s397, 1
      %s402 = smul.addr %s399, 2
      %s403 = sadd.s32 %s401, %s402
      %s404 = smul.addr %s403, 4
      %s405 = scalar_lea.vmem %s2, %s404
      %s406 = smul.u32 2, %s24
      %s407 = smul.u32 2, %s24
      %p408 = scmp.lt.s32.totalorder %s23, 1
      %s409 = scalar_select %p408, %s23, 1
      %p410 = scmp.lt.s32.totalorder %s407, 1
      %s411 = scalar_select %p410, %s407, 1
      %s412 = smul.addr %s409, 2
      %s413 = sadd.s32 %s411, %s412
      %s414 = smul.addr %s413, 8
      %s415 = scalar_lea.vmem %s5, %s414
      %s416 = smul.u32 2, %s24
      %s417 = smul.u32 2, %s24
      %p418 = scmp.lt.s32.totalorder %s23, 1
      %s419 = scalar_select %p418, %s23, 1
      %p420 = scmp.lt.s32.totalorder %s417, 1
      %s421 = scalar_select %p420, %s417, 1
      %s422 = smul.addr %s419, 2
      %s423 = sadd.s32 %s421, %s422
      %s424 = smul.addr %s423, 8
      %s425 = scalar_lea.vmem %s6, %s424
      %s426 = smul.u32 2, %s24
      %s427 = smul.u32 2, %s24
      %p428 = scmp.lt.s32.totalorder %s23, 1
      %s429 = scalar_select %p428, %s23, 1
      %p430 = scmp.lt.s32.totalorder %s427, 1
      %s431 = scalar_select %p430, %s427, 1
      %s432 = smul.addr %s429, 2
      %s433 = sadd.s32 %s431, %s432
      %s434 = smul.addr %s433, 8
      %s435 = scalar_lea.vmem %s7, %s434
      %s436 = smul.u32 2, %s24
      %v437 = vld [vmem:[%s3] sm:$0xff]
      %v438 = vld [vmem:[%s4] sm:$0xff]
      %v439 = vld [vmem:[%s385] sm:$0x77]
      %441 = vset.pattern.permute.xlu0 0
      %442 = vperm.xlu0 %441, %v438
      %v443 = vpop.permute.xlu0 %442
      %v446 = vcombine.high %v439, %v439
      %vm447 = vcmask 23552
      %v449 = vsel %vm447, %v437, 0
      %vm451 = vcmask 1042432
      %v452 = vsel %vm451, %v439, 0
      %v454 = vsel %vm451, %v446, 0
      %456 = vmatprep.subr.mxu0 %v454
      %457 = vmatpush1.msra.mxu0 %v452
      %458 = vmatprep.subr.mxu0 0.0
      %459 = vmatpush1.msra.mxu0 0.0
      %460 = vmatprep.subr.mxu0 0.0
      %461 = vmatpush1.msra.mxu0 0.0
      %462 = vmatprep.subr.mxu0 0.0
      %463 = vmatpush1.msra.mxu0 0.0
      %464 = vmatprep.subr.mxu0 0.0
      %465 = vmatpush1.msra.mxu0 0.0
      %466 = vmatprep.subr.mxu0 0.0
      %467 = vmatpush1.msra.mxu0 0.0
      %468 = vmatprep.subr.mxu0 0.0
      %469 = vmatpush1.msra.mxu0 0.0
      %470 = vmatprep.subr.mxu0 0.0
      %471 = vmatpush1.msra.mxu0 0.0
      %472 = vmatprep.subr.mxu0 0.0
      %473 = vmatpush1.msra.mxu0 0.0
      %474 = vmatprep.subr.mxu0 0.0
      %475 = vmatpush1.msra.mxu0 0.0
      %476 = vmatprep.subr.mxu0 0.0
      %477 = vmatpush1.msra.mxu0 0.0
      %478 = vmatprep.subr.mxu0 0.0
      %479 = vmatpush1.msra.mxu0 0.0
      %480 = vmatprep.subr.mxu0 0.0
      %481 = vmatpush1.msra.mxu0 0.0
      %482 = vmatprep.subr.mxu0 0.0
      %483 = vmatpush1.msra.mxu0 0.0
      %484 = vmatprep.subr.mxu0 0.0
      %485 = vmatpush1.msra.mxu0 0.0
      %486 = vmatprep.subr.mxu0 0.0
      %487 = vmatpush1.msra.mxu0 0.0
      %488 = vmatprep.subr.mxu0 0.0
      %489 = vmatpush1.msra.mxu0 0.0
      %490 = vmatprep.subr.mxu0 0.0
      %491 = vmatpush1.msra.mxu0 0.0
      %492 = vmatprep.subr.mxu0 0.0
      %493 = vmatpush1.msra.mxu0 0.0
      %494 = vmatprep.subr.mxu0 0.0
      %495 = vmatpush1.msra.mxu0 0.0
      %496 = vmatprep.subr.mxu0 0.0
      %497 = vmatpush1.msra.mxu0 0.0
      %498 = vmatprep.subr.mxu0 0.0
      %499 = vmatpush1.msra.mxu0 0.0
      %500 = vmatprep.subr.mxu0 0.0
      %501 = vmatpush1.msra.mxu0 0.0
      %502 = vmatprep.subr.mxu0 0.0
      %503 = vmatpush1.msra.mxu0 0.0
      %504 = vmatprep.subr.mxu0 0.0
      %505 = vmatpush1.msra.mxu0 0.0
      %506 = vmatprep.subr.mxu0 0.0
      %507 = vmatpush1.msra.mxu0 0.0
      %508 = vmatprep.subr.mxu0 0.0
      %509 = vmatpush1.msra.mxu0 0.0
      %510 = vmatprep.subr.mxu0 0.0
      %511 = vmatpush1.msra.mxu0 0.0
      %512 = vmatprep.subr.mxu0 0.0
      %513 = vmatpush1.msra.mxu0 0.0
      %514 = vmatprep.subr.mxu0 0.0
      %515 = vmatpush1.msra.mxu0 0.0
      %516 = vmatprep.subr.mxu0 0.0
      %517 = vmatpush1.msra.mxu0 0.0
      %518 = vmatprep.subr.mxu0 0.0
      %519 = vmatpush1.msra.mxu0 0.0
      %520 = vmatprep.mubr.f32.mxu0 0.0
      %521 = vmatmul.mubr.f32.gmra.mrb[0].mxu0 %v449
      %v522 = vpop.f32.mrb[0].mxu0
      %v523 = vadd.f32 %v443, %v522
      %v524 = vpop.f32.mrb[0].mxu0
      %v525 = vadd.f32 %v443, %v524
      %526 = vdwg.mxu0
      %v527 = vmax.f32 %v523, 0.0
      %v528 = vmax.f32 %v525, 0.0
      %529 = vst [vmem:[%s415] sm:$0xff] %v527
      %530 = vst [vmem:[%s415 + $0x8] sm:$0xff] %v528
      %v531 = vld [vmem:[%s395] sm:$0x77]
      %v533 = vcombine.high %v531, %v531
      %v534 = vsel %vm451, %v531, 0
      %v536 = vsel %vm451, %v533, 0
      %538 = vmatprep.subr.mxu0 %v536
      %539 = vmatpush1.msra.mxu0 %v534
      %540 = vmatprep.subr.mxu0 0.0
      %541 = vmatpush1.msra.mxu0 0.0
      %542 = vmatprep.subr.mxu0 0.0
      %543 = vmatpush1.msra.mxu0 0.0
      %544 = vmatprep.subr.mxu0 0.0
      %545 = vmatpush1.msra.mxu0 0.0
      %546 = vmatprep.subr.mxu0 0.0
      %547 = vmatpush1.msra.mxu0 0.0
      %548 = vmatprep.subr.mxu0 0.0
      %549 = vmatpush1.msra.mxu0 0.0
      %550 = vmatprep.subr.mxu0 0.0
      %551 = vmatpush1.msra.mxu0 0.0
      %552 = vmatprep.subr.mxu0 0.0
      %553 = vmatpush1.msra.mxu0 0.0
      %554 = vmatprep.subr.mxu0 0.0
      %555 = vmatpush1.msra.mxu0 0.0
      %556 = vmatprep.subr.mxu0 0.0
      %557 = vmatpush1.msra.mxu0 0.0
      %558 = vmatprep.subr.mxu0 0.0
      %559 = vmatpush1.msra.mxu0 0.0
      %560 = vmatprep.subr.mxu0 0.0
      %561 = vmatpush1.msra.mxu0 0.0
      %562 = vmatprep.subr.mxu0 0.0
      %563 = vmatpush1.msra.mxu0 0.0
      %564 = vmatprep.subr.mxu0 0.0
      %565 = vmatpush1.msra.mxu0 0.0
      %566 = vmatprep.subr.mxu0 0.0
      %567 = vmatpush1.msra.mxu0 0.0
      %568 = vmatprep.subr.mxu0 0.0
      %569 = vmatpush1.msra.mxu0 0.0
      %570 = vmatprep.subr.mxu0 0.0
      %571 = vmatpush1.msra.mxu0 0.0
      %572 = vmatprep.subr.mxu0 0.0
      %573 = vmatpush1.msra.mxu0 0.0
      %574 = vmatprep.subr.mxu0 0.0
      %575 = vmatpush1.msra.mxu0 0.0
      %576 = vmatprep.subr.mxu0 0.0
      %577 = vmatpush1.msra.mxu0 0.0
      %578 = vmatprep.subr.mxu0 0.0
      %579 = vmatpush1.msra.mxu0 0.0
      %580 = vmatprep.subr.mxu0 0.0
      %581 = vmatpush1.msra.mxu0 0.0
      %582 = vmatprep.subr.mxu0 0.0
      %583 = vmatpush1.msra.mxu0 0.0
      %584 = vmatprep.subr.mxu0 0.0
      %585 = vmatpush1.msra.mxu0 0.0
      %586 = vmatprep.subr.mxu0 0.0
      %587 = vmatpush1.msra.mxu0 0.0
      %588 = vmatprep.subr.mxu0 0.0
      %589 = vmatpush1.msra.mxu0 0.0
      %590 = vmatprep.subr.mxu0 0.0
      %591 = vmatpush1.msra.mxu0 0.0
      %592 = vmatprep.subr.mxu0 0.0
      %593 = vmatpush1.msra.mxu0 0.0
      %594 = vmatprep.subr.mxu0 0.0
      %595 = vmatpush1.msra.mxu0 0.0
      %596 = vmatprep.subr.mxu0 0.0
      %597 = vmatpush1.msra.mxu0 0.0
      %598 = vmatprep.subr.mxu0 0.0
      %599 = vmatpush1.msra.mxu0 0.0
      %600 = vmatprep.subr.mxu0 0.0
      %601 = vmatpush1.msra.mxu0 0.0
      %602 = vmatprep.mubr.f32.mxu0 0.0
      %603 = vmatmul.mubr.f32.gmra.mrb[0].mxu0 %v449
      %v604 = vpop.f32.mrb[0].mxu0
      %v605 = vadd.f32 %v443, %v604
      %v606 = vpop.f32.mrb[0].mxu0
      %v607 = vadd.f32 %v443, %v606
      %608 = vdwg.mxu0
      %v609 = vmax.f32 %v605, 0.0
      %v610 = vmax.f32 %v607, 0.0
      %611 = vst [vmem:[%s425] sm:$0xff] %v609
      %612 = vst [vmem:[%s425 + $0x8] sm:$0xff] %v610
      %v613 = vld [vmem:[%s405] sm:$0x77]
      %v615 = vcombine.high %v613, %v613
      %v616 = vsel %vm451, %v613, 0
      %v618 = vsel %vm451, %v615, 0
      %620 = vmatprep.subr.mxu0 %v618
      %621 = vmatpush1.msra.mxu0 %v616
      %622 = vmatprep.subr.mxu0 0.0
      %623 = vmatpush1.msra.mxu0 0.0
      %624 = vmatprep.subr.mxu0 0.0
      %625 = vmatpush1.msra.mxu0 0.0
      %626 = vmatprep.subr.mxu0 0.0
      %627 = vmatpush1.msra.mxu0 0.0
      %628 = vmatprep.subr.mxu0 0.0
      %629 = vmatpush1.msra.mxu0 0.0
      %630 = vmatprep.subr.mxu0 0.0
      %631 = vmatpush1.msra.mxu0 0.0
      %632 = vmatprep.subr.mxu0 0.0
      %633 = vmatpush1.msra.mxu0 0.0
      %634 = vmatprep.subr.mxu0 0.0
      %635 = vmatpush1.msra.mxu0 0.0
      %636 = vmatprep.subr.mxu0 0.0
      %637 = vmatpush1.msra.mxu0 0.0
      %638 = vmatprep.subr.mxu0 0.0
      %639 = vmatpush1.msra.mxu0 0.0
      %640 = vmatprep.subr.mxu0 0.0
      %641 = vmatpush1.msra.mxu0 0.0
      %642 = vmatprep.subr.mxu0 0.0
      %643 = vmatpush1.msra.mxu0 0.0
      %644 = vmatprep.subr.mxu0 0.0
      %645 = vmatpush1.msra.mxu0 0.0
      %646 = vmatprep.subr.mxu0 0.0
      %647 = vmatpush1.msra.mxu0 0.0
      %648 = vmatprep.subr.mxu0 0.0
      %649 = vmatpush1.msra.mxu0 0.0
      %650 = vmatprep.subr.mxu0 0.0
      %651 = vmatpush1.msra.mxu0 0.0
      %652 = vmatprep.subr.mxu0 0.0
      %653 = vmatpush1.msra.mxu0 0.0
      %654 = vmatprep.subr.mxu0 0.0
      %655 = vmatpush1.msra.mxu0 0.0
      %656 = vmatprep.subr.mxu0 0.0
      %657 = vmatpush1.msra.mxu0 0.0
      %658 = vmatprep.subr.mxu0 0.0
      %659 = vmatpush1.msra.mxu0 0.0
      %660 = vmatprep.subr.mxu0 0.0
      %661 = vmatpush1.msra.mxu0 0.0
      %662 = vmatprep.subr.mxu0 0.0
      %663 = vmatpush1.msra.mxu0 0.0
      %664 = vmatprep.subr.mxu0 0.0
      %665 = vmatpush1.msra.mxu0 0.0
      %666 = vmatprep.subr.mxu0 0.0
      %667 = vmatpush1.msra.mxu0 0.0
      %668 = vmatprep.subr.mxu0 0.0
      %669 = vmatpush1.msra.mxu0 0.0
      %670 = vmatprep.subr.mxu0 0.0
      %671 = vmatpush1.msra.mxu0 0.0
      %672 = vmatprep.subr.mxu0 0.0
      %673 = vmatpush1.msra.mxu0 0.0
      %674 = vmatprep.subr.mxu0 0.0
      %675 = vmatpush1.msra.mxu0 0.0
      %676 = vmatprep.subr.mxu0 0.0
      %677 = vmatpush1.msra.mxu0 0.0
      %678 = vmatprep.subr.mxu0 0.0
      %679 = vmatpush1.msra.mxu0 0.0
      %680 = vmatprep.subr.mxu0 0.0
      %681 = vmatpush1.msra.mxu0 0.0
      %682 = vmatprep.subr.mxu0 0.0
      %683 = vmatpush1.msra.mxu0 0.0
      %684 = vmatprep.mubr.f32.mxu0 0.0
      %685 = vmatmul.mubr.f32.gmra.mrb[0].mxu0 %v449
      %v686 = vpop.f32.mrb[0].mxu0
      %v687 = vadd.f32 %v443, %v686
      %v688 = vpop.f32.mrb[0].mxu0
      %v689 = vadd.f32 %v443, %v688
      %690 = vdwg.mxu0
      %v691 = vmax.f32 %v687, 0.0
      %v692 = vmax.f32 %v689, 0.0
      %693 = vst [vmem:[%s435] sm:$0xff] %v691
      %694 = vst [vmem:[%s435 + $0x8] sm:$0xff] %v692
      %s695 = smul.u32 2, %s24
      %p696 = scmp.lt.s32.totalorder %s23, 1
      %s697 = scalar_select %p696, %s23, 1
      %p698 = scmp.lt.s32.totalorder %s695, 1
      %s699 = scalar_select %p698, %s695, 1
      %s700 = smul.addr %s697, 2
      %s701 = sadd.s32 %s699, %s700
      %s702 = smul.addr %s701, 8
      %s703 = scalar_lea.vmem %s5, %s702
      %s704 = smul.u32 2, %s24
      %p705 = scmp.lt.s32.totalorder %s23, 1
      %s706 = scalar_select %p705, %s23, 1
      %p707 = scmp.lt.s32.totalorder %s704, 1
      %s708 = scalar_select %p707, %s704, 1
      %s709 = smul.addr %s706, 2
      %s710 = sadd.s32 %s708, %s709
      %s711 = smul.addr %s710, 8
      %s712 = scalar_lea.vmem %s6, %s711
      %s713 = smul.u32 2, %s24
      %p714 = scmp.lt.s32.totalorder %s23, 1
      %s715 = scalar_select %p714, %s23, 1
      %p716 = scmp.lt.s32.totalorder %s713, 1
      %s717 = scalar_select %p716, %s713, 1
      %s718 = smul.addr %s715, 2
      %s719 = sadd.s32 %s717, %s718
      %s720 = smul.addr %s719, 8
      %s721 = scalar_lea.vmem %s7, %s720
      // Predicated region
      $region41: #{inpainting_loss_with_gan.10} parent=39 // pred_check
        %p722 = pneg %p177
      $region42: #{inpainting_loss_with_gan.10} parent=39 // pred_check_branch
        %724 = sbr.rel (%p722) target = $region44
      $region43: #{inpainting_loss_with_gan.10} parent=39 // pred_region
        %s725 = smul.u32 2, %s24
      $region44: #{inpainting_loss_with_gan.10} parent=39 // pred_fallthru
        _
      // Predicated region
      $region45: #{inpainting_loss_with_gan.10} parent=39 // pred_check
        %p726 = pneg %p205
      $region46: #{inpainting_loss_with_gan.10} parent=39 // pred_check_branch
        %728 = sbr.rel (%p726) target = $region48
      $region47: #{inpainting_loss_with_gan.10} parent=39 // pred_region
        %s729 = smul.u32 2, %s24
      $region48: #{inpainting_loss_with_gan.10} parent=39 // pred_fallthru
        _
      // Predicated region
      $region49: #{inpainting_loss_with_gan.10} parent=39 // pred_check
        %p730 = pneg %p233
      $region50: #{inpainting_loss_with_gan.10} parent=39 // pred_check_branch
        %732 = sbr.rel (%p730) target = $region52
      $region51: #{inpainting_loss_with_gan.10} parent=39 // pred_region
        %s733 = smul.u32 2, %s24
      $region52: #{inpainting_loss_with_gan.10} parent=39 // pred_fallthru
        _
    $region40: #{inpainting_loss_with_gan.10} parent=5 // pred_fallthru
      _
    %p734 = scmp.le.s32.totalorder 2, %s14
    // Predicated region
    $region53: #{inpainting_loss_with_gan.10} parent=5 // pred_check
      %p735 = pneg %p734
    $region54: #{inpainting_loss_with_gan.10} parent=5 // pred_check_branch
      %737 = sbr.rel (%p735) target = $region56
    $region55: #{inpainting_loss_with_gan.10} parent=5 // pred_region
      %s738 = ssub.s32 %s14, 2
      // Predicated region
      $region57: #{inpainting_loss_with_gan.10} parent=55 // pred_check
        %p739 = pneg %p183
      $region58: #{inpainting_loss_with_gan.10} parent=55 // pred_check_branch
        %741 = sbr.rel (%p739) target = $region60
      $region59: #{inpainting_loss_with_gan.10} parent=55 // pred_region
        %s742 = smul.u32 2, %s26
        %p743 = scmp.lt.s32.totalorder %s25, 1
        %s744 = scalar_select %p743, %s25, 1
        %p745 = scmp.lt.s32.totalorder %s742, 1
        %s746 = scalar_select %p745, %s742, 1
        %s747 = smul.addr %s744, 2
        %s748 = sadd.s32 %s746, %s747
        %s749 = smul.addr %s748, 8
        %s750 = scalar_lea.vmem %s5, %s749
      $region60: #{inpainting_loss_with_gan.10} parent=55 // pred_fallthru
        _
      // Predicated region
      $region61: #{inpainting_loss_with_gan.10} parent=55 // pred_check
        %p751 = pneg %p211
      $region62: #{inpainting_loss_with_gan.10} parent=55 // pred_check_branch
        %753 = sbr.rel (%p751) target = $region64
      $region63: #{inpainting_loss_with_gan.10} parent=55 // pred_region
        %s754 = smul.u32 2, %s26
        %p755 = scmp.lt.s32.totalorder %s25, 1
        %s756 = scalar_select %p755, %s25, 1
        %p757 = scmp.lt.s32.totalorder %s754, 1
        %s758 = scalar_select %p757, %s754, 1
        %s759 = smul.addr %s756, 2
        %s760 = sadd.s32 %s758, %s759
        %s761 = smul.addr %s760, 8
        %s762 = scalar_lea.vmem %s6, %s761
      $region64: #{inpainting_loss_with_gan.10} parent=55 // pred_fallthru
        _
      // Predicated region
      $region65: #{inpainting_loss_with_gan.10} parent=55 // pred_check
        %p763 = pneg %p239
      $region66: #{inpainting_loss_with_gan.10} parent=55 // pred_check_branch
        %765 = sbr.rel (%p763) target = $region68
      $region67: #{inpainting_loss_with_gan.10} parent=55 // pred_region
        %s766 = smul.u32 2, %s26
        %p767 = scmp.lt.s32.totalorder %s25, 1
        %s768 = scalar_select %p767, %s25, 1
        %p769 = scmp.lt.s32.totalorder %s766, 1
        %s770 = scalar_select %p769, %s766, 1
        %s771 = smul.addr %s768, 2
        %s772 = sadd.s32 %s770, %s771
        %s773 = smul.addr %s772, 8
        %s774 = scalar_lea.vmem %s7, %s773
      $region68: #{inpainting_loss_with_gan.10} parent=55 // pred_fallthru
        _
    $region56: #{inpainting_loss_with_gan.10} parent=5 // pred_fallthru
      _
  $region6: #{inpainting_loss_with_gan.10} parent=0 // loop_footer
    %s18 = sadd.s32 1, %s14
  $region7: #{inpainting_loss_with_gan.10} parent=0 // loop_footer_branch
    %13 = sbr.rel target = $region3
  $region8: #{inpainting_loss_with_gan.10} parent=0 // loop_exit
    _

// kernel: inpainting_loss_with_gan.11
$region0: #{inpainting_loss_with_gan.11}
  #allocation0 [shape = 'u32[]', space=smem, size = 0x4, offset = 0x4, fixed_abs, tag = 'smem constant byte address 0x4 - core index']
  #allocation1 [shape = 'u32[144,128]{1,0:T(1,128)}', space=vmem, size = 0x12000, scoped, tag = 'internal scratch']
  %s0 = inlined_call_operand.vmem [shape: f32[2,8,64], index: 0, kind: input, shape index: {}]
  %s1 = inlined_call_operand.vmem [shape: f32[2,8,64], index: 1, kind: input, shape index: {}]
  %s2 = inlined_call_operand.vmem [shape: f32[2,8,64], index: 2, kind: input, shape index: {}]
  %s3 = inlined_call_operand.vmem [shape: f32[3,2,8,8], index: 3, kind: output, shape index: {0}]
  %s4 = inlined_call_operand.vmem [shape: f32[2], index: 4, kind: output, shape index: {1}]
  %5 = xla_tuple %s3, %s4
  %s6 = sld [smem:[#allocation0]]
  $region99: #{inpainting_loss_with_gan.11} parent=0
    _
  %s8 = ssub.s32 1, %s6
  %s9 = scalar_select 0, %s8, %s6
  $region1: #{inpainting_loss_with_gan.11} parent=0
    #allocation2 [shape = 'u8[24576]{0}', space=vmem, size = 0x6000, scoped, tag = 'output window, operand 0']
    #allocation3 [shape = 'u8[512]{0}', space=smem, size = 0x200, scoped, tag = 'output window, operand 1, single buffered']
    #allocation4 [shape = 's32[2]{0}', space=sflag, size = 0x8, scoped, tag = 'scoped memory for inpainting_loss_with_gan.11']
    %10 = vsyncpa [#allocation4], 0
    loop: start=0, step=1, limit=4
    $region2: #{inpainting_loss_with_gan.11} parent=1 // loop_pre_header
      _
    $region3: #{inpainting_loss_with_gan.11} parent=1 // loop_header
      %s12 = sphi 0, %s16
      %p13 = scmp.ge.s32.totalorder %s12, 4
      %s19 = sphi 0, %s31
      %s20 = sphi 0, %s27
      %s21 = sphi 0, %s19
      %s22 = sphi 0, %s20
      %s23 = sphi 0, %s21
      %s24 = sphi 0, %s22
      %s36 = sphi 0, %s38
      %s39 = sphi 0, %s36
      %s40 = sphi 0, %s39
      %s56 = sphi 0, %s40
      %s64 = sphi 0, %s66
      %s67 = sphi 0, %s64
      %s68 = sphi 0, %s67
      %s84 = sphi 0, %s68
      %s92 = sphi 0, %s94
      %s95 = sphi 0, %s92
      %s96 = sphi 0, %s95
      %s112 = sphi 0, %s96
      %s118 = sphi 0, %s120
      %s121 = sphi 0, %s118
      %s122 = sphi 0, %s121
      %s138 = sphi 0, %s122
      %s142 = sphi 0, %s142
      %s144 = sphi 0, %s142
      %s145 = sphi 0, %s144
      %s159 = sphi 0, %s145
    $region4: #{inpainting_loss_with_gan.11} parent=1 // loop_header_branch
      %15 = sbr.rel (%p13) target = $region8
    $region5: #{inpainting_loss_with_gan.11} parent=1 // loop_body
      %s17 = ssub.s32 %s12, 1
      %s18 = ssub.s32 %s12, 2
      %s25 = sadd.s32 1, %s20
      %p26 = scmp.ge.s32.totalorder %s25, 1
      %s27 = scalar_select %p26, 0, %s25
      %s28 = sadd.s32 1, %s19
      %s29 = scalar_select %p26, %s28, %s19
      %p30 = scmp.ge.s32.totalorder %s29, 2
      %s31 = scalar_select %p30, 0, %s29
      %s32 = ssub.s32 %s19, %s31
      %s33 = ssub.s32 %s20, %s27
      %s34 = sor.u32 %s32, %s33
      %p35 = scmp.eq.s32.totalorder %s34, 0
      %s37 = sadd.s32 %s36, 1
      %s38 = scalar_select %p35, %s36, %s37
      %p41 = pneg %p35
      %p42 = scmp.eq.s32.totalorder %s12, 1
      %p43 = por %p41, %p42
      %p44 = scmp.ne.s32.totalorder %s36, %s39
      %p45 = scmp.eq.s32.totalorder %s12, 0
      %p46 = por %p44, %p45
      %p47 = scmp.ne.s32.totalorder %s36, %s39
      %p48 = scmp.eq.s32.totalorder %s17, 1
      %p49 = por %p47, %p48
      %p50 = scmp.ne.s32.totalorder %s39, %s40
      %p51 = scmp.eq.s32.totalorder %s17, 0
      %p52 = por %p50, %p51
      %p53 = scmp.ne.s32.totalorder %s39, %s40
      %p54 = scmp.eq.s32.totalorder %s18, 1
      %p55 = por %p53, %p54
      %p57 = scmp.ne.s32.totalorder %s40, %s56
      %p58 = scmp.eq.s32.totalorder %s18, 0
      %p59 = por %p57, %p58
      %s60 = ssub.s32 %s19, %s31
      %s61 = ssub.s32 %s20, %s27
      %s62 = sor.u32 %s60, %s61
      %p63 = scmp.eq.s32.totalorder %s62, 0
      %s65 = sadd.s32 %s64, 1
      %s66 = scalar_select %p63, %s64, %s65
      %p69 = pneg %p63
      %p70 = scmp.eq.s32.totalorder %s12, 1
      %p71 = por %p69, %p70
      %p72 = scmp.ne.s32.totalorder %s64, %s67
      %p73 = scmp.eq.s32.totalorder %s12, 0
      %p74 = por %p72, %p73
      %p75 = scmp.ne.s32.totalorder %s64, %s67
      %p76 = scmp.eq.s32.totalorder %s17, 1
      %p77 = por %p75, %p76
      %p78 = scmp.ne.s32.totalorder %s67, %s68
      %p79 = scmp.eq.s32.totalorder %s17, 0
      %p80 = por %p78, %p79
      %p81 = scmp.ne.s32.totalorder %s67, %s68
      %p82 = scmp.eq.s32.totalorder %s18, 1
      %p83 = por %p81, %p82
      %p85 = scmp.ne.s32.totalorder %s68, %s84
      %p86 = scmp.eq.s32.totalorder %s18, 0
      %p87 = por %p85, %p86
      %s88 = ssub.s32 %s19, %s31
      %s89 = ssub.s32 %s20, %s27
      %s90 = sor.u32 %s88, %s89
      %p91 = scmp.eq.s32.totalorder %s90, 0
      %s93 = sadd.s32 %s92, 1
      %s94 = scalar_select %p91, %s92, %s93
      %p97 = pneg %p91
      %p98 = scmp.eq.s32.totalorder %s12, 1
      %p99 = por %p97, %p98
      %p100 = scmp.ne.s32.totalorder %s92, %s95
      %p101 = scmp.eq.s32.totalorder %s12, 0
      %p102 = por %p100, %p101
      %p103 = scmp.ne.s32.totalorder %s92, %s95
      %p104 = scmp.eq.s32.totalorder %s17, 1
      %p105 = por %p103, %p104
      %p106 = scmp.ne.s32.totalorder %s95, %s96
      %p107 = scmp.eq.s32.totalorder %s17, 0
      %p108 = por %p106, %p107
      %p109 = scmp.ne.s32.totalorder %s95, %s96
      %p110 = scmp.eq.s32.totalorder %s18, 1
      %p111 = por %p109, %p110
      %p113 = scmp.ne.s32.totalorder %s96, %s112
      %p114 = scmp.eq.s32.totalorder %s18, 0
      %p115 = por %p113, %p114
      %s116 = ssub.s32 %s19, %s31
      %p117 = scmp.eq.s32.totalorder %s116, 0
      %s119 = sadd.s32 %s118, 1
      %s120 = scalar_select %p117, %s118, %s119
      %p123 = pneg %p117
      %p124 = scmp.eq.s32.totalorder %s12, 1
      %p125 = por %p123, %p124
      %p126 = scmp.ne.s32.totalorder %s118, %s121
      %p127 = scmp.eq.s32.totalorder %s12, 0
      %p128 = por %p126, %p127
      %p129 = scmp.ne.s32.totalorder %s118, %s121
      %p130 = scmp.eq.s32.totalorder %s17, 1
      %p131 = por %p129, %p130
      %p132 = scmp.ne.s32.totalorder %s121, %s122
      %p133 = scmp.eq.s32.totalorder %s17, 0
      %p134 = por %p132, %p133
      %p135 = scmp.ne.s32.totalorder %s121, %s122
      %p136 = scmp.eq.s32.totalorder %s18, 1
      %p137 = por %p135, %p136
      %p139 = scmp.ne.s32.totalorder %s122, %s138
      %p140 = scmp.eq.s32.totalorder %s18, 0
      %p141 = por %p139, %p140
      %s143 = sadd.s32 %s142, 1
      %p146 = scmp.eq.s32.totalorder %s12, 1
      %p147 = scmp.ne.s32.totalorder %s142, %s144
      %p148 = scmp.eq.s32.totalorder %s12, 0
      %p149 = por %p147, %p148
      %p150 = scmp.ne.s32.totalorder %s142, %s144
      %p151 = scmp.eq.s32.totalorder %s17, 1
      %p152 = por %p150, %p151
      %p153 = scmp.ne.s32.totalorder %s144, %s145
      %p154 = scmp.eq.s32.totalorder %s17, 0
      %p155 = por %p153, %p154
      %p156 = scmp.ne.s32.totalorder %s144, %s145
      %p157 = scmp.eq.s32.totalorder %s18, 1
      %p158 = por %p156, %p157
      %p160 = scmp.ne.s32.totalorder %s145, %s159
      %p161 = scmp.eq.s32.totalorder %s18, 0
      %p162 = por %p160, %p161
      %p163 = scmp.le.s32.totalorder 1, %s12
      %p164 = scmp.lt.s32.totalorder %s12, 3
      %p165 = pnand %p163, %p164
      %p166 = pneg %p165
      // Predicated region
      $region9: #{inpainting_loss_with_gan.11} parent=5 // pred_check
        _
      $region10: #{inpainting_loss_with_gan.11} parent=5 // pred_check_branch
        %168 = sbr.rel (%p165) target = $region12
      $region11: #{inpainting_loss_with_gan.11} parent=5 // pred_region
        %s169 = ssub.s32 %s12, 1
      $region12: #{inpainting_loss_with_gan.11} parent=5 // pred_fallthru
        _
      %p170 = scmp.lt.s32.totalorder %s12, 2
      // Predicated region
      $region13: #{inpainting_loss_with_gan.11} parent=5 // pred_check
        %p171 = pneg %p170
      $region14: #{inpainting_loss_with_gan.11} parent=5 // pred_check_branch
        %173 = sbr.rel (%p171) target = $region16
      $region15: #{inpainting_loss_with_gan.11} parent=5 // pred_region
        // Predicated region
        $region17: #{inpainting_loss_with_gan.11} parent=15 // pred_check
          %p174 = pneg %p46
        $region18: #{inpainting_loss_with_gan.11} parent=15 // pred_check_branch
          %176 = sbr.rel (%p174) target = $region20
        $region19: #{inpainting_loss_with_gan.11} parent=15 // pred_region
          %p177 = scmp.lt.s32.totalorder %s19, 1
          %s178 = scalar_select %p177, %s19, 1
          %p179 = scmp.lt.s32.totalorder %s20, 0
          %s180 = scalar_select %p179, %s20, 0
          %s181 = sadd.s32 %s180, %s178
          %s182 = smul.addr %s181, 8
          %s183 = scalar_lea.vmem %s0, %s182
        $region20: #{inpainting_loss_with_gan.11} parent=15 // pred_fallthru
          _
        // Predicated region
        $region21: #{inpainting_loss_with_gan.11} parent=15 // pred_check
          %p184 = pneg %p74
        $region22: #{inpainting_loss_with_gan.11} parent=15 // pred_check_branch
          %186 = sbr.rel (%p184) target = $region24
        $region23: #{inpainting_loss_with_gan.11} parent=15 // pred_region
          %p187 = scmp.lt.s32.totalorder %s19, 1
          %s188 = scalar_select %p187, %s19, 1
          %p189 = scmp.lt.s32.totalorder %s20, 0
          %s190 = scalar_select %p189, %s20, 0
          %s191 = sadd.s32 %s190, %s188
          %s192 = smul.addr %s191, 8
          %s193 = scalar_lea.vmem %s1, %s192
        $region24: #{inpainting_loss_with_gan.11} parent=15 // pred_fallthru
          _
        // Predicated region
        $region25: #{inpainting_loss_with_gan.11} parent=15 // pred_check
          %p194 = pneg %p102
        $region26: #{inpainting_loss_with_gan.11} parent=15 // pred_check_branch
          %196 = sbr.rel (%p194) target = $region28
        $region27: #{inpainting_loss_with_gan.11} parent=15 // pred_region
          %p197 = scmp.lt.s32.totalorder %s19, 1
          %s198 = scalar_select %p197, %s19, 1
          %p199 = scmp.lt.s32.totalorder %s20, 0
          %s200 = scalar_select %p199, %s20, 0
          %s201 = sadd.s32 %s200, %s198
          %s202 = smul.addr %s201, 8
          %s203 = scalar_lea.vmem %s2, %s202
        $region28: #{inpainting_loss_with_gan.11} parent=15 // pred_fallthru
          _
      $region16: #{inpainting_loss_with_gan.11} parent=5 // pred_fallthru
        _
      %p204 = scmp.le.s32.totalorder 1, %s12
      %p205 = scmp.lt.s32.totalorder %s12, 3
      %p206 = pnand %p204, %p205
      %p207 = pneg %p206
      // Predicated region
      $region29: #{inpainting_loss_with_gan.11} parent=5 // pred_check
        _
      $region30: #{inpainting_loss_with_gan.11} parent=5 // pred_check_branch
        %209 = sbr.rel (%p206) target = $region32
      $region31: #{inpainting_loss_with_gan.11} parent=5 // pred_region
        %s210 = ssub.s32 %s12, 1
        %p211 = scmp.lt.s32.totalorder %s21, 1
        %s212 = scalar_select %p211, %s21, 1
        %p213 = scmp.lt.s32.totalorder %s22, 0
        %s214 = scalar_select %p213, %s22, 0
        %s215 = sadd.s32 %s214, %s212
        %s216 = smul.addr %s215, 8
        %s217 = scalar_lea.vmem %s0, %s216
        %p218 = pneg %p52
        %p219 = pneg %p49
        %p220 = scmp.lt.s32.totalorder %s21, 1
        %s221 = scalar_select %p220, %s21, 1
        %p222 = scmp.lt.s32.totalorder %s22, 0
        %s223 = scalar_select %p222, %s22, 0
        %s224 = sadd.s32 %s223, %s221
        %s225 = smul.addr %s224, 8
        %s226 = scalar_lea.vmem %s1, %s225
        %p227 = pneg %p80
        %p228 = pneg %p77
        %p229 = scmp.lt.s32.totalorder %s21, 1
        %s230 = scalar_select %p229, %s21, 1
        %p231 = scmp.lt.s32.totalorder %s22, 0
        %s232 = scalar_select %p231, %s22, 0
        %s233 = sadd.s32 %s232, %s230
        %s234 = smul.addr %s233, 8
        %s235 = scalar_lea.vmem %s2, %s234
        %p236 = pneg %p108
        %p237 = pneg %p105
        %p238 = pneg %p134
        %p239 = pneg %p131
        %s240 = sand.u32 %s121, 1
        %s241 = sand.u32 %s121, 1
        %s242 = smul.addr %s241, 24
        %s243 = scalar_lea.vmem [#allocation2], %s242
        %p244 = pneg %p155
        %p245 = pneg %p152
        %p246 = scmp.lt.s32.totalorder %s21, 1
        %s247 = scalar_select %p246, %s21, 1
        %p248 = scmp.lt.s32.totalorder %s22, 0
        %s249 = scalar_select %p248, %s22, 0
        %s250 = sadd.s32 %s249, %s247
        %s251 = smul.addr %s250, 8
        %s252 = scalar_lea.vmem %s0, %s251
        %p253 = scmp.lt.s32.totalorder %s21, 1
        %s254 = scalar_select %p253, %s21, 1
        %p255 = scmp.lt.s32.totalorder %s22, 0
        %s256 = scalar_select %p255, %s22, 0
        %s257 = sadd.s32 %s256, %s254
        %s258 = smul.addr %s257, 8
        %s259 = scalar_lea.vmem %s1, %s258
        %p260 = scmp.lt.s32.totalorder %s21, 1
        %s261 = scalar_select %p260, %s21, 1
        %p262 = scmp.lt.s32.totalorder %s22, 0
        %s263 = scalar_select %p262, %s22, 0
        %s264 = sadd.s32 %s263, %s261
        %s265 = smul.addr %s264, 8
        %s266 = scalar_lea.vmem %s2, %s265
        %p267 = scmp.eq.s32.totalorder %s21, 0
        %p268 = scmp.eq.s32.totalorder %s22, 0
        %p269 = pnand %p267, %p268
        %p270 = pneg %p269
        // Predicated region
        $region33: #{inpainting_loss_with_gan.11} parent=31 // pred_check
          _
        $region34: #{inpainting_loss_with_gan.11} parent=31 // pred_check_branch
          %272 = sbr.rel (%p269) target = $region36
        $region35: #{inpainting_loss_with_gan.11} parent=31 // pred_region
          %s273 = scalar_lea.smem [#allocation3], 0
          %274 = sst [smem:[%s273]] 0.0
          %s275 = scalar_lea.smem [#allocation3], 1
          %276 = sst [smem:[%s275]] 0.0
        $region36: #{inpainting_loss_with_gan.11} parent=31 // pred_fallthru
          _
        // Predicated region
        $region37: #{inpainting_loss_with_gan.11} parent=31 // pred_check
          %p277 = pneg %p268
        $region38: #{inpainting_loss_with_gan.11} parent=31 // pred_check_branch
          %279 = sbr.rel (%p277) target = $region40
        $region39: #{inpainting_loss_with_gan.11} parent=31 // pred_region
          %vm280 = vcmask 64512
          %281 = vst.msk [vmem:[%s243] sm:$0xff] %vm280, 0.0
          %282 = vst.msk [vmem:[%s243 + $0x8] sm:$0xff] %vm280, 0.0
          %283 = vst.msk [vmem:[%s243 + $0x10] sm:$0xff] %vm280, 0.0
        $region40: #{inpainting_loss_with_gan.11} parent=31 // pred_fallthru
          _
        %v284 = vld [vmem:[%s252] sm:$0xff]
        %v285 = vld [vmem:[%s259] sm:$0xff]
        %v286 = vld [vmem:[%s266] sm:$0xff]
        %v287 = vld [vmem:[%s243] sm:$0xff]
        %vm288 = vcmask 523264
        %v290 = vsel %vm288, %v284, 0
        %292 = vmatprep.subr.mxu0 0.0
        %293 = vmatpush1.xpose.msra.mxu0 %v290
        %294 = vmatprep.subr.mxu0 0.0
        %295 = vmatpush1.xpose.msra.mxu0 0.0
        %296 = vmatprep.subr.mxu0 0.0
        %297 = vmatpush1.xpose.msra.mxu0 0.0
        %298 = vmatprep.subr.mxu0 0.0
        %299 = vmatpush1.xpose.msra.mxu0 0.0
        %300 = vmatprep.subr.mxu0 0.0
        %301 = vmatpush1.xpose.msra.mxu0 0.0
        %302 = vmatprep.subr.mxu0 0.0
        %303 = vmatpush1.xpose.msra.mxu0 0.0
        %304 = vmatprep.subr.mxu0 0.0
        %305 = vmatpush1.xpose.msra.mxu0 0.0
        %306 = vmatprep.subr.mxu0 0.0
        %307 = vmatpush1.xpose.msra.mxu0 0.0
        %308 = vmatprep.subr.mxu0 0.0
        %309 = vmatpush1.xpose.msra.mxu0 0.0
        %310 = vmatprep.subr.mxu0 0.0
        %311 = vmatpush1.xpose.msra.mxu0 0.0
        %312 = vmatprep.subr.mxu0 0.0
        %313 = vmatpush1.xpose.msra.mxu0 0.0
        %314 = vmatprep.subr.mxu0 0.0
        %315 = vmatpush1.xpose.msra.mxu0 0.0
        %316 = vmatprep.subr.mxu0 0.0
        %317 = vmatpush1.xpose.msra.mxu0 0.0
        %318 = vmatprep.subr.mxu0 0.0
        %319 = vmatpush1.xpose.msra.mxu0 0.0
        %320 = vmatprep.subr.mxu0 0.0
        %321 = vmatpush1.xpose.msra.mxu0 0.0
        %322 = vmatprep.subr.mxu0 0.0
        %323 = vmatpush1.xpose.msra.mxu0 0.0
        %324 = vmatprep.subr.mxu0 0.0
        %325 = vmatpush1.xpose.msra.mxu0 0.0
        %326 = vmatprep.subr.mxu0 0.0
        %327 = vmatpush1.xpose.msra.mxu0 0.0
        %328 = vmatprep.subr.mxu0 0.0
        %329 = vmatpush1.xpose.msra.mxu0 0.0
        %330 = vmatprep.subr.mxu0 0.0
        %331 = vmatpush1.xpose.msra.mxu0 0.0
        %332 = vmatprep.subr.mxu0 0.0
        %333 = vmatpush1.xpose.msra.mxu0 0.0
        %334 = vmatprep.subr.mxu0 0.0
        %335 = vmatpush1.xpose.msra.mxu0 0.0
        %336 = vmatprep.subr.mxu0 0.0
        %337 = vmatpush1.xpose.msra.mxu0 0.0
        %338 = vmatprep.subr.mxu0 0.0
        %339 = vmatpush1.xpose.msra.mxu0 0.0
        %340 = vmatprep.subr.mxu0 0.0
        %341 = vmatpush1.xpose.msra.mxu0 0.0
        %342 = vmatprep.subr.mxu0 0.0
        %343 = vmatpush1.xpose.msra.mxu0 0.0
        %344 = vmatprep.subr.mxu0 0.0
        %345 = vmatpush1.xpose.msra.mxu0 0.0
        %346 = vmatprep.subr.mxu0 0.0
        %347 = vmatpush1.xpose.msra.mxu0 0.0
        %348 = vmatprep.subr.mxu0 0.0
        %349 = vmatpush1.xpose.msra.mxu0 0.0
        %350 = vmatprep.subr.mxu0 0.0
        %351 = vmatpush1.xpose.msra.mxu0 0.0
        %352 = vmatprep.subr.mxu0 0.0
        %353 = vmatpush1.xpose.msra.mxu0 0.0
        %354 = vmatprep.subr.mxu0 0.0
        %355 = vmatpush1.xpose.msra.mxu0 0.0
        %356 = vmatprep.mubr.f32.mxu0 0.0
        %357 = vmatmul.mubr.f32.gmra.mrb[0].mxu0 %v290
        %v358 = vpop.f32.mrb[0].mxu0
        %v359 = vadd.f32 0.0, %v358
        %v360 = vpop.f32.mrb[0].mxu0
        %361 = vdwg.mxu0
        %v362 = vadd.f32 %v287, %v359
        %vm363 = vcmask 64512
        %364 = vst.msk [vmem:[%s243] sm:$0xff] %vm363, %v362
        %s365 = scalar_lea.vmem %s243, 8 [#allocation2]
        %v366 = vld [vmem:[%s365] sm:$0xff]
        %v368 = vsel %vm288, %v285, 0
        %370 = vmatprep.subr.mxu0 0.0
        %371 = vmatpush1.xpose.msra.mxu0 %v368
        %372 = vmatprep.subr.mxu0 0.0
        %373 = vmatpush1.xpose.msra.mxu0 0.0
        %374 = vmatprep.subr.mxu0 0.0
        %375 = vmatpush1.xpose.msra.mxu0 0.0
        %376 = vmatprep.subr.mxu0 0.0
        %377 = vmatpush1.xpose.msra.mxu0 0.0
        %378 = vmatprep.subr.mxu0 0.0
        %379 = vmatpush1.xpose.msra.mxu0 0.0
        %380 = vmatprep.subr.mxu0 0.0
        %381 = vmatpush1.xpose.msra.mxu0 0.0
        %382 = vmatprep.subr.mxu0 0.0
        %383 = vmatpush1.xpose.msra.mxu0 0.0
        %384 = vmatprep.subr.mxu0 0.0
        %385 = vmatpush1.xpose.msra.mxu0 0.0
        %386 = vmatprep.subr.mxu0 0.0
        %387 = vmatpush1.xpose.msra.mxu0 0.0
        %388 = vmatprep.subr.mxu0 0.0
        %389 = vmatpush1.xpose.msra.mxu0 0.0
        %390 = vmatprep.subr.mxu0 0.0
        %391 = vmatpush1.xpose.msra.mxu0 0.0
        %392 = vmatprep.subr.mxu0 0.0
        %393 = vmatpush1.xpose.msra.mxu0 0.0
        %394 = vmatprep.subr.mxu0 0.0
        %395 = vmatpush1.xpose.msra.mxu0 0.0
        %396 = vmatprep.subr.mxu0 0.0
        %397 = vmatpush1.xpose.msra.mxu0 0.0
        %398 = vmatprep.subr.mxu0 0.0
        %399 = vmatpush1.xpose.msra.mxu0 0.0
        %400 = vmatprep.subr.mxu0 0.0
        %401 = vmatpush1.xpose.msra.mxu0 0.0
        %402 = vmatprep.subr.mxu0 0.0
        %403 = vmatpush1.xpose.msra.mxu0 0.0
        %404 = vmatprep.subr.mxu0 0.0
        %405 = vmatpush1.xpose.msra.mxu0 0.0
        %406 = vmatprep.subr.mxu0 0.0
        %407 = vmatpush1.xpose.msra.mxu0 0.0
        %408 = vmatprep.subr.mxu0 0.0
        %409 = vmatpush1.xpose.msra.mxu0 0.0
        %410 = vmatprep.subr.mxu0 0.0
        %411 = vmatpush1.xpose.msra.mxu0 0.0
        %412 = vmatprep.subr.mxu0 0.0
        %413 = vmatpush1.xpose.msra.mxu0 0.0
        %414 = vmatprep.subr.mxu0 0.0
        %415 = vmatpush1.xpose.msra.mxu0 0.0
        %416 = vmatprep.subr.mxu0 0.0
        %417 = vmatpush1.xpose.msra.mxu0 0.0
        %418 = vmatprep.subr.mxu0 0.0
        %419 = vmatpush1.xpose.msra.mxu0 0.0
        %420 = vmatprep.subr.mxu0 0.0
        %421 = vmatpush1.xpose.msra.mxu0 0.0
        %422 = vmatprep.subr.mxu0 0.0
        %423 = vmatpush1.xpose.msra.mxu0 0.0
        %424 = vmatprep.subr.mxu0 0.0
        %425 = vmatpush1.xpose.msra.mxu0 0.0
        %426 = vmatprep.subr.mxu0 0.0
        %427 = vmatpush1.xpose.msra.mxu0 0.0
        %428 = vmatprep.subr.mxu0 0.0
        %429 = vmatpush1.xpose.msra.mxu0 0.0
        %430 = vmatprep.subr.mxu0 0.0
        %431 = vmatpush1.xpose.msra.mxu0 0.0
        %432 = vmatprep.subr.mxu0 0.0
        %433 = vmatpush1.xpose.msra.mxu0 0.0
        %434 = vmatprep.mubr.f32.mxu0 0.0
        %435 = vmatmul.mubr.f32.gmra.mrb[0].mxu0 %v368
        %v436 = vpop.f32.mrb[0].mxu0
        %v437 = vadd.f32 0.0, %v436
        %v438 = vpop.f32.mrb[0].mxu0
        %439 = vdwg.mxu0
        %v440 = vadd.f32 %v366, %v437
        %441 = vst.msk [vmem:[%s365] sm:$0xff] %vm363, %v440
        %s442 = scalar_lea.vmem %s243, 16 [#allocation2]
        %v443 = vld [vmem:[%s442] sm:$0xff]
        %v445 = vsel %vm288, %v286, 0
        %447 = vmatprep.subr.mxu0 0.0
        %448 = vmatpush1.xpose.msra.mxu0 %v445
        %449 = vmatprep.subr.mxu0 0.0
        %450 = vmatpush1.xpose.msra.mxu0 0.0
        %451 = vmatprep.subr.mxu0 0.0
        %452 = vmatpush1.xpose.msra.mxu0 0.0
        %453 = vmatprep.subr.mxu0 0.0
        %454 = vmatpush1.xpose.msra.mxu0 0.0
        %455 = vmatprep.subr.mxu0 0.0
        %456 = vmatpush1.xpose.msra.mxu0 0.0
        %457 = vmatprep.subr.mxu0 0.0
        %458 = vmatpush1.xpose.msra.mxu0 0.0
        %459 = vmatprep.subr.mxu0 0.0
        %460 = vmatpush1.xpose.msra.mxu0 0.0
        %461 = vmatprep.subr.mxu0 0.0
        %462 = vmatpush1.xpose.msra.mxu0 0.0
        %463 = vmatprep.subr.mxu0 0.0
        %464 = vmatpush1.xpose.msra.mxu0 0.0
        %465 = vmatprep.subr.mxu0 0.0
        %466 = vmatpush1.xpose.msra.mxu0 0.0
        %467 = vmatprep.subr.mxu0 0.0
        %468 = vmatpush1.xpose.msra.mxu0 0.0
        %469 = vmatprep.subr.mxu0 0.0
        %470 = vmatpush1.xpose.msra.mxu0 0.0
        %471 = vmatprep.subr.mxu0 0.0
        %472 = vmatpush1.xpose.msra.mxu0 0.0
        %473 = vmatprep.subr.mxu0 0.0
        %474 = vmatpush1.xpose.msra.mxu0 0.0
        %475 = vmatprep.subr.mxu0 0.0
        %476 = vmatpush1.xpose.msra.mxu0 0.0
        %477 = vmatprep.subr.mxu0 0.0
        %478 = vmatpush1.xpose.msra.mxu0 0.0
        %479 = vmatprep.subr.mxu0 0.0
        %480 = vmatpush1.xpose.msra.mxu0 0.0
        %481 = vmatprep.subr.mxu0 0.0
        %482 = vmatpush1.xpose.msra.mxu0 0.0
        %483 = vmatprep.subr.mxu0 0.0
        %484 = vmatpush1.xpose.msra.mxu0 0.0
        %485 = vmatprep.subr.mxu0 0.0
        %486 = vmatpush1.xpose.msra.mxu0 0.0
        %487 = vmatprep.subr.mxu0 0.0
        %488 = vmatpush1.xpose.msra.mxu0 0.0
        %489 = vmatprep.subr.mxu0 0.0
        %490 = vmatpush1.xpose.msra.mxu0 0.0
        %491 = vmatprep.subr.mxu0 0.0
        %492 = vmatpush1.xpose.msra.mxu0 0.0
        %493 = vmatprep.subr.mxu0 0.0
        %494 = vmatpush1.xpose.msra.mxu0 0.0
        %495 = vmatprep.subr.mxu0 0.0
        %496 = vmatpush1.xpose.msra.mxu0 0.0
        %497 = vmatprep.subr.mxu0 0.0
        %498 = vmatpush1.xpose.msra.mxu0 0.0
        %499 = vmatprep.subr.mxu0 0.0
        %500 = vmatpush1.xpose.msra.mxu0 0.0
        %501 = vmatprep.subr.mxu0 0.0
        %502 = vmatpush1.xpose.msra.mxu0 0.0
        %503 = vmatprep.subr.mxu0 0.0
        %504 = vmatpush1.xpose.msra.mxu0 0.0
        %505 = vmatprep.subr.mxu0 0.0
        %506 = vmatpush1.xpose.msra.mxu0 0.0
        %507 = vmatprep.subr.mxu0 0.0
        %508 = vmatpush1.xpose.msra.mxu0 0.0
        %509 = vmatprep.subr.mxu0 0.0
        %510 = vmatpush1.xpose.msra.mxu0 0.0
        %511 = vmatprep.mubr.f32.mxu0 0.0
        %512 = vmatmul.mubr.f32.gmra.mrb[0].mxu0 %v445
        %v513 = vpop.f32.mrb[0].mxu0
        %v514 = vadd.f32 0.0, %v513
        %v515 = vpop.f32.mrb[0].mxu0
        %516 = vdwg.mxu0
        %v517 = vadd.f32 %v443, %v514
        %518 = vst.msk [vmem:[%s442] sm:$0xff] %vm363, %v517
        %s519 = sld [smem:[#allocation3]]
        %v520 = vsub.f32 %v284, %v286
        %v521 = vand.u32 2147483647, %v520
        %v522 = vsel %vm288, %v521, 0.0
        %523 = vadd.xlane.f32.xlu0 %v522
        %v524 = vpop.xlane.xlu0 %523
        %v525 = vrot.slane %v524, 4
        %v526 = vadd.f32 %v524, %v525
        %v527 = vrot.slane %v526, 2
        %v528 = vadd.f32 %v526, %v527
        %v529 = vrot.slane %v528, 1
        %v530 = vadd.f32 %v528, %v529
        %s531 = vtos %v530
        %s532 = sadd.f32 %s519, %s531
        %s533 = scalar_lea.smem [#allocation3], 0
        %534 = sst [smem:[%s533]] %s532
        %s535 = sld [smem:[#allocation3 + $0x1]]
        %v536 = vsub.f32 %v285, %v286
        %v537 = vand.u32 2147483647, %v536
        %v538 = vsel %vm288, %v537, 0.0
        %539 = vadd.xlane.f32.xlu0 %v538
        %v540 = vpop.xlane.xlu0 %539
        %v541 = vrot.slane %v540, 4
        %v542 = vadd.f32 %v540, %v541
        %v543 = vrot.slane %v542, 2
        %v544 = vadd.f32 %v542, %v543
        %v545 = vrot.slane %v544, 1
        %v546 = vadd.f32 %v544, %v545
        %s547 = vtos %v546
        %s548 = sadd.f32 %s535, %s547
        %s549 = scalar_lea.smem [#allocation3], 1
        %550 = sst [smem:[%s549]] %s548
        // Predicated region
        $region41: #{inpainting_loss_with_gan.11} parent=31 // pred_check
          %p551 = pneg %p268
        $region42: #{inpainting_loss_with_gan.11} parent=31 // pred_check_branch
          %553 = sbr.rel (%p551) target = $region44
        $region43: #{inpainting_loss_with_gan.11} parent=31 // pred_region
          %v554 = vld [vmem:[%s243] sm:$0xff]
          %v555 = vld [vmem:[%s243 + $0x8] sm:$0xff]
          %v556 = vld [vmem:[%s243 + $0x10] sm:$0xff]
          %v557 = vmul.f32 %v554, 0.001953125
          %v558 = vmul.f32 %v555, 0.001953125
          %v559 = vmul.f32 %v556, 0.001953125
          %560 = vst.msk [vmem:[%s243] sm:$0xff] %vm363, %v557
          %561 = vst.msk [vmem:[%s243 + $0x8] sm:$0xff] %vm363, %v558
          %562 = vst.msk [vmem:[%s243 + $0x10] sm:$0xff] %vm363, %v559
        $region44: #{inpainting_loss_with_gan.11} parent=31 // pred_fallthru
          _
        %s563 = sand.u32 %s121, 1
        %s564 = sand.u32 %s121, 1
        %s565 = smul.addr %s564, 24
        %s566 = scalar_lea.vmem [#allocation2], %s565
        // Predicated region
        $region45: #{inpainting_loss_with_gan.11} parent=31 // pred_check
          %p567 = pneg %p131
        $region46: #{inpainting_loss_with_gan.11} parent=31 // pred_check_branch
          %569 = sbr.rel (%p567) target = $region48
        $region47: #{inpainting_loss_with_gan.11} parent=31 // pred_region
          %s570 = smul.addr %s21, 8
          %s571 = scalar_lea.vmem %s3, %s570
          // Predicated region
          $region49: #{inpainting_loss_with_gan.11} parent=47 // pred_check
            _
          $region50: #{inpainting_loss_with_gan.11} parent=47 // pred_check_branch
            %573 = sbr.rel (0) target = $region52
          $region51: #{inpainting_loss_with_gan.11} parent=47 // pred_region
            // Predicated region
            $region53: #{inpainting_loss_with_gan.11} parent=51 // pred_check
              _
            $region54: #{inpainting_loss_with_gan.11} parent=51 // pred_check_branch
              %575 = sbr.rel (0) target = $region56
            $region55: #{inpainting_loss_with_gan.11} parent=51 // pred_region
              // Predicated region
              $region68: #{inpainting_loss_with_gan.11} parent=55 // pred_check
                _
              $region69: #{inpainting_loss_with_gan.11} parent=55 // pred_check_branch
                %594 = sbr.rel (0) target = $region71
              $region70: #{inpainting_loss_with_gan.11} parent=55 // pred_region
                loop: start=0, step=1, limit=1
                $region72: #{inpainting_loss_with_gan.11} parent=70 // loop_pre_header
                  _
                $region73: #{inpainting_loss_with_gan.11} parent=70 // loop_header
                  %s596 = sphi 0, %s600
                  %p597 = scmp.ge.s32.totalorder %s596, 1
                  %s601 = sphi %s566, %s566
                  %s602 = sphi %s571, %s571
                $region74: #{inpainting_loss_with_gan.11} parent=70 // loop_header_branch
                  %599 = sbr.rel (%p597) target = $region78
                $region75: #{inpainting_loss_with_gan.11} parent=70 // loop_body
                  %v603 = vld [vmem:[%s601] sm:$0xff]
                  %604 = vst [vmem:[%s602] sm:$0xff] %v603
                  %v605 = vld [vmem:[%s601 + $0x8] sm:$0xff]
                  %606 = vst [vmem:[%s602 + $0x10] sm:$0xff] %v605
                  %v607 = vld [vmem:[%s601 + $0x10] sm:$0xff]
                  %608 = vst [vmem:[%s602 + $0x20] sm:$0xff] %v607
                $region76: #{inpainting_loss_with_gan.11} parent=70 // loop_footer
                  %s600 = sadd.s32 1, %s596
                $region77: #{inpainting_loss_with_gan.11} parent=70 // loop_footer_branch
                  %595 = sbr.rel target = $region73
                $region78: #{inpainting_loss_with_gan.11} parent=70 // loop_exit
                  _
              $region71: #{inpainting_loss_with_gan.11} parent=55 // pred_fallthru
                _
              // Predicated region
              $region79: #{inpainting_loss_with_gan.11} parent=55 // pred_check
                _
              $region80: #{inpainting_loss_with_gan.11} parent=55 // pred_check_branch
                %610 = sbr.rel target = $region82
              $region81: #{inpainting_loss_with_gan.11} parent=55 // pred_region
                _
              $region82: #{inpainting_loss_with_gan.11} parent=55 // pred_fallthru
                _
            $region56: #{inpainting_loss_with_gan.11} parent=51 // pred_fallthru
              _
            // Predicated region
            $region57: #{inpainting_loss_with_gan.11} parent=51 // pred_check
              _
            $region58: #{inpainting_loss_with_gan.11} parent=51 // pred_check_branch
              %577 = sbr.rel target = $region60
            $region59: #{inpainting_loss_with_gan.11} parent=51 // pred_region
              loop: start=0, step=1, limit=1
              $region61: #{inpainting_loss_with_gan.11} parent=59 // loop_pre_header
                _
              $region62: #{inpainting_loss_with_gan.11} parent=59 // loop_header
                %s580 = sphi 0, %s584
                %p581 = scmp.ge.s32.totalorder %s580, 1
                %s585 = sphi %s566, %s566
                %s586 = sphi %s571, %s571
              $region63: #{inpainting_loss_with_gan.11} parent=59 // loop_header_branch
                %583 = sbr.rel (%p581) target = $region67
              $region64: #{inpainting_loss_with_gan.11} parent=59 // loop_body
                %v587 = vld [vmem:[%s585] sm:$0xff]
                %588 = vst [vmem:[%s586] sm:$0xff] %v587
                %v589 = vld [vmem:[%s585 + $0x8] sm:$0xff]
                %590 = vst [vmem:[%s586 + $0x10] sm:$0xff] %v589
                %v591 = vld [vmem:[%s585 + $0x10] sm:$0xff]
                %592 = vst [vmem:[%s586 + $0x20] sm:$0xff] %v591
              $region65: #{inpainting_loss_with_gan.11} parent=59 // loop_footer
                %s584 = sadd.s32 1, %s580
              $region66: #{inpainting_loss_with_gan.11} parent=59 // loop_footer_branch
                %579 = sbr.rel target = $region62
              $region67: #{inpainting_loss_with_gan.11} parent=59 // loop_exit
                _
            $region60: #{inpainting_loss_with_gan.11} parent=51 // pred_fallthru
              _
          $region52: #{inpainting_loss_with_gan.11} parent=47 // pred_fallthru
            _
          %611 = vnop
        $region48: #{inpainting_loss_with_gan.11} parent=31 // pred_fallthru
          _
        // Predicated region
        $region83: #{inpainting_loss_with_gan.11} parent=31 // pred_check
          %p612 = pneg %p152
        $region84: #{inpainting_loss_with_gan.11} parent=31 // pred_check_branch
          %614 = sbr.rel (%p612) target = $region86
        $region85: #{inpainting_loss_with_gan.11} parent=31 // pred_region
          %s616 = ssub.s32 16, 16
          %617 = vsyncadd [#allocation4], %s616
          %s619 = sshll.u32 %s4, 4
          %s620 = int_to_ptr.vmem [resolvable:$true] %s619
          %622 = dma.smem_to_vmem [#allocation3], 16, %s620, [#allocation4]
        $region86: #{inpainting_loss_with_gan.11} parent=31 // pred_fallthru
          _
        // Predicated region
        $region87: #{inpainting_loss_with_gan.11} parent=31 // pred_check
          %p623 = pneg %p152
        $region88: #{inpainting_loss_with_gan.11} parent=31 // pred_check_branch
          %625 = sbr.rel (%p623) target = $region90
        $region89: #{inpainting_loss_with_gan.11} parent=31 // pred_region
          %626 = dma.done [#allocation4], 16
        $region90: #{inpainting_loss_with_gan.11} parent=31 // pred_fallthru
          _
        %627 = sfence
      $region32: #{inpainting_loss_with_gan.11} parent=5 // pred_fallthru
        _
      %p628 = scmp.le.s32.totalorder 2, %s12
      // Predicated region
      $region91: #{inpainting_loss_with_gan.11} parent=5 // pred_check
        %p629 = pneg %p628
      $region92: #{inpainting_loss_with_gan.11} parent=5 // pred_check_branch
        %631 = sbr.rel (%p629) target = $region94
      $region93: #{inpainting_loss_with_gan.11} parent=5 // pred_region
        %s632 = ssub.s32 %s12, 2
        // Predicated region
        $region95: #{inpainting_loss_with_gan.11} parent=93 // pred_check
          %p633 = pneg %p137
        $region96: #{inpainting_loss_with_gan.11} parent=93 // pred_check_branch
          %635 = sbr.rel (%p633) target = $region98
        $region97: #{inpainting_loss_with_gan.11} parent=93 // pred_region
          %s636 = sand.u32 %s122, 1
          %s637 = sand.u32 %s122, 1
          %s638 = smul.addr %s637, 24
          %s639 = scalar_lea.vmem [#allocation2], %s638
        $region98: #{inpainting_loss_with_gan.11} parent=93 // pred_fallthru
          _
      $region94: #{inpainting_loss_with_gan.11} parent=5 // pred_fallthru
        _
    $region6: #{inpainting_loss_with_gan.11} parent=1 // loop_footer
      %s16 = sadd.s32 1, %s12
    $region7: #{inpainting_loss_with_gan.11} parent=1 // loop_footer_branch
      %11 = sbr.rel target = $region3
    $region8: #{inpainting_loss_with_gan.11} parent=1 // loop_exit
      _
    %640 = vsyncpa [#allocation4], 1
    %s641 = scalar_lea.sflag [#allocation4], 1
    %642 = vsyncpa %s641, 1

// kernel: inpainting_loss_with_gan.12
$region0: #{inpainting_loss_with_gan.12}
  #allocation0 [shape = 'u32[]', space=smem, size = 0x4, offset = 0x4, fixed_abs, tag = 'smem constant byte address 0x4 - core index']
  #allocation1 [shape = 'u32[144,128]{1,0:T(1,128)}', space=vmem, size = 0x12000, scoped, tag = 'internal scratch']
  %s0 = inlined_call_operand.vmem [shape: f32[2,8,64], index: 0, kind: input, shape index: {}]
  %s1 = inlined_call_operand.vmem [shape: f32[2,8,64], index: 1, kind: input, shape index: {}]
  %s2 = inlined_call_operand.vmem [shape: f32[2,8,64], index: 2, kind: input, shape index: {}]
  %s3 = inlined_call_operand.vmem [shape: f32[16,8], index: 3, kind: input, shape index: {}]
  %s4 = inlined_call_operand.vmem [shape: f32[16,1], index: 4, kind: input, shape index: {}]
  %s5 = inlined_call_operand.vmem [shape: f32[2,16,64], index: 5, kind: output, shape index: {0}]
  %s6 = inlined_call_operand.vmem [shape: f32[2,16,64], index: 6, kind: output, shape index: {1}]
  %s7 = inlined_call_operand.vmem [shape: f32[2,16,64], index: 7, kind: output, shape index: {2}]
  %8 = xla_tuple %s5, %s6, %s7
  %s9 = sld [smem:[#allocation0]]
  $region69: #{inpainting_loss_with_gan.12} parent=0
    _
  %s11 = ssub.s32 1, %s9
  %s12 = scalar_select 0, %s11, %s9
  loop: start=0, step=1, limit=4
  $region2: #{inpainting_loss_with_gan.12} parent=0 // loop_pre_header
    _
  $region3: #{inpainting_loss_with_gan.12} parent=0 // loop_header
    %s14 = sphi 0, %s18
    %p15 = scmp.ge.s32.totalorder %s14, 4
    %s21 = sphi 0, %s33
    %s22 = sphi 0, %s29
    %s23 = sphi 0, %s21
    %s24 = sphi 0, %s22
    %s25 = sphi 0, %s23
    %s26 = sphi 0, %s24
    %s38 = sphi 0, %s40
    %s41 = sphi 0, %s38
    %s42 = sphi 0, %s41
    %s58 = sphi 0, %s42
    %s66 = sphi 0, %s68
    %s69 = sphi 0, %s66
    %s70 = sphi 0, %s69
    %s86 = sphi 0, %s70
    %s94 = sphi 0, %s96
    %s97 = sphi 0, %s94
    %s98 = sphi 0, %s97
    %s114 = sphi 0, %s98
    %s118 = sphi 0, %s118
    %s120 = sphi 0, %s118
    %s121 = sphi 0, %s120
    %s135 = sphi 0, %s121
    %s139 = sphi 0, %s139
    %s141 = sphi 0, %s139
    %s142 = sphi 0, %s141
    %s156 = sphi 0, %s142
    %s164 = sphi 0, %s166
    %s167 = sphi 0, %s164
    %s168 = sphi 0, %s167
    %s184 = sphi 0, %s168
    %s192 = sphi 0, %s194
    %s195 = sphi 0, %s192
    %s196 = sphi 0, %s195
    %s212 = sphi 0, %s196
    %s220 = sphi 0, %s222
    %s223 = sphi 0, %s220
    %s224 = sphi 0, %s223
    %s240 = sphi 0, %s224
  $region4: #{inpainting_loss_with_gan.12} parent=0 // loop_header_branch
    %17 = sbr.rel (%p15) target = $region8
  $region5: #{inpainting_loss_with_gan.12} parent=0 // loop_body
    %s19 = ssub.s32 %s14, 1
    %s20 = ssub.s32 %s14, 2
    %s27 = sadd.s32 1, %s22
    %p28 = scmp.ge.s32.totalorder %s27, 1
    %s29 = scalar_select %p28, 0, %s27
    %s30 = sadd.s32 1, %s21
    %s31 = scalar_select %p28, %s30, %s21
    %p32 = scmp.ge.s32.totalorder %s31, 2
    %s33 = scalar_select %p32, 0, %s31
    %s34 = ssub.s32 %s21, %s33
    %s35 = ssub.s32 %s22, %s29
    %s36 = sor.u32 %s34, %s35
    %p37 = scmp.eq.s32.totalorder %s36, 0
    %s39 = sadd.s32 %s38, 1
    %s40 = scalar_select %p37, %s38, %s39
    %p43 = pneg %p37
    %p44 = scmp.eq.s32.totalorder %s14, 1
    %p45 = por %p43, %p44
    %p46 = scmp.ne.s32.totalorder %s38, %s41
    %p47 = scmp.eq.s32.totalorder %s14, 0
    %p48 = por %p46, %p47
    %p49 = scmp.ne.s32.totalorder %s38, %s41
    %p50 = scmp.eq.s32.totalorder %s19, 1
    %p51 = por %p49, %p50
    %p52 = scmp.ne.s32.totalorder %s41, %s42
    %p53 = scmp.eq.s32.totalorder %s19, 0
    %p54 = por %p52, %p53
    %p55 = scmp.ne.s32.totalorder %s41, %s42
    %p56 = scmp.eq.s32.totalorder %s20, 1
    %p57 = por %p55, %p56
    %p59 = scmp.ne.s32.totalorder %s42, %s58
    %p60 = scmp.eq.s32.totalorder %s20, 0
    %p61 = por %p59, %p60
    %s62 = ssub.s32 %s21, %s33
    %s63 = ssub.s32 %s22, %s29
    %s64 = sor.u32 %s62, %s63
    %p65 = scmp.eq.s32.totalorder %s64, 0
    %s67 = sadd.s32 %s66, 1
    %s68 = scalar_select %p65, %s66, %s67
    %p71 = pneg %p65
    %p72 = scmp.eq.s32.totalorder %s14, 1
    %p73 = por %p71, %p72
    %p74 = scmp.ne.s32.totalorder %s66, %s69
    %p75 = scmp.eq.s32.totalorder %s14, 0
    %p76 = por %p74, %p75
    %p77 = scmp.ne.s32.totalorder %s66, %s69
    %p78 = scmp.eq.s32.totalorder %s19, 1
    %p79 = por %p77, %p78
    %p80 = scmp.ne.s32.totalorder %s69, %s70
    %p81 = scmp.eq.s32.totalorder %s19, 0
    %p82 = por %p80, %p81
    %p83 = scmp.ne.s32.totalorder %s69, %s70
    %p84 = scmp.eq.s32.totalorder %s20, 1
    %p85 = por %p83, %p84
    %p87 = scmp.ne.s32.totalorder %s70, %s86
    %p88 = scmp.eq.s32.totalorder %s20, 0
    %p89 = por %p87, %p88
    %s90 = ssub.s32 %s21, %s33
    %s91 = ssub.s32 %s22, %s29
    %s92 = sor.u32 %s90, %s91
    %p93 = scmp.eq.s32.totalorder %s92, 0
    %s95 = sadd.s32 %s94, 1
    %s96 = scalar_select %p93, %s94, %s95
    %p99 = pneg %p93
    %p100 = scmp.eq.s32.totalorder %s14, 1
    %p101 = por %p99, %p100
    %p102 = scmp.ne.s32.totalorder %s94, %s97
    %p103 = scmp.eq.s32.totalorder %s14, 0
    %p104 = por %p102, %p103
    %p105 = scmp.ne.s32.totalorder %s94, %s97
    %p106 = scmp.eq.s32.totalorder %s19, 1
    %p107 = por %p105, %p106
    %p108 = scmp.ne.s32.totalorder %s97, %s98
    %p109 = scmp.eq.s32.totalorder %s19, 0
    %p110 = por %p108, %p109
    %p111 = scmp.ne.s32.totalorder %s97, %s98
    %p112 = scmp.eq.s32.totalorder %s20, 1
    %p113 = por %p111, %p112
    %p115 = scmp.ne.s32.totalorder %s98, %s114
    %p116 = scmp.eq.s32.totalorder %s20, 0
    %p117 = por %p115, %p116
    %s119 = sadd.s32 %s118, 1
    %p122 = scmp.eq.s32.totalorder %s14, 1
    %p123 = scmp.ne.s32.totalorder %s118, %s120
    %p124 = scmp.eq.s32.totalorder %s14, 0
    %p125 = por %p123, %p124
    %p126 = scmp.ne.s32.totalorder %s118, %s120
    %p127 = scmp.eq.s32.totalorder %s19, 1
    %p128 = por %p126, %p127
    %p129 = scmp.ne.s32.totalorder %s120, %s121
    %p130 = scmp.eq.s32.totalorder %s19, 0
    %p131 = por %p129, %p130
    %p132 = scmp.ne.s32.totalorder %s120, %s121
    %p133 = scmp.eq.s32.totalorder %s20, 1
    %p134 = por %p132, %p133
    %p136 = scmp.ne.s32.totalorder %s121, %s135
    %p137 = scmp.eq.s32.totalorder %s20, 0
    %p138 = por %p136, %p137
    %s140 = sadd.s32 %s139, 1
    %p143 = scmp.eq.s32.totalorder %s14, 1
    %p144 = scmp.ne.s32.totalorder %s139, %s141
    %p145 = scmp.eq.s32.totalorder %s14, 0
    %p146 = por %p144, %p145
    %p147 = scmp.ne.s32.totalorder %s139, %s141
    %p148 = scmp.eq.s32.totalorder %s19, 1
    %p149 = por %p147, %p148
    %p150 = scmp.ne.s32.totalorder %s141, %s142
    %p151 = scmp.eq.s32.totalorder %s19, 0
    %p152 = por %p150, %p151
    %p153 = scmp.ne.s32.totalorder %s141, %s142
    %p154 = scmp.eq.s32.totalorder %s20, 1
    %p155 = por %p153, %p154
    %p157 = scmp.ne.s32.totalorder %s142, %s156
    %p158 = scmp.eq.s32.totalorder %s20, 0
    %p159 = por %p157, %p158
    %s160 = ssub.s32 %s21, %s33
    %s161 = ssub.s32 %s22, %s29
    %s162 = sor.u32 %s160, %s161
    %p163 = scmp.eq.s32.totalorder %s162, 0
    %s165 = sadd.s32 %s164, 1
    %s166 = scalar_select %p163, %s164, %s165
    %p169 = pneg %p163
    %p170 = scmp.eq.s32.totalorder %s14, 1
    %p171 = por %p169, %p170
    %p172 = scmp.ne.s32.totalorder %s164, %s167
    %p173 = scmp.eq.s32.totalorder %s14, 0
    %p174 = por %p172, %p173
    %p175 = scmp.ne.s32.totalorder %s164, %s167
    %p176 = scmp.eq.s32.totalorder %s19, 1
    %p177 = por %p175, %p176
    %p178 = scmp.ne.s32.totalorder %s167, %s168
    %p179 = scmp.eq.s32.totalorder %s19, 0
    %p180 = por %p178, %p179
    %p181 = scmp.ne.s32.totalorder %s167, %s168
    %p182 = scmp.eq.s32.totalorder %s20, 1
    %p183 = por %p181, %p182
    %p185 = scmp.ne.s32.totalorder %s168, %s184
    %p186 = scmp.eq.s32.totalorder %s20, 0
    %p187 = por %p185, %p186
    %s188 = ssub.s32 %s21, %s33
    %s189 = ssub.s32 %s22, %s29
    %s190 = sor.u32 %s188, %s189
    %p191 = scmp.eq.s32.totalorder %s190, 0
    %s193 = sadd.s32 %s192, 1
    %s194 = scalar_select %p191, %s192, %s193
    %p197 = pneg %p191
    %p198 = scmp.eq.s32.totalorder %s14, 1
    %p199 = por %p197, %p198
    %p200 = scmp.ne.s32.totalorder %s192, %s195
    %p201 = scmp.eq.s32.totalorder %s14, 0
    %p202 = por %p200, %p201
    %p203 = scmp.ne.s32.totalorder %s192, %s195
    %p204 = scmp.eq.s32.totalorder %s19, 1
    %p205 = por %p203, %p204
    %p206 = scmp.ne.s32.totalorder %s195, %s196
    %p207 = scmp.eq.s32.totalorder %s19, 0
    %p208 = por %p206, %p207
    %p209 = scmp.ne.s32.totalorder %s195, %s196
    %p210 = scmp.eq.s32.totalorder %s20, 1
    %p211 = por %p209, %p210
    %p213 = scmp.ne.s32.totalorder %s196, %s212
    %p214 = scmp.eq.s32.totalorder %s20, 0
    %p215 = por %p213, %p214
    %s216 = ssub.s32 %s21, %s33
    %s217 = ssub.s32 %s22, %s29
    %s218 = sor.u32 %s216, %s217
    %p219 = scmp.eq.s32.totalorder %s218, 0
    %s221 = sadd.s32 %s220, 1
    %s222 = scalar_select %p219, %s220, %s221
    %p225 = pneg %p219
    %p226 = scmp.eq.s32.totalorder %s14, 1
    %p227 = por %p225, %p226
    %p228 = scmp.ne.s32.totalorder %s220, %s223
    %p229 = scmp.eq.s32.totalorder %s14, 0
    %p230 = por %p228, %p229
    %p231 = scmp.ne.s32.totalorder %s220, %s223
    %p232 = scmp.eq.s32.totalorder %s19, 1
    %p233 = por %p231, %p232
    %p234 = scmp.ne.s32.totalorder %s223, %s224
    %p235 = scmp.eq.s32.totalorder %s19, 0
    %p236 = por %p234, %p235
    %p237 = scmp.ne.s32.totalorder %s223, %s224
    %p238 = scmp.eq.s32.totalorder %s20, 1
    %p239 = por %p237, %p238
    %p241 = scmp.ne.s32.totalorder %s224, %s240
    %p242 = scmp.eq.s32.totalorder %s20, 0
    %p243 = por %p241, %p242
    %p244 = scmp.le.s32.totalorder 1, %s14
    %p245 = scmp.lt.s32.totalorder %s14, 3
    %p246 = pnand %p244, %p245
    %p247 = pneg %p246
    // Predicated region
    $region9: #{inpainting_loss_with_gan.12} parent=5 // pred_check
      _
    $region10: #{inpainting_loss_with_gan.12} parent=5 // pred_check_branch
      %249 = sbr.rel (%p246) target = $region12
    $region11: #{inpainting_loss_with_gan.12} parent=5 // pred_region
      %s250 = ssub.s32 %s14, 1
      // Predicated region
      $region13: #{inpainting_loss_with_gan.12} parent=11 // pred_check
        %p251 = pneg %p131
      $region14: #{inpainting_loss_with_gan.12} parent=11 // pred_check_branch
        %253 = sbr.rel (%p251) target = $region16
      $region15: #{inpainting_loss_with_gan.12} parent=11 // pred_region
        _
      $region16: #{inpainting_loss_with_gan.12} parent=11 // pred_fallthru
        _
      // Predicated region
      $region17: #{inpainting_loss_with_gan.12} parent=11 // pred_check
        %p254 = pneg %p152
      $region18: #{inpainting_loss_with_gan.12} parent=11 // pred_check_branch
        %256 = sbr.rel (%p254) target = $region20
      $region19: #{inpainting_loss_with_gan.12} parent=11 // pred_region
        _
      $region20: #{inpainting_loss_with_gan.12} parent=11 // pred_fallthru
        _
    $region12: #{inpainting_loss_with_gan.12} parent=5 // pred_fallthru
      _
    %p257 = scmp.lt.s32.totalorder %s14, 2
    // Predicated region
    $region21: #{inpainting_loss_with_gan.12} parent=5 // pred_check
      %p258 = pneg %p257
    $region22: #{inpainting_loss_with_gan.12} parent=5 // pred_check_branch
      %260 = sbr.rel (%p258) target = $region24
    $region23: #{inpainting_loss_with_gan.12} parent=5 // pred_region
      // Predicated region
      $region25: #{inpainting_loss_with_gan.12} parent=23 // pred_check
        %p261 = pneg %p48
      $region26: #{inpainting_loss_with_gan.12} parent=23 // pred_check_branch
        %263 = sbr.rel (%p261) target = $region28
      $region27: #{inpainting_loss_with_gan.12} parent=23 // pred_region
        %p264 = scmp.lt.s32.totalorder %s21, 1
        %s265 = scalar_select %p264, %s21, 1
        %p266 = scmp.lt.s32.totalorder %s22, 0
        %s267 = scalar_select %p266, %s22, 0
        %s268 = sadd.s32 %s267, %s265
        %s269 = smul.addr %s268, 8
        %s270 = scalar_lea.vmem %s0, %s269
      $region28: #{inpainting_loss_with_gan.12} parent=23 // pred_fallthru
        _
      // Predicated region
      $region29: #{inpainting_loss_with_gan.12} parent=23 // pred_check
        %p271 = pneg %p76
      $region30: #{inpainting_loss_with_gan.12} parent=23 // pred_check_branch
        %273 = sbr.rel (%p271) target = $region32
      $region31: #{inpainting_loss_with_gan.12} parent=23 // pred_region
        %p274 = scmp.lt.s32.totalorder %s21, 1
        %s275 = scalar_select %p274, %s21, 1
        %p276 = scmp.lt.s32.totalorder %s22, 0
        %s277 = scalar_select %p276, %s22, 0
        %s278 = sadd.s32 %s277, %s275
        %s279 = smul.addr %s278, 8
        %s280 = scalar_lea.vmem %s1, %s279
      $region32: #{inpainting_loss_with_gan.12} parent=23 // pred_fallthru
        _
      // Predicated region
      $region33: #{inpainting_loss_with_gan.12} parent=23 // pred_check
        %p281 = pneg %p104
      $region34: #{inpainting_loss_with_gan.12} parent=23 // pred_check_branch
        %283 = sbr.rel (%p281) target = $region36
      $region35: #{inpainting_loss_with_gan.12} parent=23 // pred_region
        %p284 = scmp.lt.s32.totalorder %s21, 1
        %s285 = scalar_select %p284, %s21, 1
        %p286 = scmp.lt.s32.totalorder %s22, 0
        %s287 = scalar_select %p286, %s22, 0
        %s288 = sadd.s32 %s287, %s285
        %s289 = smul.addr %s288, 8
        %s290 = scalar_lea.vmem %s2, %s289
      $region36: #{inpainting_loss_with_gan.12} parent=23 // pred_fallthru
        _
    $region24: #{inpainting_loss_with_gan.12} parent=5 // pred_fallthru
      _
    %p291 = scmp.le.s32.totalorder 1, %s14
    %p292 = scmp.lt.s32.totalorder %s14, 3
    %p293 = pnand %p291, %p292
    %p294 = pneg %p293
    // Predicated region
    $region37: #{inpainting_loss_with_gan.12} parent=5 // pred_check
      _
    $region38: #{inpainting_loss_with_gan.12} parent=5 // pred_check_branch
      %296 = sbr.rel (%p293) target = $region40
    $region39: #{inpainting_loss_with_gan.12} parent=5 // pred_region
      %s297 = ssub.s32 %s14, 1
      %p298 = scmp.lt.s32.totalorder %s23, 1
      %s299 = scalar_select %p298, %s23, 1
      %p300 = scmp.lt.s32.totalorder %s24, 0
      %s301 = scalar_select %p300, %s24, 0
      %s302 = sadd.s32 %s301, %s299
      %s303 = smul.addr %s302, 8
      %s304 = scalar_lea.vmem %s0, %s303
      %p305 = pneg %p54
      %p306 = pneg %p51
      %p307 = scmp.lt.s32.totalorder %s23, 1
      %s308 = scalar_select %p307, %s23, 1
      %p309 = scmp.lt.s32.totalorder %s24, 0
      %s310 = scalar_select %p309, %s24, 0
      %s311 = sadd.s32 %s310, %s308
      %s312 = smul.addr %s311, 8
      %s313 = scalar_lea.vmem %s1, %s312
      %p314 = pneg %p82
      %p315 = pneg %p79
      %p316 = scmp.lt.s32.totalorder %s23, 1
      %s317 = scalar_select %p316, %s23, 1
      %p318 = scmp.lt.s32.totalorder %s24, 0
      %s319 = scalar_select %p318, %s24, 0
      %s320 = sadd.s32 %s319, %s317
      %s321 = smul.addr %s320, 8
      %s322 = scalar_lea.vmem %s2, %s321
      %p323 = pneg %p110
      %p324 = pneg %p107
      %p325 = pneg %p131
      %p326 = pneg %p128
      %p327 = pneg %p152
      %p328 = pneg %p149
      %p329 = pneg %p180
      %p330 = pneg %p177
      %p331 = scmp.lt.s32.totalorder %s23, 1
      %s332 = scalar_select %p331, %s23, 1
      %p333 = scmp.lt.s32.totalorder %s24, 0
      %s334 = scalar_select %p333, %s24, 0
      %s335 = smul.addr %s332, 2
      %s336 = sadd.s32 %s334, %s335
      %s337 = smul.addr %s336, 8
      %s338 = scalar_lea.vmem %s5, %s337
      %p339 = pneg %p208
      %p340 = pneg %p205
      %p341 = scmp.lt.s32.totalorder %s23, 1
      %s342 = scalar_select %p341, %s23, 1
      %p343 = scmp.lt.s32.totalorder %s24, 0
      %s344 = scalar_select %p343, %s24, 0
      %s345 = smul.addr %s342, 2
      %s346 = sadd.s32 %s344, %s345
      %s347 = smul.addr %s346, 8
      %s348 = scalar_lea.vmem %s6, %s347
      %p349 = pneg %p236
      %p350 = pneg %p233
      %p351 = scmp.lt.s32.totalorder %s23, 1
      %s352 = scalar_select %p351, %s23, 1
      %p353 = scmp.lt.s32.totalorder %s24, 0
      %s354 = scalar_select %p353, %s24, 0
      %s355 = smul.addr %s352, 2
      %s356 = sadd.s32 %s354, %s355
      %s357 = smul.addr %s356, 8
      %s358 = scalar_lea.vmem %s7, %s357
      %p359 = scmp.lt.s32.totalorder %s23, 1
      %s360 = scalar_select %p359, %s23, 1
      %p361 = scmp.lt.s32.totalorder %s24, 0
      %s362 = scalar_select %p361, %s24, 0
      %s363 = sadd.s32 %s362, %s360
      %s364 = smul.addr %s363, 8
      %s365 = scalar_lea.vmem %s0, %s364
      %p366 = scmp.lt.s32.totalorder %s23, 1
      %s367 = scalar_select %p366, %s23, 1
      %p368 = scmp.lt.s32.totalorder %s24, 0
      %s369 = scalar_select %p368, %s24, 0
      %s370 = sadd.s32 %s369, %s367
      %s371 = smul.addr %s370, 8
      %s372 = scalar_lea.vmem %s1, %s371
      %p373 = scmp.lt.s32.totalorder %s23, 1
      %s374 = scalar_select %p373, %s23, 1
      %p375 = scmp.lt.s32.totalorder %s24, 0
      %s376 = scalar_select %p375, %s24, 0
      %s377 = sadd.s32 %s376, %s374
      %s378 = smul.addr %s377, 8
      %s379 = scalar_lea.vmem %s2, %s378
      %p380 = scmp.lt.s32.totalorder %s23, 1
      %s381 = scalar_select %p380, %s23, 1
      %p382 = scmp.lt.s32.totalorder %s24, 0
      %s383 = scalar_select %p382, %s24, 0
      %s384 = smul.addr %s381, 2
      %s385 = sadd.s32 %s383, %s384
      %s386 = smul.addr %s385, 8
      %s387 = scalar_lea.vmem %s5, %s386
      %p388 = scmp.lt.s32.totalorder %s23, 1
      %s389 = scalar_select %p388, %s23, 1
      %p390 = scmp.lt.s32.totalorder %s24, 0
      %s391 = scalar_select %p390, %s24, 0
      %s392 = smul.addr %s389, 2
      %s393 = sadd.s32 %s391, %s392
      %s394 = smul.addr %s393, 8
      %s395 = scalar_lea.vmem %s6, %s394
      %p396 = scmp.lt.s32.totalorder %s23, 1
      %s397 = scalar_select %p396, %s23, 1
      %p398 = scmp.lt.s32.totalorder %s24, 0
      %s399 = scalar_select %p398, %s24, 0
      %s400 = smul.addr %s397, 2
      %s401 = sadd.s32 %s399, %s400
      %s402 = smul.addr %s401, 8
      %s403 = scalar_lea.vmem %s7, %s402
      %v404 = vld [vmem:[%s3] sm:$0xff]
      %v405 = vld [vmem:[%s3 + $0x8] sm:$0xff]
      %v406 = vld [vmem:[%s4] sm:$0xff]
      %v407 = vld [vmem:[%s4 + $0x8] sm:$0xff]
      %v408 = vld [vmem:[%s365] sm:$0xff]
      %410 = vset.pattern.permute.xlu0 0
      %411 = vperm.xlu0 %410, %v406
      %v412 = vpop.permute.xlu0 %411
      %415 = vset.pattern.permute.xlu0 0
      %416 = vperm.xlu0 %415, %v407
      %v417 = vpop.permute.xlu0 %416
      %vm419 = vcmask 64512
      %v421 = vsel %vm419, %v404, 0
      %v424 = vsel %vm419, %v405, 0
      %426 = vmatprep.subr.mxu0 0.0
      %427 = vmatpush1.msra.mxu0 %v408
      %428 = vmatprep.subr.mxu0 0.0
      %429 = vmatpush1.msra.mxu0 0.0
      %430 = vmatprep.subr.mxu0 0.0
      %431 = vmatpush1.msra.mxu0 0.0
      %432 = vmatprep.subr.mxu0 0.0
      %433 = vmatpush1.msra.mxu0 0.0
      %434 = vmatprep.subr.mxu0 0.0
      %435 = vmatpush1.msra.mxu0 0.0
      %436 = vmatprep.subr.mxu0 0.0
      %437 = vmatpush1.msra.mxu0 0.0
      %438 = vmatprep.subr.mxu0 0.0
      %439 = vmatpush1.msra.mxu0 0.0
      %440 = vmatprep.subr.mxu0 0.0
      %441 = vmatpush1.msra.mxu0 0.0
      %442 = vmatprep.subr.mxu0 0.0
      %443 = vmatpush1.msra.mxu0 0.0
      %444 = vmatprep.subr.mxu0 0.0
      %445 = vmatpush1.msra.mxu0 0.0
      %446 = vmatprep.subr.mxu0 0.0
      %447 = vmatpush1.msra.mxu0 0.0
      %448 = vmatprep.subr.mxu0 0.0
      %449 = vmatpush1.msra.mxu0 0.0
      %450 = vmatprep.subr.mxu0 0.0
      %451 = vmatpush1.msra.mxu0 0.0
      %452 = vmatprep.subr.mxu0 0.0
      %453 = vmatpush1.msra.mxu0 0.0
      %454 = vmatprep.subr.mxu0 0.0
      %455 = vmatpush1.msra.mxu0 0.0
      %456 = vmatprep.subr.mxu0 0.0
      %457 = vmatpush1.msra.mxu0 0.0
      %458 = vmatprep.subr.mxu0 0.0
      %459 = vmatpush1.msra.mxu0 0.0
      %460 = vmatprep.subr.mxu0 0.0
      %461 = vmatpush1.msra.mxu0 0.0
      %462 = vmatprep.subr.mxu0 0.0
      %463 = vmatpush1.msra.mxu0 0.0
      %464 = vmatprep.subr.mxu0 0.0
      %465 = vmatpush1.msra.mxu0 0.0
      %466 = vmatprep.subr.mxu0 0.0
      %467 = vmatpush1.msra.mxu0 0.0
      %468 = vmatprep.subr.mxu0 0.0
      %469 = vmatpush1.msra.mxu0 0.0
      %470 = vmatprep.subr.mxu0 0.0
      %471 = vmatpush1.msra.mxu0 0.0
      %472 = vmatprep.subr.mxu0 0.0
      %473 = vmatpush1.msra.mxu0 0.0
      %474 = vmatprep.subr.mxu0 0.0
      %475 = vmatpush1.msra.mxu0 0.0
      %476 = vmatprep.subr.mxu0 0.0
      %477 = vmatpush1.msra.mxu0 0.0
      %478 = vmatprep.subr.mxu0 0.0
      %479 = vmatpush1.msra.mxu0 0.0
      %480 = vmatprep.subr.mxu0 0.0
      %481 = vmatpush1.msra.mxu0 0.0
      %482 = vmatprep.subr.mxu0 0.0
      %483 = vmatpush1.msra.mxu0 0.0
      %484 = vmatprep.subr.mxu0 0.0
      %485 = vmatpush1.msra.mxu0 0.0
      %486 = vmatprep.subr.mxu0 0.0
      %487 = vmatpush1.msra.mxu0 0.0
      %488 = vmatprep.subr.mxu0 0.0
      %489 = vmatpush1.msra.mxu0 0.0
      %490 = vmatprep.mubr.f32.mxu0 0.0
      %491 = vmatmul.mubr.f32.gmra.mrb[0].mxu0 %v421
      %v492 = vpop.f32.mrb[0].mxu0
      %v493 = vadd.f32 %v412, %v492
      %v494 = vpop.f32.mrb[0].mxu0
      %495 = vmatprep.mubr.f32.mxu0 0.0
      %496 = vmatmul.mubr.f32.gmra.mrb[0].mxu0 %v424
      %v497 = vpop.f32.mrb[0].mxu0
      %v498 = vadd.f32 %v417, %v497
      %v499 = vpop.f32.mrb[0].mxu0
      %500 = vdwg.mxu0
      %v501 = vmax.f32 %v493, 0.0
      %v502 = vmax.f32 %v498, 0.0
      %vm503 = vcmask 523264
      %504 = vst.msk [vmem:[%s387] sm:$0xff] %vm503, %v501
      %505 = vst.msk [vmem:[%s387 + $0x8] sm:$0xff] %vm503, %v502
      %v506 = vld [vmem:[%s372] sm:$0xff]
      %507 = vmatprep.subr.mxu0 0.0
      %508 = vmatpush1.msra.mxu0 %v506
      %509 = vmatprep.subr.mxu0 0.0
      %510 = vmatpush1.msra.mxu0 0.0
      %511 = vmatprep.subr.mxu0 0.0
      %512 = vmatpush1.msra.mxu0 0.0
      %513 = vmatprep.subr.mxu0 0.0
      %514 = vmatpush1.msra.mxu0 0.0
      %515 = vmatprep.subr.mxu0 0.0
      %516 = vmatpush1.msra.mxu0 0.0
      %517 = vmatprep.subr.mxu0 0.0
      %518 = vmatpush1.msra.mxu0 0.0
      %519 = vmatprep.subr.mxu0 0.0
      %520 = vmatpush1.msra.mxu0 0.0
      %521 = vmatprep.subr.mxu0 0.0
      %522 = vmatpush1.msra.mxu0 0.0
      %523 = vmatprep.subr.mxu0 0.0
      %524 = vmatpush1.msra.mxu0 0.0
      %525 = vmatprep.subr.mxu0 0.0
      %526 = vmatpush1.msra.mxu0 0.0
      %527 = vmatprep.subr.mxu0 0.0
      %528 = vmatpush1.msra.mxu0 0.0
      %529 = vmatprep.subr.mxu0 0.0
      %530 = vmatpush1.msra.mxu0 0.0
      %531 = vmatprep.subr.mxu0 0.0
      %532 = vmatpush1.msra.mxu0 0.0
      %533 = vmatprep.subr.mxu0 0.0
      %534 = vmatpush1.msra.mxu0 0.0
      %535 = vmatprep.subr.mxu0 0.0
      %536 = vmatpush1.msra.mxu0 0.0
      %537 = vmatprep.subr.mxu0 0.0
      %538 = vmatpush1.msra.mxu0 0.0
      %539 = vmatprep.subr.mxu0 0.0
      %540 = vmatpush1.msra.mxu0 0.0
      %541 = vmatprep.subr.mxu0 0.0
      %542 = vmatpush1.msra.mxu0 0.0
      %543 = vmatprep.subr.mxu0 0.0
      %544 = vmatpush1.msra.mxu0 0.0
      %545 = vmatprep.subr.mxu0 0.0
      %546 = vmatpush1.msra.mxu0 0.0
      %547 = vmatprep.subr.mxu0 0.0
      %548 = vmatpush1.msra.mxu0 0.0
      %549 = vmatprep.subr.mxu0 0.0
      %550 = vmatpush1.msra.mxu0 0.0
      %551 = vmatprep.subr.mxu0 0.0
      %552 = vmatpush1.msra.mxu0 0.0
      %553 = vmatprep.subr.mxu0 0.0
      %554 = vmatpush1.msra.mxu0 0.0
      %555 = vmatprep.subr.mxu0 0.0
      %556 = vmatpush1.msra.mxu0 0.0
      %557 = vmatprep.subr.mxu0 0.0
      %558 = vmatpush1.msra.mxu0 0.0
      %559 = vmatprep.subr.mxu0 0.0
      %560 = vmatpush1.msra.mxu0 0.0
      %561 = vmatprep.subr.mxu0 0.0
      %562 = vmatpush1.msra.mxu0 0.0
      %563 = vmatprep.subr.mxu0 0.0
      %564 = vmatpush1.msra.mxu0 0.0
      %565 = vmatprep.subr.mxu0 0.0
      %566 = vmatpush1.msra.mxu0 0.0
      %567 = vmatprep.subr.mxu0 0.0
      %568 = vmatpush1.msra.mxu0 0.0
      %569 = vmatprep.subr.mxu0 0.0
      %570 = vmatpush1.msra.mxu0 0.0
      %571 = vmatprep.mubr.f32.mxu0 0.0
      %572 = vmatmul.mubr.f32.gmra.mrb[0].mxu0 %v421
      %v573 = vpop.f32.mrb[0].mxu0
      %v574 = vadd.f32 %v412, %v573
      %v575 = vpop.f32.mrb[0].mxu0
      %576 = vmatprep.mubr.f32.mxu0 0.0
      %577 = vmatmul.mubr.f32.gmra.mrb[0].mxu0 %v424
      %v578 = vpop.f32.mrb[0].mxu0
      %v579 = vadd.f32 %v417, %v578
      %v580 = vpop.f32.mrb[0].mxu0
      %581 = vdwg.mxu0
      %v582 = vmax.f32 %v574, 0.0
      %v583 = vmax.f32 %v579, 0.0
      %584 = vst.msk [vmem:[%s395] sm:$0xff] %vm503, %v582
      %585 = vst.msk [vmem:[%s395 + $0x8] sm:$0xff] %vm503, %v583
      %v586 = vld [vmem:[%s379] sm:$0xff]
      %587 = vmatprep.subr.mxu0 0.0
      %588 = vmatpush1.msra.mxu0 %v586
      %589 = vmatprep.subr.mxu0 0.0
      %590 = vmatpush1.msra.mxu0 0.0
      %591 = vmatprep.subr.mxu0 0.0
      %592 = vmatpush1.msra.mxu0 0.0
      %593 = vmatprep.subr.mxu0 0.0
      %594 = vmatpush1.msra.mxu0 0.0
      %595 = vmatprep.subr.mxu0 0.0
      %596 = vmatpush1.msra.mxu0 0.0
      %597 = vmatprep.subr.mxu0 0.0
      %598 = vmatpush1.msra.mxu0 0.0
      %599 = vmatprep.subr.mxu0 0.0
      %600 = vmatpush1.msra.mxu0 0.0
      %601 = vmatprep.subr.mxu0 0.0
      %602 = vmatpush1.msra.mxu0 0.0
      %603 = vmatprep.subr.mxu0 0.0
      %604 = vmatpush1.msra.mxu0 0.0
      %605 = vmatprep.subr.mxu0 0.0
      %606 = vmatpush1.msra.mxu0 0.0
      %607 = vmatprep.subr.mxu0 0.0
      %608 = vmatpush1.msra.mxu0 0.0
      %609 = vmatprep.subr.mxu0 0.0
      %610 = vmatpush1.msra.mxu0 0.0
      %611 = vmatprep.subr.mxu0 0.0
      %612 = vmatpush1.msra.mxu0 0.0
      %613 = vmatprep.subr.mxu0 0.0
      %614 = vmatpush1.msra.mxu0 0.0
      %615 = vmatprep.subr.mxu0 0.0
      %616 = vmatpush1.msra.mxu0 0.0
      %617 = vmatprep.subr.mxu0 0.0
      %618 = vmatpush1.msra.mxu0 0.0
      %619 = vmatprep.subr.mxu0 0.0
      %620 = vmatpush1.msra.mxu0 0.0
      %621 = vmatprep.subr.mxu0 0.0
      %622 = vmatpush1.msra.mxu0 0.0
      %623 = vmatprep.subr.mxu0 0.0
      %624 = vmatpush1.msra.mxu0 0.0
      %625 = vmatprep.subr.mxu0 0.0
      %626 = vmatpush1.msra.mxu0 0.0
      %627 = vmatprep.subr.mxu0 0.0
      %628 = vmatpush1.msra.mxu0 0.0
      %629 = vmatprep.subr.mxu0 0.0
      %630 = vmatpush1.msra.mxu0 0.0
      %631 = vmatprep.subr.mxu0 0.0
      %632 = vmatpush1.msra.mxu0 0.0
      %633 = vmatprep.subr.mxu0 0.0
      %634 = vmatpush1.msra.mxu0 0.0
      %635 = vmatprep.subr.mxu0 0.0
      %636 = vmatpush1.msra.mxu0 0.0
      %637 = vmatprep.subr.mxu0 0.0
      %638 = vmatpush1.msra.mxu0 0.0
      %639 = vmatprep.subr.mxu0 0.0
      %640 = vmatpush1.msra.mxu0 0.0
      %641 = vmatprep.subr.mxu0 0.0
      %642 = vmatpush1.msra.mxu0 0.0
      %643 = vmatprep.subr.mxu0 0.0
      %644 = vmatpush1.msra.mxu0 0.0
      %645 = vmatprep.subr.mxu0 0.0
      %646 = vmatpush1.msra.mxu0 0.0
      %647 = vmatprep.subr.mxu0 0.0
      %648 = vmatpush1.msra.mxu0 0.0
      %649 = vmatprep.subr.mxu0 0.0
      %650 = vmatpush1.msra.mxu0 0.0
      %651 = vmatprep.mubr.f32.mxu0 0.0
      %652 = vmatmul.mubr.f32.gmra.mrb[0].mxu0 %v421
      %v653 = vpop.f32.mrb[0].mxu0
      %v654 = vadd.f32 %v412, %v653
      %v655 = vpop.f32.mrb[0].mxu0
      %656 = vmatprep.mubr.f32.mxu0 0.0
      %657 = vmatmul.mubr.f32.gmra.mrb[0].mxu0 %v424
      %v658 = vpop.f32.mrb[0].mxu0
      %v659 = vadd.f32 %v417, %v658
      %v660 = vpop.f32.mrb[0].mxu0
      %661 = vdwg.mxu0
      %v662 = vmax.f32 %v654, 0.0
      %v663 = vmax.f32 %v659, 0.0
      %664 = vst.msk [vmem:[%s403] sm:$0xff] %vm503, %v662
      %665 = vst.msk [vmem:[%s403 + $0x8] sm:$0xff] %vm503, %v663
      %p666 = scmp.lt.s32.totalorder %s23, 1
      %s667 = scalar_select %p666, %s23, 1
      %p668 = scmp.lt.s32.totalorder %s24, 0
      %s669 = scalar_select %p668, %s24, 0
      %s670 = smul.addr %s667, 2
      %s671 = sadd.s32 %s669, %s670
      %s672 = smul.addr %s671, 8
      %s673 = scalar_lea.vmem %s5, %s672
      %p674 = scmp.lt.s32.totalorder %s23, 1
      %s675 = scalar_select %p674, %s23, 1
      %p676 = scmp.lt.s32.totalorder %s24, 0
      %s677 = scalar_select %p676, %s24, 0
      %s678 = smul.addr %s675, 2
      %s679 = sadd.s32 %s677, %s678
      %s680 = smul.addr %s679, 8
      %s681 = scalar_lea.vmem %s6, %s680
      %p682 = scmp.lt.s32.totalorder %s23, 1
      %s683 = scalar_select %p682, %s23, 1
      %p684 = scmp.lt.s32.totalorder %s24, 0
      %s685 = scalar_select %p684, %s24, 0
      %s686 = smul.addr %s683, 2
      %s687 = sadd.s32 %s685, %s686
      %s688 = smul.addr %s687, 8
      %s689 = scalar_lea.vmem %s7, %s688
      // Predicated region
      $region41: #{inpainting_loss_with_gan.12} parent=39 // pred_check
        %p690 = pneg %p177
      $region42: #{inpainting_loss_with_gan.12} parent=39 // pred_check_branch
        %692 = sbr.rel (%p690) target = $region44
      $region43: #{inpainting_loss_with_gan.12} parent=39 // pred_region
        _
      $region44: #{inpainting_loss_with_gan.12} parent=39 // pred_fallthru
        _
      // Predicated region
      $region45: #{inpainting_loss_with_gan.12} parent=39 // pred_check
        %p693 = pneg %p205
      $region46: #{inpainting_loss_with_gan.12} parent=39 // pred_check_branch
        %695 = sbr.rel (%p693) target = $region48
      $region47: #{inpainting_loss_with_gan.12} parent=39 // pred_region
        _
      $region48: #{inpainting_loss_with_gan.12} parent=39 // pred_fallthru
        _
      // Predicated region
      $region49: #{inpainting_loss_with_gan.12} parent=39 // pred_check
        %p696 = pneg %p233
      $region50: #{inpainting_loss_with_gan.12} parent=39 // pred_check_branch
        %698 = sbr.rel (%p696) target = $region52
      $region51: #{inpainting_loss_with_gan.12} parent=39 // pred_region
        _
      $region52: #{inpainting_loss_with_gan.12} parent=39 // pred_fallthru
        _
    $region40: #{inpainting_loss_with_gan.12} parent=5 // pred_fallthru
      _
    %p699 = scmp.le.s32.totalorder 2, %s14
    // Predicated region
    $region53: #{inpainting_loss_with_gan.12} parent=5 // pred_check
      %p700 = pneg %p699
    $region54: #{inpainting_loss_with_gan.12} parent=5 // pred_check_branch
      %702 = sbr.rel (%p700) target = $region56
    $region55: #{inpainting_loss_with_gan.12} parent=5 // pred_region
      %s703 = ssub.s32 %s14, 2
      // Predicated region
      $region57: #{inpainting_loss_with_gan.12} parent=55 // pred_check
        %p704 = pneg %p183
      $region58: #{inpainting_loss_with_gan.12} parent=55 // pred_check_branch
        %706 = sbr.rel (%p704) target = $region60
      $region59: #{inpainting_loss_with_gan.12} parent=55 // pred_region
        %p707 = scmp.lt.s32.totalorder %s25, 1
        %s708 = scalar_select %p707, %s25, 1
        %p709 = scmp.lt.s32.totalorder %s26, 0
        %s710 = scalar_select %p709, %s26, 0
        %s711 = smul.addr %s708, 2
        %s712 = sadd.s32 %s710, %s711
        %s713 = smul.addr %s712, 8
        %s714 = scalar_lea.vmem %s5, %s713
      $region60: #{inpainting_loss_with_gan.12} parent=55 // pred_fallthru
        _
      // Predicated region
      $region61: #{inpainting_loss_with_gan.12} parent=55 // pred_check
        %p715 = pneg %p211
      $region62: #{inpainting_loss_with_gan.12} parent=55 // pred_check_branch
        %717 = sbr.rel (%p715) target = $region64
      $region63: #{inpainting_loss_with_gan.12} parent=55 // pred_region
        %p718 = scmp.lt.s32.totalorder %s25, 1
        %s719 = scalar_select %p718, %s25, 1
        %p720 = scmp.lt.s32.totalorder %s26, 0
        %s721 = scalar_select %p720, %s26, 0
        %s722 = smul.addr %s719, 2
        %s723 = sadd.s32 %s721, %s722
        %s724 = smul.addr %s723, 8
        %s725 = scalar_lea.vmem %s6, %s724
      $region64: #{inpainting_loss_with_gan.12} parent=55 // pred_fallthru
        _
      // Predicated region
      $region65: #{inpainting_loss_with_gan.12} parent=55 // pred_check
        %p726 = pneg %p239
      $region66: #{inpainting_loss_with_gan.12} parent=55 // pred_check_branch
        %728 = sbr.rel (%p726) target = $region68
      $region67: #{inpainting_loss_with_gan.12} parent=55 // pred_region
        %p729 = scmp.lt.s32.totalorder %s25, 1
        %s730 = scalar_select %p729, %s25, 1
        %p731 = scmp.lt.s32.totalorder %s26, 0
        %s732 = scalar_select %p731, %s26, 0
        %s733 = smul.addr %s730, 2
        %s734 = sadd.s32 %s732, %s733
        %s735 = smul.addr %s734, 8
        %s736 = scalar_lea.vmem %s7, %s735
      $region68: #{inpainting_loss_with_gan.12} parent=55 // pred_fallthru
        _
    $region56: #{inpainting_loss_with_gan.12} parent=5 // pred_fallthru
      _
  $region6: #{inpainting_loss_with_gan.12} parent=0 // loop_footer
    %s18 = sadd.s32 1, %s14
  $region7: #{inpainting_loss_with_gan.12} parent=0 // loop_footer_branch
    %13 = sbr.rel target = $region3
  $region8: #{inpainting_loss_with_gan.12} parent=0 // loop_exit
    _

// kernel: inpainting_loss_with_gan.14
$region0: #{inpainting_loss_with_gan.14}
  #allocation0 [shape = 'u32[]', space=smem, size = 0x4, offset = 0x4, fixed_abs, tag = 'smem constant byte address 0x4 - core index']
  #allocation1 [shape = 'u32[144,128]{1,0:T(1,128)}', space=vmem, size = 0x12000, scoped, tag = 'internal scratch']
  %s0 = inlined_call_operand.vmem [shape: f32[2,16,16], index: 0, kind: input, shape index: {}]
  %s1 = inlined_call_operand.vmem [shape: f32[2,16,16], index: 1, kind: input, shape index: {}]
  %s2 = inlined_call_operand.vmem [shape: f32[2,16,16], index: 2, kind: input, shape index: {}]
  %s3 = inlined_call_operand.vmem [shape: f32[32,16], index: 3, kind: input, shape index: {}]
  %s4 = inlined_call_operand.vmem [shape: f32[32,1], index: 4, kind: input, shape index: {}]
  %s5 = inlined_call_operand.vmem [shape: f32[2,32,16], index: 5, kind: output, shape index: {0}]
  %s6 = inlined_call_operand.vmem [shape: f32[2,32,16], index: 6, kind: output, shape index: {1}]
  %s7 = inlined_call_operand.vmem [shape: f32[2,32,16], index: 7, kind: output, shape index: {2}]
  %8 = xla_tuple %s5, %s6, %s7
  %s9 = sld [smem:[#allocation0]]
  $region69: #{inpainting_loss_with_gan.14} parent=0
    _
  %s11 = ssub.s32 1, %s9
  %s12 = scalar_select 0, %s11, %s9
  loop: start=0, step=1, limit=4
  $region2: #{inpainting_loss_with_gan.14} parent=0 // loop_pre_header
    _
  $region3: #{inpainting_loss_with_gan.14} parent=0 // loop_header
    %s14 = sphi 0, %s18
    %p15 = scmp.ge.s32.totalorder %s14, 4
    %s21 = sphi 0, %s33
    %s22 = sphi 0, %s29
    %s23 = sphi 0, %s21
    %s24 = sphi 0, %s22
    %s25 = sphi 0, %s23
    %s26 = sphi 0, %s24
    %s38 = sphi 0, %s40
    %s41 = sphi 0, %s38
    %s42 = sphi 0, %s41
    %s58 = sphi 0, %s42
    %s66 = sphi 0, %s68
    %s69 = sphi 0, %s66
    %s70 = sphi 0, %s69
    %s86 = sphi 0, %s70
    %s94 = sphi 0, %s96
    %s97 = sphi 0, %s94
    %s98 = sphi 0, %s97
    %s114 = sphi 0, %s98
    %s118 = sphi 0, %s118
    %s120 = sphi 0, %s118
    %s121 = sphi 0, %s120
    %s135 = sphi 0, %s121
    %s139 = sphi 0, %s139
    %s141 = sphi 0, %s139
    %s142 = sphi 0, %s141
    %s156 = sphi 0, %s142
    %s164 = sphi 0, %s166
    %s167 = sphi 0, %s164
    %s168 = sphi 0, %s167
    %s184 = sphi 0, %s168
    %s192 = sphi 0, %s194
    %s195 = sphi 0, %s192
    %s196 = sphi 0, %s195
    %s212 = sphi 0, %s196
    %s220 = sphi 0, %s222
    %s223 = sphi 0, %s220
    %s224 = sphi 0, %s223
    %s240 = sphi 0, %s224
  $region4: #{inpainting_loss_with_gan.14} parent=0 // loop_header_branch
    %17 = sbr.rel (%p15) target = $region8
  $region5: #{inpainting_loss_with_gan.14} parent=0 // loop_body
    %s19 = ssub.s32 %s14, 1
    %s20 = ssub.s32 %s14, 2
    %s27 = sadd.s32 1, %s22
    %p28 = scmp.ge.s32.totalorder %s27, 1
    %s29 = scalar_select %p28, 0, %s27
    %s30 = sadd.s32 1, %s21
    %s31 = scalar_select %p28, %s30, %s21
    %p32 = scmp.ge.s32.totalorder %s31, 2
    %s33 = scalar_select %p32, 0, %s31
    %s34 = ssub.s32 %s21, %s33
    %s35 = ssub.s32 %s22, %s29
    %s36 = sor.u32 %s34, %s35
    %p37 = scmp.eq.s32.totalorder %s36, 0
    %s39 = sadd.s32 %s38, 1
    %s40 = scalar_select %p37, %s38, %s39
    %p43 = pneg %p37
    %p44 = scmp.eq.s32.totalorder %s14, 1
    %p45 = por %p43, %p44
    %p46 = scmp.ne.s32.totalorder %s38, %s41
    %p47 = scmp.eq.s32.totalorder %s14, 0
    %p48 = por %p46, %p47
    %p49 = scmp.ne.s32.totalorder %s38, %s41
    %p50 = scmp.eq.s32.totalorder %s19, 1
    %p51 = por %p49, %p50
    %p52 = scmp.ne.s32.totalorder %s41, %s42
    %p53 = scmp.eq.s32.totalorder %s19, 0
    %p54 = por %p52, %p53
    %p55 = scmp.ne.s32.totalorder %s41, %s42
    %p56 = scmp.eq.s32.totalorder %s20, 1
    %p57 = por %p55, %p56
    %p59 = scmp.ne.s32.totalorder %s42, %s58
    %p60 = scmp.eq.s32.totalorder %s20, 0
    %p61 = por %p59, %p60
    %s62 = ssub.s32 %s21, %s33
    %s63 = ssub.s32 %s22, %s29
    %s64 = sor.u32 %s62, %s63
    %p65 = scmp.eq.s32.totalorder %s64, 0
    %s67 = sadd.s32 %s66, 1
    %s68 = scalar_select %p65, %s66, %s67
    %p71 = pneg %p65
    %p72 = scmp.eq.s32.totalorder %s14, 1
    %p73 = por %p71, %p72
    %p74 = scmp.ne.s32.totalorder %s66, %s69
    %p75 = scmp.eq.s32.totalorder %s14, 0
    %p76 = por %p74, %p75
    %p77 = scmp.ne.s32.totalorder %s66, %s69
    %p78 = scmp.eq.s32.totalorder %s19, 1
    %p79 = por %p77, %p78
    %p80 = scmp.ne.s32.totalorder %s69, %s70
    %p81 = scmp.eq.s32.totalorder %s19, 0
    %p82 = por %p80, %p81
    %p83 = scmp.ne.s32.totalorder %s69, %s70
    %p84 = scmp.eq.s32.totalorder %s20, 1
    %p85 = por %p83, %p84
    %p87 = scmp.ne.s32.totalorder %s70, %s86
    %p88 = scmp.eq.s32.totalorder %s20, 0
    %p89 = por %p87, %p88
    %s90 = ssub.s32 %s21, %s33
    %s91 = ssub.s32 %s22, %s29
    %s92 = sor.u32 %s90, %s91
    %p93 = scmp.eq.s32.totalorder %s92, 0
    %s95 = sadd.s32 %s94, 1
    %s96 = scalar_select %p93, %s94, %s95
    %p99 = pneg %p93
    %p100 = scmp.eq.s32.totalorder %s14, 1
    %p101 = por %p99, %p100
    %p102 = scmp.ne.s32.totalorder %s94, %s97
    %p103 = scmp.eq.s32.totalorder %s14, 0
    %p104 = por %p102, %p103
    %p105 = scmp.ne.s32.totalorder %s94, %s97
    %p106 = scmp.eq.s32.totalorder %s19, 1
    %p107 = por %p105, %p106
    %p108 = scmp.ne.s32.totalorder %s97, %s98
    %p109 = scmp.eq.s32.totalorder %s19, 0
    %p110 = por %p108, %p109
    %p111 = scmp.ne.s32.totalorder %s97, %s98
    %p112 = scmp.eq.s32.totalorder %s20, 1
    %p113 = por %p111, %p112
    %p115 = scmp.ne.s32.totalorder %s98, %s114
    %p116 = scmp.eq.s32.totalorder %s20, 0
    %p117 = por %p115, %p116
    %s119 = sadd.s32 %s118, 1
    %p122 = scmp.eq.s32.totalorder %s14, 1
    %p123 = scmp.ne.s32.totalorder %s118, %s120
    %p124 = scmp.eq.s32.totalorder %s14, 0
    %p125 = por %p123, %p124
    %p126 = scmp.ne.s32.totalorder %s118, %s120
    %p127 = scmp.eq.s32.totalorder %s19, 1
    %p128 = por %p126, %p127
    %p129 = scmp.ne.s32.totalorder %s120, %s121
    %p130 = scmp.eq.s32.totalorder %s19, 0
    %p131 = por %p129, %p130
    %p132 = scmp.ne.s32.totalorder %s120, %s121
    %p133 = scmp.eq.s32.totalorder %s20, 1
    %p134 = por %p132, %p133
    %p136 = scmp.ne.s32.totalorder %s121, %s135
    %p137 = scmp.eq.s32.totalorder %s20, 0
    %p138 = por %p136, %p137
    %s140 = sadd.s32 %s139, 1
    %p143 = scmp.eq.s32.totalorder %s14, 1
    %p144 = scmp.ne.s32.totalorder %s139, %s141
    %p145 = scmp.eq.s32.totalorder %s14, 0
    %p146 = por %p144, %p145
    %p147 = scmp.ne.s32.totalorder %s139, %s141
    %p148 = scmp.eq.s32.totalorder %s19, 1
    %p149 = por %p147, %p148
    %p150 = scmp.ne.s32.totalorder %s141, %s142
    %p151 = scmp.eq.s32.totalorder %s19, 0
    %p152 = por %p150, %p151
    %p153 = scmp.ne.s32.totalorder %s141, %s142
    %p154 = scmp.eq.s32.totalorder %s20, 1
    %p155 = por %p153, %p154
    %p157 = scmp.ne.s32.totalorder %s142, %s156
    %p158 = scmp.eq.s32.totalorder %s20, 0
    %p159 = por %p157, %p158
    %s160 = ssub.s32 %s21, %s33
    %s161 = ssub.s32 %s22, %s29
    %s162 = sor.u32 %s160, %s161
    %p163 = scmp.eq.s32.totalorder %s162, 0
    %s165 = sadd.s32 %s164, 1
    %s166 = scalar_select %p163, %s164, %s165
    %p169 = pneg %p163
    %p170 = scmp.eq.s32.totalorder %s14, 1
    %p171 = por %p169, %p170
    %p172 = scmp.ne.s32.totalorder %s164, %s167
    %p173 = scmp.eq.s32.totalorder %s14, 0
    %p174 = por %p172, %p173
    %p175 = scmp.ne.s32.totalorder %s164, %s167
    %p176 = scmp.eq.s32.totalorder %s19, 1
    %p177 = por %p175, %p176
    %p178 = scmp.ne.s32.totalorder %s167, %s168
    %p179 = scmp.eq.s32.totalorder %s19, 0
    %p180 = por %p178, %p179
    %p181 = scmp.ne.s32.totalorder %s167, %s168
    %p182 = scmp.eq.s32.totalorder %s20, 1
    %p183 = por %p181, %p182
    %p185 = scmp.ne.s32.totalorder %s168, %s184
    %p186 = scmp.eq.s32.totalorder %s20, 0
    %p187 = por %p185, %p186
    %s188 = ssub.s32 %s21, %s33
    %s189 = ssub.s32 %s22, %s29
    %s190 = sor.u32 %s188, %s189
    %p191 = scmp.eq.s32.totalorder %s190, 0
    %s193 = sadd.s32 %s192, 1
    %s194 = scalar_select %p191, %s192, %s193
    %p197 = pneg %p191
    %p198 = scmp.eq.s32.totalorder %s14, 1
    %p199 = por %p197, %p198
    %p200 = scmp.ne.s32.totalorder %s192, %s195
    %p201 = scmp.eq.s32.totalorder %s14, 0
    %p202 = por %p200, %p201
    %p203 = scmp.ne.s32.totalorder %s192, %s195
    %p204 = scmp.eq.s32.totalorder %s19, 1
    %p205 = por %p203, %p204
    %p206 = scmp.ne.s32.totalorder %s195, %s196
    %p207 = scmp.eq.s32.totalorder %s19, 0
    %p208 = por %p206, %p207
    %p209 = scmp.ne.s32.totalorder %s195, %s196
    %p210 = scmp.eq.s32.totalorder %s20, 1
    %p211 = por %p209, %p210
    %p213 = scmp.ne.s32.totalorder %s196, %s212
    %p214 = scmp.eq.s32.totalorder %s20, 0
    %p215 = por %p213, %p214
    %s216 = ssub.s32 %s21, %s33
    %s217 = ssub.s32 %s22, %s29
    %s218 = sor.u32 %s216, %s217
    %p219 = scmp.eq.s32.totalorder %s218, 0
    %s221 = sadd.s32 %s220, 1
    %s222 = scalar_select %p219, %s220, %s221
    %p225 = pneg %p219
    %p226 = scmp.eq.s32.totalorder %s14, 1
    %p227 = por %p225, %p226
    %p228 = scmp.ne.s32.totalorder %s220, %s223
    %p229 = scmp.eq.s32.totalorder %s14, 0
    %p230 = por %p228, %p229
    %p231 = scmp.ne.s32.totalorder %s220, %s223
    %p232 = scmp.eq.s32.totalorder %s19, 1
    %p233 = por %p231, %p232
    %p234 = scmp.ne.s32.totalorder %s223, %s224
    %p235 = scmp.eq.s32.totalorder %s19, 0
    %p236 = por %p234, %p235
    %p237 = scmp.ne.s32.totalorder %s223, %s224
    %p238 = scmp.eq.s32.totalorder %s20, 1
    %p239 = por %p237, %p238
    %p241 = scmp.ne.s32.totalorder %s224, %s240
    %p242 = scmp.eq.s32.totalorder %s20, 0
    %p243 = por %p241, %p242
    %p244 = scmp.le.s32.totalorder 1, %s14
    %p245 = scmp.lt.s32.totalorder %s14, 3
    %p246 = pnand %p244, %p245
    %p247 = pneg %p246
    // Predicated region
    $region9: #{inpainting_loss_with_gan.14} parent=5 // pred_check
      _
    $region10: #{inpainting_loss_with_gan.14} parent=5 // pred_check_branch
      %249 = sbr.rel (%p246) target = $region12
    $region11: #{inpainting_loss_with_gan.14} parent=5 // pred_region
      %s250 = ssub.s32 %s14, 1
      // Predicated region
      $region13: #{inpainting_loss_with_gan.14} parent=11 // pred_check
        %p251 = pneg %p131
      $region14: #{inpainting_loss_with_gan.14} parent=11 // pred_check_branch
        %253 = sbr.rel (%p251) target = $region16
      $region15: #{inpainting_loss_with_gan.14} parent=11 // pred_region
        _
      $region16: #{inpainting_loss_with_gan.14} parent=11 // pred_fallthru
        _
      // Predicated region
      $region17: #{inpainting_loss_with_gan.14} parent=11 // pred_check
        %p254 = pneg %p152
      $region18: #{inpainting_loss_with_gan.14} parent=11 // pred_check_branch
        %256 = sbr.rel (%p254) target = $region20
      $region19: #{inpainting_loss_with_gan.14} parent=11 // pred_region
        _
      $region20: #{inpainting_loss_with_gan.14} parent=11 // pred_fallthru
        _
    $region12: #{inpainting_loss_with_gan.14} parent=5 // pred_fallthru
      _
    %p257 = scmp.lt.s32.totalorder %s14, 2
    // Predicated region
    $region21: #{inpainting_loss_with_gan.14} parent=5 // pred_check
      %p258 = pneg %p257
    $region22: #{inpainting_loss_with_gan.14} parent=5 // pred_check_branch
      %260 = sbr.rel (%p258) target = $region24
    $region23: #{inpainting_loss_with_gan.14} parent=5 // pred_region
      // Predicated region
      $region25: #{inpainting_loss_with_gan.14} parent=23 // pred_check
        %p261 = pneg %p48
      $region26: #{inpainting_loss_with_gan.14} parent=23 // pred_check_branch
        %263 = sbr.rel (%p261) target = $region28
      $region27: #{inpainting_loss_with_gan.14} parent=23 // pred_region
        %p264 = scmp.lt.s32.totalorder %s21, 1
        %s265 = scalar_select %p264, %s21, 1
        %p266 = scmp.lt.s32.totalorder %s22, 0
        %s267 = scalar_select %p266, %s22, 0
        %s268 = smul.addr %s265, 2
        %s269 = sadd.s32 %s267, %s268
        %s270 = smul.addr %s269, 8
        %s271 = scalar_lea.vmem %s0, %s270
      $region28: #{inpainting_loss_with_gan.14} parent=23 // pred_fallthru
        _
      // Predicated region
      $region29: #{inpainting_loss_with_gan.14} parent=23 // pred_check
        %p272 = pneg %p76
      $region30: #{inpainting_loss_with_gan.14} parent=23 // pred_check_branch
        %274 = sbr.rel (%p272) target = $region32
      $region31: #{inpainting_loss_with_gan.14} parent=23 // pred_region
        %p275 = scmp.lt.s32.totalorder %s21, 1
        %s276 = scalar_select %p275, %s21, 1
        %p277 = scmp.lt.s32.totalorder %s22, 0
        %s278 = scalar_select %p277, %s22, 0
        %s279 = smul.addr %s276, 2
        %s280 = sadd.s32 %s278, %s279
        %s281 = smul.addr %s280, 8
        %s282 = scalar_lea.vmem %s1, %s281
      $region32: #{inpainting_loss_with_gan.14} parent=23 // pred_fallthru
        _
      // Predicated region
      $region33: #{inpainting_loss_with_gan.14} parent=23 // pred_check
        %p283 = pneg %p104
      $region34: #{inpainting_loss_with_gan.14} parent=23 // pred_check_branch
        %285 = sbr.rel (%p283) target = $region36
      $region35: #{inpainting_loss_with_gan.14} parent=23 // pred_region
        %p286 = scmp.lt.s32.totalorder %s21, 1
        %s287 = scalar_select %p286, %s21, 1
        %p288 = scmp.lt.s32.totalorder %s22, 0
        %s289 = scalar_select %p288, %s22, 0
        %s290 = smul.addr %s287, 2
        %s291 = sadd.s32 %s289, %s290
        %s292 = smul.addr %s291, 8
        %s293 = scalar_lea.vmem %s2, %s292
      $region36: #{inpainting_loss_with_gan.14} parent=23 // pred_fallthru
        _
    $region24: #{inpainting_loss_with_gan.14} parent=5 // pred_fallthru
      _
    %p294 = scmp.le.s32.totalorder 1, %s14
    %p295 = scmp.lt.s32.totalorder %s14, 3
    %p296 = pnand %p294, %p295
    %p297 = pneg %p296
    // Predicated region
    $region37: #{inpainting_loss_with_gan.14} parent=5 // pred_check
      _
    $region38: #{inpainting_loss_with_gan.14} parent=5 // pred_check_branch
      %299 = sbr.rel (%p296) target = $region40
    $region39: #{inpainting_loss_with_gan.14} parent=5 // pred_region
      %s300 = ssub.s32 %s14, 1
      %p301 = scmp.lt.s32.totalorder %s23, 1
      %s302 = scalar_select %p301, %s23, 1
      %p303 = scmp.lt.s32.totalorder %s24, 0
      %s304 = scalar_select %p303, %s24, 0
      %s305 = smul.addr %s302, 2
      %s306 = sadd.s32 %s304, %s305
      %s307 = smul.addr %s306, 8
      %s308 = scalar_lea.vmem %s0, %s307
      %p309 = pneg %p54
      %p310 = pneg %p51
      %p311 = scmp.lt.s32.totalorder %s23, 1
      %s312 = scalar_select %p311, %s23, 1
      %p313 = scmp.lt.s32.totalorder %s24, 0
      %s314 = scalar_select %p313, %s24, 0
      %s315 = smul.addr %s312, 2
      %s316 = sadd.s32 %s314, %s315
      %s317 = smul.addr %s316, 8
      %s318 = scalar_lea.vmem %s1, %s317
      %p319 = pneg %p82
      %p320 = pneg %p79
      %p321 = scmp.lt.s32.totalorder %s23, 1
      %s322 = scalar_select %p321, %s23, 1
      %p323 = scmp.lt.s32.totalorder %s24, 0
      %s324 = scalar_select %p323, %s24, 0
      %s325 = smul.addr %s322, 2
      %s326 = sadd.s32 %s324, %s325
      %s327 = smul.addr %s326, 8
      %s328 = scalar_lea.vmem %s2, %s327
      %p329 = pneg %p110
      %p330 = pneg %p107
      %p331 = pneg %p131
      %p332 = pneg %p128
      %p333 = pneg %p152
      %p334 = pneg %p149
      %p335 = pneg %p180
      %p336 = pneg %p177
      %p337 = scmp.lt.s32.totalorder %s23, 1
      %s338 = scalar_select %p337, %s23, 1
      %p339 = scmp.lt.s32.totalorder %s24, 0
      %s340 = scalar_select %p339, %s24, 0
      %s341 = smul.addr %s338, 4
      %s342 = sadd.s32 %s340, %s341
      %s343 = smul.addr %s342, 8
      %s344 = scalar_lea.vmem %s5, %s343
      %p345 = pneg %p208
      %p346 = pneg %p205
      %p347 = scmp.lt.s32.totalorder %s23, 1
      %s348 = scalar_select %p347, %s23, 1
      %p349 = scmp.lt.s32.totalorder %s24, 0
      %s350 = scalar_select %p349, %s24, 0
      %s351 = smul.addr %s348, 4
      %s352 = sadd.s32 %s350, %s351
      %s353 = smul.addr %s352, 8
      %s354 = scalar_lea.vmem %s6, %s353
      %p355 = pneg %p236
      %p356 = pneg %p233
      %p357 = scmp.lt.s32.totalorder %s23, 1
      %s358 = scalar_select %p357, %s23, 1
      %p359 = scmp.lt.s32.totalorder %s24, 0
      %s360 = scalar_select %p359, %s24, 0
      %s361 = smul.addr %s358, 4
      %s362 = sadd.s32 %s360, %s361
      %s363 = smul.addr %s362, 8
      %s364 = scalar_lea.vmem %s7, %s363
      %p365 = scmp.lt.s32.totalorder %s23, 1
      %s366 = scalar_select %p365, %s23, 1
      %p367 = scmp.lt.s32.totalorder %s24, 0
      %s368 = scalar_select %p367, %s24, 0
      %s369 = smul.addr %s366, 2
      %s370 = sadd.s32 %s368, %s369
      %s371 = smul.addr %s370, 8
      %s372 = scalar_lea.vmem %s0, %s371
      %p373 = scmp.lt.s32.totalorder %s23, 1
      %s374 = scalar_select %p373, %s23, 1
      %p375 = scmp.lt.s32.totalorder %s24, 0
      %s376 = scalar_select %p375, %s24, 0
      %s377 = smul.addr %s374, 2
      %s378 = sadd.s32 %s376, %s377
      %s379 = smul.addr %s378, 8
      %s380 = scalar_lea.vmem %s1, %s379
      %p381 = scmp.lt.s32.totalorder %s23, 1
      %s382 = scalar_select %p381, %s23, 1
      %p383 = scmp.lt.s32.totalorder %s24, 0
      %s384 = scalar_select %p383, %s24, 0
      %s385 = smul.addr %s382, 2
      %s386 = sadd.s32 %s384, %s385
      %s387 = smul.addr %s386, 8
      %s388 = scalar_lea.vmem %s2, %s387
      %p389 = scmp.lt.s32.totalorder %s23, 1
      %s390 = scalar_select %p389, %s23, 1
      %p391 = scmp.lt.s32.totalorder %s24, 0
      %s392 = scalar_select %p391, %s24, 0
      %s393 = smul.addr %s390, 4
      %s394 = sadd.s32 %s392, %s393
      %s395 = smul.addr %s394, 8
      %s396 = scalar_lea.vmem %s5, %s395
      %p397 = scmp.lt.s32.totalorder %s23, 1
      %s398 = scalar_select %p397, %s23, 1
      %p399 = scmp.lt.s32.totalorder %s24, 0
      %s400 = scalar_select %p399, %s24, 0
      %s401 = smul.addr %s398, 4
      %s402 = sadd.s32 %s400, %s401
      %s403 = smul.addr %s402, 8
      %s404 = scalar_lea.vmem %s6, %s403
      %p405 = scmp.lt.s32.totalorder %s23, 1
      %s406 = scalar_select %p405, %s23, 1
      %p407 = scmp.lt.s32.totalorder %s24, 0
      %s408 = scalar_select %p407, %s24, 0
      %s409 = smul.addr %s406, 4
      %s410 = sadd.s32 %s408, %s409
      %s411 = smul.addr %s410, 8
      %s412 = scalar_lea.vmem %s7, %s411
      %v413 = vld [vmem:[%s3] sm:$0xff]
      %v414 = vld [vmem:[%s3 + $0x8] sm:$0xff]
      %v415 = vld [vmem:[%s3 + $0x10] sm:$0xff]
      %v416 = vld [vmem:[%s3 + $0x18] sm:$0xff]
      %v417 = vld [vmem:[%s4] sm:$0xff]
      %v418 = vld [vmem:[%s4 + $0x8] sm:$0xff]
      %v419 = vld [vmem:[%s4 + $0x10] sm:$0xff]
      %v420 = vld [vmem:[%s4 + $0x18] sm:$0xff]
      %v421 = vld [vmem:[%s372] sm:$0xff]
      %v422 = vld [vmem:[%s372 + $0x8] sm:$0xff]
      %424 = vset.pattern.permute.xlu0 0
      %425 = vperm.xlu0 %424, %v417
      %v426 = vpop.permute.xlu0 %425
      %429 = vset.pattern.permute.xlu0 0
      %430 = vperm.xlu0 %429, %v418
      %v431 = vpop.permute.xlu0 %430
      %434 = vset.pattern.permute.xlu0 0
      %435 = vperm.xlu0 %434, %v419
      %v436 = vpop.permute.xlu0 %435
      %439 = vset.pattern.permute.xlu0 0
      %440 = vperm.xlu0 %439, %v420
      %v441 = vpop.permute.xlu0 %440
      %vm443 = vcmask 130048
      %v445 = vsel %vm443, %v413, 0
      %v448 = vsel %vm443, %v414, 0
      %v451 = vsel %vm443, %v415, 0
      %v454 = vsel %vm443, %v416, 0
      %456 = vmatprep.subr.mxu0 0.0
      %457 = vmatpush1.msra.mxu0 %v421
      %458 = vmatprep.subr.mxu0 0.0
      %459 = vmatpush1.msra.mxu0 %v422
      %460 = vmatprep.subr.mxu0 0.0
      %461 = vmatpush1.msra.mxu0 0.0
      %462 = vmatprep.subr.mxu0 0.0
      %463 = vmatpush1.msra.mxu0 0.0
      %464 = vmatprep.subr.mxu0 0.0
      %465 = vmatpush1.msra.mxu0 0.0
      %466 = vmatprep.subr.mxu0 0.0
      %467 = vmatpush1.msra.mxu0 0.0
      %468 = vmatprep.subr.mxu0 0.0
      %469 = vmatpush1.msra.mxu0 0.0
      %470 = vmatprep.subr.mxu0 0.0
      %471 = vmatpush1.msra.mxu0 0.0
      %472 = vmatprep.subr.mxu0 0.0
      %473 = vmatpush1.msra.mxu0 0.0
      %474 = vmatprep.subr.mxu0 0.0
      %475 = vmatpush1.msra.mxu0 0.0
      %476 = vmatprep.subr.mxu0 0.0
      %477 = vmatpush1.msra.mxu0 0.0
      %478 = vmatprep.subr.mxu0 0.0
      %479 = vmatpush1.msra.mxu0 0.0
      %480 = vmatprep.subr.mxu0 0.0
      %481 = vmatpush1.msra.mxu0 0.0
      %482 = vmatprep.subr.mxu0 0.0
      %483 = vmatpush1.msra.mxu0 0.0
      %484 = vmatprep.subr.mxu0 0.0
      %485 = vmatpush1.msra.mxu0 0.0
      %486 = vmatprep.subr.mxu0 0.0
      %487 = vmatpush1.msra.mxu0 0.0
      %488 = vmatprep.subr.mxu0 0.0
      %489 = vmatpush1.msra.mxu0 0.0
      %490 = vmatprep.subr.mxu0 0.0
      %491 = vmatpush1.msra.mxu0 0.0
      %492 = vmatprep.subr.mxu0 0.0
      %493 = vmatpush1.msra.mxu0 0.0
      %494 = vmatprep.subr.mxu0 0.0
      %495 = vmatpush1.msra.mxu0 0.0
      %496 = vmatprep.subr.mxu0 0.0
      %497 = vmatpush1.msra.mxu0 0.0
      %498 = vmatprep.subr.mxu0 0.0
      %499 = vmatpush1.msra.mxu0 0.0
      %500 = vmatprep.subr.mxu0 0.0
      %501 = vmatpush1.msra.mxu0 0.0
      %502 = vmatprep.subr.mxu0 0.0
      %503 = vmatpush1.msra.mxu0 0.0
      %504 = vmatprep.subr.mxu0 0.0
      %505 = vmatpush1.msra.mxu0 0.0
      %506 = vmatprep.subr.mxu0 0.0
      %507 = vmatpush1.msra.mxu0 0.0
      %508 = vmatprep.subr.mxu0 0.0
      %509 = vmatpush1.msra.mxu0 0.0
      %510 = vmatprep.subr.mxu0 0.0
      %511 = vmatpush1.msra.mxu0 0.0
      %512 = vmatprep.subr.mxu0 0.0
      %513 = vmatpush1.msra.mxu0 0.0
      %514 = vmatprep.subr.mxu0 0.0
      %515 = vmatpush1.msra.mxu0 0.0
      %516 = vmatprep.subr.mxu0 0.0
      %517 = vmatpush1.msra.mxu0 0.0
      %518 = vmatprep.subr.mxu0 0.0
      %519 = vmatpush1.msra.mxu0 0.0
      %520 = vmatprep.mubr.f32.mxu0 0.0
      %521 = vmatmul.mubr.f32.gmra.mrb[0].mxu0 %v445
      %v522 = vpop.f32.mrb[0].mxu0
      %v523 = vadd.f32 %v426, %v522
      %v524 = vpop.f32.mrb[0].mxu0
      %525 = vmatprep.mubr.f32.mxu0 0.0
      %526 = vmatmul.mubr.f32.gmra.mrb[0].mxu0 %v448
      %v527 = vpop.f32.mrb[0].mxu0
      %v528 = vadd.f32 %v431, %v527
      %v529 = vpop.f32.mrb[0].mxu0
      %530 = vmatprep.mubr.f32.mxu0 0.0
      %531 = vmatmul.mubr.f32.gmra.mrb[0].mxu0 %v451
      %v532 = vpop.f32.mrb[0].mxu0
      %v533 = vadd.f32 %v436, %v532
      %v534 = vpop.f32.mrb[0].mxu0
      %535 = vmatprep.mubr.f32.mxu0 0.0
      %536 = vmatmul.mubr.f32.gmra.mrb[0].mxu0 %v454
      %v537 = vpop.f32.mrb[0].mxu0
      %v538 = vadd.f32 %v441, %v537
      %v539 = vpop.f32.mrb[0].mxu0
      %540 = vdwg.mxu0
      %v541 = vmax.f32 %v523, 0.0
      %v542 = vmax.f32 %v528, 0.0
      %v543 = vmax.f32 %v533, 0.0
      %v544 = vmax.f32 %v538, 0.0
      %545 = vst.msk [vmem:[%s396] sm:$0xff] %vm443, %v541
      %546 = vst.msk [vmem:[%s396 + $0x8] sm:$0xff] %vm443, %v542
      %547 = vst.msk [vmem:[%s396 + $0x10] sm:$0xff] %vm443, %v543
      %548 = vst.msk [vmem:[%s396 + $0x18] sm:$0xff] %vm443, %v544
      %v549 = vld [vmem:[%s380] sm:$0xff]
      %v550 = vld [vmem:[%s380 + $0x8] sm:$0xff]
      %551 = vmatprep.subr.mxu0 0.0
      %552 = vmatpush1.msra.mxu0 %v549
      %553 = vmatprep.subr.mxu0 0.0
      %554 = vmatpush1.msra.mxu0 %v550
      %555 = vmatprep.subr.mxu0 0.0
      %556 = vmatpush1.msra.mxu0 0.0
      %557 = vmatprep.subr.mxu0 0.0
      %558 = vmatpush1.msra.mxu0 0.0
      %559 = vmatprep.subr.mxu0 0.0
      %560 = vmatpush1.msra.mxu0 0.0
      %561 = vmatprep.subr.mxu0 0.0
      %562 = vmatpush1.msra.mxu0 0.0
      %563 = vmatprep.subr.mxu0 0.0
      %564 = vmatpush1.msra.mxu0 0.0
      %565 = vmatprep.subr.mxu0 0.0
      %566 = vmatpush1.msra.mxu0 0.0
      %567 = vmatprep.subr.mxu0 0.0
      %568 = vmatpush1.msra.mxu0 0.0
      %569 = vmatprep.subr.mxu0 0.0
      %570 = vmatpush1.msra.mxu0 0.0
      %571 = vmatprep.subr.mxu0 0.0
      %572 = vmatpush1.msra.mxu0 0.0
      %573 = vmatprep.subr.mxu0 0.0
      %574 = vmatpush1.msra.mxu0 0.0
      %575 = vmatprep.subr.mxu0 0.0
      %576 = vmatpush1.msra.mxu0 0.0
      %577 = vmatprep.subr.mxu0 0.0
      %578 = vmatpush1.msra.mxu0 0.0
      %579 = vmatprep.subr.mxu0 0.0
      %580 = vmatpush1.msra.mxu0 0.0
      %581 = vmatprep.subr.mxu0 0.0
      %582 = vmatpush1.msra.mxu0 0.0
      %583 = vmatprep.subr.mxu0 0.0
      %584 = vmatpush1.msra.mxu0 0.0
      %585 = vmatprep.subr.mxu0 0.0
      %586 = vmatpush1.msra.mxu0 0.0
      %587 = vmatprep.subr.mxu0 0.0
      %588 = vmatpush1.msra.mxu0 0.0
      %589 = vmatprep.subr.mxu0 0.0
      %590 = vmatpush1.msra.mxu0 0.0
      %591 = vmatprep.subr.mxu0 0.0
      %592 = vmatpush1.msra.mxu0 0.0
      %593 = vmatprep.subr.mxu0 0.0
      %594 = vmatpush1.msra.mxu0 0.0
      %595 = vmatprep.subr.mxu0 0.0
      %596 = vmatpush1.msra.mxu0 0.0
      %597 = vmatprep.subr.mxu0 0.0
      %598 = vmatpush1.msra.mxu0 0.0
      %599 = vmatprep.subr.mxu0 0.0
      %600 = vmatpush1.msra.mxu0 0.0
      %601 = vmatprep.subr.mxu0 0.0
      %602 = vmatpush1.msra.mxu0 0.0
      %603 = vmatprep.subr.mxu0 0.0
      %604 = vmatpush1.msra.mxu0 0.0
      %605 = vmatprep.subr.mxu0 0.0
      %606 = vmatpush1.msra.mxu0 0.0
      %607 = vmatprep.subr.mxu0 0.0
      %608 = vmatpush1.msra.mxu0 0.0
      %609 = vmatprep.subr.mxu0 0.0
      %610 = vmatpush1.msra.mxu0 0.0
      %611 = vmatprep.subr.mxu0 0.0
      %612 = vmatpush1.msra.mxu0 0.0
      %613 = vmatprep.subr.mxu0 0.0
      %614 = vmatpush1.msra.mxu0 0.0
      %615 = vmatprep.mubr.f32.mxu0 0.0
      %616 = vmatmul.mubr.f32.gmra.mrb[0].mxu0 %v445
      %v617 = vpop.f32.mrb[0].mxu0
      %v618 = vadd.f32 %v426, %v617
      %v619 = vpop.f32.mrb[0].mxu0
      %620 = vmatprep.mubr.f32.mxu0 0.0
      %621 = vmatmul.mubr.f32.gmra.mrb[0].mxu0 %v448
      %v622 = vpop.f32.mrb[0].mxu0
      %v623 = vadd.f32 %v431, %v622
      %v624 = vpop.f32.mrb[0].mxu0
      %625 = vmatprep.mubr.f32.mxu0 0.0
      %626 = vmatmul.mubr.f32.gmra.mrb[0].mxu0 %v451
      %v627 = vpop.f32.mrb[0].mxu0
      %v628 = vadd.f32 %v436, %v627
      %v629 = vpop.f32.mrb[0].mxu0
      %630 = vmatprep.mubr.f32.mxu0 0.0
      %631 = vmatmul.mubr.f32.gmra.mrb[0].mxu0 %v454
      %v632 = vpop.f32.mrb[0].mxu0
      %v633 = vadd.f32 %v441, %v632
      %v634 = vpop.f32.mrb[0].mxu0
      %635 = vdwg.mxu0
      %v636 = vmax.f32 %v618, 0.0
      %v637 = vmax.f32 %v623, 0.0
      %v638 = vmax.f32 %v628, 0.0
      %v639 = vmax.f32 %v633, 0.0
      %640 = vst.msk [vmem:[%s404] sm:$0xff] %vm443, %v636
      %641 = vst.msk [vmem:[%s404 + $0x8] sm:$0xff] %vm443, %v637
      %642 = vst.msk [vmem:[%s404 + $0x10] sm:$0xff] %vm443, %v638
      %643 = vst.msk [vmem:[%s404 + $0x18] sm:$0xff] %vm443, %v639
      %v644 = vld [vmem:[%s388] sm:$0xff]
      %v645 = vld [vmem:[%s388 + $0x8] sm:$0xff]
      %646 = vmatprep.subr.mxu0 0.0
      %647 = vmatpush1.msra.mxu0 %v644
      %648 = vmatprep.subr.mxu0 0.0
      %649 = vmatpush1.msra.mxu0 %v645
      %650 = vmatprep.subr.mxu0 0.0
      %651 = vmatpush1.msra.mxu0 0.0
      %652 = vmatprep.subr.mxu0 0.0
      %653 = vmatpush1.msra.mxu0 0.0
      %654 = vmatprep.subr.mxu0 0.0
      %655 = vmatpush1.msra.mxu0 0.0
      %656 = vmatprep.subr.mxu0 0.0
      %657 = vmatpush1.msra.mxu0 0.0
      %658 = vmatprep.subr.mxu0 0.0
      %659 = vmatpush1.msra.mxu0 0.0
      %660 = vmatprep.subr.mxu0 0.0
      %661 = vmatpush1.msra.mxu0 0.0
      %662 = vmatprep.subr.mxu0 0.0
      %663 = vmatpush1.msra.mxu0 0.0
      %664 = vmatprep.subr.mxu0 0.0
      %665 = vmatpush1.msra.mxu0 0.0
      %666 = vmatprep.subr.mxu0 0.0
      %667 = vmatpush1.msra.mxu0 0.0
      %668 = vmatprep.subr.mxu0 0.0
      %669 = vmatpush1.msra.mxu0 0.0
      %670 = vmatprep.subr.mxu0 0.0
      %671 = vmatpush1.msra.mxu0 0.0
      %672 = vmatprep.subr.mxu0 0.0
      %673 = vmatpush1.msra.mxu0 0.0
      %674 = vmatprep.subr.mxu0 0.0
      %675 = vmatpush1.msra.mxu0 0.0
      %676 = vmatprep.subr.mxu0 0.0
      %677 = vmatpush1.msra.mxu0 0.0
      %678 = vmatprep.subr.mxu0 0.0
      %679 = vmatpush1.msra.mxu0 0.0
      %680 = vmatprep.subr.mxu0 0.0
      %681 = vmatpush1.msra.mxu0 0.0
      %682 = vmatprep.subr.mxu0 0.0
      %683 = vmatpush1.msra.mxu0 0.0
      %684 = vmatprep.subr.mxu0 0.0
      %685 = vmatpush1.msra.mxu0 0.0
      %686 = vmatprep.subr.mxu0 0.0
      %687 = vmatpush1.msra.mxu0 0.0
      %688 = vmatprep.subr.mxu0 0.0
      %689 = vmatpush1.msra.mxu0 0.0
      %690 = vmatprep.subr.mxu0 0.0
      %691 = vmatpush1.msra.mxu0 0.0
      %692 = vmatprep.subr.mxu0 0.0
      %693 = vmatpush1.msra.mxu0 0.0
      %694 = vmatprep.subr.mxu0 0.0
      %695 = vmatpush1.msra.mxu0 0.0
      %696 = vmatprep.subr.mxu0 0.0
      %697 = vmatpush1.msra.mxu0 0.0
      %698 = vmatprep.subr.mxu0 0.0
      %699 = vmatpush1.msra.mxu0 0.0
      %700 = vmatprep.subr.mxu0 0.0
      %701 = vmatpush1.msra.mxu0 0.0
      %702 = vmatprep.subr.mxu0 0.0
      %703 = vmatpush1.msra.mxu0 0.0
      %704 = vmatprep.subr.mxu0 0.0
      %705 = vmatpush1.msra.mxu0 0.0
      %706 = vmatprep.subr.mxu0 0.0
      %707 = vmatpush1.msra.mxu0 0.0
      %708 = vmatprep.subr.mxu0 0.0
      %709 = vmatpush1.msra.mxu0 0.0
      %710 = vmatprep.mubr.f32.mxu0 0.0
      %711 = vmatmul.mubr.f32.gmra.mrb[0].mxu0 %v445
      %v712 = vpop.f32.mrb[0].mxu0
      %v713 = vadd.f32 %v426, %v712
      %v714 = vpop.f32.mrb[0].mxu0
      %715 = vmatprep.mubr.f32.mxu0 0.0
      %716 = vmatmul.mubr.f32.gmra.mrb[0].mxu0 %v448
      %v717 = vpop.f32.mrb[0].mxu0
      %v718 = vadd.f32 %v431, %v717
      %v719 = vpop.f32.mrb[0].mxu0
      %720 = vmatprep.mubr.f32.mxu0 0.0
      %721 = vmatmul.mubr.f32.gmra.mrb[0].mxu0 %v451
      %v722 = vpop.f32.mrb[0].mxu0
      %v723 = vadd.f32 %v436, %v722
      %v724 = vpop.f32.mrb[0].mxu0
      %725 = vmatprep.mubr.f32.mxu0 0.0
      %726 = vmatmul.mubr.f32.gmra.mrb[0].mxu0 %v454
      %v727 = vpop.f32.mrb[0].mxu0
      %v728 = vadd.f32 %v441, %v727
      %v729 = vpop.f32.mrb[0].mxu0
      %730 = vdwg.mxu0
      %v731 = vmax.f32 %v713, 0.0
      %v732 = vmax.f32 %v718, 0.0
      %v733 = vmax.f32 %v723, 0.0
      %v734 = vmax.f32 %v728, 0.0
      %735 = vst.msk [vmem:[%s412] sm:$0xff] %vm443, %v731
      %736 = vst.msk [vmem:[%s412 + $0x8] sm:$0xff] %vm443, %v732
      %737 = vst.msk [vmem:[%s412 + $0x10] sm:$0xff] %vm443, %v733
      %738 = vst.msk [vmem:[%s412 + $0x18] sm:$0xff] %vm443, %v734
      %p739 = scmp.lt.s32.totalorder %s23, 1
      %s740 = scalar_select %p739, %s23, 1
      %p741 = scmp.lt.s32.totalorder %s24, 0
      %s742 = scalar_select %p741, %s24, 0
      %s743 = smul.addr %s740, 4
      %s744 = sadd.s32 %s742, %s743
      %s745 = smul.addr %s744, 8
      %s746 = scalar_lea.vmem %s5, %s745
      %p747 = scmp.lt.s32.totalorder %s23, 1
      %s748 = scalar_select %p747, %s23, 1
      %p749 = scmp.lt.s32.totalorder %s24, 0
      %s750 = scalar_select %p749, %s24, 0
      %s751 = smul.addr %s748, 4
      %s752 = sadd.s32 %s750, %s751
      %s753 = smul.addr %s752, 8
      %s754 = scalar_lea.vmem %s6, %s753
      %p755 = scmp.lt.s32.totalorder %s23, 1
      %s756 = scalar_select %p755, %s23, 1
      %p757 = scmp.lt.s32.totalorder %s24, 0
      %s758 = scalar_select %p757, %s24, 0
      %s759 = smul.addr %s756, 4
      %s760 = sadd.s32 %s758, %s759
      %s761 = smul.addr %s760, 8
      %s762 = scalar_lea.vmem %s7, %s761
      // Predicated region
      $region41: #{inpainting_loss_with_gan.14} parent=39 // pred_check
        %p763 = pneg %p177
      $region42: #{inpainting_loss_with_gan.14} parent=39 // pred_check_branch
        %765 = sbr.rel (%p763) target = $region44
      $region43: #{inpainting_loss_with_gan.14} parent=39 // pred_region
        _
      $region44: #{inpainting_loss_with_gan.14} parent=39 // pred_fallthru
        _
      // Predicated region
      $region45: #{inpainting_loss_with_gan.14} parent=39 // pred_check
        %p766 = pneg %p205
      $region46: #{inpainting_loss_with_gan.14} parent=39 // pred_check_branch
        %768 = sbr.rel (%p766) target = $region48
      $region47: #{inpainting_loss_with_gan.14} parent=39 // pred_region
        _
      $region48: #{inpainting_loss_with_gan.14} parent=39 // pred_fallthru
        _
      // Predicated region
      $region49: #{inpainting_loss_with_gan.14} parent=39 // pred_check
        %p769 = pneg %p233
      $region50: #{inpainting_loss_with_gan.14} parent=39 // pred_check_branch
        %771 = sbr.rel (%p769) target = $region52
      $region51: #{inpainting_loss_with_gan.14} parent=39 // pred_region
        _
      $region52: #{inpainting_loss_with_gan.14} parent=39 // pred_fallthru
        _
    $region40: #{inpainting_loss_with_gan.14} parent=5 // pred_fallthru
      _
    %p772 = scmp.le.s32.totalorder 2, %s14
    // Predicated region
    $region53: #{inpainting_loss_with_gan.14} parent=5 // pred_check
      %p773 = pneg %p772
    $region54: #{inpainting_loss_with_gan.14} parent=5 // pred_check_branch
      %775 = sbr.rel (%p773) target = $region56
    $region55: #{inpainting_loss_with_gan.14} parent=5 // pred_region
      %s776 = ssub.s32 %s14, 2
      // Predicated region
      $region57: #{inpainting_loss_with_gan.14} parent=55 // pred_check
        %p777 = pneg %p183
      $region58: #{inpainting_loss_with_gan.14} parent=55 // pred_check_branch
        %779 = sbr.rel (%p777) target = $region60
      $region59: #{inpainting_loss_with_gan.14} parent=55 // pred_region
        %p780 = scmp.lt.s32.totalorder %s25, 1
        %s781 = scalar_select %p780, %s25, 1
        %p782 = scmp.lt.s32.totalorder %s26, 0
        %s783 = scalar_select %p782, %s26, 0
        %s784 = smul.addr %s781, 4
        %s785 = sadd.s32 %s783, %s784
        %s786 = smul.addr %s785, 8
        %s787 = scalar_lea.vmem %s5, %s786
      $region60: #{inpainting_loss_with_gan.14} parent=55 // pred_fallthru
        _
      // Predicated region
      $region61: #{inpainting_loss_with_gan.14} parent=55 // pred_check
        %p788 = pneg %p211
      $region62: #{inpainting_loss_with_gan.14} parent=55 // pred_check_branch
        %790 = sbr.rel (%p788) target = $region64
      $region63: #{inpainting_loss_with_gan.14} parent=55 // pred_region
        %p791 = scmp.lt.s32.totalorder %s25, 1
        %s792 = scalar_select %p791, %s25, 1
        %p793 = scmp.lt.s32.totalorder %s26, 0
        %s794 = scalar_select %p793, %s26, 0
        %s795 = smul.addr %s792, 4
        %s796 = sadd.s32 %s794, %s795
        %s797 = smul.addr %s796, 8
        %s798 = scalar_lea.vmem %s6, %s797
      $region64: #{inpainting_loss_with_gan.14} parent=55 // pred_fallthru
        _
      // Predicated region
      $region65: #{inpainting_loss_with_gan.14} parent=55 // pred_check
        %p799 = pneg %p239
      $region66: #{inpainting_loss_with_gan.14} parent=55 // pred_check_branch
        %801 = sbr.rel (%p799) target = $region68
      $region67: #{inpainting_loss_with_gan.14} parent=55 // pred_region
        %p802 = scmp.lt.s32.totalorder %s25, 1
        %s803 = scalar_select %p802, %s25, 1
        %p804 = scmp.lt.s32.totalorder %s26, 0
        %s805 = scalar_select %p804, %s26, 0
        %s806 = smul.addr %s803, 4
        %s807 = sadd.s32 %s805, %s806
        %s808 = smul.addr %s807, 8
        %s809 = scalar_lea.vmem %s7, %s808
      $region68: #{inpainting_loss_with_gan.14} parent=55 // pred_fallthru
        _
    $region56: #{inpainting_loss_with_gan.14} parent=5 // pred_fallthru
      _
  $region6: #{inpainting_loss_with_gan.14} parent=0 // loop_footer
    %s18 = sadd.s32 1, %s14
  $region7: #{inpainting_loss_with_gan.14} parent=0 // loop_footer_branch
    %13 = sbr.rel target = $region3
  $region8: #{inpainting_loss_with_gan.14} parent=0 // loop_exit
    _

// kernel: inpainting_loss_with_gan.13
$region0: #{inpainting_loss_with_gan.13}
  #allocation0 [shape = 'u32[]', space=smem, size = 0x4, offset = 0x4, fixed_abs, tag = 'smem constant byte address 0x4 - core index']
  #allocation1 [shape = 'u32[144,128]{1,0:T(1,128)}', space=vmem, size = 0x12000, scoped, tag = 'internal scratch']
  %s0 = inlined_call_operand.vmem [shape: f32[2,16,16], index: 0, kind: input, shape index: {}]
  %s1 = inlined_call_operand.vmem [shape: f32[2,16,16], index: 1, kind: input, shape index: {}]
  %s2 = inlined_call_operand.vmem [shape: f32[2,16,16], index: 2, kind: input, shape index: {}]
  %s3 = inlined_call_operand.vmem [shape: f32[3,2,16,16], index: 3, kind: output, shape index: {0}]
  %s4 = inlined_call_operand.vmem [shape: f32[2], index: 4, kind: output, shape index: {1}]
  %5 = xla_tuple %s3, %s4
  %s6 = sld [smem:[#allocation0]]
  $region99: #{inpainting_loss_with_gan.13} parent=0
    _
  %s8 = ssub.s32 1, %s6
  %s9 = scalar_select 0, %s8, %s6
  $region1: #{inpainting_loss_with_gan.13} parent=0
    #allocation2 [shape = 'u8[49152]{0}', space=vmem, size = 0xc000, scoped, tag = 'output window, operand 0']
    #allocation3 [shape = 'u8[512]{0}', space=smem, size = 0x200, scoped, tag = 'output window, operand 1, single buffered']
    #allocation4 [shape = 's32[2]{0}', space=sflag, size = 0x8, scoped, tag = 'scoped memory for inpainting_loss_with_gan.13']
    %10 = vsyncpa [#allocation4], 0
    loop: start=0, step=1, limit=4
    $region2: #{inpainting_loss_with_gan.13} parent=1 // loop_pre_header
      _
    $region3: #{inpainting_loss_with_gan.13} parent=1 // loop_header
      %s12 = sphi 0, %s16
      %p13 = scmp.ge.s32.totalorder %s12, 4
      %s19 = sphi 0, %s31
      %s20 = sphi 0, %s27
      %s21 = sphi 0, %s19
      %s22 = sphi 0, %s20
      %s23 = sphi 0, %s21
      %s24 = sphi 0, %s22
      %s36 = sphi 0, %s38
      %s39 = sphi 0, %s36
      %s40 = sphi 0, %s39
      %s56 = sphi 0, %s40
      %s64 = sphi 0, %s66
      %s67 = sphi 0, %s64
      %s68 = sphi 0, %s67
      %s84 = sphi 0, %s68
      %s92 = sphi 0, %s94
      %s95 = sphi 0, %s92
      %s96 = sphi 0, %s95
      %s112 = sphi 0, %s96
      %s118 = sphi 0, %s120
      %s121 = sphi 0, %s118
      %s122 = sphi 0, %s121
      %s138 = sphi 0, %s122
      %s142 = sphi 0, %s142
      %s144 = sphi 0, %s142
      %s145 = sphi 0, %s144
      %s159 = sphi 0, %s145
    $region4: #{inpainting_loss_with_gan.13} parent=1 // loop_header_branch
      %15 = sbr.rel (%p13) target = $region8
    $region5: #{inpainting_loss_with_gan.13} parent=1 // loop_body
      %s17 = ssub.s32 %s12, 1
      %s18 = ssub.s32 %s12, 2
      %s25 = sadd.s32 1, %s20
      %p26 = scmp.ge.s32.totalorder %s25, 1
      %s27 = scalar_select %p26, 0, %s25
      %s28 = sadd.s32 1, %s19
      %s29 = scalar_select %p26, %s28, %s19
      %p30 = scmp.ge.s32.totalorder %s29, 2
      %s31 = scalar_select %p30, 0, %s29
      %s32 = ssub.s32 %s19, %s31
      %s33 = ssub.s32 %s20, %s27
      %s34 = sor.u32 %s32, %s33
      %p35 = scmp.eq.s32.totalorder %s34, 0
      %s37 = sadd.s32 %s36, 1
      %s38 = scalar_select %p35, %s36, %s37
      %p41 = pneg %p35
      %p42 = scmp.eq.s32.totalorder %s12, 1
      %p43 = por %p41, %p42
      %p44 = scmp.ne.s32.totalorder %s36, %s39
      %p45 = scmp.eq.s32.totalorder %s12, 0
      %p46 = por %p44, %p45
      %p47 = scmp.ne.s32.totalorder %s36, %s39
      %p48 = scmp.eq.s32.totalorder %s17, 1
      %p49 = por %p47, %p48
      %p50 = scmp.ne.s32.totalorder %s39, %s40
      %p51 = scmp.eq.s32.totalorder %s17, 0
      %p52 = por %p50, %p51
      %p53 = scmp.ne.s32.totalorder %s39, %s40
      %p54 = scmp.eq.s32.totalorder %s18, 1
      %p55 = por %p53, %p54
      %p57 = scmp.ne.s32.totalorder %s40, %s56
      %p58 = scmp.eq.s32.totalorder %s18, 0
      %p59 = por %p57, %p58
      %s60 = ssub.s32 %s19, %s31
      %s61 = ssub.s32 %s20, %s27
      %s62 = sor.u32 %s60, %s61
      %p63 = scmp.eq.s32.totalorder %s62, 0
      %s65 = sadd.s32 %s64, 1
      %s66 = scalar_select %p63, %s64, %s65
      %p69 = pneg %p63
      %p70 = scmp.eq.s32.totalorder %s12, 1
      %p71 = por %p69, %p70
      %p72 = scmp.ne.s32.totalorder %s64, %s67
      %p73 = scmp.eq.s32.totalorder %s12, 0
      %p74 = por %p72, %p73
      %p75 = scmp.ne.s32.totalorder %s64, %s67
      %p76 = scmp.eq.s32.totalorder %s17, 1
      %p77 = por %p75, %p76
      %p78 = scmp.ne.s32.totalorder %s67, %s68
      %p79 = scmp.eq.s32.totalorder %s17, 0
      %p80 = por %p78, %p79
      %p81 = scmp.ne.s32.totalorder %s67, %s68
      %p82 = scmp.eq.s32.totalorder %s18, 1
      %p83 = por %p81, %p82
      %p85 = scmp.ne.s32.totalorder %s68, %s84
      %p86 = scmp.eq.s32.totalorder %s18, 0
      %p87 = por %p85, %p86
      %s88 = ssub.s32 %s19, %s31
      %s89 = ssub.s32 %s20, %s27
      %s90 = sor.u32 %s88, %s89
      %p91 = scmp.eq.s32.totalorder %s90, 0
      %s93 = sadd.s32 %s92, 1
      %s94 = scalar_select %p91, %s92, %s93
      %p97 = pneg %p91
      %p98 = scmp.eq.s32.totalorder %s12, 1
      %p99 = por %p97, %p98
      %p100 = scmp.ne.s32.totalorder %s92, %s95
      %p101 = scmp.eq.s32.totalorder %s12, 0
      %p102 = por %p100, %p101
      %p103 = scmp.ne.s32.totalorder %s92, %s95
      %p104 = scmp.eq.s32.totalorder %s17, 1
      %p105 = por %p103, %p104
      %p106 = scmp.ne.s32.totalorder %s95, %s96
      %p107 = scmp.eq.s32.totalorder %s17, 0
      %p108 = por %p106, %p107
      %p109 = scmp.ne.s32.totalorder %s95, %s96
      %p110 = scmp.eq.s32.totalorder %s18, 1
      %p111 = por %p109, %p110
      %p113 = scmp.ne.s32.totalorder %s96, %s112
      %p114 = scmp.eq.s32.totalorder %s18, 0
      %p115 = por %p113, %p114
      %s116 = ssub.s32 %s19, %s31
      %p117 = scmp.eq.s32.totalorder %s116, 0
      %s119 = sadd.s32 %s118, 1
      %s120 = scalar_select %p117, %s118, %s119
      %p123 = pneg %p117
      %p124 = scmp.eq.s32.totalorder %s12, 1
      %p125 = por %p123, %p124
      %p126 = scmp.ne.s32.totalorder %s118, %s121
      %p127 = scmp.eq.s32.totalorder %s12, 0
      %p128 = por %p126, %p127
      %p129 = scmp.ne.s32.totalorder %s118, %s121
      %p130 = scmp.eq.s32.totalorder %s17, 1
      %p131 = por %p129, %p130
      %p132 = scmp.ne.s32.totalorder %s121, %s122
      %p133 = scmp.eq.s32.totalorder %s17, 0
      %p134 = por %p132, %p133
      %p135 = scmp.ne.s32.totalorder %s121, %s122
      %p136 = scmp.eq.s32.totalorder %s18, 1
      %p137 = por %p135, %p136
      %p139 = scmp.ne.s32.totalorder %s122, %s138
      %p140 = scmp.eq.s32.totalorder %s18, 0
      %p141 = por %p139, %p140
      %s143 = sadd.s32 %s142, 1
      %p146 = scmp.eq.s32.totalorder %s12, 1
      %p147 = scmp.ne.s32.totalorder %s142, %s144
      %p148 = scmp.eq.s32.totalorder %s12, 0
      %p149 = por %p147, %p148
      %p150 = scmp.ne.s32.totalorder %s142, %s144
      %p151 = scmp.eq.s32.totalorder %s17, 1
      %p152 = por %p150, %p151
      %p153 = scmp.ne.s32.totalorder %s144, %s145
      %p154 = scmp.eq.s32.totalorder %s17, 0
      %p155 = por %p153, %p154
      %p156 = scmp.ne.s32.totalorder %s144, %s145
      %p157 = scmp.eq.s32.totalorder %s18, 1
      %p158 = por %p156, %p157
      %p160 = scmp.ne.s32.totalorder %s145, %s159
      %p161 = scmp.eq.s32.totalorder %s18, 0
      %p162 = por %p160, %p161
      %p163 = scmp.le.s32.totalorder 1, %s12
      %p164 = scmp.lt.s32.totalorder %s12, 3
      %p165 = pnand %p163, %p164
      %p166 = pneg %p165
      // Predicated region
      $region9: #{inpainting_loss_with_gan.13} parent=5 // pred_check
        _
      $region10: #{inpainting_loss_with_gan.13} parent=5 // pred_check_branch
        %168 = sbr.rel (%p165) target = $region12
      $region11: #{inpainting_loss_with_gan.13} parent=5 // pred_region
        %s169 = ssub.s32 %s12, 1
      $region12: #{inpainting_loss_with_gan.13} parent=5 // pred_fallthru
        _
      %p170 = scmp.lt.s32.totalorder %s12, 2
      // Predicated region
      $region13: #{inpainting_loss_with_gan.13} parent=5 // pred_check
        %p171 = pneg %p170
      $region14: #{inpainting_loss_with_gan.13} parent=5 // pred_check_branch
        %173 = sbr.rel (%p171) target = $region16
      $region15: #{inpainting_loss_with_gan.13} parent=5 // pred_region
        // Predicated region
        $region17: #{inpainting_loss_with_gan.13} parent=15 // pred_check
          %p174 = pneg %p46
        $region18: #{inpainting_loss_with_gan.13} parent=15 // pred_check_branch
          %176 = sbr.rel (%p174) target = $region20
        $region19: #{inpainting_loss_with_gan.13} parent=15 // pred_region
          %p177 = scmp.lt.s32.totalorder %s19, 1
          %s178 = scalar_select %p177, %s19, 1
          %p179 = scmp.lt.s32.totalorder %s20, 0
          %s180 = scalar_select %p179, %s20, 0
          %s181 = smul.addr %s178, 2
          %s182 = sadd.s32 %s180, %s181
          %s183 = smul.addr %s182, 8
          %s184 = scalar_lea.vmem %s0, %s183
        $region20: #{inpainting_loss_with_gan.13} parent=15 // pred_fallthru
          _
        // Predicated region
        $region21: #{inpainting_loss_with_gan.13} parent=15 // pred_check
          %p185 = pneg %p74
        $region22: #{inpainting_loss_with_gan.13} parent=15 // pred_check_branch
          %187 = sbr.rel (%p185) target = $region24
        $region23: #{inpainting_loss_with_gan.13} parent=15 // pred_region
          %p188 = scmp.lt.s32.totalorder %s19, 1
          %s189 = scalar_select %p188, %s19, 1
          %p190 = scmp.lt.s32.totalorder %s20, 0
          %s191 = scalar_select %p190, %s20, 0
          %s192 = smul.addr %s189, 2
          %s193 = sadd.s32 %s191, %s192
          %s194 = smul.addr %s193, 8
          %s195 = scalar_lea.vmem %s1, %s194
        $region24: #{inpainting_loss_with_gan.13} parent=15 // pred_fallthru
          _
        // Predicated region
        $region25: #{inpainting_loss_with_gan.13} parent=15 // pred_check
          %p196 = pneg %p102
        $region26: #{inpainting_loss_with_gan.13} parent=15 // pred_check_branch
          %198 = sbr.rel (%p196) target = $region28
        $region27: #{inpainting_loss_with_gan.13} parent=15 // pred_region
          %p199 = scmp.lt.s32.totalorder %s19, 1
          %s200 = scalar_select %p199, %s19, 1
          %p201 = scmp.lt.s32.totalorder %s20, 0
          %s202 = scalar_select %p201, %s20, 0
          %s203 = smul.addr %s200, 2
          %s204 = sadd.s32 %s202, %s203
          %s205 = smul.addr %s204, 8
          %s206 = scalar_lea.vmem %s2, %s205
        $region28: #{inpainting_loss_with_gan.13} parent=15 // pred_fallthru
          _
      $region16: #{inpainting_loss_with_gan.13} parent=5 // pred_fallthru
        _
      %p207 = scmp.le.s32.totalorder 1, %s12
      %p208 = scmp.lt.s32.totalorder %s12, 3
      %p209 = pnand %p207, %p208
      %p210 = pneg %p209
      // Predicated region
      $region29: #{inpainting_loss_with_gan.13} parent=5 // pred_check
        _
      $region30: #{inpainting_loss_with_gan.13} parent=5 // pred_check_branch
        %212 = sbr.rel (%p209) target = $region32
      $region31: #{inpainting_loss_with_gan.13} parent=5 // pred_region
        %s213 = ssub.s32 %s12, 1
        %p214 = scmp.lt.s32.totalorder %s21, 1
        %s215 = scalar_select %p214, %s21, 1
        %p216 = scmp.lt.s32.totalorder %s22, 0
        %s217 = scalar_select %p216, %s22, 0
        %s218 = smul.addr %s215, 2
        %s219 = sadd.s32 %s217, %s218
        %s220 = smul.addr %s219, 8
        %s221 = scalar_lea.vmem %s0, %s220
        %p222 = pneg %p52
        %p223 = pneg %p49
        %p224 = scmp.lt.s32.totalorder %s21, 1
        %s225 = scalar_select %p224, %s21, 1
        %p226 = scmp.lt.s32.totalorder %s22, 0
        %s227 = scalar_select %p226, %s22, 0
        %s228 = smul.addr %s225, 2
        %s229 = sadd.s32 %s227, %s228
        %s230 = smul.addr %s229, 8
        %s231 = scalar_lea.vmem %s1, %s230
        %p232 = pneg %p80
        %p233 = pneg %p77
        %p234 = scmp.lt.s32.totalorder %s21, 1
        %s235 = scalar_select %p234, %s21, 1
        %p236 = scmp.lt.s32.totalorder %s22, 0
        %s237 = scalar_select %p236, %s22, 0
        %s238 = smul.addr %s235, 2
        %s239 = sadd.s32 %s237, %s238
        %s240 = smul.addr %s239, 8
        %s241 = scalar_lea.vmem %s2, %s240
        %p242 = pneg %p108
        %p243 = pneg %p105
        %p244 = pneg %p134
        %p245 = pneg %p131
        %s246 = sand.u32 %s121, 1
        %s247 = sand.u32 %s121, 1
        %s248 = smul.addr %s247, 48
        %s249 = scalar_lea.vmem [#allocation2], %s248
        %p250 = pneg %p155
        %p251 = pneg %p152
        %p252 = scmp.lt.s32.totalorder %s21, 1
        %s253 = scalar_select %p252, %s21, 1
        %p254 = scmp.lt.s32.totalorder %s22, 0
        %s255 = scalar_select %p254, %s22, 0
        %s256 = smul.addr %s253, 2
        %s257 = sadd.s32 %s255, %s256
        %s258 = smul.addr %s257, 8
        %s259 = scalar_lea.vmem %s0, %s258
        %p260 = scmp.lt.s32.totalorder %s21, 1
        %s261 = scalar_select %p260, %s21, 1
        %p262 = scmp.lt.s32.totalorder %s22, 0
        %s263 = scalar_select %p262, %s22, 0
        %s264 = smul.addr %s261, 2
        %s265 = sadd.s32 %s263, %s264
        %s266 = smul.addr %s265, 8
        %s267 = scalar_lea.vmem %s1, %s266
        %p268 = scmp.lt.s32.totalorder %s21, 1
        %s269 = scalar_select %p268, %s21, 1
        %p270 = scmp.lt.s32.totalorder %s22, 0
        %s271 = scalar_select %p270, %s22, 0
        %s272 = smul.addr %s269, 2
        %s273 = sadd.s32 %s271, %s272
        %s274 = smul.addr %s273, 8
        %s275 = scalar_lea.vmem %s2, %s274
        %p276 = scmp.eq.s32.totalorder %s21, 0
        %p277 = scmp.eq.s32.totalorder %s22, 0
        %p278 = pnand %p276, %p277
        %p279 = pneg %p278
        // Predicated region
        $region33: #{inpainting_loss_with_gan.13} parent=31 // pred_check
          _
        $region34: #{inpainting_loss_with_gan.13} parent=31 // pred_check_branch
          %281 = sbr.rel (%p278) target = $region36
        $region35: #{inpainting_loss_with_gan.13} parent=31 // pred_region
          %s282 = scalar_lea.smem [#allocation3], 0
          %283 = sst [smem:[%s282]] 0.0
          %s284 = scalar_lea.smem [#allocation3], 1
          %285 = sst [smem:[%s284]] 0.0
        $region36: #{inpainting_loss_with_gan.13} parent=31 // pred_fallthru
          _
        // Predicated region
        $region37: #{inpainting_loss_with_gan.13} parent=31 // pred_check
          %p286 = pneg %p277
        $region38: #{inpainting_loss_with_gan.13} parent=31 // pred_check_branch
          %288 = sbr.rel (%p286) target = $region40
        $region39: #{inpainting_loss_with_gan.13} parent=31 // pred_region
          %vm289 = vcmask 130048
          %290 = vst.msk [vmem:[%s249] sm:$0xff] %vm289, 0.0
          %291 = vst.msk [vmem:[%s249 + $0x8] sm:$0xff] %vm289, 0.0
          %292 = vst.msk [vmem:[%s249 + $0x10] sm:$0xff] %vm289, 0.0
          %293 = vst.msk [vmem:[%s249 + $0x18] sm:$0xff] %vm289, 0.0
          %294 = vst.msk [vmem:[%s249 + $0x20] sm:$0xff] %vm289, 0.0
          %295 = vst.msk [vmem:[%s249 + $0x28] sm:$0xff] %vm289, 0.0
        $region40: #{inpainting_loss_with_gan.13} parent=31 // pred_fallthru
          _
        %v296 = vld [vmem:[%s259] sm:$0xff]
        %v297 = vld [vmem:[%s259 + $0x8] sm:$0xff]
        %v298 = vld [vmem:[%s267] sm:$0xff]
        %v299 = vld [vmem:[%s267 + $0x8] sm:$0xff]
        %v300 = vld [vmem:[%s275] sm:$0xff]
        %v301 = vld [vmem:[%s275 + $0x8] sm:$0xff]
        %v302 = vld [vmem:[%s249] sm:$0xff]
        %v303 = vld [vmem:[%s249 + $0x8] sm:$0xff]
        %vm304 = vcmask 130048
        %v306 = vsel %vm304, %v296, 0
        %v309 = vsel %vm304, %v297, 0
        %311 = vmatprep.subr.mxu0 0.0
        %312 = vmatpush1.xpose.msra.mxu0 %v306
        %313 = vmatprep.subr.mxu0 0.0
        %314 = vmatpush1.xpose.msra.mxu0 %v309
        %315 = vmatprep.subr.mxu0 0.0
        %316 = vmatpush1.xpose.msra.mxu0 0.0
        %317 = vmatprep.subr.mxu0 0.0
        %318 = vmatpush1.xpose.msra.mxu0 0.0
        %319 = vmatprep.subr.mxu0 0.0
        %320 = vmatpush1.xpose.msra.mxu0 0.0
        %321 = vmatprep.subr.mxu0 0.0
        %322 = vmatpush1.xpose.msra.mxu0 0.0
        %323 = vmatprep.subr.mxu0 0.0
        %324 = vmatpush1.xpose.msra.mxu0 0.0
        %325 = vmatprep.subr.mxu0 0.0
        %326 = vmatpush1.xpose.msra.mxu0 0.0
        %327 = vmatprep.subr.mxu0 0.0
        %328 = vmatpush1.xpose.msra.mxu0 0.0
        %329 = vmatprep.subr.mxu0 0.0
        %330 = vmatpush1.xpose.msra.mxu0 0.0
        %331 = vmatprep.subr.mxu0 0.0
        %332 = vmatpush1.xpose.msra.mxu0 0.0
        %333 = vmatprep.subr.mxu0 0.0
        %334 = vmatpush1.xpose.msra.mxu0 0.0
        %335 = vmatprep.subr.mxu0 0.0
        %336 = vmatpush1.xpose.msra.mxu0 0.0
        %337 = vmatprep.subr.mxu0 0.0
        %338 = vmatpush1.xpose.msra.mxu0 0.0
        %339 = vmatprep.subr.mxu0 0.0
        %340 = vmatpush1.xpose.msra.mxu0 0.0
        %341 = vmatprep.subr.mxu0 0.0
        %342 = vmatpush1.xpose.msra.mxu0 0.0
        %343 = vmatprep.subr.mxu0 0.0
        %344 = vmatpush1.xpose.msra.mxu0 0.0
        %345 = vmatprep.subr.mxu0 0.0
        %346 = vmatpush1.xpose.msra.mxu0 0.0
        %347 = vmatprep.subr.mxu0 0.0
        %348 = vmatpush1.xpose.msra.mxu0 0.0
        %349 = vmatprep.subr.mxu0 0.0
        %350 = vmatpush1.xpose.msra.mxu0 0.0
        %351 = vmatprep.subr.mxu0 0.0
        %352 = vmatpush1.xpose.msra.mxu0 0.0
        %353 = vmatprep.subr.mxu0 0.0
        %354 = vmatpush1.xpose.msra.mxu0 0.0
        %355 = vmatprep.subr.mxu0 0.0
        %356 = vmatpush1.xpose.msra.mxu0 0.0
        %357 = vmatprep.subr.mxu0 0.0
        %358 = vmatpush1.xpose.msra.mxu0 0.0
        %359 = vmatprep.subr.mxu0 0.0
        %360 = vmatpush1.xpose.msra.mxu0 0.0
        %361 = vmatprep.subr.mxu0 0.0
        %362 = vmatpush1.xpose.msra.mxu0 0.0
        %363 = vmatprep.subr.mxu0 0.0
        %364 = vmatpush1.xpose.msra.mxu0 0.0
        %365 = vmatprep.subr.mxu0 0.0
        %366 = vmatpush1.xpose.msra.mxu0 0.0
        %367 = vmatprep.subr.mxu0 0.0
        %368 = vmatpush1.xpose.msra.mxu0 0.0
        %369 = vmatprep.subr.mxu0 0.0
        %370 = vmatpush1.xpose.msra.mxu0 0.0
        %371 = vmatprep.subr.mxu0 0.0
        %372 = vmatpush1.xpose.msra.mxu0 0.0
        %373 = vmatprep.subr.mxu0 0.0
        %374 = vmatpush1.xpose.msra.mxu0 0.0
        %375 = vmatprep.mubr.f32.mxu0 0.0
        %376 = vmatmul.mubr.f32.gmra.mrb[0].mxu0 %v306
        %v377 = vpop.f32.mrb[0].mxu0
        %v378 = vadd.f32 0.0, %v377
        %v379 = vpop.f32.mrb[0].mxu0
        %380 = vmatprep.mubr.f32.mxu0 0.0
        %381 = vmatmul.mubr.f32.gmra.mrb[0].mxu0 %v309
        %v382 = vpop.f32.mrb[0].mxu0
        %v383 = vadd.f32 0.0, %v382
        %v384 = vpop.f32.mrb[0].mxu0
        %385 = vdwg.mxu0
        %v386 = vadd.f32 %v302, %v378
        %v387 = vadd.f32 %v303, %v383
        %388 = vst.msk [vmem:[%s249] sm:$0xff] %vm304, %v386
        %389 = vst.msk [vmem:[%s249 + $0x8] sm:$0xff] %vm304, %v387
        %s390 = scalar_lea.vmem %s249, 16 [#allocation2]
        %v391 = vld [vmem:[%s390] sm:$0xff]
        %v392 = vld [vmem:[%s390 + $0x8] sm:$0xff]
        %v394 = vsel %vm304, %v298, 0
        %v397 = vsel %vm304, %v299, 0
        %399 = vmatprep.subr.mxu0 0.0
        %400 = vmatpush1.xpose.msra.mxu0 %v394
        %401 = vmatprep.subr.mxu0 0.0
        %402 = vmatpush1.xpose.msra.mxu0 %v397
        %403 = vmatprep.subr.mxu0 0.0
        %404 = vmatpush1.xpose.msra.mxu0 0.0
        %405 = vmatprep.subr.mxu0 0.0
        %406 = vmatpush1.xpose.msra.mxu0 0.0
        %407 = vmatprep.subr.mxu0 0.0
        %408 = vmatpush1.xpose.msra.mxu0 0.0
        %409 = vmatprep.subr.mxu0 0.0
        %410 = vmatpush1.xpose.msra.mxu0 0.0
        %411 = vmatprep.subr.mxu0 0.0
        %412 = vmatpush1.xpose.msra.mxu0 0.0
        %413 = vmatprep.subr.mxu0 0.0
        %414 = vmatpush1.xpose.msra.mxu0 0.0
        %415 = vmatprep.subr.mxu0 0.0
        %416 = vmatpush1.xpose.msra.mxu0 0.0
        %417 = vmatprep.subr.mxu0 0.0
        %418 = vmatpush1.xpose.msra.mxu0 0.0
        %419 = vmatprep.subr.mxu0 0.0
        %420 = vmatpush1.xpose.msra.mxu0 0.0
        %421 = vmatprep.subr.mxu0 0.0
        %422 = vmatpush1.xpose.msra.mxu0 0.0
        %423 = vmatprep.subr.mxu0 0.0
        %424 = vmatpush1.xpose.msra.mxu0 0.0
        %425 = vmatprep.subr.mxu0 0.0
        %426 = vmatpush1.xpose.msra.mxu0 0.0
        %427 = vmatprep.subr.mxu0 0.0
        %428 = vmatpush1.xpose.msra.mxu0 0.0
        %429 = vmatprep.subr.mxu0 0.0
        %430 = vmatpush1.xpose.msra.mxu0 0.0
        %431 = vmatprep.subr.mxu0 0.0
        %432 = vmatpush1.xpose.msra.mxu0 0.0
        %433 = vmatprep.subr.mxu0 0.0
        %434 = vmatpush1.xpose.msra.mxu0 0.0
        %435 = vmatprep.subr.mxu0 0.0
        %436 = vmatpush1.xpose.msra.mxu0 0.0
        %437 = vmatprep.subr.mxu0 0.0
        %438 = vmatpush1.xpose.msra.mxu0 0.0
        %439 = vmatprep.subr.mxu0 0.0
        %440 = vmatpush1.xpose.msra.mxu0 0.0
        %441 = vmatprep.subr.mxu0 0.0
        %442 = vmatpush1.xpose.msra.mxu0 0.0
        %443 = vmatprep.subr.mxu0 0.0
        %444 = vmatpush1.xpose.msra.mxu0 0.0
        %445 = vmatprep.subr.mxu0 0.0
        %446 = vmatpush1.xpose.msra.mxu0 0.0
        %447 = vmatprep.subr.mxu0 0.0
        %448 = vmatpush1.xpose.msra.mxu0 0.0
        %449 = vmatprep.subr.mxu0 0.0
        %450 = vmatpush1.xpose.msra.mxu0 0.0
        %451 = vmatprep.subr.mxu0 0.0
        %452 = vmatpush1.xpose.msra.mxu0 0.0
        %453 = vmatprep.subr.mxu0 0.0
        %454 = vmatpush1.xpose.msra.mxu0 0.0
        %455 = vmatprep.subr.mxu0 0.0
        %456 = vmatpush1.xpose.msra.mxu0 0.0
        %457 = vmatprep.subr.mxu0 0.0
        %458 = vmatpush1.xpose.msra.mxu0 0.0
        %459 = vmatprep.subr.mxu0 0.0
        %460 = vmatpush1.xpose.msra.mxu0 0.0
        %461 = vmatprep.subr.mxu0 0.0
        %462 = vmatpush1.xpose.msra.mxu0 0.0
        %463 = vmatprep.mubr.f32.mxu0 0.0
        %464 = vmatmul.mubr.f32.gmra.mrb[0].mxu0 %v394
        %v465 = vpop.f32.mrb[0].mxu0
        %v466 = vadd.f32 0.0, %v465
        %v467 = vpop.f32.mrb[0].mxu0
        %468 = vmatprep.mubr.f32.mxu0 0.0
        %469 = vmatmul.mubr.f32.gmra.mrb[0].mxu0 %v397
        %v470 = vpop.f32.mrb[0].mxu0
        %v471 = vadd.f32 0.0, %v470
        %v472 = vpop.f32.mrb[0].mxu0
        %473 = vdwg.mxu0
        %v474 = vadd.f32 %v391, %v466
        %v475 = vadd.f32 %v392, %v471
        %476 = vst.msk [vmem:[%s390] sm:$0xff] %vm304, %v474
        %477 = vst.msk [vmem:[%s390 + $0x8] sm:$0xff] %vm304, %v475
        %s478 = scalar_lea.vmem %s249, 32 [#allocation2]
        %v479 = vld [vmem:[%s478] sm:$0xff]
        %v480 = vld [vmem:[%s478 + $0x8] sm:$0xff]
        %v482 = vsel %vm304, %v300, 0
        %v485 = vsel %vm304, %v301, 0
        %487 = vmatprep.subr.mxu0 0.0
        %488 = vmatpush1.xpose.msra.mxu0 %v482
        %489 = vmatprep.subr.mxu0 0.0
        %490 = vmatpush1.xpose.msra.mxu0 %v485
        %491 = vmatprep.subr.mxu0 0.0
        %492 = vmatpush1.xpose.msra.mxu0 0.0
        %493 = vmatprep.subr.mxu0 0.0
        %494 = vmatpush1.xpose.msra.mxu0 0.0
        %495 = vmatprep.subr.mxu0 0.0
        %496 = vmatpush1.xpose.msra.mxu0 0.0
        %497 = vmatprep.subr.mxu0 0.0
        %498 = vmatpush1.xpose.msra.mxu0 0.0
        %499 = vmatprep.subr.mxu0 0.0
        %500 = vmatpush1.xpose.msra.mxu0 0.0
        %501 = vmatprep.subr.mxu0 0.0
        %502 = vmatpush1.xpose.msra.mxu0 0.0
        %503 = vmatprep.subr.mxu0 0.0
        %504 = vmatpush1.xpose.msra.mxu0 0.0
        %505 = vmatprep.subr.mxu0 0.0
        %506 = vmatpush1.xpose.msra.mxu0 0.0
        %507 = vmatprep.subr.mxu0 0.0
        %508 = vmatpush1.xpose.msra.mxu0 0.0
        %509 = vmatprep.subr.mxu0 0.0
        %510 = vmatpush1.xpose.msra.mxu0 0.0
        %511 = vmatprep.subr.mxu0 0.0
        %512 = vmatpush1.xpose.msra.mxu0 0.0
        %513 = vmatprep.subr.mxu0 0.0
        %514 = vmatpush1.xpose.msra.mxu0 0.0
        %515 = vmatprep.subr.mxu0 0.0
        %516 = vmatpush1.xpose.msra.mxu0 0.0
        %517 = vmatprep.subr.mxu0 0.0
        %518 = vmatpush1.xpose.msra.mxu0 0.0
        %519 = vmatprep.subr.mxu0 0.0
        %520 = vmatpush1.xpose.msra.mxu0 0.0
        %521 = vmatprep.subr.mxu0 0.0
        %522 = vmatpush1.xpose.msra.mxu0 0.0
        %523 = vmatprep.subr.mxu0 0.0
        %524 = vmatpush1.xpose.msra.mxu0 0.0
        %525 = vmatprep.subr.mxu0 0.0
        %526 = vmatpush1.xpose.msra.mxu0 0.0
        %527 = vmatprep.subr.mxu0 0.0
        %528 = vmatpush1.xpose.msra.mxu0 0.0
        %529 = vmatprep.subr.mxu0 0.0
        %530 = vmatpush1.xpose.msra.mxu0 0.0
        %531 = vmatprep.subr.mxu0 0.0
        %532 = vmatpush1.xpose.msra.mxu0 0.0
        %533 = vmatprep.subr.mxu0 0.0
        %534 = vmatpush1.xpose.msra.mxu0 0.0
        %535 = vmatprep.subr.mxu0 0.0
        %536 = vmatpush1.xpose.msra.mxu0 0.0
        %537 = vmatprep.subr.mxu0 0.0
        %538 = vmatpush1.xpose.msra.mxu0 0.0
        %539 = vmatprep.subr.mxu0 0.0
        %540 = vmatpush1.xpose.msra.mxu0 0.0
        %541 = vmatprep.subr.mxu0 0.0
        %542 = vmatpush1.xpose.msra.mxu0 0.0
        %543 = vmatprep.subr.mxu0 0.0
        %544 = vmatpush1.xpose.msra.mxu0 0.0
        %545 = vmatprep.subr.mxu0 0.0
        %546 = vmatpush1.xpose.msra.mxu0 0.0
        %547 = vmatprep.subr.mxu0 0.0
        %548 = vmatpush1.xpose.msra.mxu0 0.0
        %549 = vmatprep.subr.mxu0 0.0
        %550 = vmatpush1.xpose.msra.mxu0 0.0
        %551 = vmatprep.mubr.f32.mxu0 0.0
        %552 = vmatmul.mubr.f32.gmra.mrb[0].mxu0 %v482
        %v553 = vpop.f32.mrb[0].mxu0
        %v554 = vadd.f32 0.0, %v553
        %v555 = vpop.f32.mrb[0].mxu0
        %556 = vmatprep.mubr.f32.mxu0 0.0
        %557 = vmatmul.mubr.f32.gmra.mrb[0].mxu0 %v485
        %v558 = vpop.f32.mrb[0].mxu0
        %v559 = vadd.f32 0.0, %v558
        %v560 = vpop.f32.mrb[0].mxu0
        %561 = vdwg.mxu0
        %v562 = vadd.f32 %v479, %v554
        %v563 = vadd.f32 %v480, %v559
        %564 = vst.msk [vmem:[%s478] sm:$0xff] %vm304, %v562
        %565 = vst.msk [vmem:[%s478 + $0x8] sm:$0xff] %vm304, %v563
        %s566 = sld [smem:[#allocation3]]
        %v567 = vsub.f32 %v296, %v300
        %v568 = vsub.f32 %v297, %v301
        %v569 = vand.u32 2147483647, %v567
        %v570 = vand.u32 2147483647, %v568
        %v571 = vsel %vm304, %v569, 0.0
        %v572 = vsel %vm304, %v570, 0.0
        %v573 = vadd.f32 %v571, %v572
        %574 = vadd.xlane.f32.xlu0 %v573
        %v575 = vpop.xlane.xlu0 %574
        %v576 = vrot.slane %v575, 4
        %v577 = vadd.f32 %v575, %v576
        %v578 = vrot.slane %v577, 2
        %v579 = vadd.f32 %v577, %v578
        %v580 = vrot.slane %v579, 1
        %v581 = vadd.f32 %v579, %v580
        %s582 = vtos %v581
        %s583 = sadd.f32 %s566, %s582
        %s584 = scalar_lea.smem [#allocation3], 0
        %585 = sst [smem:[%s584]] %s583
        %s586 = sld [smem:[#allocation3 + $0x1]]
        %v587 = vsub.f32 %v298, %v300
        %v588 = vsub.f32 %v299, %v301
        %v589 = vand.u32 2147483647, %v587
        %v590 = vand.u32 2147483647, %v588
        %v591 = vsel %vm304, %v589, 0.0
        %v592 = vsel %vm304, %v590, 0.0
        %v593 = vadd.f32 %v591, %v592
        %594 = vadd.xlane.f32.xlu0 %v593
        %v595 = vpop.xlane.xlu0 %594
        %v596 = vrot.slane %v595, 4
        %v597 = vadd.f32 %v595, %v596
        %v598 = vrot.slane %v597, 2
        %v599 = vadd.f32 %v597, %v598
        %v600 = vrot.slane %v599, 1
        %v601 = vadd.f32 %v599, %v600
        %s602 = vtos %v601
        %s603 = sadd.f32 %s586, %s602
        %s604 = scalar_lea.smem [#allocation3], 1
        %605 = sst [smem:[%s604]] %s603
        // Predicated region
        $region41: #{inpainting_loss_with_gan.13} parent=31 // pred_check
          %p606 = pneg %p277
        $region42: #{inpainting_loss_with_gan.13} parent=31 // pred_check_branch
          %608 = sbr.rel (%p606) target = $region44
        $region43: #{inpainting_loss_with_gan.13} parent=31 // pred_region
          %v609 = vld [vmem:[%s249] sm:$0xff]
          %v610 = vld [vmem:[%s249 + $0x8] sm:$0xff]
          %v611 = vld [vmem:[%s249 + $0x10] sm:$0xff]
          %v612 = vld [vmem:[%s249 + $0x18] sm:$0xff]
          %v613 = vld [vmem:[%s249 + $0x20] sm:$0xff]
          %v614 = vld [vmem:[%s249 + $0x28] sm:$0xff]
          %v615 = vmul.f32 %v609, 0.00390625
          %v616 = vmul.f32 %v610, 0.00390625
          %v617 = vmul.f32 %v611, 0.00390625
          %v618 = vmul.f32 %v612, 0.00390625
          %v619 = vmul.f32 %v613, 0.00390625
          %v620 = vmul.f32 %v614, 0.00390625
          %621 = vst.msk [vmem:[%s249] sm:$0xff] %vm304, %v615
          %622 = vst.msk [vmem:[%s249 + $0x8] sm:$0xff] %vm304, %v616
          %623 = vst.msk [vmem:[%s249 + $0x10] sm:$0xff] %vm304, %v617
          %624 = vst.msk [vmem:[%s249 + $0x18] sm:$0xff] %vm304, %v618
          %625 = vst.msk [vmem:[%s249 + $0x20] sm:$0xff] %vm304, %v619
          %626 = vst.msk [vmem:[%s249 + $0x28] sm:$0xff] %vm304, %v620
        $region44: #{inpainting_loss_with_gan.13} parent=31 // pred_fallthru
          _
        %s627 = sand.u32 %s121, 1
        %s628 = sand.u32 %s121, 1
        %s629 = smul.addr %s628, 48
        %s630 = scalar_lea.vmem [#allocation2], %s629
        // Predicated region
        $region45: #{inpainting_loss_with_gan.13} parent=31 // pred_check
          %p631 = pneg %p131
        $region46: #{inpainting_loss_with_gan.13} parent=31 // pred_check_branch
          %633 = sbr.rel (%p631) target = $region48
        $region47: #{inpainting_loss_with_gan.13} parent=31 // pred_region
          %s634 = smul.addr %s21, 2
          %s635 = smul.addr %s634, 8
          %s636 = scalar_lea.vmem %s3, %s635
          // Predicated region
          $region49: #{inpainting_loss_with_gan.13} parent=47 // pred_check
            _
          $region50: #{inpainting_loss_with_gan.13} parent=47 // pred_check_branch
            %638 = sbr.rel (0) target = $region52
          $region51: #{inpainting_loss_with_gan.13} parent=47 // pred_region
            // Predicated region
            $region53: #{inpainting_loss_with_gan.13} parent=51 // pred_check
              _
            $region54: #{inpainting_loss_with_gan.13} parent=51 // pred_check_branch
              %640 = sbr.rel (0) target = $region56
            $region55: #{inpainting_loss_with_gan.13} parent=51 // pred_region
              // Predicated region
              $region68: #{inpainting_loss_with_gan.13} parent=55 // pred_check
                _
              $region69: #{inpainting_loss_with_gan.13} parent=55 // pred_check_branch
                %665 = sbr.rel (0) target = $region71
              $region70: #{inpainting_loss_with_gan.13} parent=55 // pred_region
                loop: start=0, step=1, limit=1
                $region72: #{inpainting_loss_with_gan.13} parent=70 // loop_pre_header
                  _
                $region73: #{inpainting_loss_with_gan.13} parent=70 // loop_header
                  %s667 = sphi 0, %s671
                  %p668 = scmp.ge.s32.totalorder %s667, 1
                  %s672 = sphi %s630, %s630
                  %s673 = sphi %s636, %s636
                $region74: #{inpainting_loss_with_gan.13} parent=70 // loop_header_branch
                  %670 = sbr.rel (%p668) target = $region78
                $region75: #{inpainting_loss_with_gan.13} parent=70 // loop_body
                  %v674 = vld [vmem:[%s672] sm:$0xff]
                  %675 = vst [vmem:[%s673] sm:$0xff] %v674
                  %v676 = vld [vmem:[%s672 + $0x8] sm:$0xff]
                  %677 = vst [vmem:[%s673 + $0x8] sm:$0xff] %v676
                  %v678 = vld [vmem:[%s672 + $0x10] sm:$0xff]
                  %679 = vst [vmem:[%s673 + $0x20] sm:$0xff] %v678
                  %v680 = vld [vmem:[%s672 + $0x18] sm:$0xff]
                  %681 = vst [vmem:[%s673 + $0x28] sm:$0xff] %v680
                  %v682 = vld [vmem:[%s672 + $0x20] sm:$0xff]
                  %683 = vst [vmem:[%s673 + $0x40] sm:$0xff] %v682
                  %v684 = vld [vmem:[%s672 + $0x28] sm:$0xff]
                  %685 = vst [vmem:[%s673 + $0x48] sm:$0xff] %v684
                $region76: #{inpainting_loss_with_gan.13} parent=70 // loop_footer
                  %s671 = sadd.s32 1, %s667
                $region77: #{inpainting_loss_with_gan.13} parent=70 // loop_footer_branch
                  %666 = sbr.rel target = $region73
                $region78: #{inpainting_loss_with_gan.13} parent=70 // loop_exit
                  _
              $region71: #{inpainting_loss_with_gan.13} parent=55 // pred_fallthru
                _
              // Predicated region
              $region79: #{inpainting_loss_with_gan.13} parent=55 // pred_check
                _
              $region80: #{inpainting_loss_with_gan.13} parent=55 // pred_check_branch
                %687 = sbr.rel target = $region82
              $region81: #{inpainting_loss_with_gan.13} parent=55 // pred_region
                _
              $region82: #{inpainting_loss_with_gan.13} parent=55 // pred_fallthru
                _
            $region56: #{inpainting_loss_with_gan.13} parent=51 // pred_fallthru
              _
            // Predicated region
            $region57: #{inpainting_loss_with_gan.13} parent=51 // pred_check
              _
            $region58: #{inpainting_loss_with_gan.13} parent=51 // pred_check_branch
              %642 = sbr.rel target = $region60
            $region59: #{inpainting_loss_with_gan.13} parent=51 // pred_region
              loop: start=0, step=1, limit=1
              $region61: #{inpainting_loss_with_gan.13} parent=59 // loop_pre_header
                _
              $region62: #{inpainting_loss_with_gan.13} parent=59 // loop_header
                %s645 = sphi 0, %s649
                %p646 = scmp.ge.s32.totalorder %s645, 1
                %s650 = sphi %s630, %s630
                %s651 = sphi %s636, %s636
              $region63: #{inpainting_loss_with_gan.13} parent=59 // loop_header_branch
                %648 = sbr.rel (%p646) target = $region67
              $region64: #{inpainting_loss_with_gan.13} parent=59 // loop_body
                %v652 = vld [vmem:[%s650] sm:$0xff]
                %653 = vst [vmem:[%s651] sm:$0xff] %v652
                %v654 = vld [vmem:[%s650 + $0x8] sm:$0xff]
                %655 = vst [vmem:[%s651 + $0x8] sm:$0xff] %v654
                %v656 = vld [vmem:[%s650 + $0x10] sm:$0xff]
                %657 = vst [vmem:[%s651 + $0x20] sm:$0xff] %v656
                %v658 = vld [vmem:[%s650 + $0x18] sm:$0xff]
                %659 = vst [vmem:[%s651 + $0x28] sm:$0xff] %v658
                %v660 = vld [vmem:[%s650 + $0x20] sm:$0xff]
                %661 = vst [vmem:[%s651 + $0x40] sm:$0xff] %v660
                %v662 = vld [vmem:[%s650 + $0x28] sm:$0xff]
                %663 = vst [vmem:[%s651 + $0x48] sm:$0xff] %v662
              $region65: #{inpainting_loss_with_gan.13} parent=59 // loop_footer
                %s649 = sadd.s32 1, %s645
              $region66: #{inpainting_loss_with_gan.13} parent=59 // loop_footer_branch
                %644 = sbr.rel target = $region62
              $region67: #{inpainting_loss_with_gan.13} parent=59 // loop_exit
                _
            $region60: #{inpainting_loss_with_gan.13} parent=51 // pred_fallthru
              _
          $region52: #{inpainting_loss_with_gan.13} parent=47 // pred_fallthru
            _
          %688 = vnop
        $region48: #{inpainting_loss_with_gan.13} parent=31 // pred_fallthru
          _
        // Predicated region
        $region83: #{inpainting_loss_with_gan.13} parent=31 // pred_check
          %p689 = pneg %p152
        $region84: #{inpainting_loss_with_gan.13} parent=31 // pred_check_branch
          %691 = sbr.rel (%p689) target = $region86
        $region85: #{inpainting_loss_with_gan.13} parent=31 // pred_region
          %s693 = ssub.s32 16, 16
          %694 = vsyncadd [#allocation4], %s693
          %s696 = sshll.u32 %s4, 4
          %s697 = int_to_ptr.vmem [resolvable:$true] %s696
          %699 = dma.smem_to_vmem [#allocation3], 16, %s697, [#allocation4]
        $region86: #{inpainting_loss_with_gan.13} parent=31 // pred_fallthru
          _
        // Predicated region
        $region87: #{inpainting_loss_with_gan.13} parent=31 // pred_check
          %p700 = pneg %p152
        $region88: #{inpainting_loss_with_gan.13} parent=31 // pred_check_branch
          %702 = sbr.rel (%p700) target = $region90
        $region89: #{inpainting_loss_with_gan.13} parent=31 // pred_region
          %703 = dma.done [#allocation4], 16
        $region90: #{inpainting_loss_with_gan.13} parent=31 // pred_fallthru
          _
        %704 = sfence
      $region32: #{inpainting_loss_with_gan.13} parent=5 // pred_fallthru
        _
      %p705 = scmp.le.s32.totalorder 2, %s12
      // Predicated region
      $region91: #{inpainting_loss_with_gan.13} parent=5 // pred_check
        %p706 = pneg %p705
      $region92: #{inpainting_loss_with_gan.13} parent=5 // pred_check_branch
        %708 = sbr.rel (%p706) target = $region94
      $region93: #{inpainting_loss_with_gan.13} parent=5 // pred_region
        %s709 = ssub.s32 %s12, 2
        // Predicated region
        $region95: #{inpainting_loss_with_gan.13} parent=93 // pred_check
          %p710 = pneg %p137
        $region96: #{inpainting_loss_with_gan.13} parent=93 // pred_check_branch
          %712 = sbr.rel (%p710) target = $region98
        $region97: #{inpainting_loss_with_gan.13} parent=93 // pred_region
          %s713 = sand.u32 %s122, 1
          %s714 = sand.u32 %s122, 1
          %s715 = smul.addr %s714, 48
          %s716 = scalar_lea.vmem [#allocation2], %s715
        $region98: #{inpainting_loss_with_gan.13} parent=93 // pred_fallthru
          _
      $region94: #{inpainting_loss_with_gan.13} parent=5 // pred_fallthru
        _
    $region6: #{inpainting_loss_with_gan.13} parent=1 // loop_footer
      %s16 = sadd.s32 1, %s12
    $region7: #{inpainting_loss_with_gan.13} parent=1 // loop_footer_branch
      %11 = sbr.rel target = $region3
    $region8: #{inpainting_loss_with_gan.13} parent=1 // loop_exit
      _
    %717 = vsyncpa [#allocation4], 1
    %s718 = scalar_lea.sflag [#allocation4], 1
    %719 = vsyncpa %s718, 1

// kernel: inpainting_loss_with_gan.15
$region0: #{inpainting_loss_with_gan.15}
  #allocation0 [shape = 'u32[]', space=smem, size = 0x4, offset = 0x4, fixed_abs, tag = 'smem constant byte address 0x4 - core index']
  #allocation1 [shape = 'u32[144,128]{1,0:T(1,128)}', space=vmem, size = 0x12000, scoped, tag = 'internal scratch']
  %s0 = inlined_call_operand.vmem [shape: f32[2,32,4], index: 0, kind: input, shape index: {}]
  %s1 = inlined_call_operand.vmem [shape: f32[2,32,4], index: 1, kind: input, shape index: {}]
  %s2 = inlined_call_operand.vmem [shape: f32[2,32,4], index: 2, kind: input, shape index: {}]
  %s3 = inlined_call_operand.vmem [shape: f32[3,2,32,32], index: 3, kind: output, shape index: {0}]
  %s4 = inlined_call_operand.vmem [shape: f32[2], index: 4, kind: output, shape index: {1}]
  %5 = xla_tuple %s3, %s4
  %s6 = sld [smem:[#allocation0]]
  $region99: #{inpainting_loss_with_gan.15} parent=0
    _
  %s8 = ssub.s32 1, %s6
  %s9 = scalar_select 0, %s8, %s6
  $region1: #{inpainting_loss_with_gan.15} parent=0
    #allocation2 [shape = 'u8[98304]{0}', space=vmem, size = 0x18000, scoped, tag = 'output window, operand 0']
    #allocation3 [shape = 'u8[512]{0}', space=smem, size = 0x200, scoped, tag = 'output window, operand 1, single buffered']
    #allocation4 [shape = 's32[2]{0}', space=sflag, size = 0x8, scoped, tag = 'scoped memory for inpainting_loss_with_gan.15']
    %10 = vsyncpa [#allocation4], 0
    loop: start=0, step=1, limit=4
    $region2: #{inpainting_loss_with_gan.15} parent=1 // loop_pre_header
      _
    $region3: #{inpainting_loss_with_gan.15} parent=1 // loop_header
      %s12 = sphi 0, %s16
      %p13 = scmp.ge.s32.totalorder %s12, 4
      %s19 = sphi 0, %s31
      %s20 = sphi 0, %s27
      %s21 = sphi 0, %s19
      %s22 = sphi 0, %s20
      %s23 = sphi 0, %s21
      %s24 = sphi 0, %s22
      %s36 = sphi 0, %s38
      %s39 = sphi 0, %s36
      %s40 = sphi 0, %s39
      %s56 = sphi 0, %s40
      %s64 = sphi 0, %s66
      %s67 = sphi 0, %s64
      %s68 = sphi 0, %s67
      %s84 = sphi 0, %s68
      %s92 = sphi 0, %s94
      %s95 = sphi 0, %s92
      %s96 = sphi 0, %s95
      %s112 = sphi 0, %s96
      %s118 = sphi 0, %s120
      %s121 = sphi 0, %s118
      %s122 = sphi 0, %s121
      %s138 = sphi 0, %s122
      %s142 = sphi 0, %s142
      %s144 = sphi 0, %s142
      %s145 = sphi 0, %s144
      %s159 = sphi 0, %s145
    $region4: #{inpainting_loss_with_gan.15} parent=1 // loop_header_branch
      %15 = sbr.rel (%p13) target = $region8
    $region5: #{inpainting_loss_with_gan.15} parent=1 // loop_body
      %s17 = ssub.s32 %s12, 1
      %s18 = ssub.s32 %s12, 2
      %s25 = sadd.s32 1, %s20
      %p26 = scmp.ge.s32.totalorder %s25, 1
      %s27 = scalar_select %p26, 0, %s25
      %s28 = sadd.s32 1, %s19
      %s29 = scalar_select %p26, %s28, %s19
      %p30 = scmp.ge.s32.totalorder %s29, 2
      %s31 = scalar_select %p30, 0, %s29
      %s32 = ssub.s32 %s19, %s31
      %s33 = ssub.s32 %s20, %s27
      %s34 = sor.u32 %s32, %s33
      %p35 = scmp.eq.s32.totalorder %s34, 0
      %s37 = sadd.s32 %s36, 1
      %s38 = scalar_select %p35, %s36, %s37
      %p41 = pneg %p35
      %p42 = scmp.eq.s32.totalorder %s12, 1
      %p43 = por %p41, %p42
      %p44 = scmp.ne.s32.totalorder %s36, %s39
      %p45 = scmp.eq.s32.totalorder %s12, 0
      %p46 = por %p44, %p45
      %p47 = scmp.ne.s32.totalorder %s36, %s39
      %p48 = scmp.eq.s32.totalorder %s17, 1
      %p49 = por %p47, %p48
      %p50 = scmp.ne.s32.totalorder %s39, %s40
      %p51 = scmp.eq.s32.totalorder %s17, 0
      %p52 = por %p50, %p51
      %p53 = scmp.ne.s32.totalorder %s39, %s40
      %p54 = scmp.eq.s32.totalorder %s18, 1
      %p55 = por %p53, %p54
      %p57 = scmp.ne.s32.totalorder %s40, %s56
      %p58 = scmp.eq.s32.totalorder %s18, 0
      %p59 = por %p57, %p58
      %s60 = ssub.s32 %s19, %s31
      %s61 = ssub.s32 %s20, %s27
      %s62 = sor.u32 %s60, %s61
      %p63 = scmp.eq.s32.totalorder %s62, 0
      %s65 = sadd.s32 %s64, 1
      %s66 = scalar_select %p63, %s64, %s65
      %p69 = pneg %p63
      %p70 = scmp.eq.s32.totalorder %s12, 1
      %p71 = por %p69, %p70
      %p72 = scmp.ne.s32.totalorder %s64, %s67
      %p73 = scmp.eq.s32.totalorder %s12, 0
      %p74 = por %p72, %p73
      %p75 = scmp.ne.s32.totalorder %s64, %s67
      %p76 = scmp.eq.s32.totalorder %s17, 1
      %p77 = por %p75, %p76
      %p78 = scmp.ne.s32.totalorder %s67, %s68
      %p79 = scmp.eq.s32.totalorder %s17, 0
      %p80 = por %p78, %p79
      %p81 = scmp.ne.s32.totalorder %s67, %s68
      %p82 = scmp.eq.s32.totalorder %s18, 1
      %p83 = por %p81, %p82
      %p85 = scmp.ne.s32.totalorder %s68, %s84
      %p86 = scmp.eq.s32.totalorder %s18, 0
      %p87 = por %p85, %p86
      %s88 = ssub.s32 %s19, %s31
      %s89 = ssub.s32 %s20, %s27
      %s90 = sor.u32 %s88, %s89
      %p91 = scmp.eq.s32.totalorder %s90, 0
      %s93 = sadd.s32 %s92, 1
      %s94 = scalar_select %p91, %s92, %s93
      %p97 = pneg %p91
      %p98 = scmp.eq.s32.totalorder %s12, 1
      %p99 = por %p97, %p98
      %p100 = scmp.ne.s32.totalorder %s92, %s95
      %p101 = scmp.eq.s32.totalorder %s12, 0
      %p102 = por %p100, %p101
      %p103 = scmp.ne.s32.totalorder %s92, %s95
      %p104 = scmp.eq.s32.totalorder %s17, 1
      %p105 = por %p103, %p104
      %p106 = scmp.ne.s32.totalorder %s95, %s96
      %p107 = scmp.eq.s32.totalorder %s17, 0
      %p108 = por %p106, %p107
      %p109 = scmp.ne.s32.totalorder %s95, %s96
      %p110 = scmp.eq.s32.totalorder %s18, 1
      %p111 = por %p109, %p110
      %p113 = scmp.ne.s32.totalorder %s96, %s112
      %p114 = scmp.eq.s32.totalorder %s18, 0
      %p115 = por %p113, %p114
      %s116 = ssub.s32 %s19, %s31
      %p117 = scmp.eq.s32.totalorder %s116, 0
      %s119 = sadd.s32 %s118, 1
      %s120 = scalar_select %p117, %s118, %s119
      %p123 = pneg %p117
      %p124 = scmp.eq.s32.totalorder %s12, 1
      %p125 = por %p123, %p124
      %p126 = scmp.ne.s32.totalorder %s118, %s121
      %p127 = scmp.eq.s32.totalorder %s12, 0
      %p128 = por %p126, %p127
      %p129 = scmp.ne.s32.totalorder %s118, %s121
      %p130 = scmp.eq.s32.totalorder %s17, 1
      %p131 = por %p129, %p130
      %p132 = scmp.ne.s32.totalorder %s121, %s122
      %p133 = scmp.eq.s32.totalorder %s17, 0
      %p134 = por %p132, %p133
      %p135 = scmp.ne.s32.totalorder %s121, %s122
      %p136 = scmp.eq.s32.totalorder %s18, 1
      %p137 = por %p135, %p136
      %p139 = scmp.ne.s32.totalorder %s122, %s138
      %p140 = scmp.eq.s32.totalorder %s18, 0
      %p141 = por %p139, %p140
      %s143 = sadd.s32 %s142, 1
      %p146 = scmp.eq.s32.totalorder %s12, 1
      %p147 = scmp.ne.s32.totalorder %s142, %s144
      %p148 = scmp.eq.s32.totalorder %s12, 0
      %p149 = por %p147, %p148
      %p150 = scmp.ne.s32.totalorder %s142, %s144
      %p151 = scmp.eq.s32.totalorder %s17, 1
      %p152 = por %p150, %p151
      %p153 = scmp.ne.s32.totalorder %s144, %s145
      %p154 = scmp.eq.s32.totalorder %s17, 0
      %p155 = por %p153, %p154
      %p156 = scmp.ne.s32.totalorder %s144, %s145
      %p157 = scmp.eq.s32.totalorder %s18, 1
      %p158 = por %p156, %p157
      %p160 = scmp.ne.s32.totalorder %s145, %s159
      %p161 = scmp.eq.s32.totalorder %s18, 0
      %p162 = por %p160, %p161
      %p163 = scmp.le.s32.totalorder 1, %s12
      %p164 = scmp.lt.s32.totalorder %s12, 3
      %p165 = pnand %p163, %p164
      %p166 = pneg %p165
      // Predicated region
      $region9: #{inpainting_loss_with_gan.15} parent=5 // pred_check
        _
      $region10: #{inpainting_loss_with_gan.15} parent=5 // pred_check_branch
        %168 = sbr.rel (%p165) target = $region12
      $region11: #{inpainting_loss_with_gan.15} parent=5 // pred_region
        %s169 = ssub.s32 %s12, 1
      $region12: #{inpainting_loss_with_gan.15} parent=5 // pred_fallthru
        _
      %p170 = scmp.lt.s32.totalorder %s12, 2
      // Predicated region
      $region13: #{inpainting_loss_with_gan.15} parent=5 // pred_check
        %p171 = pneg %p170
      $region14: #{inpainting_loss_with_gan.15} parent=5 // pred_check_branch
        %173 = sbr.rel (%p171) target = $region16
      $region15: #{inpainting_loss_with_gan.15} parent=5 // pred_region
        // Predicated region
        $region17: #{inpainting_loss_with_gan.15} parent=15 // pred_check
          %p174 = pneg %p46
        $region18: #{inpainting_loss_with_gan.15} parent=15 // pred_check_branch
          %176 = sbr.rel (%p174) target = $region20
        $region19: #{inpainting_loss_with_gan.15} parent=15 // pred_region
          %p177 = scmp.lt.s32.totalorder %s19, 1
          %s178 = scalar_select %p177, %s19, 1
          %p179 = scmp.lt.s32.totalorder %s20, 0
          %s180 = scalar_select %p179, %s20, 0
          %s181 = smul.addr %s178, 4
          %s182 = sadd.s32 %s180, %s181
          %s183 = smul.addr %s182, 8
          %s184 = scalar_lea.vmem %s0, %s183
        $region20: #{inpainting_loss_with_gan.15} parent=15 // pred_fallthru
          _
        // Predicated region
        $region21: #{inpainting_loss_with_gan.15} parent=15 // pred_check
          %p185 = pneg %p74
        $region22: #{inpainting_loss_with_gan.15} parent=15 // pred_check_branch
          %187 = sbr.rel (%p185) target = $region24
        $region23: #{inpainting_loss_with_gan.15} parent=15 // pred_region
          %p188 = scmp.lt.s32.totalorder %s19, 1
          %s189 = scalar_select %p188, %s19, 1
          %p190 = scmp.lt.s32.totalorder %s20, 0
          %s191 = scalar_select %p190, %s20, 0
          %s192 = smul.addr %s189, 4
          %s193 = sadd.s32 %s191, %s192
          %s194 = smul.addr %s193, 8
          %s195 = scalar_lea.vmem %s1, %s194
        $region24: #{inpainting_loss_with_gan.15} parent=15 // pred_fallthru
          _
        // Predicated region
        $region25: #{inpainting_loss_with_gan.15} parent=15 // pred_check
          %p196 = pneg %p102
        $region26: #{inpainting_loss_with_gan.15} parent=15 // pred_check_branch
          %198 = sbr.rel (%p196) target = $region28
        $region27: #{inpainting_loss_with_gan.15} parent=15 // pred_region
          %p199 = scmp.lt.s32.totalorder %s19, 1
          %s200 = scalar_select %p199, %s19, 1
          %p201 = scmp.lt.s32.totalorder %s20, 0
          %s202 = scalar_select %p201, %s20, 0
          %s203 = smul.addr %s200, 4
          %s204 = sadd.s32 %s202, %s203
          %s205 = smul.addr %s204, 8
          %s206 = scalar_lea.vmem %s2, %s205
        $region28: #{inpainting_loss_with_gan.15} parent=15 // pred_fallthru
          _
      $region16: #{inpainting_loss_with_gan.15} parent=5 // pred_fallthru
        _
      %p207 = scmp.le.s32.totalorder 1, %s12
      %p208 = scmp.lt.s32.totalorder %s12, 3
      %p209 = pnand %p207, %p208
      %p210 = pneg %p209
      // Predicated region
      $region29: #{inpainting_loss_with_gan.15} parent=5 // pred_check
        _
      $region30: #{inpainting_loss_with_gan.15} parent=5 // pred_check_branch
        %212 = sbr.rel (%p209) target = $region32
      $region31: #{inpainting_loss_with_gan.15} parent=5 // pred_region
        %s213 = ssub.s32 %s12, 1
        %p214 = scmp.lt.s32.totalorder %s21, 1
        %s215 = scalar_select %p214, %s21, 1
        %p216 = scmp.lt.s32.totalorder %s22, 0
        %s217 = scalar_select %p216, %s22, 0
        %s218 = smul.addr %s215, 4
        %s219 = sadd.s32 %s217, %s218
        %s220 = smul.addr %s219, 8
        %s221 = scalar_lea.vmem %s0, %s220
        %p222 = pneg %p52
        %p223 = pneg %p49
        %p224 = scmp.lt.s32.totalorder %s21, 1
        %s225 = scalar_select %p224, %s21, 1
        %p226 = scmp.lt.s32.totalorder %s22, 0
        %s227 = scalar_select %p226, %s22, 0
        %s228 = smul.addr %s225, 4
        %s229 = sadd.s32 %s227, %s228
        %s230 = smul.addr %s229, 8
        %s231 = scalar_lea.vmem %s1, %s230
        %p232 = pneg %p80
        %p233 = pneg %p77
        %p234 = scmp.lt.s32.totalorder %s21, 1
        %s235 = scalar_select %p234, %s21, 1
        %p236 = scmp.lt.s32.totalorder %s22, 0
        %s237 = scalar_select %p236, %s22, 0
        %s238 = smul.addr %s235, 4
        %s239 = sadd.s32 %s237, %s238
        %s240 = smul.addr %s239, 8
        %s241 = scalar_lea.vmem %s2, %s240
        %p242 = pneg %p108
        %p243 = pneg %p105
        %p244 = pneg %p134
        %p245 = pneg %p131
        %s246 = sand.u32 %s121, 1
        %s247 = sand.u32 %s121, 1
        %s248 = smul.addr %s247, 96
        %s249 = scalar_lea.vmem [#allocation2], %s248
        %p250 = pneg %p155
        %p251 = pneg %p152
        %p252 = scmp.lt.s32.totalorder %s21, 1
        %s253 = scalar_select %p252, %s21, 1
        %p254 = scmp.lt.s32.totalorder %s22, 0
        %s255 = scalar_select %p254, %s22, 0
        %s256 = smul.addr %s253, 4
        %s257 = sadd.s32 %s255, %s256
        %s258 = smul.addr %s257, 8
        %s259 = scalar_lea.vmem %s0, %s258
        %p260 = scmp.lt.s32.totalorder %s21, 1
        %s261 = scalar_select %p260, %s21, 1
        %p262 = scmp.lt.s32.totalorder %s22, 0
        %s263 = scalar_select %p262, %s22, 0
        %s264 = smul.addr %s261, 4
        %s265 = sadd.s32 %s263, %s264
        %s266 = smul.addr %s265, 8
        %s267 = scalar_lea.vmem %s1, %s266
        %p268 = scmp.lt.s32.totalorder %s21, 1
        %s269 = scalar_select %p268, %s21, 1
        %p270 = scmp.lt.s32.totalorder %s22, 0
        %s271 = scalar_select %p270, %s22, 0
        %s272 = smul.addr %s269, 4
        %s273 = sadd.s32 %s271, %s272
        %s274 = smul.addr %s273, 8
        %s275 = scalar_lea.vmem %s2, %s274
        %p276 = scmp.eq.s32.totalorder %s21, 0
        %p277 = scmp.eq.s32.totalorder %s22, 0
        %p278 = pnand %p276, %p277
        %p279 = pneg %p278
        // Predicated region
        $region33: #{inpainting_loss_with_gan.15} parent=31 // pred_check
          _
        $region34: #{inpainting_loss_with_gan.15} parent=31 // pred_check_branch
          %281 = sbr.rel (%p278) target = $region36
        $region35: #{inpainting_loss_with_gan.15} parent=31 // pred_region
          %s282 = scalar_lea.smem [#allocation3], 0
          %283 = sst [smem:[%s282]] 0.0
          %s284 = scalar_lea.smem [#allocation3], 1
          %285 = sst [smem:[%s284]] 0.0
        $region36: #{inpainting_loss_with_gan.15} parent=31 // pred_fallthru
          _
        // Predicated region
        $region37: #{inpainting_loss_with_gan.15} parent=31 // pred_check
          %p286 = pneg %p277
        $region38: #{inpainting_loss_with_gan.15} parent=31 // pred_check_branch
          %288 = sbr.rel (%p286) target = $region40
        $region39: #{inpainting_loss_with_gan.15} parent=31 // pred_region
          %vm289 = vcmask 261120
          %290 = vst.msk [vmem:[%s249] sm:$0xff] %vm289, 0.0
          %291 = vst.msk [vmem:[%s249 + $0x8] sm:$0xff] %vm289, 0.0
          %292 = vst.msk [vmem:[%s249 + $0x10] sm:$0xff] %vm289, 0.0
          %293 = vst.msk [vmem:[%s249 + $0x18] sm:$0xff] %vm289, 0.0
          %294 = vst.msk [vmem:[%s249 + $0x20] sm:$0xff] %vm289, 0.0
          %295 = vst.msk [vmem:[%s249 + $0x28] sm:$0xff] %vm289, 0.0
          %296 = vst.msk [vmem:[%s249 + $0x30] sm:$0xff] %vm289, 0.0
          %297 = vst.msk [vmem:[%s249 + $0x38] sm:$0xff] %vm289, 0.0
          %298 = vst.msk [vmem:[%s249 + $0x40] sm:$0xff] %vm289, 0.0
          %299 = vst.msk [vmem:[%s249 + $0x48] sm:$0xff] %vm289, 0.0
          %300 = vst.msk [vmem:[%s249 + $0x50] sm:$0xff] %vm289, 0.0
          %301 = vst.msk [vmem:[%s249 + $0x58] sm:$0xff] %vm289, 0.0
        $region40: #{inpainting_loss_with_gan.15} parent=31 // pred_fallthru
          _
        %v302 = vld [vmem:[%s259] sm:$0xff]
        %v303 = vld [vmem:[%s259 + $0x8] sm:$0xff]
        %v304 = vld [vmem:[%s259 + $0x10] sm:$0xff]
        %v305 = vld [vmem:[%s259 + $0x18] sm:$0xff]
        %v306 = vld [vmem:[%s267] sm:$0xff]
        %v307 = vld [vmem:[%s267 + $0x8] sm:$0xff]
        %v308 = vld [vmem:[%s267 + $0x10] sm:$0xff]
        %v309 = vld [vmem:[%s267 + $0x18] sm:$0xff]
        %v310 = vld [vmem:[%s275] sm:$0xff]
        %v311 = vld [vmem:[%s275 + $0x8] sm:$0xff]
        %v312 = vld [vmem:[%s275 + $0x10] sm:$0xff]
        %v313 = vld [vmem:[%s275 + $0x18] sm:$0xff]
        %v314 = vld [vmem:[%s249] sm:$0xff]
        %v315 = vld [vmem:[%s249 + $0x8] sm:$0xff]
        %v316 = vld [vmem:[%s249 + $0x10] sm:$0xff]
        %v317 = vld [vmem:[%s249 + $0x18] sm:$0xff]
        %vm318 = vcmask 31744
        %v320 = vsel %vm318, %v302, 0
        %v323 = vsel %vm318, %v303, 0
        %v326 = vsel %vm318, %v304, 0
        %v329 = vsel %vm318, %v305, 0
        %331 = vmatprep.subr.mxu0 0.0
        %332 = vmatpush1.xpose.msra.mxu0 %v320
        %333 = vmatprep.subr.mxu0 0.0
        %334 = vmatpush1.xpose.msra.mxu0 %v323
        %335 = vmatprep.subr.mxu0 0.0
        %336 = vmatpush1.xpose.msra.mxu0 %v326
        %337 = vmatprep.subr.mxu0 0.0
        %338 = vmatpush1.xpose.msra.mxu0 %v329
        %339 = vmatprep.subr.mxu0 0.0
        %340 = vmatpush1.xpose.msra.mxu0 0.0
        %341 = vmatprep.subr.mxu0 0.0
        %342 = vmatpush1.xpose.msra.mxu0 0.0
        %343 = vmatprep.subr.mxu0 0.0
        %344 = vmatpush1.xpose.msra.mxu0 0.0
        %345 = vmatprep.subr.mxu0 0.0
        %346 = vmatpush1.xpose.msra.mxu0 0.0
        %347 = vmatprep.subr.mxu0 0.0
        %348 = vmatpush1.xpose.msra.mxu0 0.0
        %349 = vmatprep.subr.mxu0 0.0
        %350 = vmatpush1.xpose.msra.mxu0 0.0
        %351 = vmatprep.subr.mxu0 0.0
        %352 = vmatpush1.xpose.msra.mxu0 0.0
        %353 = vmatprep.subr.mxu0 0.0
        %354 = vmatpush1.xpose.msra.mxu0 0.0
        %355 = vmatprep.subr.mxu0 0.0
        %356 = vmatpush1.xpose.msra.mxu0 0.0
        %357 = vmatprep.subr.mxu0 0.0
        %358 = vmatpush1.xpose.msra.mxu0 0.0
        %359 = vmatprep.subr.mxu0 0.0
        %360 = vmatpush1.xpose.msra.mxu0 0.0
        %361 = vmatprep.subr.mxu0 0.0
        %362 = vmatpush1.xpose.msra.mxu0 0.0
        %363 = vmatprep.subr.mxu0 0.0
        %364 = vmatpush1.xpose.msra.mxu0 0.0
        %365 = vmatprep.subr.mxu0 0.0
        %366 = vmatpush1.xpose.msra.mxu0 0.0
        %367 = vmatprep.subr.mxu0 0.0
        %368 = vmatpush1.xpose.msra.mxu0 0.0
        %369 = vmatprep.subr.mxu0 0.0
        %370 = vmatpush1.xpose.msra.mxu0 0.0
        %371 = vmatprep.subr.mxu0 0.0
        %372 = vmatpush1.xpose.msra.mxu0 0.0
        %373 = vmatprep.subr.mxu0 0.0
        %374 = vmatpush1.xpose.msra.mxu0 0.0
        %375 = vmatprep.subr.mxu0 0.0
        %376 = vmatpush1.xpose.msra.mxu0 0.0
        %377 = vmatprep.subr.mxu0 0.0
        %378 = vmatpush1.xpose.msra.mxu0 0.0
        %379 = vmatprep.subr.mxu0 0.0
        %380 = vmatpush1.xpose.msra.mxu0 0.0
        %381 = vmatprep.subr.mxu0 0.0
        %382 = vmatpush1.xpose.msra.mxu0 0.0
        %383 = vmatprep.subr.mxu0 0.0
        %384 = vmatpush1.xpose.msra.mxu0 0.0
        %385 = vmatprep.subr.mxu0 0.0
        %386 = vmatpush1.xpose.msra.mxu0 0.0
        %387 = vmatprep.subr.mxu0 0.0
        %388 = vmatpush1.xpose.msra.mxu0 0.0
        %389 = vmatprep.subr.mxu0 0.0
        %390 = vmatpush1.xpose.msra.mxu0 0.0
        %391 = vmatprep.subr.mxu0 0.0
        %392 = vmatpush1.xpose.msra.mxu0 0.0
        %393 = vmatprep.subr.mxu0 0.0
        %394 = vmatpush1.xpose.msra.mxu0 0.0
        %395 = vmatprep.mubr.f32.mxu0 0.0
        %396 = vmatmul.mubr.f32.gmra.mrb[0].mxu0 %v320
        %v397 = vpop.f32.mrb[0].mxu0
        %v398 = vadd.f32 0.0, %v397
        %v399 = vpop.f32.mrb[0].mxu0
        %400 = vmatprep.mubr.f32.mxu0 0.0
        %401 = vmatmul.mubr.f32.gmra.mrb[0].mxu0 %v323
        %v402 = vpop.f32.mrb[0].mxu0
        %v403 = vadd.f32 0.0, %v402
        %v404 = vpop.f32.mrb[0].mxu0
        %405 = vmatprep.mubr.f32.mxu0 0.0
        %406 = vmatmul.mubr.f32.gmra.mrb[0].mxu0 %v326
        %v407 = vpop.f32.mrb[0].mxu0
        %v408 = vadd.f32 0.0, %v407
        %v409 = vpop.f32.mrb[0].mxu0
        %410 = vmatprep.mubr.f32.mxu0 0.0
        %411 = vmatmul.mubr.f32.gmra.mrb[0].mxu0 %v329
        %v412 = vpop.f32.mrb[0].mxu0
        %v413 = vadd.f32 0.0, %v412
        %v414 = vpop.f32.mrb[0].mxu0
        %415 = vdwg.mxu0
        %v416 = vadd.f32 %v314, %v398
        %v417 = vadd.f32 %v315, %v403
        %v418 = vadd.f32 %v316, %v408
        %v419 = vadd.f32 %v317, %v413
        %vm420 = vcmask 261120
        %421 = vst.msk [vmem:[%s249] sm:$0xff] %vm420, %v416
        %422 = vst.msk [vmem:[%s249 + $0x8] sm:$0xff] %vm420, %v417
        %423 = vst.msk [vmem:[%s249 + $0x10] sm:$0xff] %vm420, %v418
        %424 = vst.msk [vmem:[%s249 + $0x18] sm:$0xff] %vm420, %v419
        %s425 = scalar_lea.vmem %s249, 32 [#allocation2]
        %v426 = vld [vmem:[%s425] sm:$0xff]
        %v427 = vld [vmem:[%s425 + $0x8] sm:$0xff]
        %v428 = vld [vmem:[%s425 + $0x10] sm:$0xff]
        %v429 = vld [vmem:[%s425 + $0x18] sm:$0xff]
        %v431 = vsel %vm318, %v306, 0
        %v434 = vsel %vm318, %v307, 0
        %v437 = vsel %vm318, %v308, 0
        %v440 = vsel %vm318, %v309, 0
        %442 = vmatprep.subr.mxu0 0.0
        %443 = vmatpush1.xpose.msra.mxu0 %v431
        %444 = vmatprep.subr.mxu0 0.0
        %445 = vmatpush1.xpose.msra.mxu0 %v434
        %446 = vmatprep.subr.mxu0 0.0
        %447 = vmatpush1.xpose.msra.mxu0 %v437
        %448 = vmatprep.subr.mxu0 0.0
        %449 = vmatpush1.xpose.msra.mxu0 %v440
        %450 = vmatprep.subr.mxu0 0.0
        %451 = vmatpush1.xpose.msra.mxu0 0.0
        %452 = vmatprep.subr.mxu0 0.0
        %453 = vmatpush1.xpose.msra.mxu0 0.0
        %454 = vmatprep.subr.mxu0 0.0
        %455 = vmatpush1.xpose.msra.mxu0 0.0
        %456 = vmatprep.subr.mxu0 0.0
        %457 = vmatpush1.xpose.msra.mxu0 0.0
        %458 = vmatprep.subr.mxu0 0.0
        %459 = vmatpush1.xpose.msra.mxu0 0.0
        %460 = vmatprep.subr.mxu0 0.0
        %461 = vmatpush1.xpose.msra.mxu0 0.0
        %462 = vmatprep.subr.mxu0 0.0
        %463 = vmatpush1.xpose.msra.mxu0 0.0
        %464 = vmatprep.subr.mxu0 0.0
        %465 = vmatpush1.xpose.msra.mxu0 0.0
        %466 = vmatprep.subr.mxu0 0.0
        %467 = vmatpush1.xpose.msra.mxu0 0.0
        %468 = vmatprep.subr.mxu0 0.0
        %469 = vmatpush1.xpose.msra.mxu0 0.0
        %470 = vmatprep.subr.mxu0 0.0
        %471 = vmatpush1.xpose.msra.mxu0 0.0
        %472 = vmatprep.subr.mxu0 0.0
        %473 = vmatpush1.xpose.msra.mxu0 0.0
        %474 = vmatprep.subr.mxu0 0.0
        %475 = vmatpush1.xpose.msra.mxu0 0.0
        %476 = vmatprep.subr.mxu0 0.0
        %477 = vmatpush1.xpose.msra.mxu0 0.0
        %478 = vmatprep.subr.mxu0 0.0
        %479 = vmatpush1.xpose.msra.mxu0 0.0
        %480 = vmatprep.subr.mxu0 0.0
        %481 = vmatpush1.xpose.msra.mxu0 0.0
        %482 = vmatprep.subr.mxu0 0.0
        %483 = vmatpush1.xpose.msra.mxu0 0.0
        %484 = vmatprep.subr.mxu0 0.0
        %485 = vmatpush1.xpose.msra.mxu0 0.0
        %486 = vmatprep.subr.mxu0 0.0
        %487 = vmatpush1.xpose.msra.mxu0 0.0
        %488 = vmatprep.subr.mxu0 0.0
        %489 = vmatpush1.xpose.msra.mxu0 0.0
        %490 = vmatprep.subr.mxu0 0.0
        %491 = vmatpush1.xpose.msra.mxu0 0.0
        %492 = vmatprep.subr.mxu0 0.0
        %493 = vmatpush1.xpose.msra.mxu0 0.0
        %494 = vmatprep.subr.mxu0 0.0
        %495 = vmatpush1.xpose.msra.mxu0 0.0
        %496 = vmatprep.subr.mxu0 0.0
        %497 = vmatpush1.xpose.msra.mxu0 0.0
        %498 = vmatprep.subr.mxu0 0.0
        %499 = vmatpush1.xpose.msra.mxu0 0.0
        %500 = vmatprep.subr.mxu0 0.0
        %501 = vmatpush1.xpose.msra.mxu0 0.0
        %502 = vmatprep.subr.mxu0 0.0
        %503 = vmatpush1.xpose.msra.mxu0 0.0
        %504 = vmatprep.subr.mxu0 0.0
        %505 = vmatpush1.xpose.msra.mxu0 0.0
        %506 = vmatprep.mubr.f32.mxu0 0.0
        %507 = vmatmul.mubr.f32.gmra.mrb[0].mxu0 %v431
        %v508 = vpop.f32.mrb[0].mxu0
        %v509 = vadd.f32 0.0, %v508
        %v510 = vpop.f32.mrb[0].mxu0
        %511 = vmatprep.mubr.f32.mxu0 0.0
        %512 = vmatmul.mubr.f32.gmra.mrb[0].mxu0 %v434
        %v513 = vpop.f32.mrb[0].mxu0
        %v514 = vadd.f32 0.0, %v513
        %v515 = vpop.f32.mrb[0].mxu0
        %516 = vmatprep.mubr.f32.mxu0 0.0
        %517 = vmatmul.mubr.f32.gmra.mrb[0].mxu0 %v437
        %v518 = vpop.f32.mrb[0].mxu0
        %v519 = vadd.f32 0.0, %v518
        %v520 = vpop.f32.mrb[0].mxu0
        %521 = vmatprep.mubr.f32.mxu0 0.0
        %522 = vmatmul.mubr.f32.gmra.mrb[0].mxu0 %v440
        %v523 = vpop.f32.mrb[0].mxu0
        %v524 = vadd.f32 0.0, %v523
        %v525 = vpop.f32.mrb[0].mxu0
        %526 = vdwg.mxu0
        %v527 = vadd.f32 %v426, %v509
        %v528 = vadd.f32 %v427, %v514
        %v529 = vadd.f32 %v428, %v519
        %v530 = vadd.f32 %v429, %v524
        %531 = vst.msk [vmem:[%s425] sm:$0xff] %vm420, %v527
        %532 = vst.msk [vmem:[%s425 + $0x8] sm:$0xff] %vm420, %v528
        %533 = vst.msk [vmem:[%s425 + $0x10] sm:$0xff] %vm420, %v529
        %534 = vst.msk [vmem:[%s425 + $0x18] sm:$0xff] %vm420, %v530
        %s535 = scalar_lea.vmem %s249, 64 [#allocation2]
        %v536 = vld [vmem:[%s535] sm:$0xff]
        %v537 = vld [vmem:[%s535 + $0x8] sm:$0xff]
        %v538 = vld [vmem:[%s535 + $0x10] sm:$0xff]
        %v539 = vld [vmem:[%s535 + $0x18] sm:$0xff]
        %v541 = vsel %vm318, %v310, 0
        %v544 = vsel %vm318, %v311, 0
        %v547 = vsel %vm318, %v312, 0
        %v550 = vsel %vm318, %v313, 0
        %552 = vmatprep.subr.mxu0 0.0
        %553 = vmatpush1.xpose.msra.mxu0 %v541
        %554 = vmatprep.subr.mxu0 0.0
        %555 = vmatpush1.xpose.msra.mxu0 %v544
        %556 = vmatprep.subr.mxu0 0.0
        %557 = vmatpush1.xpose.msra.mxu0 %v547
        %558 = vmatprep.subr.mxu0 0.0
        %559 = vmatpush1.xpose.msra.mxu0 %v550
        %560 = vmatprep.subr.mxu0 0.0
        %561 = vmatpush1.xpose.msra.mxu0 0.0
        %562 = vmatprep.subr.mxu0 0.0
        %563 = vmatpush1.xpose.msra.mxu0 0.0
        %564 = vmatprep.subr.mxu0 0.0
        %565 = vmatpush1.xpose.msra.mxu0 0.0
        %566 = vmatprep.subr.mxu0 0.0
        %567 = vmatpush1.xpose.msra.mxu0 0.0
        %568 = vmatprep.subr.mxu0 0.0
        %569 = vmatpush1.xpose.msra.mxu0 0.0
        %570 = vmatprep.subr.mxu0 0.0
        %571 = vmatpush1.xpose.msra.mxu0 0.0
        %572 = vmatprep.subr.mxu0 0.0
        %573 = vmatpush1.xpose.msra.mxu0 0.0
        %574 = vmatprep.subr.mxu0 0.0
        %575 = vmatpush1.xpose.msra.mxu0 0.0
        %576 = vmatprep.subr.mxu0 0.0
        %577 = vmatpush1.xpose.msra.mxu0 0.0
        %578 = vmatprep.subr.mxu0 0.0
        %579 = vmatpush1.xpose.msra.mxu0 0.0
        %580 = vmatprep.subr.mxu0 0.0
        %581 = vmatpush1.xpose.msra.mxu0 0.0
        %582 = vmatprep.subr.mxu0 0.0
        %583 = vmatpush1.xpose.msra.mxu0 0.0
        %584 = vmatprep.subr.mxu0 0.0
        %585 = vmatpush1.xpose.msra.mxu0 0.0
        %586 = vmatprep.subr.mxu0 0.0
        %587 = vmatpush1.xpose.msra.mxu0 0.0
        %588 = vmatprep.subr.mxu0 0.0
        %589 = vmatpush1.xpose.msra.mxu0 0.0
        %590 = vmatprep.subr.mxu0 0.0
        %591 = vmatpush1.xpose.msra.mxu0 0.0
        %592 = vmatprep.subr.mxu0 0.0
        %593 = vmatpush1.xpose.msra.mxu0 0.0
        %594 = vmatprep.subr.mxu0 0.0
        %595 = vmatpush1.xpose.msra.mxu0 0.0
        %596 = vmatprep.subr.mxu0 0.0
        %597 = vmatpush1.xpose.msra.mxu0 0.0
        %598 = vmatprep.subr.mxu0 0.0
        %599 = vmatpush1.xpose.msra.mxu0 0.0
        %600 = vmatprep.subr.mxu0 0.0
        %601 = vmatpush1.xpose.msra.mxu0 0.0
        %602 = vmatprep.subr.mxu0 0.0
        %603 = vmatpush1.xpose.msra.mxu0 0.0
        %604 = vmatprep.subr.mxu0 0.0
        %605 = vmatpush1.xpose.msra.mxu0 0.0
        %606 = vmatprep.subr.mxu0 0.0
        %607 = vmatpush1.xpose.msra.mxu0 0.0
        %608 = vmatprep.subr.mxu0 0.0
        %609 = vmatpush1.xpose.msra.mxu0 0.0
        %610 = vmatprep.subr.mxu0 0.0
        %611 = vmatpush1.xpose.msra.mxu0 0.0
        %612 = vmatprep.subr.mxu0 0.0
        %613 = vmatpush1.xpose.msra.mxu0 0.0
        %614 = vmatprep.subr.mxu0 0.0
        %615 = vmatpush1.xpose.msra.mxu0 0.0
        %616 = vmatprep.mubr.f32.mxu0 0.0
        %617 = vmatmul.mubr.f32.gmra.mrb[0].mxu0 %v541
        %v618 = vpop.f32.mrb[0].mxu0
        %v619 = vadd.f32 0.0, %v618
        %v620 = vpop.f32.mrb[0].mxu0
        %621 = vmatprep.mubr.f32.mxu0 0.0
        %622 = vmatmul.mubr.f32.gmra.mrb[0].mxu0 %v544
        %v623 = vpop.f32.mrb[0].mxu0
        %v624 = vadd.f32 0.0, %v623
        %v625 = vpop.f32.mrb[0].mxu0
        %626 = vmatprep.mubr.f32.mxu0 0.0
        %627 = vmatmul.mubr.f32.gmra.mrb[0].mxu0 %v547
        %v628 = vpop.f32.mrb[0].mxu0
        %v629 = vadd.f32 0.0, %v628
        %v630 = vpop.f32.mrb[0].mxu0
        %631 = vmatprep.mubr.f32.mxu0 0.0
        %632 = vmatmul.mubr.f32.gmra.mrb[0].mxu0 %v550
        %v633 = vpop.f32.mrb[0].mxu0
        %v634 = vadd.f32 0.0, %v633
        %v635 = vpop.f32.mrb[0].mxu0
        %636 = vdwg.mxu0
        %v637 = vadd.f32 %v536, %v619
        %v638 = vadd.f32 %v537, %v624
        %v639 = vadd.f32 %v538, %v629
        %v640 = vadd.f32 %v539, %v634
        %641 = vst.msk [vmem:[%s535] sm:$0xff] %vm420, %v637
        %642 = vst.msk [vmem:[%s535 + $0x8] sm:$0xff] %vm420, %v638
        %643 = vst.msk [vmem:[%s535 + $0x10] sm:$0xff] %vm420, %v639
        %644 = vst.msk [vmem:[%s535 + $0x18] sm:$0xff] %vm420, %v640
        %s645 = sld [smem:[#allocation3]]
        %v646 = vsub.f32 %v302, %v310
        %v647 = vsub.f32 %v303, %v311
        %v648 = vsub.f32 %v304, %v312
        %v649 = vsub.f32 %v305, %v313
        %v650 = vand.u32 2147483647, %v646
        %v651 = vand.u32 2147483647, %v647
        %v652 = vand.u32 2147483647, %v648
        %v653 = vand.u32 2147483647, %v649
        %v654 = vsel %vm318, %v650, 0.0
        %v655 = vsel %vm318, %v651, 0.0
        %v656 = vadd.f32 %v654, %v655
        %v657 = vsel %vm318, %v652, 0.0
        %v658 = vadd.f32 %v656, %v657
        %v659 = vsel %vm318, %v653, 0.0
        %v660 = vadd.f32 %v658, %v659
        %661 = vadd.xlane.f32.xlu0 %v660
        %v662 = vpop.xlane.xlu0 %661
        %v663 = vrot.slane %v662, 4
        %v664 = vadd.f32 %v662, %v663
        %v665 = vrot.slane %v664, 2
        %v666 = vadd.f32 %v664, %v665
        %v667 = vrot.slane %v666, 1
        %v668 = vadd.f32 %v666, %v667
        %s669 = vtos %v668
        %s670 = sadd.f32 %s645, %s669
        %s671 = scalar_lea.smem [#allocation3], 0
        %672 = sst [smem:[%s671]] %s670
        %s673 = sld [smem:[#allocation3 + $0x1]]
        %v674 = vsub.f32 %v306, %v310
        %v675 = vsub.f32 %v307, %v311
        %v676 = vsub.f32 %v308, %v312
        %v677 = vsub.f32 %v309, %v313
        %v678 = vand.u32 2147483647, %v674
        %v679 = vand.u32 2147483647, %v675
        %v680 = vand.u32 2147483647, %v676
        %v681 = vand.u32 2147483647, %v677
        %v682 = vsel %vm318, %v678, 0.0
        %v683 = vsel %vm318, %v679, 0.0
        %v684 = vadd.f32 %v682, %v683
        %v685 = vsel %vm318, %v680, 0.0
        %v686 = vadd.f32 %v684, %v685
        %v687 = vsel %vm318, %v681, 0.0
        %v688 = vadd.f32 %v686, %v687
        %689 = vadd.xlane.f32.xlu0 %v688
        %v690 = vpop.xlane.xlu0 %689
        %v691 = vrot.slane %v690, 4
        %v692 = vadd.f32 %v690, %v691
        %v693 = vrot.slane %v692, 2
        %v694 = vadd.f32 %v692, %v693
        %v695 = vrot.slane %v694, 1
        %v696 = vadd.f32 %v694, %v695
        %s697 = vtos %v696
        %s698 = sadd.f32 %s673, %s697
        %s699 = scalar_lea.smem [#allocation3], 1
        %700 = sst [smem:[%s699]] %s698
        // Predicated region
        $region41: #{inpainting_loss_with_gan.15} parent=31 // pred_check
          %p701 = pneg %p277
        $region42: #{inpainting_loss_with_gan.15} parent=31 // pred_check_branch
          %703 = sbr.rel (%p701) target = $region44
        $region43: #{inpainting_loss_with_gan.15} parent=31 // pred_region
          %v704 = vld [vmem:[%s249] sm:$0xff]
          %v705 = vld [vmem:[%s249 + $0x8] sm:$0xff]
          %v706 = vld [vmem:[%s249 + $0x10] sm:$0xff]
          %v707 = vld [vmem:[%s249 + $0x18] sm:$0xff]
          %v708 = vld [vmem:[%s249 + $0x20] sm:$0xff]
          %v709 = vld [vmem:[%s249 + $0x28] sm:$0xff]
          %v710 = vld [vmem:[%s249 + $0x30] sm:$0xff]
          %v711 = vld [vmem:[%s249 + $0x38] sm:$0xff]
          %v712 = vld [vmem:[%s249 + $0x40] sm:$0xff]
          %v713 = vld [vmem:[%s249 + $0x48] sm:$0xff]
          %v714 = vld [vmem:[%s249 + $0x50] sm:$0xff]
          %v715 = vld [vmem:[%s249 + $0x58] sm:$0xff]
          %v716 = vmul.f32 %v704, 0.0078125
          %v717 = vmul.f32 %v705, 0.0078125
          %v718 = vmul.f32 %v706, 0.0078125
          %v719 = vmul.f32 %v707, 0.0078125
          %v720 = vmul.f32 %v708, 0.0078125
          %v721 = vmul.f32 %v709, 0.0078125
          %v722 = vmul.f32 %v710, 0.0078125
          %v723 = vmul.f32 %v711, 0.0078125
          %v724 = vmul.f32 %v712, 0.0078125
          %v725 = vmul.f32 %v713, 0.0078125
          %v726 = vmul.f32 %v714, 0.0078125
          %v727 = vmul.f32 %v715, 0.0078125
          %728 = vst.msk [vmem:[%s249] sm:$0xff] %vm420, %v716
          %729 = vst.msk [vmem:[%s249 + $0x8] sm:$0xff] %vm420, %v717
          %730 = vst.msk [vmem:[%s249 + $0x10] sm:$0xff] %vm420, %v718
          %731 = vst.msk [vmem:[%s249 + $0x18] sm:$0xff] %vm420, %v719
          %732 = vst.msk [vmem:[%s249 + $0x20] sm:$0xff] %vm420, %v720
          %733 = vst.msk [vmem:[%s249 + $0x28] sm:$0xff] %vm420, %v721
          %734 = vst.msk [vmem:[%s249 + $0x30] sm:$0xff] %vm420, %v722
          %735 = vst.msk [vmem:[%s249 + $0x38] sm:$0xff] %vm420, %v723
          %736 = vst.msk [vmem:[%s249 + $0x40] sm:$0xff] %vm420, %v724
          %737 = vst.msk [vmem:[%s249 + $0x48] sm:$0xff] %vm420, %v725
          %738 = vst.msk [vmem:[%s249 + $0x50] sm:$0xff] %vm420, %v726
          %739 = vst.msk [vmem:[%s249 + $0x58] sm:$0xff] %vm420, %v727
        $region44: #{inpainting_loss_with_gan.15} parent=31 // pred_fallthru
          _
        %s740 = sand.u32 %s121, 1
        %s741 = sand.u32 %s121, 1
        %s742 = smul.addr %s741, 96
        %s743 = scalar_lea.vmem [#allocation2], %s742
        // Predicated region
        $region45: #{inpainting_loss_with_gan.15} parent=31 // pred_check
          %p744 = pneg %p131
        $region46: #{inpainting_loss_with_gan.15} parent=31 // pred_check_branch
          %746 = sbr.rel (%p744) target = $region48
        $region47: #{inpainting_loss_with_gan.15} parent=31 // pred_region
          %s747 = smul.addr %s21, 4
          %s748 = smul.addr %s747, 8
          %s749 = scalar_lea.vmem %s3, %s748
          // Predicated region
          $region49: #{inpainting_loss_with_gan.15} parent=47 // pred_check
            _
          $region50: #{inpainting_loss_with_gan.15} parent=47 // pred_check_branch
            %751 = sbr.rel (0) target = $region52
          $region51: #{inpainting_loss_with_gan.15} parent=47 // pred_region
            // Predicated region
            $region53: #{inpainting_loss_with_gan.15} parent=51 // pred_check
              _
            $region54: #{inpainting_loss_with_gan.15} parent=51 // pred_check_branch
              %753 = sbr.rel (0) target = $region56
            $region55: #{inpainting_loss_with_gan.15} parent=51 // pred_region
              // Predicated region
              $region68: #{inpainting_loss_with_gan.15} parent=55 // pred_check
                _
              $region69: #{inpainting_loss_with_gan.15} parent=55 // pred_check_branch
                %790 = sbr.rel (0) target = $region71
              $region70: #{inpainting_loss_with_gan.15} parent=55 // pred_region
                loop: start=0, step=1, limit=1
                $region72: #{inpainting_loss_with_gan.15} parent=70 // loop_pre_header
                  _
                $region73: #{inpainting_loss_with_gan.15} parent=70 // loop_header
                  %s792 = sphi 0, %s796
                  %p793 = scmp.ge.s32.totalorder %s792, 1
                  %s797 = sphi %s743, %s743
                  %s798 = sphi %s749, %s749
                $region74: #{inpainting_loss_with_gan.15} parent=70 // loop_header_branch
                  %795 = sbr.rel (%p793) target = $region78
                $region75: #{inpainting_loss_with_gan.15} parent=70 // loop_body
                  %v799 = vld [vmem:[%s797] sm:$0xff]
                  %800 = vst [vmem:[%s798] sm:$0xff] %v799
                  %v801 = vld [vmem:[%s797 + $0x8] sm:$0xff]
                  %802 = vst [vmem:[%s798 + $0x8] sm:$0xff] %v801
                  %v803 = vld [vmem:[%s797 + $0x10] sm:$0xff]
                  %804 = vst [vmem:[%s798 + $0x10] sm:$0xff] %v803
                  %v805 = vld [vmem:[%s797 + $0x18] sm:$0xff]
                  %806 = vst [vmem:[%s798 + $0x18] sm:$0xff] %v805
                  %v807 = vld [vmem:[%s797 + $0x20] sm:$0xff]
                  %808 = vst [vmem:[%s798 + $0x40] sm:$0xff] %v807
                  %v809 = vld [vmem:[%s797 + $0x28] sm:$0xff]
                  %810 = vst [vmem:[%s798 + $0x48] sm:$0xff] %v809
                  %v811 = vld [vmem:[%s797 + $0x30] sm:$0xff]
                  %812 = vst [vmem:[%s798 + $0x50] sm:$0xff] %v811
                  %v813 = vld [vmem:[%s797 + $0x38] sm:$0xff]
                  %814 = vst [vmem:[%s798 + $0x58] sm:$0xff] %v813
                  %v815 = vld [vmem:[%s797 + $0x40] sm:$0xff]
                  %816 = vst [vmem:[%s798 + $0x80] sm:$0xff] %v815
                  %v817 = vld [vmem:[%s797 + $0x48] sm:$0xff]
                  %818 = vst [vmem:[%s798 + $0x88] sm:$0xff] %v817
                  %v819 = vld [vmem:[%s797 + $0x50] sm:$0xff]
                  %820 = vst [vmem:[%s798 + $0x90] sm:$0xff] %v819
                  %v821 = vld [vmem:[%s797 + $0x58] sm:$0xff]
                  %822 = vst [vmem:[%s798 + $0x98] sm:$0xff] %v821
                $region76: #{inpainting_loss_with_gan.15} parent=70 // loop_footer
                  %s796 = sadd.s32 1, %s792
                $region77: #{inpainting_loss_with_gan.15} parent=70 // loop_footer_branch
                  %791 = sbr.rel target = $region73
                $region78: #{inpainting_loss_with_gan.15} parent=70 // loop_exit
                  _
              $region71: #{inpainting_loss_with_gan.15} parent=55 // pred_fallthru
                _
              // Predicated region
              $region79: #{inpainting_loss_with_gan.15} parent=55 // pred_check
                _
              $region80: #{inpainting_loss_with_gan.15} parent=55 // pred_check_branch
                %824 = sbr.rel target = $region82
              $region81: #{inpainting_loss_with_gan.15} parent=55 // pred_region
                _
              $region82: #{inpainting_loss_with_gan.15} parent=55 // pred_fallthru
                _
            $region56: #{inpainting_loss_with_gan.15} parent=51 // pred_fallthru
              _
            // Predicated region
            $region57: #{inpainting_loss_with_gan.15} parent=51 // pred_check
              _
            $region58: #{inpainting_loss_with_gan.15} parent=51 // pred_check_branch
              %755 = sbr.rel target = $region60
            $region59: #{inpainting_loss_with_gan.15} parent=51 // pred_region
              loop: start=0, step=1, limit=1
              $region61: #{inpainting_loss_with_gan.15} parent=59 // loop_pre_header
                _
              $region62: #{inpainting_loss_with_gan.15} parent=59 // loop_header
                %s758 = sphi 0, %s762
                %p759 = scmp.ge.s32.totalorder %s758, 1
                %s763 = sphi %s743, %s743
                %s764 = sphi %s749, %s749
              $region63: #{inpainting_loss_with_gan.15} parent=59 // loop_header_branch
                %761 = sbr.rel (%p759) target = $region67
              $region64: #{inpainting_loss_with_gan.15} parent=59 // loop_body
                %v765 = vld [vmem:[%s763] sm:$0xff]
                %766 = vst [vmem:[%s764] sm:$0xff] %v765
                %v767 = vld [vmem:[%s763 + $0x8] sm:$0xff]
                %768 = vst [vmem:[%s764 + $0x8] sm:$0xff] %v767
                %v769 = vld [vmem:[%s763 + $0x10] sm:$0xff]
                %770 = vst [vmem:[%s764 + $0x10] sm:$0xff] %v769
                %v771 = vld [vmem:[%s763 + $0x18] sm:$0xff]
                %772 = vst [vmem:[%s764 + $0x18] sm:$0xff] %v771
                %v773 = vld [vmem:[%s763 + $0x20] sm:$0xff]
                %774 = vst [vmem:[%s764 + $0x40] sm:$0xff] %v773
                %v775 = vld [vmem:[%s763 + $0x28] sm:$0xff]
                %776 = vst [vmem:[%s764 + $0x48] sm:$0xff] %v775
                %v777 = vld [vmem:[%s763 + $0x30] sm:$0xff]
                %778 = vst [vmem:[%s764 + $0x50] sm:$0xff] %v777
                %v779 = vld [vmem:[%s763 + $0x38] sm:$0xff]
                %780 = vst [vmem:[%s764 + $0x58] sm:$0xff] %v779
                %v781 = vld [vmem:[%s763 + $0x40] sm:$0xff]
                %782 = vst [vmem:[%s764 + $0x80] sm:$0xff] %v781
                %v783 = vld [vmem:[%s763 + $0x48] sm:$0xff]
                %784 = vst [vmem:[%s764 + $0x88] sm:$0xff] %v783
                %v785 = vld [vmem:[%s763 + $0x50] sm:$0xff]
                %786 = vst [vmem:[%s764 + $0x90] sm:$0xff] %v785
                %v787 = vld [vmem:[%s763 + $0x58] sm:$0xff]
                %788 = vst [vmem:[%s764 + $0x98] sm:$0xff] %v787
              $region65: #{inpainting_loss_with_gan.15} parent=59 // loop_footer
                %s762 = sadd.s32 1, %s758
              $region66: #{inpainting_loss_with_gan.15} parent=59 // loop_footer_branch
                %757 = sbr.rel target = $region62
              $region67: #{inpainting_loss_with_gan.15} parent=59 // loop_exit
                _
            $region60: #{inpainting_loss_with_gan.15} parent=51 // pred_fallthru
              _
          $region52: #{inpainting_loss_with_gan.15} parent=47 // pred_fallthru
            _
          %825 = vnop
        $region48: #{inpainting_loss_with_gan.15} parent=31 // pred_fallthru
          _
        // Predicated region
        $region83: #{inpainting_loss_with_gan.15} parent=31 // pred_check
          %p826 = pneg %p152
        $region84: #{inpainting_loss_with_gan.15} parent=31 // pred_check_branch
          %828 = sbr.rel (%p826) target = $region86
        $region85: #{inpainting_loss_with_gan.15} parent=31 // pred_region
          %s830 = ssub.s32 16, 16
          %831 = vsyncadd [#allocation4], %s830
          %s833 = sshll.u32 %s4, 4
          %s834 = int_to_ptr.vmem [resolvable:$true] %s833
          %836 = dma.smem_to_vmem [#allocation3], 16, %s834, [#allocation4]
        $region86: #{inpainting_loss_with_gan.15} parent=31 // pred_fallthru
          _
        // Predicated region
        $region87: #{inpainting_loss_with_gan.15} parent=31 // pred_check
          %p837 = pneg %p152
        $region88: #{inpainting_loss_with_gan.15} parent=31 // pred_check_branch
          %839 = sbr.rel (%p837) target = $region90
        $region89: #{inpainting_loss_with_gan.15} parent=31 // pred_region
          %840 = dma.done [#allocation4], 16
        $region90: #{inpainting_loss_with_gan.15} parent=31 // pred_fallthru
          _
        %841 = sfence
      $region32: #{inpainting_loss_with_gan.15} parent=5 // pred_fallthru
        _
      %p842 = scmp.le.s32.totalorder 2, %s12
      // Predicated region
      $region91: #{inpainting_loss_with_gan.15} parent=5 // pred_check
        %p843 = pneg %p842
      $region92: #{inpainting_loss_with_gan.15} parent=5 // pred_check_branch
        %845 = sbr.rel (%p843) target = $region94
      $region93: #{inpainting_loss_with_gan.15} parent=5 // pred_region
        %s846 = ssub.s32 %s12, 2
        // Predicated region
        $region95: #{inpainting_loss_with_gan.15} parent=93 // pred_check
          %p847 = pneg %p137
        $region96: #{inpainting_loss_with_gan.15} parent=93 // pred_check_branch
          %849 = sbr.rel (%p847) target = $region98
        $region97: #{inpainting_loss_with_gan.15} parent=93 // pred_region
          %s850 = sand.u32 %s122, 1
          %s851 = sand.u32 %s122, 1
          %s852 = smul.addr %s851, 96
          %s853 = scalar_lea.vmem [#allocation2], %s852
        $region98: #{inpainting_loss_with_gan.15} parent=93 // pred_fallthru
          _
      $region94: #{inpainting_loss_with_gan.15} parent=5 // pred_fallthru
        _
    $region6: #{inpainting_loss_with_gan.15} parent=1 // loop_footer
      %s16 = sadd.s32 1, %s12
    $region7: #{inpainting_loss_with_gan.15} parent=1 // loop_footer_branch
      %11 = sbr.rel target = $region3
    $region8: #{inpainting_loss_with_gan.15} parent=1 // loop_exit
      _
    %854 = vsyncpa [#allocation4], 1
    %s855 = scalar_lea.sflag [#allocation4], 1
    %856 = vsyncpa %s855, 1

// kernel: inpainting_loss_with_gan.8
$region0: #{inpainting_loss_with_gan.8}
  #allocation0 [shape = 'u32[]', space=smem, size = 0x4, offset = 0x4, fixed_abs, tag = 'smem constant byte address 0x4 - core index']
  #allocation1 [shape = 'u32[144,128]{1,0:T(1,128)}', space=vmem, size = 0x12000, scoped, tag = 'internal scratch']
  #allocation2 [shape = 'f32[1,1]{1,0:T(1,128)S(1)}', space=vmem, size = 0x200, scoped, tag = 'scoped memory for inpainting_loss_with_gan.8']
  %s0 = inlined_call_operand.vmem [shape: f32[2,3,256], index: 0, kind: input, shape index: {}]
  %s1 = inlined_call_operand.vmem [shape: f32[2,1,256], index: 1, kind: input, shape index: {}]
  %s2 = inlined_call_operand.vmem [shape: f32[16,3], index: 2, kind: input, shape index: {}]
  %s3 = inlined_call_operand.vmem [shape: f32[16,3], index: 3, kind: input, shape index: {}]
  %s4 = inlined_call_operand.vmem [shape: f32[16,1], index: 4, kind: input, shape index: {}]
  %s5 = inlined_call_operand.vmem [shape: f32[16,16], index: 5, kind: input, shape index: {}]
  %s6 = inlined_call_operand.vmem [shape: f32[16,1], index: 6, kind: input, shape index: {}]
  %s7 = inlined_call_operand.vmem [shape: f32[16,1], index: 7, kind: input, shape index: {}]
  %s8 = inlined_call_operand.<no memory space> [shape: f32[1,1], index: 8, kind: input, shape index: {}]
  %s9 = inlined_call_operand.hbm [shape: f32[1], index: 9, kind: output, shape index: {}]
  %s10 = sld [smem:[#allocation0]]
  $region73: #{inpainting_loss_with_gan.8} parent=0
    _
  %s12 = ssub.s32 1, %s10
  %s13 = scalar_select 0, %s12, %s10
  %v14 = vstv %s8
  %15 = vst [vmem:[#allocation2] sm:$0x1] %v14
  $region1: #{inpainting_loss_with_gan.8} parent=0
    #allocation3 [shape = 'u8[512]{0}', space=smem, size = 0x200, scoped, tag = 'output window, operand 0, single buffered']
    #allocation4 [shape = 's32[2]{0}', space=sflag, size = 0x8, scoped, tag = 'scoped memory for inpainting_loss_with_gan.8']
    %16 = vsyncpa [#allocation4], 0
    loop: start=0, step=1, limit=4
    $region2: #{inpainting_loss_with_gan.8} parent=1 // loop_pre_header
      _
    $region3: #{inpainting_loss_with_gan.8} parent=1 // loop_header
      %s18 = sphi 0, %s22
      %p19 = scmp.ge.s32.totalorder %s18, 4
      %s25 = sphi 0, %s37
      %s26 = sphi 0, %s33
      %s27 = sphi 0, %s25
      %s28 = sphi 0, %s26
      %s29 = sphi 0, %s27
      %s30 = sphi 0, %s28
      %s42 = sphi 0, %s44
      %s45 = sphi 0, %s42
      %s46 = sphi 0, %s45
      %s62 = sphi 0, %s46
      %s70 = sphi 0, %s72
      %s73 = sphi 0, %s70
      %s74 = sphi 0, %s73
      %s90 = sphi 0, %s74
      %s94 = sphi 0, %s94
      %s96 = sphi 0, %s94
      %s97 = sphi 0, %s96
      %s111 = sphi 0, %s97
      %s115 = sphi 0, %s115
      %s117 = sphi 0, %s115
      %s118 = sphi 0, %s117
      %s132 = sphi 0, %s118
      %s136 = sphi 0, %s136
      %s138 = sphi 0, %s136
      %s139 = sphi 0, %s138
      %s153 = sphi 0, %s139
      %s157 = sphi 0, %s157
      %s159 = sphi 0, %s157
      %s160 = sphi 0, %s159
      %s174 = sphi 0, %s160
      %s178 = sphi 0, %s178
      %s180 = sphi 0, %s178
      %s181 = sphi 0, %s180
      %s195 = sphi 0, %s181
      %s199 = sphi 0, %s199
      %s201 = sphi 0, %s199
      %s202 = sphi 0, %s201
      %s216 = sphi 0, %s202
      %s220 = sphi 0, %s220
      %s222 = sphi 0, %s220
      %s223 = sphi 0, %s222
      %s237 = sphi 0, %s223
      %s241 = sphi 0, %s241
      %s243 = sphi 0, %s241
      %s244 = sphi 0, %s243
      %s258 = sphi 0, %s244
    $region4: #{inpainting_loss_with_gan.8} parent=1 // loop_header_branch
      %21 = sbr.rel (%p19) target = $region8
    $region5: #{inpainting_loss_with_gan.8} parent=1 // loop_body
      %s23 = ssub.s32 %s18, 1
      %s24 = ssub.s32 %s18, 2
      %s31 = sadd.s32 1, %s26
      %p32 = scmp.ge.s32.totalorder %s31, 1
      %s33 = scalar_select %p32, 0, %s31
      %s34 = sadd.s32 1, %s25
      %s35 = scalar_select %p32, %s34, %s25
      %p36 = scmp.ge.s32.totalorder %s35, 2
      %s37 = scalar_select %p36, 0, %s35
      %s38 = ssub.s32 %s25, %s37
      %s39 = ssub.s32 %s26, %s33
      %s40 = sor.u32 %s38, %s39
      %p41 = scmp.eq.s32.totalorder %s40, 0
      %s43 = sadd.s32 %s42, 1
      %s44 = scalar_select %p41, %s42, %s43
      %p47 = pneg %p41
      %p48 = scmp.eq.s32.totalorder %s18, 1
      %p49 = por %p47, %p48
      %p50 = scmp.ne.s32.totalorder %s42, %s45
      %p51 = scmp.eq.s32.totalorder %s18, 0
      %p52 = por %p50, %p51
      %p53 = scmp.ne.s32.totalorder %s42, %s45
      %p54 = scmp.eq.s32.totalorder %s23, 1
      %p55 = por %p53, %p54
      %p56 = scmp.ne.s32.totalorder %s45, %s46
      %p57 = scmp.eq.s32.totalorder %s23, 0
      %p58 = por %p56, %p57
      %p59 = scmp.ne.s32.totalorder %s45, %s46
      %p60 = scmp.eq.s32.totalorder %s24, 1
      %p61 = por %p59, %p60
      %p63 = scmp.ne.s32.totalorder %s46, %s62
      %p64 = scmp.eq.s32.totalorder %s24, 0
      %p65 = por %p63, %p64
      %s66 = ssub.s32 %s25, %s37
      %s67 = ssub.s32 %s26, %s33
      %s68 = sor.u32 %s66, %s67
      %p69 = scmp.eq.s32.totalorder %s68, 0
      %s71 = sadd.s32 %s70, 1
      %s72 = scalar_select %p69, %s70, %s71
      %p75 = pneg %p69
      %p76 = scmp.eq.s32.totalorder %s18, 1
      %p77 = por %p75, %p76
      %p78 = scmp.ne.s32.totalorder %s70, %s73
      %p79 = scmp.eq.s32.totalorder %s18, 0
      %p80 = por %p78, %p79
      %p81 = scmp.ne.s32.totalorder %s70, %s73
      %p82 = scmp.eq.s32.totalorder %s23, 1
      %p83 = por %p81, %p82
      %p84 = scmp.ne.s32.totalorder %s73, %s74
      %p85 = scmp.eq.s32.totalorder %s23, 0
      %p86 = por %p84, %p85
      %p87 = scmp.ne.s32.totalorder %s73, %s74
      %p88 = scmp.eq.s32.totalorder %s24, 1
      %p89 = por %p87, %p88
      %p91 = scmp.ne.s32.totalorder %s74, %s90
      %p92 = scmp.eq.s32.totalorder %s24, 0
      %p93 = por %p91, %p92
      %s95 = sadd.s32 %s94, 1
      %p98 = scmp.eq.s32.totalorder %s18, 1
      %p99 = scmp.ne.s32.totalorder %s94, %s96
      %p100 = scmp.eq.s32.totalorder %s18, 0
      %p101 = por %p99, %p100
      %p102 = scmp.ne.s32.totalorder %s94, %s96
      %p103 = scmp.eq.s32.totalorder %s23, 1
      %p104 = por %p102, %p103
      %p105 = scmp.ne.s32.totalorder %s96, %s97
      %p106 = scmp.eq.s32.totalorder %s23, 0
      %p107 = por %p105, %p106
      %p108 = scmp.ne.s32.totalorder %s96, %s97
      %p109 = scmp.eq.s32.totalorder %s24, 1
      %p110 = por %p108, %p109
      %p112 = scmp.ne.s32.totalorder %s97, %s111
      %p113 = scmp.eq.s32.totalorder %s24, 0
      %p114 = por %p112, %p113
      %s116 = sadd.s32 %s115, 1
      %p119 = scmp.eq.s32.totalorder %s18, 1
      %p120 = scmp.ne.s32.totalorder %s115, %s117
      %p121 = scmp.eq.s32.totalorder %s18, 0
      %p122 = por %p120, %p121
      %p123 = scmp.ne.s32.totalorder %s115, %s117
      %p124 = scmp.eq.s32.totalorder %s23, 1
      %p125 = por %p123, %p124
      %p126 = scmp.ne.s32.totalorder %s117, %s118
      %p127 = scmp.eq.s32.totalorder %s23, 0
      %p128 = por %p126, %p127
      %p129 = scmp.ne.s32.totalorder %s117, %s118
      %p130 = scmp.eq.s32.totalorder %s24, 1
      %p131 = por %p129, %p130
      %p133 = scmp.ne.s32.totalorder %s118, %s132
      %p134 = scmp.eq.s32.totalorder %s24, 0
      %p135 = por %p133, %p134
      %s137 = sadd.s32 %s136, 1
      %p140 = scmp.eq.s32.totalorder %s18, 1
      %p141 = scmp.ne.s32.totalorder %s136, %s138
      %p142 = scmp.eq.s32.totalorder %s18, 0
      %p143 = por %p141, %p142
      %p144 = scmp.ne.s32.totalorder %s136, %s138
      %p145 = scmp.eq.s32.totalorder %s23, 1
      %p146 = por %p144, %p145
      %p147 = scmp.ne.s32.totalorder %s138, %s139
      %p148 = scmp.eq.s32.totalorder %s23, 0
      %p149 = por %p147, %p148
      %p150 = scmp.ne.s32.totalorder %s138, %s139
      %p151 = scmp.eq.s32.totalorder %s24, 1
      %p152 = por %p150, %p151
      %p154 = scmp.ne.s32.totalorder %s139, %s153
      %p155 = scmp.eq.s32.totalorder %s24, 0
      %p156 = por %p154, %p155
      %s158 = sadd.s32 %s157, 1
      %p161 = scmp.eq.s32.totalorder %s18, 1
      %p162 = scmp.ne.s32.totalorder %s157, %s159
      %p163 = scmp.eq.s32.totalorder %s18, 0
      %p164 = por %p162, %p163
      %p165 = scmp.ne.s32.totalorder %s157, %s159
      %p166 = scmp.eq.s32.totalorder %s23, 1
      %p167 = por %p165, %p166
      %p168 = scmp.ne.s32.totalorder %s159, %s160
      %p169 = scmp.eq.s32.totalorder %s23, 0
      %p170 = por %p168, %p169
      %p171 = scmp.ne.s32.totalorder %s159, %s160
      %p172 = scmp.eq.s32.totalorder %s24, 1
      %p173 = por %p171, %p172
      %p175 = scmp.ne.s32.totalorder %s160, %s174
      %p176 = scmp.eq.s32.totalorder %s24, 0
      %p177 = por %p175, %p176
      %s179 = sadd.s32 %s178, 1
      %p182 = scmp.eq.s32.totalorder %s18, 1
      %p183 = scmp.ne.s32.totalorder %s178, %s180
      %p184 = scmp.eq.s32.totalorder %s18, 0
      %p185 = por %p183, %p184
      %p186 = scmp.ne.s32.totalorder %s178, %s180
      %p187 = scmp.eq.s32.totalorder %s23, 1
      %p188 = por %p186, %p187
      %p189 = scmp.ne.s32.totalorder %s180, %s181
      %p190 = scmp.eq.s32.totalorder %s23, 0
      %p191 = por %p189, %p190
      %p192 = scmp.ne.s32.totalorder %s180, %s181
      %p193 = scmp.eq.s32.totalorder %s24, 1
      %p194 = por %p192, %p193
      %p196 = scmp.ne.s32.totalorder %s181, %s195
      %p197 = scmp.eq.s32.totalorder %s24, 0
      %p198 = por %p196, %p197
      %s200 = sadd.s32 %s199, 1
      %p203 = scmp.eq.s32.totalorder %s18, 1
      %p204 = scmp.ne.s32.totalorder %s199, %s201
      %p205 = scmp.eq.s32.totalorder %s18, 0
      %p206 = por %p204, %p205
      %p207 = scmp.ne.s32.totalorder %s199, %s201
      %p208 = scmp.eq.s32.totalorder %s23, 1
      %p209 = por %p207, %p208
      %p210 = scmp.ne.s32.totalorder %s201, %s202
      %p211 = scmp.eq.s32.totalorder %s23, 0
      %p212 = por %p210, %p211
      %p213 = scmp.ne.s32.totalorder %s201, %s202
      %p214 = scmp.eq.s32.totalorder %s24, 1
      %p215 = por %p213, %p214
      %p217 = scmp.ne.s32.totalorder %s202, %s216
      %p218 = scmp.eq.s32.totalorder %s24, 0
      %p219 = por %p217, %p218
      %s221 = sadd.s32 %s220, 1
      %p224 = scmp.eq.s32.totalorder %s18, 1
      %p225 = scmp.ne.s32.totalorder %s220, %s222
      %p226 = scmp.eq.s32.totalorder %s18, 0
      %p227 = por %p225, %p226
      %p228 = scmp.ne.s32.totalorder %s220, %s222
      %p229 = scmp.eq.s32.totalorder %s23, 1
      %p230 = por %p228, %p229
      %p231 = scmp.ne.s32.totalorder %s222, %s223
      %p232 = scmp.eq.s32.totalorder %s23, 0
      %p233 = por %p231, %p232
      %p234 = scmp.ne.s32.totalorder %s222, %s223
      %p235 = scmp.eq.s32.totalorder %s24, 1
      %p236 = por %p234, %p235
      %p238 = scmp.ne.s32.totalorder %s223, %s237
      %p239 = scmp.eq.s32.totalorder %s24, 0
      %p240 = por %p238, %p239
      %s242 = sadd.s32 %s241, 1
      %p245 = scmp.eq.s32.totalorder %s18, 1
      %p246 = scmp.ne.s32.totalorder %s241, %s243
      %p247 = scmp.eq.s32.totalorder %s18, 0
      %p248 = por %p246, %p247
      %p249 = scmp.ne.s32.totalorder %s241, %s243
      %p250 = scmp.eq.s32.totalorder %s23, 1
      %p251 = por %p249, %p250
      %p252 = scmp.ne.s32.totalorder %s243, %s244
      %p253 = scmp.eq.s32.totalorder %s23, 0
      %p254 = por %p252, %p253
      %p255 = scmp.ne.s32.totalorder %s243, %s244
      %p256 = scmp.eq.s32.totalorder %s24, 1
      %p257 = por %p255, %p256
      %p259 = scmp.ne.s32.totalorder %s244, %s258
      %p260 = scmp.eq.s32.totalorder %s24, 0
      %p261 = por %p259, %p260
      %p262 = scmp.le.s32.totalorder 1, %s18
      %p263 = scmp.lt.s32.totalorder %s18, 3
      %p264 = pnand %p262, %p263
      %p265 = pneg %p264
      // Predicated region
      $region9: #{inpainting_loss_with_gan.8} parent=5 // pred_check
        _
      $region10: #{inpainting_loss_with_gan.8} parent=5 // pred_check_branch
        %267 = sbr.rel (%p264) target = $region12
      $region11: #{inpainting_loss_with_gan.8} parent=5 // pred_region
        %s268 = ssub.s32 %s18, 1
        // Predicated region
        $region13: #{inpainting_loss_with_gan.8} parent=11 // pred_check
          %p269 = pneg %p107
        $region14: #{inpainting_loss_with_gan.8} parent=11 // pred_check_branch
          %271 = sbr.rel (%p269) target = $region16
        $region15: #{inpainting_loss_with_gan.8} parent=11 // pred_region
          _
        $region16: #{inpainting_loss_with_gan.8} parent=11 // pred_fallthru
          _
        // Predicated region
        $region17: #{inpainting_loss_with_gan.8} parent=11 // pred_check
          %p272 = pneg %p128
        $region18: #{inpainting_loss_with_gan.8} parent=11 // pred_check_branch
          %274 = sbr.rel (%p272) target = $region20
        $region19: #{inpainting_loss_with_gan.8} parent=11 // pred_region
          _
        $region20: #{inpainting_loss_with_gan.8} parent=11 // pred_fallthru
          _
        // Predicated region
        $region21: #{inpainting_loss_with_gan.8} parent=11 // pred_check
          %p275 = pneg %p149
        $region22: #{inpainting_loss_with_gan.8} parent=11 // pred_check_branch
          %277 = sbr.rel (%p275) target = $region24
        $region23: #{inpainting_loss_with_gan.8} parent=11 // pred_region
          _
        $region24: #{inpainting_loss_with_gan.8} parent=11 // pred_fallthru
          _
        // Predicated region
        $region25: #{inpainting_loss_with_gan.8} parent=11 // pred_check
          %p278 = pneg %p170
        $region26: #{inpainting_loss_with_gan.8} parent=11 // pred_check_branch
          %280 = sbr.rel (%p278) target = $region28
        $region27: #{inpainting_loss_with_gan.8} parent=11 // pred_region
          _
        $region28: #{inpainting_loss_with_gan.8} parent=11 // pred_fallthru
          _
        // Predicated region
        $region29: #{inpainting_loss_with_gan.8} parent=11 // pred_check
          %p281 = pneg %p191
        $region30: #{inpainting_loss_with_gan.8} parent=11 // pred_check_branch
          %283 = sbr.rel (%p281) target = $region32
        $region31: #{inpainting_loss_with_gan.8} parent=11 // pred_region
          _
        $region32: #{inpainting_loss_with_gan.8} parent=11 // pred_fallthru
          _
        // Predicated region
        $region33: #{inpainting_loss_with_gan.8} parent=11 // pred_check
          %p284 = pneg %p212
        $region34: #{inpainting_loss_with_gan.8} parent=11 // pred_check_branch
          %286 = sbr.rel (%p284) target = $region36
        $region35: #{inpainting_loss_with_gan.8} parent=11 // pred_region
          _
        $region36: #{inpainting_loss_with_gan.8} parent=11 // pred_fallthru
          _
        // Predicated region
        $region37: #{inpainting_loss_with_gan.8} parent=11 // pred_check
          %p287 = pneg %p233
        $region38: #{inpainting_loss_with_gan.8} parent=11 // pred_check_branch
          %289 = sbr.rel (%p287) target = $region40
        $region39: #{inpainting_loss_with_gan.8} parent=11 // pred_region
          _
        $region40: #{inpainting_loss_with_gan.8} parent=11 // pred_fallthru
          _
      $region12: #{inpainting_loss_with_gan.8} parent=5 // pred_fallthru
        _
      %p290 = scmp.lt.s32.totalorder %s18, 2
      // Predicated region
      $region41: #{inpainting_loss_with_gan.8} parent=5 // pred_check
        %p291 = pneg %p290
      $region42: #{inpainting_loss_with_gan.8} parent=5 // pred_check_branch
        %293 = sbr.rel (%p291) target = $region44
      $region43: #{inpainting_loss_with_gan.8} parent=5 // pred_region
        // Predicated region
        $region45: #{inpainting_loss_with_gan.8} parent=43 // pred_check
          %p294 = pneg %p52
        $region46: #{inpainting_loss_with_gan.8} parent=43 // pred_check_branch
          %296 = sbr.rel (%p294) target = $region48
        $region47: #{inpainting_loss_with_gan.8} parent=43 // pred_region
          %s297 = smul.u32 2, %s26
          %p298 = scmp.lt.s32.totalorder %s25, 1
          %s299 = scalar_select %p298, %s25, 1
          %p300 = scmp.lt.s32.totalorder %s297, 1
          %s301 = scalar_select %p300, %s297, 1
          %s302 = smul.addr %s299, 2
          %s303 = sadd.s32 %s301, %s302
          %s304 = smul.addr %s303, 4
          %s305 = scalar_lea.vmem %s0, %s304
          %s306 = smul.u32 2, %s26
        $region48: #{inpainting_loss_with_gan.8} parent=43 // pred_fallthru
          _
        // Predicated region
        $region49: #{inpainting_loss_with_gan.8} parent=43 // pred_check
          %p307 = pneg %p80
        $region50: #{inpainting_loss_with_gan.8} parent=43 // pred_check_branch
          %309 = sbr.rel (%p307) target = $region52
        $region51: #{inpainting_loss_with_gan.8} parent=43 // pred_region
          %s310 = smul.u32 2, %s26
          %p311 = scmp.lt.s32.totalorder %s25, 1
          %s312 = scalar_select %p311, %s25, 1
          %p313 = scmp.lt.s32.totalorder %s310, 1
          %s314 = scalar_select %p313, %s310, 1
          %s315 = smul.addr %s312, 2
          %s316 = sadd.s32 %s314, %s315
          %s317 = scalar_lea.vmem %s1, %s316
          %s318 = smul.u32 2, %s26
        $region52: #{inpainting_loss_with_gan.8} parent=43 // pred_fallthru
          _
      $region44: #{inpainting_loss_with_gan.8} parent=5 // pred_fallthru
        _
      %p319 = scmp.le.s32.totalorder 1, %s18
      %p320 = scmp.lt.s32.totalorder %s18, 3
      %p321 = pnand %p319, %p320
      %p322 = pneg %p321
      // Predicated region
      $region53: #{inpainting_loss_with_gan.8} parent=5 // pred_check
        _
      $region54: #{inpainting_loss_with_gan.8} parent=5 // pred_check_branch
        %324 = sbr.rel (%p321) target = $region56
      $region55: #{inpainting_loss_with_gan.8} parent=5 // pred_region
        %s325 = ssub.s32 %s18, 1
        %s326 = smul.u32 2, %s28
        %p327 = scmp.lt.s32.totalorder %s27, 1
        %s328 = scalar_select %p327, %s27, 1
        %p329 = scmp.lt.s32.totalorder %s326, 1
        %s330 = scalar_select %p329, %s326, 1
        %s331 = smul.addr %s328, 2
        %s332 = sadd.s32 %s330, %s331
        %s333 = smul.addr %s332, 4
        %s334 = scalar_lea.vmem %s0, %s333
        %p335 = pneg %p58
        %p336 = pneg %p55
        %s337 = smul.u32 2, %s28
        %p338 = scmp.lt.s32.totalorder %s27, 1
        %s339 = scalar_select %p338, %s27, 1
        %p340 = scmp.lt.s32.totalorder %s337, 1
        %s341 = scalar_select %p340, %s337, 1
        %s342 = smul.addr %s339, 2
        %s343 = sadd.s32 %s341, %s342
        %s344 = scalar_lea.vmem %s1, %s343
        %p345 = pneg %p86
        %p346 = pneg %p83
        %p347 = pneg %p107
        %p348 = pneg %p104
        %p349 = pneg %p128
        %p350 = pneg %p125
        %p351 = pneg %p149
        %p352 = pneg %p146
        %p353 = pneg %p170
        %p354 = pneg %p167
        %p355 = pneg %p191
        %p356 = pneg %p188
        %p357 = pneg %p212
        %p358 = pneg %p209
        %p359 = pneg %p233
        %p360 = pneg %p230
        %p361 = pneg %p254
        %p362 = pneg %p251
        %s363 = smul.u32 2, %s28
        %p364 = scmp.lt.s32.totalorder %s27, 1
        %s365 = scalar_select %p364, %s27, 1
        %p366 = scmp.lt.s32.totalorder %s363, 1
        %s367 = scalar_select %p366, %s363, 1
        %s368 = smul.addr %s365, 2
        %s369 = sadd.s32 %s367, %s368
        %s370 = smul.addr %s369, 4
        %s371 = scalar_lea.vmem %s0, %s370
        %s372 = smul.u32 2, %s28
        %s373 = smul.u32 2, %s28
        %p374 = scmp.lt.s32.totalorder %s27, 1
        %s375 = scalar_select %p374, %s27, 1
        %p376 = scmp.lt.s32.totalorder %s373, 1
        %s377 = scalar_select %p376, %s373, 1
        %s378 = smul.addr %s375, 2
        %s379 = sadd.s32 %s377, %s378
        %s380 = scalar_lea.vmem %s1, %s379
        %s381 = smul.u32 2, %s28
        %p382 = scmp.eq.s32.totalorder %s27, 0
        %p383 = scmp.eq.s32.totalorder %s28, 0
        %p384 = pnand %p382, %p383
        %p385 = pneg %p384
        // Predicated region
        $region57: #{inpainting_loss_with_gan.8} parent=55 // pred_check
          _
        $region58: #{inpainting_loss_with_gan.8} parent=55 // pred_check_branch
          %387 = sbr.rel (%p384) target = $region60
        $region59: #{inpainting_loss_with_gan.8} parent=55 // pred_region
          %s388 = scalar_lea.smem [#allocation3], 0
          %389 = sst [smem:[%s388]] 0.0
        $region60: #{inpainting_loss_with_gan.8} parent=55 // pred_fallthru
          _
        %v390 = vld [vmem:[%s371] sm:$0x77]
        %v391 = vld [vmem:[%s380] sm:$0x3]
        %v392 = vld [vmem:[%s2] sm:$0xff]
        %v393 = vld [vmem:[%s2 + $0x8] sm:$0xff]
        %v395 = vlaneseq
        %v396 = vshrl.u32 %v395, 7
        %v397 = vsub.s32 0, %v396
        %v398 = vrot.slane %v391, %v397
        %v399 = vlaneseq
        %v400 = vshrl.u32 %v399, 7
        %v401 = vsub.s32 1, %v400
        %v402 = vrot.slane %v391, %v401
        %v403 = vcombine.low %v398, %v402
        %v405 = vmul.f32 %v390, %v403
        %v406 = vld [vmem:[%s3] sm:$0xff]
        %v407 = vld [vmem:[%s3 + $0x8] sm:$0xff]
        %v408 = vsub.f32 1.0, %v391
        %v410 = vlaneseq
        %v411 = vshrl.u32 %v410, 7
        %v412 = vsub.s32 0, %v411
        %v413 = vrot.slane %v408, %v412
        %v414 = vlaneseq
        %v415 = vshrl.u32 %v414, 7
        %v416 = vsub.s32 1, %v415
        %v417 = vrot.slane %v408, %v416
        %v418 = vcombine.low %v413, %v417
        %v420 = vmul.f32 %v390, %v418
        %v422 = vcombine.high %v420, %v420
        %vm423 = vcmask 23552
        %v425 = vsel %vm423, %v406, 0
        %v428 = vsel %vm423, %v407, 0
        %vm430 = vcmask 1042432
        %v431 = vsel %vm430, %v420, 0
        %v433 = vsel %vm430, %v422, 0
        %435 = vmatprep.subr.mxu0 %v433
        %436 = vmatpush1.msra.mxu0 %v431
        %437 = vmatprep.subr.mxu0 0.0
        %438 = vmatpush1.msra.mxu0 0.0
        %439 = vmatprep.subr.mxu0 0.0
        %440 = vmatpush1.msra.mxu0 0.0
        %441 = vmatprep.subr.mxu0 0.0
        %442 = vmatpush1.msra.mxu0 0.0
        %443 = vmatprep.subr.mxu0 0.0
        %444 = vmatpush1.msra.mxu0 0.0
        %445 = vmatprep.subr.mxu0 0.0
        %446 = vmatpush1.msra.mxu0 0.0
        %447 = vmatprep.subr.mxu0 0.0
        %448 = vmatpush1.msra.mxu0 0.0
        %449 = vmatprep.subr.mxu0 0.0
        %450 = vmatpush1.msra.mxu0 0.0
        %451 = vmatprep.subr.mxu0 0.0
        %452 = vmatpush1.msra.mxu0 0.0
        %453 = vmatprep.subr.mxu0 0.0
        %454 = vmatpush1.msra.mxu0 0.0
        %455 = vmatprep.subr.mxu0 0.0
        %456 = vmatpush1.msra.mxu0 0.0
        %457 = vmatprep.subr.mxu0 0.0
        %458 = vmatpush1.msra.mxu0 0.0
        %459 = vmatprep.subr.mxu0 0.0
        %460 = vmatpush1.msra.mxu0 0.0
        %461 = vmatprep.subr.mxu0 0.0
        %462 = vmatpush1.msra.mxu0 0.0
        %463 = vmatprep.subr.mxu0 0.0
        %464 = vmatpush1.msra.mxu0 0.0
        %465 = vmatprep.subr.mxu0 0.0
        %466 = vmatpush1.msra.mxu0 0.0
        %467 = vmatprep.subr.mxu0 0.0
        %468 = vmatpush1.msra.mxu0 0.0
        %469 = vmatprep.subr.mxu0 0.0
        %470 = vmatpush1.msra.mxu0 0.0
        %471 = vmatprep.subr.mxu0 0.0
        %472 = vmatpush1.msra.mxu0 0.0
        %473 = vmatprep.subr.mxu0 0.0
        %474 = vmatpush1.msra.mxu0 0.0
        %475 = vmatprep.subr.mxu0 0.0
        %476 = vmatpush1.msra.mxu0 0.0
        %477 = vmatprep.subr.mxu0 0.0
        %478 = vmatpush1.msra.mxu0 0.0
        %479 = vmatprep.subr.mxu0 0.0
        %480 = vmatpush1.msra.mxu0 0.0
        %481 = vmatprep.subr.mxu0 0.0
        %482 = vmatpush1.msra.mxu0 0.0
        %483 = vmatprep.subr.mxu0 0.0
        %484 = vmatpush1.msra.mxu0 0.0
        %485 = vmatprep.subr.mxu0 0.0
        %486 = vmatpush1.msra.mxu0 0.0
        %487 = vmatprep.subr.mxu0 0.0
        %488 = vmatpush1.msra.mxu0 0.0
        %489 = vmatprep.subr.mxu0 0.0
        %490 = vmatpush1.msra.mxu0 0.0
        %491 = vmatprep.subr.mxu0 0.0
        %492 = vmatpush1.msra.mxu0 0.0
        %493 = vmatprep.subr.mxu0 0.0
        %494 = vmatpush1.msra.mxu0 0.0
        %495 = vmatprep.subr.mxu0 0.0
        %496 = vmatpush1.msra.mxu0 0.0
        %497 = vmatprep.subr.mxu0 0.0
        %498 = vmatpush1.msra.mxu0 0.0
        %499 = vmatprep.mubr.f32.mxu0 0.0
        %500 = vmatmul.mubr.f32.gmra.mrb[0].mxu0 %v425
        %v501 = vpop.f32.mrb[0].mxu0
        %v502 = vadd.f32 0.0, %v501
        %v503 = vpop.f32.mrb[0].mxu0
        %v504 = vadd.f32 0.0, %v503
        %505 = vmatprep.mubr.f32.mxu0 0.0
        %506 = vmatmul.mubr.f32.gmra.mrb[0].mxu0 %v428
        %v507 = vpop.f32.mrb[0].mxu0
        %v508 = vadd.f32 0.0, %v507
        %v509 = vpop.f32.mrb[0].mxu0
        %v510 = vadd.f32 0.0, %v509
        %511 = vdwg.mxu0
        %v513 = vcombine.high %v405, %v405
        %v515 = vsel %vm423, %v392, 0
        %v518 = vsel %vm423, %v393, 0
        %v520 = vsel %vm430, %v405, 0
        %v522 = vsel %vm430, %v513, 0
        %524 = vmatprep.subr.mxu0 %v522
        %525 = vmatpush1.msra.mxu0 %v520
        %526 = vmatprep.subr.mxu0 0.0
        %527 = vmatpush1.msra.mxu0 0.0
        %528 = vmatprep.subr.mxu0 0.0
        %529 = vmatpush1.msra.mxu0 0.0
        %530 = vmatprep.subr.mxu0 0.0
        %531 = vmatpush1.msra.mxu0 0.0
        %532 = vmatprep.subr.mxu0 0.0
        %533 = vmatpush1.msra.mxu0 0.0
        %534 = vmatprep.subr.mxu0 0.0
        %535 = vmatpush1.msra.mxu0 0.0
        %536 = vmatprep.subr.mxu0 0.0
        %537 = vmatpush1.msra.mxu0 0.0
        %538 = vmatprep.subr.mxu0 0.0
        %539 = vmatpush1.msra.mxu0 0.0
        %540 = vmatprep.subr.mxu0 0.0
        %541 = vmatpush1.msra.mxu0 0.0
        %542 = vmatprep.subr.mxu0 0.0
        %543 = vmatpush1.msra.mxu0 0.0
        %544 = vmatprep.subr.mxu0 0.0
        %545 = vmatpush1.msra.mxu0 0.0
        %546 = vmatprep.subr.mxu0 0.0
        %547 = vmatpush1.msra.mxu0 0.0
        %548 = vmatprep.subr.mxu0 0.0
        %549 = vmatpush1.msra.mxu0 0.0
        %550 = vmatprep.subr.mxu0 0.0
        %551 = vmatpush1.msra.mxu0 0.0
        %552 = vmatprep.subr.mxu0 0.0
        %553 = vmatpush1.msra.mxu0 0.0
        %554 = vmatprep.subr.mxu0 0.0
        %555 = vmatpush1.msra.mxu0 0.0
        %556 = vmatprep.subr.mxu0 0.0
        %557 = vmatpush1.msra.mxu0 0.0
        %558 = vmatprep.subr.mxu0 0.0
        %559 = vmatpush1.msra.mxu0 0.0
        %560 = vmatprep.subr.mxu0 0.0
        %561 = vmatpush1.msra.mxu0 0.0
        %562 = vmatprep.subr.mxu0 0.0
        %563 = vmatpush1.msra.mxu0 0.0
        %564 = vmatprep.subr.mxu0 0.0
        %565 = vmatpush1.msra.mxu0 0.0
        %566 = vmatprep.subr.mxu0 0.0
        %567 = vmatpush1.msra.mxu0 0.0
        %568 = vmatprep.subr.mxu0 0.0
        %569 = vmatpush1.msra.mxu0 0.0
        %570 = vmatprep.subr.mxu0 0.0
        %571 = vmatpush1.msra.mxu0 0.0
        %572 = vmatprep.subr.mxu0 0.0
        %573 = vmatpush1.msra.mxu0 0.0
        %574 = vmatprep.subr.mxu0 0.0
        %575 = vmatpush1.msra.mxu0 0.0
        %576 = vmatprep.subr.mxu0 0.0
        %577 = vmatpush1.msra.mxu0 0.0
        %578 = vmatprep.subr.mxu0 0.0
        %579 = vmatpush1.msra.mxu0 0.0
        %580 = vmatprep.subr.mxu0 0.0
        %581 = vmatpush1.msra.mxu0 0.0
        %582 = vmatprep.subr.mxu0 0.0
        %583 = vmatpush1.msra.mxu0 0.0
        %584 = vmatprep.subr.mxu0 0.0
        %585 = vmatpush1.msra.mxu0 0.0
        %586 = vmatprep.subr.mxu0 0.0
        %587 = vmatpush1.msra.mxu0 0.0
        %588 = vmatprep.mubr.f32.mxu0 0.0
        %589 = vmatmul.mubr.f32.gmra.mrb[0].mxu0 %v515
        %v590 = vpop.f32.mrb[0].mxu0
        %v591 = vadd.f32 %v502, %v590
        %v592 = vpop.f32.mrb[0].mxu0
        %v593 = vadd.f32 %v504, %v592
        %594 = vmatprep.mubr.f32.mxu0 0.0
        %595 = vmatmul.mubr.f32.gmra.mrb[0].mxu0 %v518
        %v596 = vpop.f32.mrb[0].mxu0
        %v597 = vadd.f32 %v508, %v596
        %v598 = vpop.f32.mrb[0].mxu0
        %v599 = vadd.f32 %v510, %v598
        %600 = vdwg.mxu0
        %v601 = vld [vmem:[%s4] sm:$0xff]
        %v602 = vld [vmem:[%s4 + $0x8] sm:$0xff]
        %604 = vset.pattern.permute.xlu0 0
        %605 = vperm.xlu0 %604, %v601
        %v606 = vpop.permute.xlu0 %605
        %609 = vset.pattern.permute.xlu0 0
        %610 = vperm.xlu0 %609, %v602
        %v611 = vpop.permute.xlu0 %610
        %v613 = vadd.f32 %v591, %v606
        %v614 = vadd.f32 %v593, %v606
        %v615 = vadd.f32 %v597, %v611
        %v616 = vadd.f32 %v599, %v611
        %vm617 = vcmp.gt.f32.partialorder %v613, 0.0
        %vm618 = vcmp.gt.f32.partialorder %v614, 0.0
        %vm619 = vcmp.gt.f32.partialorder %v615, 0.0
        %vm620 = vcmp.gt.f32.partialorder %v616, 0.0
        %v621 = vmul.f32 %v613, 0.2
        %v622 = vmul.f32 %v614, 0.2
        %v623 = vmul.f32 %v615, 0.2
        %v624 = vmul.f32 %v616, 0.2
        %v625 = vsel %vm617, %v613, %v621
        %v626 = vsel %vm618, %v614, %v622
        %v627 = vsel %vm619, %v615, %v623
        %v628 = vsel %vm620, %v616, %v624
        %v629 = vld [vmem:[%s5] sm:$0xff]
        %v630 = vld [vmem:[%s5 + $0x8] sm:$0xff]
        %v631 = vld [vmem:[%s6] sm:$0xff]
        %v632 = vld [vmem:[%s6 + $0x8] sm:$0xff]
        %634 = vset.pattern.permute.xlu0 0
        %635 = vperm.xlu0 %634, %v631
        %v636 = vpop.permute.xlu0 %635
        %639 = vset.pattern.permute.xlu0 0
        %640 = vperm.xlu0 %639, %v632
        %v641 = vpop.permute.xlu0 %640
        %vm643 = vcmask 130048
        %v645 = vsel %vm643, %v629, 0
        %v648 = vsel %vm643, %v630, 0
        %650 = vmatprep.subr.mxu0 %v626
        %651 = vmatpush1.msra.mxu0 %v625
        %652 = vmatprep.subr.mxu0 %v628
        %653 = vmatpush1.msra.mxu0 %v627
        %654 = vmatprep.subr.mxu0 0.0
        %655 = vmatpush1.msra.mxu0 0.0
        %656 = vmatprep.subr.mxu0 0.0
        %657 = vmatpush1.msra.mxu0 0.0
        %658 = vmatprep.subr.mxu0 0.0
        %659 = vmatpush1.msra.mxu0 0.0
        %660 = vmatprep.subr.mxu0 0.0
        %661 = vmatpush1.msra.mxu0 0.0
        %662 = vmatprep.subr.mxu0 0.0
        %663 = vmatpush1.msra.mxu0 0.0
        %664 = vmatprep.subr.mxu0 0.0
        %665 = vmatpush1.msra.mxu0 0.0
        %666 = vmatprep.subr.mxu0 0.0
        %667 = vmatpush1.msra.mxu0 0.0
        %668 = vmatprep.subr.mxu0 0.0
        %669 = vmatpush1.msra.mxu0 0.0
        %670 = vmatprep.subr.mxu0 0.0
        %671 = vmatpush1.msra.mxu0 0.0
        %672 = vmatprep.subr.mxu0 0.0
        %673 = vmatpush1.msra.mxu0 0.0
        %674 = vmatprep.subr.mxu0 0.0
        %675 = vmatpush1.msra.mxu0 0.0
        %676 = vmatprep.subr.mxu0 0.0
        %677 = vmatpush1.msra.mxu0 0.0
        %678 = vmatprep.subr.mxu0 0.0
        %679 = vmatpush1.msra.mxu0 0.0
        %680 = vmatprep.subr.mxu0 0.0
        %681 = vmatpush1.msra.mxu0 0.0
        %682 = vmatprep.subr.mxu0 0.0
        %683 = vmatpush1.msra.mxu0 0.0
        %684 = vmatprep.subr.mxu0 0.0
        %685 = vmatpush1.msra.mxu0 0.0
        %686 = vmatprep.subr.mxu0 0.0
        %687 = vmatpush1.msra.mxu0 0.0
        %688 = vmatprep.subr.mxu0 0.0
        %689 = vmatpush1.msra.mxu0 0.0
        %690 = vmatprep.subr.mxu0 0.0
        %691 = vmatpush1.msra.mxu0 0.0
        %692 = vmatprep.subr.mxu0 0.0
        %693 = vmatpush1.msra.mxu0 0.0
        %694 = vmatprep.subr.mxu0 0.0
        %695 = vmatpush1.msra.mxu0 0.0
        %696 = vmatprep.subr.mxu0 0.0
        %697 = vmatpush1.msra.mxu0 0.0
        %698 = vmatprep.subr.mxu0 0.0
        %699 = vmatpush1.msra.mxu0 0.0
        %700 = vmatprep.subr.mxu0 0.0
        %701 = vmatpush1.msra.mxu0 0.0
        %702 = vmatprep.subr.mxu0 0.0
        %703 = vmatpush1.msra.mxu0 0.0
        %704 = vmatprep.subr.mxu0 0.0
        %705 = vmatpush1.msra.mxu0 0.0
        %706 = vmatprep.subr.mxu0 0.0
        %707 = vmatpush1.msra.mxu0 0.0
        %708 = vmatprep.subr.mxu0 0.0
        %709 = vmatpush1.msra.mxu0 0.0
        %710 = vmatprep.subr.mxu0 0.0
        %711 = vmatpush1.msra.mxu0 0.0
        %712 = vmatprep.subr.mxu0 0.0
        %713 = vmatpush1.msra.mxu0 0.0
        %714 = vmatprep.mubr.f32.mxu0 0.0
        %715 = vmatmul.mubr.f32.gmra.mrb[0].mxu0 %v645
        %v716 = vpop.f32.mrb[0].mxu0
        %v717 = vadd.f32 %v636, %v716
        %v718 = vpop.f32.mrb[0].mxu0
        %v719 = vadd.f32 %v636, %v718
        %720 = vmatprep.mubr.f32.mxu0 0.0
        %721 = vmatmul.mubr.f32.gmra.mrb[0].mxu0 %v648
        %v722 = vpop.f32.mrb[0].mxu0
        %v723 = vadd.f32 %v641, %v722
        %v724 = vpop.f32.mrb[0].mxu0
        %v725 = vadd.f32 %v641, %v724
        %726 = vdwg.mxu0
        %vm727 = vcmp.gt.f32.partialorder %v717, 0.0
        %vm728 = vcmp.gt.f32.partialorder %v719, 0.0
        %vm729 = vcmp.gt.f32.partialorder %v723, 0.0
        %vm730 = vcmp.gt.f32.partialorder %v725, 0.0
        %v731 = vmul.f32 %v717, 0.2
        %v732 = vmul.f32 %v719, 0.2
        %v733 = vmul.f32 %v723, 0.2
        %v734 = vmul.f32 %v725, 0.2
        %v735 = vsel %vm727, %v717, %v731
        %v736 = vsel %vm728, %v719, %v732
        %v737 = vsel %vm729, %v723, %v733
        %v738 = vsel %vm730, %v725, %v734
        %v739 = vld [vmem:[%s7] sm:$0xff]
        %v740 = vld [vmem:[%s7 + $0x8] sm:$0xff]
        %742 = vset.pattern.permute.xlu0 0
        %743 = vperm.xlu0 %742, %v739
        %v744 = vpop.permute.xlu0 %743
        %747 = vset.pattern.permute.xlu0 0
        %748 = vperm.xlu0 %747, %v740
        %v749 = vpop.permute.xlu0 %748
        %v751 = vmul.f32 %v744, %v735
        %v752 = vmul.f32 %v744, %v736
        %v753 = vmul.f32 %v749, %v737
        %v754 = vmul.f32 %v749, %v738
        %v755 = vadd.f32 %v751, %v753
        %v756 = vrot.slane %v755, 4
        %v757 = vadd.f32 %v755, %v756
        %v758 = vrot.slane %v757, 2
        %v759 = vadd.f32 %v757, %v758
        %v760 = vrot.slane %v759, 1
        %v761 = vadd.f32 %v759, %v760
        %v762 = vadd.f32 %v752, %v754
        %v763 = vrot.slane %v762, 4
        %v764 = vadd.f32 %v762, %v763
        %v765 = vrot.slane %v764, 2
        %v766 = vadd.f32 %v764, %v765
        %v767 = vrot.slane %v766, 1
        %v768 = vadd.f32 %v766, %v767
        %v769 = vld [vmem:[#allocation2] sm:$0x1]
        %771 = vset.pattern.permute.xlu0 0
        %772 = vperm.xlu0 %771, %v769
        %v773 = vpop.permute.xlu0 %772
        %v775 = vlaneseq
        %v776 = vshrl.u32 %v775, 7
        %v777 = vsub.s32 0, %v776
        %v778 = vrot.slane %v773, %v777
        %v779 = vadd.f32 %v761, %v778
        %v780 = vadd.f32 %v768, %v778
        %s781 = sld [smem:[#allocation3]]
        %vm782 = vcmask 1040384
        %v783 = vsel %vm782, %v779, 0.0
        %v784 = vsel %vm782, %v780, 0.0
        %v785 = vadd.f32 %v783, %v784
        %786 = vadd.xlane.f32.xlu0 %v785
        %v787 = vpop.xlane.xlu0 %786
        %v788 = vrot.slane %v787, 4
        %v789 = vadd.f32 %v787, %v788
        %v790 = vrot.slane %v789, 2
        %v791 = vadd.f32 %v789, %v790
        %v792 = vrot.slane %v791, 1
        %v793 = vadd.f32 %v791, %v792
        %s794 = vtos %v793
        %s795 = sadd.f32 %s781, %s794
        %s796 = scalar_lea.smem [#allocation3], 0
        %797 = sst [smem:[%s796]] %s795
        // Predicated region
        $region61: #{inpainting_loss_with_gan.8} parent=55 // pred_check
          %p798 = pneg %p251
        $region62: #{inpainting_loss_with_gan.8} parent=55 // pred_check_branch
          %800 = sbr.rel (%p798) target = $region64
        $region63: #{inpainting_loss_with_gan.8} parent=55 // pred_region
          %s802 = ssub.s32 16, 16
          %803 = vsyncadd [#allocation4], %s802
          %806 = dma.smem_to_hbm [#allocation3], 16, %s9, [#allocation4]
        $region64: #{inpainting_loss_with_gan.8} parent=55 // pred_fallthru
          _
        // Predicated region
        $region65: #{inpainting_loss_with_gan.8} parent=55 // pred_check
          %p807 = pneg %p251
        $region66: #{inpainting_loss_with_gan.8} parent=55 // pred_check_branch
          %809 = sbr.rel (%p807) target = $region68
        $region67: #{inpainting_loss_with_gan.8} parent=55 // pred_region
          %810 = dma.done [#allocation4], 16
        $region68: #{inpainting_loss_with_gan.8} parent=55 // pred_fallthru
          _
        %811 = sfence
      $region56: #{inpainting_loss_with_gan.8} parent=5 // pred_fallthru
        _
      %p812 = scmp.le.s32.totalorder 2, %s18
      // Predicated region
      $region69: #{inpainting_loss_with_gan.8} parent=5 // pred_check
        %p813 = pneg %p812
      $region70: #{inpainting_loss_with_gan.8} parent=5 // pred_check_branch
        %815 = sbr.rel (%p813) target = $region72
      $region71: #{inpainting_loss_with_gan.8} parent=5 // pred_region
        %s816 = ssub.s32 %s18, 2
      $region72: #{inpainting_loss_with_gan.8} parent=5 // pred_fallthru
        _
    $region6: #{inpainting_loss_with_gan.8} parent=1 // loop_footer
      %s22 = sadd.s32 1, %s18
    $region7: #{inpainting_loss_with_gan.8} parent=1 // loop_footer_branch
      %17 = sbr.rel target = $region3
    $region8: #{inpainting_loss_with_gan.8} parent=1 // loop_exit
      _
    %817 = vsyncpa [#allocation4], 1
    %s818 = scalar_lea.sflag [#allocation4], 1
    %819 = vsyncpa %s818, 1

</llo_original>
